<compile_context>
chip_gen: v5e
topology: v5e:2x2
jax: 0.10.0
libtpu: 0.0.40
codegen_flags: <defaults>
</compile_context>

<pallas_src>
import functools

import jax
import jax.numpy as jnp
from jax.experimental import pallas as pl
from jax.experimental.pallas import tpu as pltpu

LRELU_SLOPE = 0.2
BN_EPS = 1e-5


# ------------------------------ kernel helpers ------------------------------

def _lrelu(v):
    return jnp.where(v > 0, v, LRELU_SLOPE * v)


def _reflect_pad1(x, h, w):
    """Reflection pad by 1 on the two spatial axes of an (N, h, w, C) tensor."""
    x = jnp.concatenate([x[:, 1:2], x, x[:, h - 2:h - 1]], axis=1)
    x = jnp.concatenate([x[:, :, 1:2], x, x[:, :, w - 2:w - 1]], axis=2)
    return x


def _im2col3(xp, h, w, K):
    """KxK im2col of an already 1-padded (N, h+2, w+2, C) tensor.

    Returns (N, h*w, K*K*C) with columns ordered (ky, kx, c), c minor — this
    matches reshaping HWIO conv weights to (K*K*C, Cout).
    """
    n = xp.shape[0]
    c = xp.shape[-1]
    taps = [xp[:, ky:ky + h, kx:kx + w, :] for ky in range(K) for kx in range(K)]
    return jnp.concatenate(taps, axis=-1).reshape(n, h * w, K * K * c)


def _subsample_even(y, h, w):
    """(N, h, w, C) -> (N, h//2, w//2, C), keeping even rows/cols (stride 2)."""
    y = jnp.concatenate([y[:, i:i + 1] for i in range(0, h, 2)], axis=1)
    y = jnp.concatenate([y[:, :, j:j + 1] for j in range(0, w, 2)], axis=2)
    return y


# --------------------------------- kernel -----------------------------------

def _fused_kernel(x_ref,
                  caS_w1_ref, caS_w2_ref, caT_w1_ref, caT_w2_ref,
                  wS_ref, wT_ref, wE1_ref, wE2_ref,
                  gS_ref, bS_ref, gT_ref, bT_ref,
                  g1_ref, b1_ref, g2_ref, b2_ref,
                  oS_ref, oE_ref, oT_ref,
                  *, N, H, W, Cin, Cskip, Cenc, K):
    HW = H * W
    H2, W2 = H // 2, W // 2
    KKC = K * K * Cin

    x = x_ref[...]                                       # (N, H, W, Cin) f32

    # -- ChannelAttention gates: avg-pool -> 1x1 -> LReLU -> 1x1 -> sigmoid --
    pooled = jnp.mean(x, axis=(1, 2))                    # (N, Cin)

    def ca_gate(w1, w2):
        hh = _lrelu(jnp.dot(pooled, w1, preferred_element_type=jnp.float32))
        aa = jnp.dot(hh, w2, preferred_element_type=jnp.float32)
        return jax.nn.sigmoid(aa)                        # (N, Cin)

    a_S = ca_gate(caS_w1_ref[...], caS_w2_ref[...])
    a_T = ca_gate(caT_w1_ref[...], caT_w2_ref[...])

    # -- reflection pad + single im2col shared by skipS / skipT / enc-conv1 --
    patches = _im2col3(_reflect_pad1(x, H, W), H, W, K)  # (N, HW, KKC)

    # -- gate the patches (VPU), keep the conv weights static for the MXU ----
    def tap_gate(a):
        # (N, Cin) -> (N, 1, K*K*Cin): gate repeated per tap, c minor.
        return jnp.concatenate([a] * (K * K), axis=1)[:, None, :]

    p_flat = patches.reshape(N * HW, KKC)
    pS_flat = (patches * tap_gate(a_S)).reshape(N * HW, KKC)
    pT_flat = (patches * tap_gate(a_T)).reshape(N * HW, KKC)

    yS = jnp.dot(pS_flat, wS_ref[...],
                 preferred_element_type=jnp.float32)     # (N*HW, Cskip)
    yT = jnp.dot(pT_flat, wT_ref[...],
                 preferred_element_type=jnp.float32)     # (N*HW, Cskip)
    yE = jnp.dot(p_flat, wE1_ref[...],
                 preferred_element_type=jnp.float32)     # (N*HW, Cenc)

    # encoder conv1 has stride 2: keep only even output rows/cols (in VMEM)
    yE = _subsample_even(yE.reshape(N, H, W, Cenc), H, W)  # (N, H2, W2, Cenc)
    yE = yE.reshape(N * H2 * W2, Cenc)

    # -- BatchNorm2d (training-mode batch stats, biased var) + LeakyReLU -----
    def bn_lrelu(y, g, b):                               # y:(rows,C) g,b:(1,C)
        mean = jnp.mean(y, axis=0, keepdims=True)
        var = jnp.mean(jnp.square(y - mean), axis=0, keepdims=True)
        return _lrelu((y - mean) * jax.lax.rsqrt(var + BN_EPS) * g + b)

    oS = bn_lrelu(yS, gS_ref[...], bS_ref[...])          # (N*HW,  Cskip)
    oT = bn_lrelu(yT, gT_ref[...], bT_ref[...])
    e1 = bn_lrelu(yE, g1_ref[...], b1_ref[...])          # (N*H2*W2, Cenc)

    # -- encoder conv2 (stride 1) + BN + LReLU, all still in VMEM ------------
    p2 = _im2col3(_reflect_pad1(e1.reshape(N, H2, W2, Cenc), H2, W2), H2, W2, K)
    y2 = jnp.dot(p2.reshape(N * H2 * W2, K * K * Cenc), wE2_ref[...],
                 preferred_element_type=jnp.float32)     # (N*H2*W2, Cenc)
    oE = bn_lrelu(y2, g2_ref[...], b2_ref[...])

    # -- lane-dense stores: (C, H*W) per sample puts spatial on the lane axis
    oS3 = oS.reshape(N, HW, Cskip)
    oT3 = oT.reshape(N, HW, Cskip)
    oE3 = oE.reshape(N, H2 * W2, Cenc)
    for n in range(N):                                   # N small & static
        oS_ref[n] = oS3[n].T
        oT_ref[n] = oT3[n].T
        oE_ref[n] = oE3[n].T


# ------------------------------- JAX wrapper ---------------------------------

def _full_spec(shape):
    nd = len(shape)
    return pl.BlockSpec(shape, lambda i, _nd=nd: (0,) * _nd)


def skips_encoder_skipt_forward(x_nchw, params, kernel_size=3):
    """Forward of SkipS_Encoder_SkipT.  x_nchw: (N, Cin, H, W) float32."""
    # TODO(synk): generalize the in-kernel reflection pad / im2col to kernel_size != 3.
    assert kernel_size == 3, "fused kernel is specialized to kernel_size=3"
    K = kernel_size
    N, Cin, H, W = x_nchw.shape
    H2, W2 = H // 2, W // 2

    pS, pE, pT = params["skipS"], params["encoder"], params["skipT"]
    Cskip = pS["conv_w"].shape[-1]
    Cenc = pE["conv1_w"].shape[-1]
    KKC = K * K * Cin

    # channels-last inside the kernel (Cin on lanes, W on sublanes)
    x = jnp.transpose(x_nchw, (0, 2, 3, 1))

    # HWIO conv weights -> (K*K*Cin, Cout), matching the im2col column order.
    wS = pS["conv_w"].reshape(KKC, Cskip)
    wT = pT["conv_w"].reshape(KKC, Cskip)
    wE1 = pE["conv1_w"].reshape(KKC, Cenc)
    wE2 = pE["conv2_w"].reshape(K * K * Cenc, Cenc)

    kernel = functools.partial(
        _fused_kernel, N=N, H=H, W=W, Cin=Cin, Cskip=Cskip, Cenc=Cenc, K=K)

    ins = (x,
           pS["ca_w1t"], pS["ca_w2t"], pT["ca_w1t"], pT["ca_w2t"],
           wS, wT, wE1, wE2,
           pS["bn_g"], pS["bn_b"], pT["bn_g"], pT["bn_b"],
           pE["bn1_g"], pE["bn1_b"], pE["bn2_g"], pE["bn2_b"])

    oS, oE, oT = pl.pallas_call(
        kernel,
        out_shape=(jax.ShapeDtypeStruct((N, Cskip, H * W), jnp.float32),
                   jax.ShapeDtypeStruct((N, Cenc, H2 * W2), jnp.float32),
                   jax.ShapeDtypeStruct((N, Cskip, H * W), jnp.float32)),
        grid=(1,),
        in_specs=[_full_spec(a.shape) for a in ins],
        out_specs=(_full_spec((N, Cskip, H * W)),
                   _full_spec((N, Cenc, H2 * W2)),
                   _full_spec((N, Cskip, H * W))),
        compiler_params=pltpu.CompilerParams(
            dimension_semantics=("arbitrary",)),
    )(*ins)

    # outputs are already channels-first; just un-flatten the spatial axis.
    return (oS.reshape(N, Cskip, H, W),
            oE.reshape(N, Cenc, H2, W2),
            oT.reshape(N, Cskip, H, W))


# ------------------------- deterministic parameters --------------------------

def make_params(key, Cin, Cskip, Cenc, K):
    """Conv biases are omitted on purpose: with training-mode BatchNorm right
    after each conv, a per-channel bias is exactly cancelled by the mean
    subtraction, so it does not affect the forward output."""
    def norm(k, shape, scale=0.1):
        return (scale * jax.random.normal(k, shape)).astype(jnp.float32)

    Cr = max(Cin // 16, 1)                    # ChannelAttention ratio=16
    k_s, k_e, k_t = jax.random.split(key, 3)

    def make_skip(k):
        ks = jax.random.split(k, 5)
        return {
            "ca_w1t": norm(ks[0], (Cin, Cr)),           # Conv2d(Cin,Cr,1) weight, transposed
            "ca_w2t": norm(ks[1], (Cr, Cin)),           # Conv2d(Cr,Cin,1) weight, transposed
            "conv_w": norm(ks[2], (K, K, Cin, Cskip)),  # HWIO
            "bn_g": 1.0 + norm(ks[3], (1, Cskip)),
            "bn_b": norm(ks[4], (1, Cskip)),
        }

    def make_encoder(k):
        ks = jax.random.split(k, 6)
        return {
            "conv1_w": norm(ks[0], (K, K, Cin, Cenc)),
            "bn1_g": 1.0 + norm(ks[1], (1, Cenc)),
            "bn1_b": norm(ks[2], (1, Cenc)),
            "conv2_w": norm(ks[3], (K, K, Cenc, Cenc)),
            "bn2_g": 1.0 + norm(ks[4], (1, Cenc)),
            "bn2_b": norm(ks[5], (1, Cenc)),
        }

    return {"skipS": make_skip(k_s), "encoder": make_encoder(k_e),
            "skipT": make_skip(k_t)}


if __name__ == "__main__":
    key = jax.random.PRNGKey(0)
    k_x, k_p = jax.random.split(key)

    # in_channel must be >= 16 (ChannelAttention ratio=16)
    N, Cin, H, W = 2, 16, 16, 16
    Cskip, Cenc, K = 8, 16, 3

    x = jax.random.normal(k_x, (N, Cin, H, W), jnp.float32)   # NCHW like PyTorch
    params = make_params(k_p, Cin, Cskip, Cenc, K)

    fwd = jax.jit(functools.partial(skips_encoder_skipt_forward, kernel_size=K))
    skipS, encoder, skipT = fwd(x, params)
    jax.block_until_ready((skipS, encoder, skipT))

    assert skipS.shape == (N, Cskip, H, W)
    assert encoder.shape == (N, Cenc, H // 2, W // 2)
    assert skipT.shape == (N, Cskip, H, W)
    print("KERNEL_OK")
</pallas_src>

<mosaic_0001>
module attributes {stable_mosaic.version = 11 : i64} {
  func.func @_fused_kernel(%arg0: i32, %arg1: memref<2x16x16x16xf32, #tpu.memory_space<vmem>>, %arg2: memref<16x1xf32, #tpu.memory_space<vmem>>, %arg3: memref<1x16xf32, #tpu.memory_space<vmem>>, %arg4: memref<16x1xf32, #tpu.memory_space<vmem>>, %arg5: memref<1x16xf32, #tpu.memory_space<vmem>>, %arg6: memref<144x8xf32, #tpu.memory_space<vmem>>, %arg7: memref<144x8xf32, #tpu.memory_space<vmem>>, %arg8: memref<144x16xf32, #tpu.memory_space<vmem>>, %arg9: memref<144x16xf32, #tpu.memory_space<vmem>>, %arg10: memref<1x8xf32, #tpu.memory_space<vmem>>, %arg11: memref<1x8xf32, #tpu.memory_space<vmem>>, %arg12: memref<1x8xf32, #tpu.memory_space<vmem>>, %arg13: memref<1x8xf32, #tpu.memory_space<vmem>>, %arg14: memref<1x16xf32, #tpu.memory_space<vmem>>, %arg15: memref<1x16xf32, #tpu.memory_space<vmem>>, %arg16: memref<1x16xf32, #tpu.memory_space<vmem>>, %arg17: memref<1x16xf32, #tpu.memory_space<vmem>>, %arg18: memref<2x8x256xf32, #tpu.memory_space<vmem>>, %arg19: memref<2x16x64xf32, #tpu.memory_space<vmem>>, %arg20: memref<2x8x256xf32, #tpu.memory_space<vmem>>) attributes {dimension_semantics = [#tpu.dimension_semantics<arbitrary>], iteration_bounds = array<i64: 1>, scalar_prefetch = 0 : i64, scratch_operands = 0 : i64, tpu.core_type = #tpu.core_type<tc>, window_params = [{pipeline_mode = #tpu.pipeline_mode<synchronous>, transform_indices = @transform_0, window_bounds = array<i64: 2, 16, 16, 16>}, {pipeline_mode = #tpu.pipeline_mode<synchronous>, transform_indices = @transform_1, window_bounds = array<i64: 16, 1>}, {pipeline_mode = #tpu.pipeline_mode<synchronous>, transform_indices = @transform_2, window_bounds = array<i64: 1, 16>}, {pipeline_mode = #tpu.pipeline_mode<synchronous>, transform_indices = @transform_3, window_bounds = array<i64: 16, 1>}, {pipeline_mode = #tpu.pipeline_mode<synchronous>, transform_indices = @transform_4, window_bounds = array<i64: 1, 16>}, {pipeline_mode = #tpu.pipeline_mode<synchronous>, transform_indices = @transform_5, window_bounds = array<i64: 144, 8>}, {pipeline_mode = #tpu.pipeline_mode<synchronous>, transform_indices = @transform_6, window_bounds = array<i64: 144, 8>}, {pipeline_mode = #tpu.pipeline_mode<synchronous>, transform_indices = @transform_7, window_bounds = array<i64: 144, 16>}, {pipeline_mode = #tpu.pipeline_mode<synchronous>, transform_indices = @transform_8, window_bounds = array<i64: 144, 16>}, {pipeline_mode = #tpu.pipeline_mode<synchronous>, transform_indices = @transform_9, window_bounds = array<i64: 1, 8>}, {pipeline_mode = #tpu.pipeline_mode<synchronous>, transform_indices = @transform_10, window_bounds = array<i64: 1, 8>}, {pipeline_mode = #tpu.pipeline_mode<synchronous>, transform_indices = @transform_11, window_bounds = array<i64: 1, 8>}, {pipeline_mode = #tpu.pipeline_mode<synchronous>, transform_indices = @transform_12, window_bounds = array<i64: 1, 8>}, {pipeline_mode = #tpu.pipeline_mode<synchronous>, transform_indices = @transform_13, window_bounds = array<i64: 1, 16>}, {pipeline_mode = #tpu.pipeline_mode<synchronous>, transform_indices = @transform_14, window_bounds = array<i64: 1, 16>}, {pipeline_mode = #tpu.pipeline_mode<synchronous>, transform_indices = @transform_15, window_bounds = array<i64: 1, 16>}, {pipeline_mode = #tpu.pipeline_mode<synchronous>, transform_indices = @transform_16, window_bounds = array<i64: 1, 16>}, {pipeline_mode = #tpu.pipeline_mode<synchronous>, transform_indices = @transform_17, window_bounds = array<i64: 2, 8, 256>}, {pipeline_mode = #tpu.pipeline_mode<synchronous>, transform_indices = @transform_18, window_bounds = array<i64: 2, 16, 64>}, {pipeline_mode = #tpu.pipeline_mode<synchronous>, transform_indices = @transform_19, window_bounds = array<i64: 2, 8, 256>}]} {
    %c0 = arith.constant 0 : index
    %c0_0 = arith.constant 0 : index
    %c0_1 = arith.constant 0 : index
    %c0_2 = arith.constant 0 : index
    %0 = vector.load %arg1[%c0, %c0_0, %c0_1, %c0_2] : memref<2x16x16x16xf32, #tpu.memory_space<vmem>>, vector<2x16x16x16xf32>
    %cst = arith.constant dense<0.000000e+00> : vector<2x16xf32>
    %1 = vector.multi_reduction <add>, %0, %cst [1, 2] : vector<2x16x16x16xf32> to vector<2x16xf32>
    %cst_3 = arith.constant 2.560000e+02 : f32
    %2 = vector.broadcast %cst_3 : f32 to vector<2x16xf32>
    %3 = arith.divf %1, %2 : vector<2x16xf32>
    %c0_4 = arith.constant 0 : index
    %c0_5 = arith.constant 0 : index
    %4 = vector.load %arg2[%c0_4, %c0_5] : memref<16x1xf32, #tpu.memory_space<vmem>>, vector<16x1xf32>
    %c0_6 = arith.constant 0 : index
    %c0_7 = arith.constant 0 : index
    %5 = vector.load %arg3[%c0_6, %c0_7] : memref<1x16xf32, #tpu.memory_space<vmem>>, vector<1x16xf32>
    %cst_8 = arith.constant dense<0.000000e+00> : vector<2x1xf32>
    %6 = tpu.matmul %3, %4, %cst_8 {dimension_numbers = #tpu.dot_dimension_numbers<[1], [0], [0], [1], [0, 0, 1, 1], [], []>} : vector<2x16xf32>, vector<16x1xf32>, vector<2x1xf32> -> vector<2x1xf32>
    %cst_9 = arith.constant 0.000000e+00 : f32
    %7 = vector.broadcast %cst_9 : f32 to vector<2x1xf32>
    %8 = arith.cmpf ogt, %6, %7 : vector<2x1xf32>
    %cst_10 = arith.constant 2.000000e-01 : f32
    %9 = vector.broadcast %cst_10 : f32 to vector<2x1xf32>
    %10 = arith.mulf %9, %6 : vector<2x1xf32>
    %11 = arith.select %8, %6, %10 : vector<2x1xi1>, vector<2x1xf32>
    %cst_11 = arith.constant dense<0.000000e+00> : vector<2x16xf32>
    %12 = tpu.matmul %11, %5, %cst_11 {dimension_numbers = #tpu.dot_dimension_numbers<[1], [0], [0], [1], [0, 0, 1, 1], [], []>} : vector<2x1xf32>, vector<1x16xf32>, vector<2x16xf32> -> vector<2x16xf32>
    %13 = arith.negf %12 : vector<2x16xf32>
    %14 = math.exp %13 : vector<2x16xf32>
    %cst_12 = arith.constant 1.000000e+00 : f32
    %15 = vector.broadcast %cst_12 : f32 to vector<2x16xf32>
    %16 = arith.addf %15, %14 : vector<2x16xf32>
    %17 = arith.divf %15, %16 : vector<2x16xf32>
    %c0_13 = arith.constant 0 : index
    %c0_14 = arith.constant 0 : index
    %18 = vector.load %arg4[%c0_13, %c0_14] : memref<16x1xf32, #tpu.memory_space<vmem>>, vector<16x1xf32>
    %c0_15 = arith.constant 0 : index
    %c0_16 = arith.constant 0 : index
    %19 = vector.load %arg5[%c0_15, %c0_16] : memref<1x16xf32, #tpu.memory_space<vmem>>, vector<1x16xf32>
    %cst_17 = arith.constant dense<0.000000e+00> : vector<2x1xf32>
    %20 = tpu.matmul %3, %18, %cst_17 {dimension_numbers = #tpu.dot_dimension_numbers<[1], [0], [0], [1], [0, 0, 1, 1], [], []>} : vector<2x16xf32>, vector<16x1xf32>, vector<2x1xf32> -> vector<2x1xf32>
    %cst_18 = arith.constant 0.000000e+00 : f32
    %21 = vector.broadcast %cst_18 : f32 to vector<2x1xf32>
    %22 = arith.cmpf ogt, %20, %21 : vector<2x1xf32>
    %cst_19 = arith.constant 2.000000e-01 : f32
    %23 = vector.broadcast %cst_19 : f32 to vector<2x1xf32>
    %24 = arith.mulf %23, %20 : vector<2x1xf32>
    %25 = arith.select %22, %20, %24 : vector<2x1xi1>, vector<2x1xf32>
    %cst_20 = arith.constant dense<0.000000e+00> : vector<2x16xf32>
    %26 = tpu.matmul %25, %19, %cst_20 {dimension_numbers = #tpu.dot_dimension_numbers<[1], [0], [0], [1], [0, 0, 1, 1], [], []>} : vector<2x1xf32>, vector<1x16xf32>, vector<2x16xf32> -> vector<2x16xf32>
    %27 = arith.negf %26 : vector<2x16xf32>
    %28 = math.exp %27 : vector<2x16xf32>
    %cst_21 = arith.constant 1.000000e+00 : f32
    %29 = vector.broadcast %cst_21 : f32 to vector<2x16xf32>
    %30 = arith.addf %29, %28 : vector<2x16xf32>
    %31 = arith.divf %29, %30 : vector<2x16xf32>
    %32 = vector.extract_strided_slice %0 {offsets = [0, 1, 0, 0], sizes = [2, 1, 16, 16], strides = [1, 1, 1, 1]} : vector<2x16x16x16xf32> to vector<2x1x16x16xf32>
    %33 = vector.extract_strided_slice %0 {offsets = [0, 14, 0, 0], sizes = [2, 1, 16, 16], strides = [1, 1, 1, 1]} : vector<2x16x16x16xf32> to vector<2x1x16x16xf32>
    %34 = tpu.concatenate %32, %0, %33 in 1 : vector<2x1x16x16xf32>, vector<2x16x16x16xf32>, vector<2x1x16x16xf32> -> vector<2x18x16x16xf32>
    %35 = vector.extract_strided_slice %34 {offsets = [0, 0, 1, 0], sizes = [2, 18, 1, 16], strides = [1, 1, 1, 1]} : vector<2x18x16x16xf32> to vector<2x18x1x16xf32>
    %36 = vector.extract_strided_slice %34 {offsets = [0, 0, 14, 0], sizes = [2, 18, 1, 16], strides = [1, 1, 1, 1]} : vector<2x18x16x16xf32> to vector<2x18x1x16xf32>
    %37 = tpu.concatenate %35, %34, %36 in 2 : vector<2x18x1x16xf32>, vector<2x18x16x16xf32>, vector<2x18x1x16xf32> -> vector<2x18x18x16xf32>
    %38 = vector.extract_strided_slice %37 {offsets = [0, 0, 0, 0], sizes = [2, 16, 16, 16], strides = [1, 1, 1, 1]} : vector<2x18x18x16xf32> to vector<2x16x16x16xf32>
    %39 = vector.extract_strided_slice %37 {offsets = [0, 0, 1, 0], sizes = [2, 16, 16, 16], strides = [1, 1, 1, 1]} : vector<2x18x18x16xf32> to vector<2x16x16x16xf32>
    %40 = vector.extract_strided_slice %37 {offsets = [0, 0, 2, 0], sizes = [2, 16, 16, 16], strides = [1, 1, 1, 1]} : vector<2x18x18x16xf32> to vector<2x16x16x16xf32>
    %41 = vector.extract_strided_slice %37 {offsets = [0, 1, 0, 0], sizes = [2, 16, 16, 16], strides = [1, 1, 1, 1]} : vector<2x18x18x16xf32> to vector<2x16x16x16xf32>
    %42 = vector.extract_strided_slice %37 {offsets = [0, 1, 1, 0], sizes = [2, 16, 16, 16], strides = [1, 1, 1, 1]} : vector<2x18x18x16xf32> to vector<2x16x16x16xf32>
    %43 = vector.extract_strided_slice %37 {offsets = [0, 1, 2, 0], sizes = [2, 16, 16, 16], strides = [1, 1, 1, 1]} : vector<2x18x18x16xf32> to vector<2x16x16x16xf32>
    %44 = vector.extract_strided_slice %37 {offsets = [0, 2, 0, 0], sizes = [2, 16, 16, 16], strides = [1, 1, 1, 1]} : vector<2x18x18x16xf32> to vector<2x16x16x16xf32>
    %45 = vector.extract_strided_slice %37 {offsets = [0, 2, 1, 0], sizes = [2, 16, 16, 16], strides = [1, 1, 1, 1]} : vector<2x18x18x16xf32> to vector<2x16x16x16xf32>
    %46 = vector.extract_strided_slice %37 {offsets = [0, 2, 2, 0], sizes = [2, 16, 16, 16], strides = [1, 1, 1, 1]} : vector<2x18x18x16xf32> to vector<2x16x16x16xf32>
    %47 = tpu.concatenate %38, %39, %40, %41, %42, %43, %44, %45, %46 in 3 : vector<2x16x16x16xf32>, vector<2x16x16x16xf32>, vector<2x16x16x16xf32>, vector<2x16x16x16xf32>, vector<2x16x16x16xf32>, vector<2x16x16x16xf32>, vector<2x16x16x16xf32>, vector<2x16x16x16xf32>, vector<2x16x16x16xf32> -> vector<2x16x16x144xf32>
    %48 = vector.shape_cast %47 : vector<2x16x16x144xf32> to vector<2x256x144xf32>
    %49 = vector.shape_cast %48 : vector<2x256x144xf32> to vector<512x144xf32>
    %50 = tpu.concatenate %17, %17, %17, %17, %17, %17, %17, %17, %17 in 1 : vector<2x16xf32>, vector<2x16xf32>, vector<2x16xf32>, vector<2x16xf32>, vector<2x16xf32>, vector<2x16xf32>, vector<2x16xf32>, vector<2x16xf32>, vector<2x16xf32> -> vector<2x144xf32>
    %51 = vector.shape_cast %50 : vector<2x144xf32> to vector<2x1x144xf32>
    %52 = vector.broadcast %51 : vector<2x1x144xf32> to vector<2x256x144xf32>
    %53 = arith.mulf %48, %52 : vector<2x256x144xf32>
    %54 = vector.shape_cast %53 : vector<2x256x144xf32> to vector<512x144xf32>
    %55 = tpu.concatenate %31, %31, %31, %31, %31, %31, %31, %31, %31 in 1 : vector<2x16xf32>, vector<2x16xf32>, vector<2x16xf32>, vector<2x16xf32>, vector<2x16xf32>, vector<2x16xf32>, vector<2x16xf32>, vector<2x16xf32>, vector<2x16xf32> -> vector<2x144xf32>
    %56 = vector.shape_cast %55 : vector<2x144xf32> to vector<2x1x144xf32>
    %57 = vector.broadcast %56 : vector<2x1x144xf32> to vector<2x256x144xf32>
    %58 = arith.mulf %48, %57 : vector<2x256x144xf32>
    %59 = vector.shape_cast %58 : vector<2x256x144xf32> to vector<512x144xf32>
    %c0_22 = arith.constant 0 : index
    %c0_23 = arith.constant 0 : index
    %60 = vector.load %arg6[%c0_22, %c0_23] : memref<144x8xf32, #tpu.memory_space<vmem>>, vector<144x8xf32>
    %cst_24 = arith.constant dense<0.000000e+00> : vector<512x8xf32>
    %61 = tpu.matmul %54, %60, %cst_24 {dimension_numbers = #tpu.dot_dimension_numbers<[1], [0], [0], [1], [0, 0, 1, 1], [], []>} : vector<512x144xf32>, vector<144x8xf32>, vector<512x8xf32> -> vector<512x8xf32>
    %c0_25 = arith.constant 0 : index
    %c0_26 = arith.constant 0 : index
    %62 = vector.load %arg7[%c0_25, %c0_26] : memref<144x8xf32, #tpu.memory_space<vmem>>, vector<144x8xf32>
    %cst_27 = arith.constant dense<0.000000e+00> : vector<512x8xf32>
    %63 = tpu.matmul %59, %62, %cst_27 {dimension_numbers = #tpu.dot_dimension_numbers<[1], [0], [0], [1], [0, 0, 1, 1], [], []>} : vector<512x144xf32>, vector<144x8xf32>, vector<512x8xf32> -> vector<512x8xf32>
    %c0_28 = arith.constant 0 : index
    %c0_29 = arith.constant 0 : index
    %64 = vector.load %arg8[%c0_28, %c0_29] : memref<144x16xf32, #tpu.memory_space<vmem>>, vector<144x16xf32>
    %cst_30 = arith.constant dense<0.000000e+00> : vector<512x16xf32>
    %65 = tpu.matmul %49, %64, %cst_30 {dimension_numbers = #tpu.dot_dimension_numbers<[1], [0], [0], [1], [0, 0, 1, 1], [], []>} : vector<512x144xf32>, vector<144x16xf32>, vector<512x16xf32> -> vector<512x16xf32>
    %66 = vector.shape_cast %65 : vector<512x16xf32> to vector<2x16x16x16xf32>
    %67 = vector.extract_strided_slice %66 {offsets = [0, 0, 0, 0], sizes = [2, 1, 16, 16], strides = [1, 1, 1, 1]} : vector<2x16x16x16xf32> to vector<2x1x16x16xf32>
    %68 = vector.extract_strided_slice %66 {offsets = [0, 2, 0, 0], sizes = [2, 1, 16, 16], strides = [1, 1, 1, 1]} : vector<2x16x16x16xf32> to vector<2x1x16x16xf32>
    %69 = vector.extract_strided_slice %66 {offsets = [0, 4, 0, 0], sizes = [2, 1, 16, 16], strides = [1, 1, 1, 1]} : vector<2x16x16x16xf32> to vector<2x1x16x16xf32>
    %70 = vector.extract_strided_slice %66 {offsets = [0, 6, 0, 0], sizes = [2, 1, 16, 16], strides = [1, 1, 1, 1]} : vector<2x16x16x16xf32> to vector<2x1x16x16xf32>
    %71 = vector.extract_strided_slice %66 {offsets = [0, 8, 0, 0], sizes = [2, 1, 16, 16], strides = [1, 1, 1, 1]} : vector<2x16x16x16xf32> to vector<2x1x16x16xf32>
    %72 = vector.extract_strided_slice %66 {offsets = [0, 10, 0, 0], sizes = [2, 1, 16, 16], strides = [1, 1, 1, 1]} : vector<2x16x16x16xf32> to vector<2x1x16x16xf32>
    %73 = vector.extract_strided_slice %66 {offsets = [0, 12, 0, 0], sizes = [2, 1, 16, 16], strides = [1, 1, 1, 1]} : vector<2x16x16x16xf32> to vector<2x1x16x16xf32>
    %74 = vector.extract_strided_slice %66 {offsets = [0, 14, 0, 0], sizes = [2, 1, 16, 16], strides = [1, 1, 1, 1]} : vector<2x16x16x16xf32> to vector<2x1x16x16xf32>
    %75 = tpu.concatenate %67, %68, %69, %70, %71, %72, %73, %74 in 1 : vector<2x1x16x16xf32>, vector<2x1x16x16xf32>, vector<2x1x16x16xf32>, vector<2x1x16x16xf32>, vector<2x1x16x16xf32>, vector<2x1x16x16xf32>, vector<2x1x16x16xf32>, vector<2x1x16x16xf32> -> vector<2x8x16x16xf32>
    %76 = vector.extract_strided_slice %75 {offsets = [0, 0, 0, 0], sizes = [2, 8, 1, 16], strides = [1, 1, 1, 1]} : vector<2x8x16x16xf32> to vector<2x8x1x16xf32>
    %77 = vector.extract_strided_slice %75 {offsets = [0, 0, 2, 0], sizes = [2, 8, 1, 16], strides = [1, 1, 1, 1]} : vector<2x8x16x16xf32> to vector<2x8x1x16xf32>
    %78 = vector.extract_strided_slice %75 {offsets = [0, 0, 4, 0], sizes = [2, 8, 1, 16], strides = [1, 1, 1, 1]} : vector<2x8x16x16xf32> to vector<2x8x1x16xf32>
    %79 = vector.extract_strided_slice %75 {offsets = [0, 0, 6, 0], sizes = [2, 8, 1, 16], strides = [1, 1, 1, 1]} : vector<2x8x16x16xf32> to vector<2x8x1x16xf32>
    %80 = vector.extract_strided_slice %75 {offsets = [0, 0, 8, 0], sizes = [2, 8, 1, 16], strides = [1, 1, 1, 1]} : vector<2x8x16x16xf32> to vector<2x8x1x16xf32>
    %81 = vector.extract_strided_slice %75 {offsets = [0, 0, 10, 0], sizes = [2, 8, 1, 16], strides = [1, 1, 1, 1]} : vector<2x8x16x16xf32> to vector<2x8x1x16xf32>
    %82 = vector.extract_strided_slice %75 {offsets = [0, 0, 12, 0], sizes = [2, 8, 1, 16], strides = [1, 1, 1, 1]} : vector<2x8x16x16xf32> to vector<2x8x1x16xf32>
    %83 = vector.extract_strided_slice %75 {offsets = [0, 0, 14, 0], sizes = [2, 8, 1, 16], strides = [1, 1, 1, 1]} : vector<2x8x16x16xf32> to vector<2x8x1x16xf32>
    %84 = tpu.concatenate %76, %77, %78, %79, %80, %81, %82, %83 in 2 : vector<2x8x1x16xf32>, vector<2x8x1x16xf32>, vector<2x8x1x16xf32>, vector<2x8x1x16xf32>, vector<2x8x1x16xf32>, vector<2x8x1x16xf32>, vector<2x8x1x16xf32>, vector<2x8x1x16xf32> -> vector<2x8x8x16xf32>
    %85 = vector.shape_cast %84 : vector<2x8x8x16xf32> to vector<128x16xf32>
    %c0_31 = arith.constant 0 : index
    %c0_32 = arith.constant 0 : index
    %86 = vector.load %arg10[%c0_31, %c0_32] : memref<1x8xf32, #tpu.memory_space<vmem>>, vector<1x8xf32>
    %c0_33 = arith.constant 0 : index
    %c0_34 = arith.constant 0 : index
    %87 = vector.load %arg11[%c0_33, %c0_34] : memref<1x8xf32, #tpu.memory_space<vmem>>, vector<1x8xf32>
    %cst_35 = arith.constant dense<0.000000e+00> : vector<8xf32>
    %88 = vector.multi_reduction <add>, %61, %cst_35 [0] : vector<512x8xf32> to vector<8xf32>
    %89 = vector.shape_cast %88 : vector<8xf32> to vector<1x8xf32>
    %cst_36 = arith.constant 5.120000e+02 : f32
    %90 = vector.broadcast %cst_36 : f32 to vector<1x8xf32>
    %91 = arith.divf %89, %90 : vector<1x8xf32>
    %92 = vector.broadcast %91 : vector<1x8xf32> to vector<512x8xf32>
    %93 = arith.subf %61, %92 : vector<512x8xf32>
    %94 = arith.mulf %93, %93 : vector<512x8xf32>
    %cst_37 = arith.constant dense<0.000000e+00> : vector<8xf32>
    %95 = vector.multi_reduction <add>, %94, %cst_37 [0] : vector<512x8xf32> to vector<8xf32>
    %96 = vector.shape_cast %95 : vector<8xf32> to vector<1x8xf32>
    %cst_38 = arith.constant 5.120000e+02 : f32
    %97 = vector.broadcast %cst_38 : f32 to vector<1x8xf32>
    %98 = arith.divf %96, %97 : vector<1x8xf32>
    %99 = vector.broadcast %91 : vector<1x8xf32> to vector<512x8xf32>
    %100 = arith.subf %61, %99 : vector<512x8xf32>
    %cst_39 = arith.constant 9.99999974E-6 : f32
    %101 = vector.broadcast %cst_39 : f32 to vector<1x8xf32>
    %102 = arith.addf %98, %101 : vector<1x8xf32>
    %103 = math.rsqrt %102 : vector<1x8xf32>
    %104 = vector.broadcast %103 : vector<1x8xf32> to vector<512x8xf32>
    %105 = arith.mulf %100, %104 : vector<512x8xf32>
    %106 = vector.broadcast %86 : vector<1x8xf32> to vector<512x8xf32>
    %107 = arith.mulf %105, %106 : vector<512x8xf32>
    %108 = vector.broadcast %87 : vector<1x8xf32> to vector<512x8xf32>
    %109 = arith.addf %107, %108 : vector<512x8xf32>
    %cst_40 = arith.constant 0.000000e+00 : f32
    %110 = vector.broadcast %cst_40 : f32 to vector<512x8xf32>
    %111 = arith.cmpf ogt, %109, %110 : vector<512x8xf32>
    %cst_41 = arith.constant 2.000000e-01 : f32
    %112 = vector.broadcast %cst_41 : f32 to vector<512x8xf32>
    %113 = arith.mulf %112, %109 : vector<512x8xf32>
    %114 = arith.select %111, %109, %113 : vector<512x8xi1>, vector<512x8xf32>
    %c0_42 = arith.constant 0 : index
    %c0_43 = arith.constant 0 : index
    %115 = vector.load %arg12[%c0_42, %c0_43] : memref<1x8xf32, #tpu.memory_space<vmem>>, vector<1x8xf32>
    %c0_44 = arith.constant 0 : index
    %c0_45 = arith.constant 0 : index
    %116 = vector.load %arg13[%c0_44, %c0_45] : memref<1x8xf32, #tpu.memory_space<vmem>>, vector<1x8xf32>
    %cst_46 = arith.constant dense<0.000000e+00> : vector<8xf32>
    %117 = vector.multi_reduction <add>, %63, %cst_46 [0] : vector<512x8xf32> to vector<8xf32>
    %118 = vector.shape_cast %117 : vector<8xf32> to vector<1x8xf32>
    %cst_47 = arith.constant 5.120000e+02 : f32
    %119 = vector.broadcast %cst_47 : f32 to vector<1x8xf32>
    %120 = arith.divf %118, %119 : vector<1x8xf32>
    %121 = vector.broadcast %120 : vector<1x8xf32> to vector<512x8xf32>
    %122 = arith.subf %63, %121 : vector<512x8xf32>
    %123 = arith.mulf %122, %122 : vector<512x8xf32>
    %cst_48 = arith.constant dense<0.000000e+00> : vector<8xf32>
    %124 = vector.multi_reduction <add>, %123, %cst_48 [0] : vector<512x8xf32> to vector<8xf32>
    %125 = vector.shape_cast %124 : vector<8xf32> to vector<1x8xf32>
    %cst_49 = arith.constant 5.120000e+02 : f32
    %126 = vector.broadcast %cst_49 : f32 to vector<1x8xf32>
    %127 = arith.divf %125, %126 : vector<1x8xf32>
    %128 = vector.broadcast %120 : vector<1x8xf32> to vector<512x8xf32>
    %129 = arith.subf %63, %128 : vector<512x8xf32>
    %cst_50 = arith.constant 9.99999974E-6 : f32
    %130 = vector.broadcast %cst_50 : f32 to vector<1x8xf32>
    %131 = arith.addf %127, %130 : vector<1x8xf32>
    %132 = math.rsqrt %131 : vector<1x8xf32>
    %133 = vector.broadcast %132 : vector<1x8xf32> to vector<512x8xf32>
    %134 = arith.mulf %129, %133 : vector<512x8xf32>
    %135 = vector.broadcast %115 : vector<1x8xf32> to vector<512x8xf32>
    %136 = arith.mulf %134, %135 : vector<512x8xf32>
    %137 = vector.broadcast %116 : vector<1x8xf32> to vector<512x8xf32>
    %138 = arith.addf %136, %137 : vector<512x8xf32>
    %cst_51 = arith.constant 0.000000e+00 : f32
    %139 = vector.broadcast %cst_51 : f32 to vector<512x8xf32>
    %140 = arith.cmpf ogt, %138, %139 : vector<512x8xf32>
    %cst_52 = arith.constant 2.000000e-01 : f32
    %141 = vector.broadcast %cst_52 : f32 to vector<512x8xf32>
    %142 = arith.mulf %141, %138 : vector<512x8xf32>
    %143 = arith.select %140, %138, %142 : vector<512x8xi1>, vector<512x8xf32>
    %c0_53 = arith.constant 0 : index
    %c0_54 = arith.constant 0 : index
    %144 = vector.load %arg14[%c0_53, %c0_54] : memref<1x16xf32, #tpu.memory_space<vmem>>, vector<1x16xf32>
    %c0_55 = arith.constant 0 : index
    %c0_56 = arith.constant 0 : index
    %145 = vector.load %arg15[%c0_55, %c0_56] : memref<1x16xf32, #tpu.memory_space<vmem>>, vector<1x16xf32>
    %cst_57 = arith.constant dense<0.000000e+00> : vector<16xf32>
    %146 = vector.multi_reduction <add>, %85, %cst_57 [0] : vector<128x16xf32> to vector<16xf32>
    %147 = vector.shape_cast %146 : vector<16xf32> to vector<1x16xf32>
    %cst_58 = arith.constant 1.280000e+02 : f32
    %148 = vector.broadcast %cst_58 : f32 to vector<1x16xf32>
    %149 = arith.divf %147, %148 : vector<1x16xf32>
    %150 = vector.broadcast %149 : vector<1x16xf32> to vector<128x16xf32>
    %151 = arith.subf %85, %150 : vector<128x16xf32>
    %152 = arith.mulf %151, %151 : vector<128x16xf32>
    %cst_59 = arith.constant dense<0.000000e+00> : vector<16xf32>
    %153 = vector.multi_reduction <add>, %152, %cst_59 [0] : vector<128x16xf32> to vector<16xf32>
    %154 = vector.shape_cast %153 : vector<16xf32> to vector<1x16xf32>
    %cst_60 = arith.constant 1.280000e+02 : f32
    %155 = vector.broadcast %cst_60 : f32 to vector<1x16xf32>
    %156 = arith.divf %154, %155 : vector<1x16xf32>
    %157 = vector.broadcast %149 : vector<1x16xf32> to vector<128x16xf32>
    %158 = arith.subf %85, %157 : vector<128x16xf32>
    %cst_61 = arith.constant 9.99999974E-6 : f32
    %159 = vector.broadcast %cst_61 : f32 to vector<1x16xf32>
    %160 = arith.addf %156, %159 : vector<1x16xf32>
    %161 = math.rsqrt %160 : vector<1x16xf32>
    %162 = vector.broadcast %161 : vector<1x16xf32> to vector<128x16xf32>
    %163 = arith.mulf %158, %162 : vector<128x16xf32>
    %164 = vector.broadcast %144 : vector<1x16xf32> to vector<128x16xf32>
    %165 = arith.mulf %163, %164 : vector<128x16xf32>
    %166 = vector.broadcast %145 : vector<1x16xf32> to vector<128x16xf32>
    %167 = arith.addf %165, %166 : vector<128x16xf32>
    %cst_62 = arith.constant 0.000000e+00 : f32
    %168 = vector.broadcast %cst_62 : f32 to vector<128x16xf32>
    %169 = arith.cmpf ogt, %167, %168 : vector<128x16xf32>
    %cst_63 = arith.constant 2.000000e-01 : f32
    %170 = vector.broadcast %cst_63 : f32 to vector<128x16xf32>
    %171 = arith.mulf %170, %167 : vector<128x16xf32>
    %172 = arith.select %169, %167, %171 : vector<128x16xi1>, vector<128x16xf32>
    %173 = vector.shape_cast %172 : vector<128x16xf32> to vector<2x8x8x16xf32>
    %174 = vector.extract_strided_slice %173 {offsets = [0, 1, 0, 0], sizes = [2, 1, 8, 16], strides = [1, 1, 1, 1]} : vector<2x8x8x16xf32> to vector<2x1x8x16xf32>
    %175 = vector.extract_strided_slice %173 {offsets = [0, 6, 0, 0], sizes = [2, 1, 8, 16], strides = [1, 1, 1, 1]} : vector<2x8x8x16xf32> to vector<2x1x8x16xf32>
    %176 = tpu.concatenate %174, %173, %175 in 1 : vector<2x1x8x16xf32>, vector<2x8x8x16xf32>, vector<2x1x8x16xf32> -> vector<2x10x8x16xf32>
    %177 = vector.extract_strided_slice %176 {offsets = [0, 0, 1, 0], sizes = [2, 10, 1, 16], strides = [1, 1, 1, 1]} : vector<2x10x8x16xf32> to vector<2x10x1x16xf32>
    %178 = vector.extract_strided_slice %176 {offsets = [0, 0, 6, 0], sizes = [2, 10, 1, 16], strides = [1, 1, 1, 1]} : vector<2x10x8x16xf32> to vector<2x10x1x16xf32>
    %179 = tpu.concatenate %177, %176, %178 in 2 : vector<2x10x1x16xf32>, vector<2x10x8x16xf32>, vector<2x10x1x16xf32> -> vector<2x10x10x16xf32>
    %180 = vector.extract_strided_slice %179 {offsets = [0, 0, 0, 0], sizes = [2, 8, 8, 16], strides = [1, 1, 1, 1]} : vector<2x10x10x16xf32> to vector<2x8x8x16xf32>
    %181 = vector.extract_strided_slice %179 {offsets = [0, 0, 1, 0], sizes = [2, 8, 8, 16], strides = [1, 1, 1, 1]} : vector<2x10x10x16xf32> to vector<2x8x8x16xf32>
    %182 = vector.extract_strided_slice %179 {offsets = [0, 0, 2, 0], sizes = [2, 8, 8, 16], strides = [1, 1, 1, 1]} : vector<2x10x10x16xf32> to vector<2x8x8x16xf32>
    %183 = vector.extract_strided_slice %179 {offsets = [0, 1, 0, 0], sizes = [2, 8, 8, 16], strides = [1, 1, 1, 1]} : vector<2x10x10x16xf32> to vector<2x8x8x16xf32>
    %184 = vector.extract_strided_slice %179 {offsets = [0, 1, 1, 0], sizes = [2, 8, 8, 16], strides = [1, 1, 1, 1]} : vector<2x10x10x16xf32> to vector<2x8x8x16xf32>
    %185 = vector.extract_strided_slice %179 {offsets = [0, 1, 2, 0], sizes = [2, 8, 8, 16], strides = [1, 1, 1, 1]} : vector<2x10x10x16xf32> to vector<2x8x8x16xf32>
    %186 = vector.extract_strided_slice %179 {offsets = [0, 2, 0, 0], sizes = [2, 8, 8, 16], strides = [1, 1, 1, 1]} : vector<2x10x10x16xf32> to vector<2x8x8x16xf32>
    %187 = vector.extract_strided_slice %179 {offsets = [0, 2, 1, 0], sizes = [2, 8, 8, 16], strides = [1, 1, 1, 1]} : vector<2x10x10x16xf32> to vector<2x8x8x16xf32>
    %188 = vector.extract_strided_slice %179 {offsets = [0, 2, 2, 0], sizes = [2, 8, 8, 16], strides = [1, 1, 1, 1]} : vector<2x10x10x16xf32> to vector<2x8x8x16xf32>
    %189 = tpu.concatenate %180, %181, %182, %183, %184, %185, %186, %187, %188 in 3 : vector<2x8x8x16xf32>, vector<2x8x8x16xf32>, vector<2x8x8x16xf32>, vector<2x8x8x16xf32>, vector<2x8x8x16xf32>, vector<2x8x8x16xf32>, vector<2x8x8x16xf32>, vector<2x8x8x16xf32>, vector<2x8x8x16xf32> -> vector<2x8x8x144xf32>
    %190 = vector.shape_cast %189 : vector<2x8x8x144xf32> to vector<2x64x144xf32>
    %191 = vector.shape_cast %190 : vector<2x64x144xf32> to vector<128x144xf32>
    %c0_64 = arith.constant 0 : index
    %c0_65 = arith.constant 0 : index
    %192 = vector.load %arg9[%c0_64, %c0_65] : memref<144x16xf32, #tpu.memory_space<vmem>>, vector<144x16xf32>
    %cst_66 = arith.constant dense<0.000000e+00> : vector<128x16xf32>
    %193 = tpu.matmul %191, %192, %cst_66 {dimension_numbers = #tpu.dot_dimension_numbers<[1], [0], [0], [1], [0, 0, 1, 1], [], []>} : vector<128x144xf32>, vector<144x16xf32>, vector<128x16xf32> -> vector<128x16xf32>
    %c0_67 = arith.constant 0 : index
    %c0_68 = arith.constant 0 : index
    %194 = vector.load %arg16[%c0_67, %c0_68] : memref<1x16xf32, #tpu.memory_space<vmem>>, vector<1x16xf32>
    %c0_69 = arith.constant 0 : index
    %c0_70 = arith.constant 0 : index
    %195 = vector.load %arg17[%c0_69, %c0_70] : memref<1x16xf32, #tpu.memory_space<vmem>>, vector<1x16xf32>
    %cst_71 = arith.constant dense<0.000000e+00> : vector<16xf32>
    %196 = vector.multi_reduction <add>, %193, %cst_71 [0] : vector<128x16xf32> to vector<16xf32>
    %197 = vector.shape_cast %196 : vector<16xf32> to vector<1x16xf32>
    %cst_72 = arith.constant 1.280000e+02 : f32
    %198 = vector.broadcast %cst_72 : f32 to vector<1x16xf32>
    %199 = arith.divf %197, %198 : vector<1x16xf32>
    %200 = vector.broadcast %199 : vector<1x16xf32> to vector<128x16xf32>
    %201 = arith.subf %193, %200 : vector<128x16xf32>
    %202 = arith.mulf %201, %201 : vector<128x16xf32>
    %cst_73 = arith.constant dense<0.000000e+00> : vector<16xf32>
    %203 = vector.multi_reduction <add>, %202, %cst_73 [0] : vector<128x16xf32> to vector<16xf32>
    %204 = vector.shape_cast %203 : vector<16xf32> to vector<1x16xf32>
    %cst_74 = arith.constant 1.280000e+02 : f32
    %205 = vector.broadcast %cst_74 : f32 to vector<1x16xf32>
    %206 = arith.divf %204, %205 : vector<1x16xf32>
    %207 = vector.broadcast %199 : vector<1x16xf32> to vector<128x16xf32>
    %208 = arith.subf %193, %207 : vector<128x16xf32>
    %cst_75 = arith.constant 9.99999974E-6 : f32
    %209 = vector.broadcast %cst_75 : f32 to vector<1x16xf32>
    %210 = arith.addf %206, %209 : vector<1x16xf32>
    %211 = math.rsqrt %210 : vector<1x16xf32>
    %212 = vector.broadcast %211 : vector<1x16xf32> to vector<128x16xf32>
    %213 = arith.mulf %208, %212 : vector<128x16xf32>
    %214 = vector.broadcast %194 : vector<1x16xf32> to vector<128x16xf32>
    %215 = arith.mulf %213, %214 : vector<128x16xf32>
    %216 = vector.broadcast %195 : vector<1x16xf32> to vector<128x16xf32>
    %217 = arith.addf %215, %216 : vector<128x16xf32>
    %cst_76 = arith.constant 0.000000e+00 : f32
    %218 = vector.broadcast %cst_76 : f32 to vector<128x16xf32>
    %219 = arith.cmpf ogt, %217, %218 : vector<128x16xf32>
    %cst_77 = arith.constant 2.000000e-01 : f32
    %220 = vector.broadcast %cst_77 : f32 to vector<128x16xf32>
    %221 = arith.mulf %220, %217 : vector<128x16xf32>
    %222 = arith.select %219, %217, %221 : vector<128x16xi1>, vector<128x16xf32>
    %223 = vector.shape_cast %114 : vector<512x8xf32> to vector<2x256x8xf32>
    %224 = vector.shape_cast %143 : vector<512x8xf32> to vector<2x256x8xf32>
    %225 = vector.shape_cast %222 : vector<128x16xf32> to vector<2x64x16xf32>
    %226 = vector.extract_strided_slice %223 {offsets = [0, 0, 0], sizes = [1, 256, 8], strides = [1, 1, 1]} : vector<2x256x8xf32> to vector<1x256x8xf32>
    %227 = vector.shape_cast %226 : vector<1x256x8xf32> to vector<256x8xf32>
    %228 = tpu.transpose %227, [1, 0] : vector<256x8xf32> -> vector<8x256xf32>
    %c0_78 = arith.constant 0 : index
    %c0_79 = arith.constant 0 : index
    %c0_80 = arith.constant 0 : index
    %229 = vector.load %arg18[%c0_78, %c0_79, %c0_80] : memref<2x8x256xf32, #tpu.memory_space<vmem>>, vector<1x8x256xf32>
    %230 = vector.shape_cast %229 : vector<1x8x256xf32> to vector<8x256xf32>
    %231 = vector.shape_cast %228 : vector<8x256xf32> to vector<1x8x256xf32>
    tpu.vector_store %arg18[%c0_78, %c0_79, %c0_80], %231 {strides = array<i32>} : memref<2x8x256xf32, #tpu.memory_space<vmem>>, vector<1x8x256xf32>,
    %232 = vector.extract_strided_slice %224 {offsets = [0, 0, 0], sizes = [1, 256, 8], strides = [1, 1, 1]} : vector<2x256x8xf32> to vector<1x256x8xf32>
    %233 = vector.shape_cast %232 : vector<1x256x8xf32> to vector<256x8xf32>
    %234 = tpu.transpose %233, [1, 0] : vector<256x8xf32> -> vector<8x256xf32>
    %c0_81 = arith.constant 0 : index
    %c0_82 = arith.constant 0 : index
    %c0_83 = arith.constant 0 : index
    %235 = vector.load %arg20[%c0_81, %c0_82, %c0_83] : memref<2x8x256xf32, #tpu.memory_space<vmem>>, vector<1x8x256xf32>
    %236 = vector.shape_cast %235 : vector<1x8x256xf32> to vector<8x256xf32>
    %237 = vector.shape_cast %234 : vector<8x256xf32> to vector<1x8x256xf32>
    tpu.vector_store %arg20[%c0_81, %c0_82, %c0_83], %237 {strides = array<i32>} : memref<2x8x256xf32, #tpu.memory_space<vmem>>, vector<1x8x256xf32>,
    %238 = vector.extract_strided_slice %225 {offsets = [0, 0, 0], sizes = [1, 64, 16], strides = [1, 1, 1]} : vector<2x64x16xf32> to vector<1x64x16xf32>
    %239 = vector.shape_cast %238 : vector<1x64x16xf32> to vector<64x16xf32>
    %240 = tpu.transpose %239, [1, 0] : vector<64x16xf32> -> vector<16x64xf32>
    %c0_84 = arith.constant 0 : index
    %c0_85 = arith.constant 0 : index
    %c0_86 = arith.constant 0 : index
    %241 = vector.load %arg19[%c0_84, %c0_85, %c0_86] : memref<2x16x64xf32, #tpu.memory_space<vmem>>, vector<1x16x64xf32>
    %242 = vector.shape_cast %241 : vector<1x16x64xf32> to vector<16x64xf32>
    %243 = vector.shape_cast %240 : vector<16x64xf32> to vector<1x16x64xf32>
    tpu.vector_store %arg19[%c0_84, %c0_85, %c0_86], %243 {strides = array<i32>} : memref<2x16x64xf32, #tpu.memory_space<vmem>>, vector<1x16x64xf32>,
    %244 = vector.extract_strided_slice %223 {offsets = [1, 0, 0], sizes = [1, 256, 8], strides = [1, 1, 1]} : vector<2x256x8xf32> to vector<1x256x8xf32>
    %245 = vector.shape_cast %244 : vector<1x256x8xf32> to vector<256x8xf32>
    %246 = tpu.transpose %245, [1, 0] : vector<256x8xf32> -> vector<8x256xf32>
    %c1 = arith.constant 1 : index
    %c0_87 = arith.constant 0 : index
    %c0_88 = arith.constant 0 : index
    %247 = vector.load %arg18[%c1, %c0_87, %c0_88] : memref<2x8x256xf32, #tpu.memory_space<vmem>>, vector<1x8x256xf32>
    %248 = vector.shape_cast %247 : vector<1x8x256xf32> to vector<8x256xf32>
    %249 = vector.shape_cast %246 : vector<8x256xf32> to vector<1x8x256xf32>
    tpu.vector_store %arg18[%c1, %c0_87, %c0_88], %249 {strides = array<i32>} : memref<2x8x256xf32, #tpu.memory_space<vmem>>, vector<1x8x256xf32>,
    %250 = vector.extract_strided_slice %224 {offsets = [1, 0, 0], sizes = [1, 256, 8], strides = [1, 1, 1]} : vector<2x256x8xf32> to vector<1x256x8xf32>
    %251 = vector.shape_cast %250 : vector<1x256x8xf32> to vector<256x8xf32>
    %252 = tpu.transpose %251, [1, 0] : vector<256x8xf32> -> vector<8x256xf32>
    %c1_89 = arith.constant 1 : index
    %c0_90 = arith.constant 0 : index
    %c0_91 = arith.constant 0 : index
    %253 = vector.load %arg20[%c1_89, %c0_90, %c0_91] : memref<2x8x256xf32, #tpu.memory_space<vmem>>, vector<1x8x256xf32>
    %254 = vector.shape_cast %253 : vector<1x8x256xf32> to vector<8x256xf32>
    %255 = vector.shape_cast %252 : vector<8x256xf32> to vector<1x8x256xf32>
    tpu.vector_store %arg20[%c1_89, %c0_90, %c0_91], %255 {strides = array<i32>} : memref<2x8x256xf32, #tpu.memory_space<vmem>>, vector<1x8x256xf32>,
    %256 = vector.extract_strided_slice %225 {offsets = [1, 0, 0], sizes = [1, 64, 16], strides = [1, 1, 1]} : vector<2x64x16xf32> to vector<1x64x16xf32>
    %257 = vector.shape_cast %256 : vector<1x64x16xf32> to vector<64x16xf32>
    %258 = tpu.transpose %257, [1, 0] : vector<64x16xf32> -> vector<16x64xf32>
    %c1_92 = arith.constant 1 : index
    %c0_93 = arith.constant 0 : index
    %c0_94 = arith.constant 0 : index
    %259 = vector.load %arg19[%c1_92, %c0_93, %c0_94] : memref<2x16x64xf32, #tpu.memory_space<vmem>>, vector<1x16x64xf32>
    %260 = vector.shape_cast %259 : vector<1x16x64xf32> to vector<16x64xf32>
    %261 = vector.shape_cast %258 : vector<16x64xf32> to vector<1x16x64xf32>
    tpu.vector_store %arg19[%c1_92, %c0_93, %c0_94], %261 {strides = array<i32>} : memref<2x16x64xf32, #tpu.memory_space<vmem>>, vector<1x16x64xf32>,
    return
  }
  func.func @transform_0(%arg0: i32) -> (i32, i32, i32, i32) {
    %c0_i32 = arith.constant 0 : i32
    %c0_i32_0 = arith.constant 0 : i32
    %c0_i32_1 = arith.constant 0 : i32
    %c0_i32_2 = arith.constant 0 : i32
    %c0_i32_3 = arith.constant 0 : i32
    return %c0_i32, %c0_i32_0, %c0_i32_1, %c0_i32_2 : i32, i32, i32, i32
  }
  func.func @transform_1(%arg0: i32) -> (i32, i32) {
    %c0_i32 = arith.constant 0 : i32
    %c0_i32_0 = arith.constant 0 : i32
    %c0_i32_1 = arith.constant 0 : i32
    return %c0_i32, %c0_i32_0 : i32, i32
  }
  func.func @transform_2(%arg0: i32) -> (i32, i32) {
    %c0_i32 = arith.constant 0 : i32
    %c0_i32_0 = arith.constant 0 : i32
    %c0_i32_1 = arith.constant 0 : i32
    return %c0_i32, %c0_i32_0 : i32, i32
  }
  func.func @transform_3(%arg0: i32) -> (i32, i32) {
    %c0_i32 = arith.constant 0 : i32
    %c0_i32_0 = arith.constant 0 : i32
    %c0_i32_1 = arith.constant 0 : i32
    return %c0_i32, %c0_i32_0 : i32, i32
  }
  func.func @transform_4(%arg0: i32) -> (i32, i32) {
    %c0_i32 = arith.constant 0 : i32
    %c0_i32_0 = arith.constant 0 : i32
    %c0_i32_1 = arith.constant 0 : i32
    return %c0_i32, %c0_i32_0 : i32, i32
  }
  func.func @transform_5(%arg0: i32) -> (i32, i32) {
    %c0_i32 = arith.constant 0 : i32
    %c0_i32_0 = arith.constant 0 : i32
    %c0_i32_1 = arith.constant 0 : i32
    return %c0_i32, %c0_i32_0 : i32, i32
  }
  func.func @transform_6(%arg0: i32) -> (i32, i32) {
    %c0_i32 = arith.constant 0 : i32
    %c0_i32_0 = arith.constant 0 : i32
    %c0_i32_1 = arith.constant 0 : i32
    return %c0_i32, %c0_i32_0 : i32, i32
  }
  func.func @transform_7(%arg0: i32) -> (i32, i32) {
    %c0_i32 = arith.constant 0 : i32
    %c0_i32_0 = arith.constant 0 : i32
    %c0_i32_1 = arith.constant 0 : i32
    return %c0_i32, %c0_i32_0 : i32, i32
  }
  func.func @transform_8(%arg0: i32) -> (i32, i32) {
    %c0_i32 = arith.constant 0 : i32
    %c0_i32_0 = arith.constant 0 : i32
    %c0_i32_1 = arith.constant 0 : i32
    return %c0_i32, %c0_i32_0 : i32, i32
  }
  func.func @transform_9(%arg0: i32) -> (i32, i32) {
    %c0_i32 = arith.constant 0 : i32
    %c0_i32_0 = arith.constant 0 : i32
    %c0_i32_1 = arith.constant 0 : i32
    return %c0_i32, %c0_i32_0 : i32, i32
  }
  func.func @transform_10(%arg0: i32) -> (i32, i32) {
    %c0_i32 = arith.constant 0 : i32
    %c0_i32_0 = arith.constant 0 : i32
    %c0_i32_1 = arith.constant 0 : i32
    return %c0_i32, %c0_i32_0 : i32, i32
  }
  func.func @transform_11(%arg0: i32) -> (i32, i32) {
    %c0_i32 = arith.constant 0 : i32
    %c0_i32_0 = arith.constant 0 : i32
    %c0_i32_1 = arith.constant 0 : i32
    return %c0_i32, %c0_i32_0 : i32, i32
  }
  func.func @transform_12(%arg0: i32) -> (i32, i32) {
    %c0_i32 = arith.constant 0 : i32
    %c0_i32_0 = arith.constant 0 : i32
    %c0_i32_1 = arith.constant 0 : i32
    return %c0_i32, %c0_i32_0 : i32, i32
  }
  func.func @transform_13(%arg0: i32) -> (i32, i32) {
    %c0_i32 = arith.constant 0 : i32
    %c0_i32_0 = arith.constant 0 : i32
    %c0_i32_1 = arith.constant 0 : i32
    return %c0_i32, %c0_i32_0 : i32, i32
  }
  func.func @transform_14(%arg0: i32) -> (i32, i32) {
    %c0_i32 = arith.constant 0 : i32
    %c0_i32_0 = arith.constant 0 : i32
    %c0_i32_1 = arith.constant 0 : i32
    return %c0_i32, %c0_i32_0 : i32, i32
  }
  func.func @transform_15(%arg0: i32) -> (i32, i32) {
    %c0_i32 = arith.constant 0 : i32
    %c0_i32_0 = arith.constant 0 : i32
    %c0_i32_1 = arith.constant 0 : i32
    return %c0_i32, %c0_i32_0 : i32, i32
  }
  func.func @transform_16(%arg0: i32) -> (i32, i32) {
    %c0_i32 = arith.constant 0 : i32
    %c0_i32_0 = arith.constant 0 : i32
    %c0_i32_1 = arith.constant 0 : i32
    return %c0_i32, %c0_i32_0 : i32, i32
  }
  func.func @transform_17(%arg0: i32) -> (i32, i32, i32) {
    %c0_i32 = arith.constant 0 : i32
    %c0_i32_0 = arith.constant 0 : i32
    %c0_i32_1 = arith.constant 0 : i32
    %c0_i32_2 = arith.constant 0 : i32
    return %c0_i32, %c0_i32_0, %c0_i32_1 : i32, i32, i32
  }
  func.func @transform_18(%arg0: i32) -> (i32, i32, i32) {
    %c0_i32 = arith.constant 0 : i32
    %c0_i32_0 = arith.constant 0 : i32
    %c0_i32_1 = arith.constant 0 : i32
    %c0_i32_2 = arith.constant 0 : i32
    return %c0_i32, %c0_i32_0, %c0_i32_1 : i32, i32, i32
  }
  func.func @transform_19(%arg0: i32) -> (i32, i32, i32) {
    %c0_i32 = arith.constant 0 : i32
    %c0_i32_0 = arith.constant 0 : i32
    %c0_i32_1 = arith.constant 0 : i32
    %c0_i32_2 = arith.constant 0 : i32
    return %c0_i32, %c0_i32_0, %c0_i32_1 : i32, i32, i32
  }
}

</mosaic_0001>

<llo_original>
// kernel: skips_encoder_skipt_forward.1
$region0: #{skips_encoder_skipt_forward.1}
  #allocation0 [shape = 'u32[]', space=smem, size = 0x4, offset = 0x4, fixed_abs, tag = 'smem constant byte address 0x4 - core index']
  #allocation1 [shape = 'u32[72,128]{1,0:T(1,128)}', space=vmem, size = 0x9000, scoped, tag = 'internal scratch']
  %s0 = inlined_call_operand.vmem [shape: f32[2,16,16,16], index: 0, kind: input, shape index: {}]
  %s1 = inlined_call_operand.vmem [shape: f32[16,1], index: 1, kind: input, shape index: {}]
  %s2 = inlined_call_operand.vmem [shape: f32[1,16], index: 2, kind: input, shape index: {}]
  %s3 = inlined_call_operand.vmem [shape: f32[16,1], index: 3, kind: input, shape index: {}]
  %s4 = inlined_call_operand.vmem [shape: f32[1,16], index: 4, kind: input, shape index: {}]
  %s5 = inlined_call_operand.vmem [shape: f32[144,8], index: 5, kind: input, shape index: {}]
  %s6 = inlined_call_operand.vmem [shape: f32[144,8], index: 6, kind: input, shape index: {}]
  %s7 = inlined_call_operand.vmem [shape: f32[144,16], index: 7, kind: input, shape index: {}]
  %s8 = inlined_call_operand.vmem [shape: f32[144,16], index: 8, kind: input, shape index: {}]
  %s9 = inlined_call_operand.vmem [shape: f32[1,8], index: 9, kind: input, shape index: {}]
  %s10 = inlined_call_operand.vmem [shape: f32[1,8], index: 10, kind: input, shape index: {}]
  %s11 = inlined_call_operand.vmem [shape: f32[1,8], index: 11, kind: input, shape index: {}]
  %s12 = inlined_call_operand.vmem [shape: f32[1,8], index: 12, kind: input, shape index: {}]
  %s13 = inlined_call_operand.vmem [shape: f32[1,16], index: 13, kind: input, shape index: {}]
  %s14 = inlined_call_operand.vmem [shape: f32[1,16], index: 14, kind: input, shape index: {}]
  %s15 = inlined_call_operand.vmem [shape: f32[1,16], index: 15, kind: input, shape index: {}]
  %s16 = inlined_call_operand.vmem [shape: f32[1,16], index: 16, kind: input, shape index: {}]
  %s17 = inlined_call_operand.vmem [shape: f32[2,8,256], index: 17, kind: output, shape index: {0}]
  %s18 = inlined_call_operand.vmem [shape: f32[2,16,64], index: 18, kind: output, shape index: {1}]
  %s19 = inlined_call_operand.vmem [shape: f32[2,8,256], index: 19, kind: output, shape index: {2}]
  %20 = xla_tuple %s17, %s18, %s19
  %s21 = sld [smem:[#allocation0]]
  $region94: #{skips_encoder_skipt_forward.1} parent=0
    _
  %s23 = ssub.s32 1, %s21
  %s24 = scalar_select 0, %s23, %s21
  // Predicated region
  $region2: #{skips_encoder_skipt_forward.1} parent=0 // pred_check
    _
  $region3: #{skips_encoder_skipt_forward.1} parent=0 // pred_check_branch
    %26 = sbr.rel (0) target = $region5
  $region4: #{skips_encoder_skipt_forward.1} parent=0 // pred_region
    _
  $region5: #{skips_encoder_skipt_forward.1} parent=0 // pred_fallthru
    _
  // Predicated region
  $region6: #{skips_encoder_skipt_forward.1} parent=0 // pred_check
    _
  $region7: #{skips_encoder_skipt_forward.1} parent=0 // pred_check_branch
    %28 = sbr.rel (0) target = $region9
  $region8: #{skips_encoder_skipt_forward.1} parent=0 // pred_region
    _
  $region9: #{skips_encoder_skipt_forward.1} parent=0 // pred_fallthru
    _
  // Predicated region
  $region10: #{skips_encoder_skipt_forward.1} parent=0 // pred_check
    _
  $region11: #{skips_encoder_skipt_forward.1} parent=0 // pred_check_branch
    %30 = sbr.rel (0) target = $region13
  $region12: #{skips_encoder_skipt_forward.1} parent=0 // pred_region
    _
  $region13: #{skips_encoder_skipt_forward.1} parent=0 // pred_fallthru
    _
  // Predicated region
  $region14: #{skips_encoder_skipt_forward.1} parent=0 // pred_check
    _
  $region15: #{skips_encoder_skipt_forward.1} parent=0 // pred_check_branch
    %32 = sbr.rel (0) target = $region17
  $region16: #{skips_encoder_skipt_forward.1} parent=0 // pred_region
    _
  $region17: #{skips_encoder_skipt_forward.1} parent=0 // pred_fallthru
    _
  // Predicated region
  $region18: #{skips_encoder_skipt_forward.1} parent=0 // pred_check
    _
  $region19: #{skips_encoder_skipt_forward.1} parent=0 // pred_check_branch
    %34 = sbr.rel (0) target = $region21
  $region20: #{skips_encoder_skipt_forward.1} parent=0 // pred_region
    _
  $region21: #{skips_encoder_skipt_forward.1} parent=0 // pred_fallthru
    _
  // Predicated region
  $region22: #{skips_encoder_skipt_forward.1} parent=0 // pred_check
    _
  $region23: #{skips_encoder_skipt_forward.1} parent=0 // pred_check_branch
    %36 = sbr.rel (0) target = $region25
  $region24: #{skips_encoder_skipt_forward.1} parent=0 // pred_region
    _
  $region25: #{skips_encoder_skipt_forward.1} parent=0 // pred_fallthru
    _
  // Predicated region
  $region26: #{skips_encoder_skipt_forward.1} parent=0 // pred_check
    _
  $region27: #{skips_encoder_skipt_forward.1} parent=0 // pred_check_branch
    %38 = sbr.rel (0) target = $region29
  $region28: #{skips_encoder_skipt_forward.1} parent=0 // pred_region
    _
  $region29: #{skips_encoder_skipt_forward.1} parent=0 // pred_fallthru
    _
  // Predicated region
  $region30: #{skips_encoder_skipt_forward.1} parent=0 // pred_check
    _
  $region31: #{skips_encoder_skipt_forward.1} parent=0 // pred_check_branch
    %40 = sbr.rel (0) target = $region33
  $region32: #{skips_encoder_skipt_forward.1} parent=0 // pred_region
    _
  $region33: #{skips_encoder_skipt_forward.1} parent=0 // pred_fallthru
    _
  // Predicated region
  $region34: #{skips_encoder_skipt_forward.1} parent=0 // pred_check
    _
  $region35: #{skips_encoder_skipt_forward.1} parent=0 // pred_check_branch
    %42 = sbr.rel (0) target = $region37
  $region36: #{skips_encoder_skipt_forward.1} parent=0 // pred_region
    _
  $region37: #{skips_encoder_skipt_forward.1} parent=0 // pred_fallthru
    _
  // Predicated region
  $region38: #{skips_encoder_skipt_forward.1} parent=0 // pred_check
    _
  $region39: #{skips_encoder_skipt_forward.1} parent=0 // pred_check_branch
    %44 = sbr.rel (0) target = $region41
  $region40: #{skips_encoder_skipt_forward.1} parent=0 // pred_region
    _
  $region41: #{skips_encoder_skipt_forward.1} parent=0 // pred_fallthru
    _
  // Predicated region
  $region42: #{skips_encoder_skipt_forward.1} parent=0 // pred_check
    _
  $region43: #{skips_encoder_skipt_forward.1} parent=0 // pred_check_branch
    %46 = sbr.rel (0) target = $region45
  $region44: #{skips_encoder_skipt_forward.1} parent=0 // pred_region
    _
  $region45: #{skips_encoder_skipt_forward.1} parent=0 // pred_fallthru
    _
  // Predicated region
  $region46: #{skips_encoder_skipt_forward.1} parent=0 // pred_check
    _
  $region47: #{skips_encoder_skipt_forward.1} parent=0 // pred_check_branch
    %48 = sbr.rel (0) target = $region49
  $region48: #{skips_encoder_skipt_forward.1} parent=0 // pred_region
    _
  $region49: #{skips_encoder_skipt_forward.1} parent=0 // pred_fallthru
    _
  // Predicated region
  $region50: #{skips_encoder_skipt_forward.1} parent=0 // pred_check
    _
  $region51: #{skips_encoder_skipt_forward.1} parent=0 // pred_check_branch
    %50 = sbr.rel (0) target = $region53
  $region52: #{skips_encoder_skipt_forward.1} parent=0 // pred_region
    _
  $region53: #{skips_encoder_skipt_forward.1} parent=0 // pred_fallthru
    _
  // Predicated region
  $region54: #{skips_encoder_skipt_forward.1} parent=0 // pred_check
    _
  $region55: #{skips_encoder_skipt_forward.1} parent=0 // pred_check_branch
    %52 = sbr.rel (0) target = $region57
  $region56: #{skips_encoder_skipt_forward.1} parent=0 // pred_region
    _
  $region57: #{skips_encoder_skipt_forward.1} parent=0 // pred_fallthru
    _
  // Predicated region
  $region58: #{skips_encoder_skipt_forward.1} parent=0 // pred_check
    _
  $region59: #{skips_encoder_skipt_forward.1} parent=0 // pred_check_branch
    %54 = sbr.rel (0) target = $region61
  $region60: #{skips_encoder_skipt_forward.1} parent=0 // pred_region
    _
  $region61: #{skips_encoder_skipt_forward.1} parent=0 // pred_fallthru
    _
  // Predicated region
  $region62: #{skips_encoder_skipt_forward.1} parent=0 // pred_check
    _
  $region63: #{skips_encoder_skipt_forward.1} parent=0 // pred_check_branch
    %56 = sbr.rel (0) target = $region65
  $region64: #{skips_encoder_skipt_forward.1} parent=0 // pred_region
    _
  $region65: #{skips_encoder_skipt_forward.1} parent=0 // pred_fallthru
    _
  // Predicated region
  $region66: #{skips_encoder_skipt_forward.1} parent=0 // pred_check
    _
  $region67: #{skips_encoder_skipt_forward.1} parent=0 // pred_check_branch
    %58 = sbr.rel (0) target = $region69
  $region68: #{skips_encoder_skipt_forward.1} parent=0 // pred_region
    _
  $region69: #{skips_encoder_skipt_forward.1} parent=0 // pred_fallthru
    _
  %v59 = vld [vmem:[%s0] sm:$0xff]
  %v60 = vld [vmem:[%s0 + $0x8] sm:$0xff]
  %v61 = vld [vmem:[%s0 + $0x10] sm:$0xff]
  %v62 = vld [vmem:[%s0 + $0x18] sm:$0xff]
  %v63 = vld [vmem:[%s0 + $0x20] sm:$0xff]
  %v64 = vld [vmem:[%s0 + $0x28] sm:$0xff]
  %v65 = vld [vmem:[%s0 + $0x30] sm:$0xff]
  %v66 = vld [vmem:[%s0 + $0x38] sm:$0xff]
  %v67 = vld [vmem:[%s0 + $0x40] sm:$0xff]
  %v68 = vld [vmem:[%s0 + $0x48] sm:$0xff]
  %v69 = vld [vmem:[%s0 + $0x50] sm:$0xff]
  %v70 = vld [vmem:[%s0 + $0x58] sm:$0xff]
  %v71 = vld [vmem:[%s0 + $0x60] sm:$0xff]
  %v72 = vld [vmem:[%s0 + $0x68] sm:$0xff]
  %v73 = vld [vmem:[%s0 + $0x70] sm:$0xff]
  %v74 = vld [vmem:[%s0 + $0x78] sm:$0xff]
  %v75 = vld [vmem:[%s0 + $0x80] sm:$0xff]
  %v76 = vld [vmem:[%s0 + $0x88] sm:$0xff]
  %v77 = vld [vmem:[%s0 + $0x90] sm:$0xff]
  %v78 = vld [vmem:[%s0 + $0x98] sm:$0xff]
  %v79 = vld [vmem:[%s0 + $0xa0] sm:$0xff]
  %v80 = vld [vmem:[%s0 + $0xa8] sm:$0xff]
  %v81 = vld [vmem:[%s0 + $0xb0] sm:$0xff]
  %v82 = vld [vmem:[%s0 + $0xb8] sm:$0xff]
  %v83 = vld [vmem:[%s0 + $0xc0] sm:$0xff]
  %v84 = vld [vmem:[%s0 + $0xc8] sm:$0xff]
  %v85 = vld [vmem:[%s0 + $0xd0] sm:$0xff]
  %v86 = vld [vmem:[%s0 + $0xd8] sm:$0xff]
  %v87 = vld [vmem:[%s0 + $0xe0] sm:$0xff]
  %v88 = vld [vmem:[%s0 + $0xe8] sm:$0xff]
  %v89 = vld [vmem:[%s0 + $0xf0] sm:$0xff]
  %v90 = vld [vmem:[%s0 + $0xf8] sm:$0xff]
  %v91 = vld [vmem:[%s0 + $0x100] sm:$0xff]
  %v92 = vld [vmem:[%s0 + $0x108] sm:$0xff]
  %v93 = vld [vmem:[%s0 + $0x110] sm:$0xff]
  %v94 = vld [vmem:[%s0 + $0x118] sm:$0xff]
  %v95 = vld [vmem:[%s0 + $0x120] sm:$0xff]
  %v96 = vld [vmem:[%s0 + $0x128] sm:$0xff]
  %v97 = vld [vmem:[%s0 + $0x130] sm:$0xff]
  %v98 = vld [vmem:[%s0 + $0x138] sm:$0xff]
  %v99 = vld [vmem:[%s0 + $0x140] sm:$0xff]
  %v100 = vld [vmem:[%s0 + $0x148] sm:$0xff]
  %v101 = vld [vmem:[%s0 + $0x150] sm:$0xff]
  %v102 = vld [vmem:[%s0 + $0x158] sm:$0xff]
  %v103 = vld [vmem:[%s0 + $0x160] sm:$0xff]
  %v104 = vld [vmem:[%s0 + $0x168] sm:$0xff]
  %v105 = vld [vmem:[%s0 + $0x170] sm:$0xff]
  %v106 = vld [vmem:[%s0 + $0x178] sm:$0xff]
  %v107 = vld [vmem:[%s0 + $0x180] sm:$0xff]
  %v108 = vld [vmem:[%s0 + $0x188] sm:$0xff]
  %v109 = vld [vmem:[%s0 + $0x190] sm:$0xff]
  %v110 = vld [vmem:[%s0 + $0x198] sm:$0xff]
  %v111 = vld [vmem:[%s0 + $0x1a0] sm:$0xff]
  %v112 = vld [vmem:[%s0 + $0x1a8] sm:$0xff]
  %v113 = vld [vmem:[%s0 + $0x1b0] sm:$0xff]
  %v114 = vld [vmem:[%s0 + $0x1b8] sm:$0xff]
  %v115 = vld [vmem:[%s0 + $0x1c0] sm:$0xff]
  %v116 = vld [vmem:[%s0 + $0x1c8] sm:$0xff]
  %v117 = vld [vmem:[%s0 + $0x1d0] sm:$0xff]
  %v118 = vld [vmem:[%s0 + $0x1d8] sm:$0xff]
  %v119 = vld [vmem:[%s0 + $0x1e0] sm:$0xff]
  %v120 = vld [vmem:[%s0 + $0x1e8] sm:$0xff]
  %v121 = vld [vmem:[%s0 + $0x1f0] sm:$0xff]
  %v122 = vld [vmem:[%s0 + $0x1f8] sm:$0xff]
  %vm123 = vcmask 130048
  %v124 = vsel %vm123, %v59, 0.0
  %v125 = vsel %vm123, %v60, 0.0
  %v126 = vadd.f32 %v124, %v125
  %v127 = vsel %vm123, %v61, 0.0
  %v128 = vadd.f32 %v126, %v127
  %v129 = vsel %vm123, %v62, 0.0
  %v130 = vadd.f32 %v128, %v129
  %v131 = vsel %vm123, %v63, 0.0
  %v132 = vadd.f32 %v130, %v131
  %v133 = vsel %vm123, %v64, 0.0
  %v134 = vadd.f32 %v132, %v133
  %v135 = vsel %vm123, %v65, 0.0
  %v136 = vadd.f32 %v134, %v135
  %v137 = vsel %vm123, %v66, 0.0
  %v138 = vadd.f32 %v136, %v137
  %v139 = vsel %vm123, %v67, 0.0
  %v140 = vadd.f32 %v138, %v139
  %v141 = vsel %vm123, %v68, 0.0
  %v142 = vadd.f32 %v140, %v141
  %v143 = vsel %vm123, %v69, 0.0
  %v144 = vadd.f32 %v142, %v143
  %v145 = vsel %vm123, %v70, 0.0
  %v146 = vadd.f32 %v144, %v145
  %v147 = vsel %vm123, %v71, 0.0
  %v148 = vadd.f32 %v146, %v147
  %v149 = vsel %vm123, %v72, 0.0
  %v150 = vadd.f32 %v148, %v149
  %v151 = vsel %vm123, %v73, 0.0
  %v152 = vadd.f32 %v150, %v151
  %v153 = vsel %vm123, %v74, 0.0
  %v154 = vadd.f32 %v152, %v153
  %v155 = vsel %vm123, %v75, 0.0
  %v156 = vadd.f32 %v154, %v155
  %v157 = vsel %vm123, %v76, 0.0
  %v158 = vadd.f32 %v156, %v157
  %v159 = vsel %vm123, %v77, 0.0
  %v160 = vadd.f32 %v158, %v159
  %v161 = vsel %vm123, %v78, 0.0
  %v162 = vadd.f32 %v160, %v161
  %v163 = vsel %vm123, %v79, 0.0
  %v164 = vadd.f32 %v162, %v163
  %v165 = vsel %vm123, %v80, 0.0
  %v166 = vadd.f32 %v164, %v165
  %v167 = vsel %vm123, %v81, 0.0
  %v168 = vadd.f32 %v166, %v167
  %v169 = vsel %vm123, %v82, 0.0
  %v170 = vadd.f32 %v168, %v169
  %v171 = vsel %vm123, %v83, 0.0
  %v172 = vadd.f32 %v170, %v171
  %v173 = vsel %vm123, %v84, 0.0
  %v174 = vadd.f32 %v172, %v173
  %v175 = vsel %vm123, %v85, 0.0
  %v176 = vadd.f32 %v174, %v175
  %v177 = vsel %vm123, %v86, 0.0
  %v178 = vadd.f32 %v176, %v177
  %v179 = vsel %vm123, %v87, 0.0
  %v180 = vadd.f32 %v178, %v179
  %v181 = vsel %vm123, %v88, 0.0
  %v182 = vadd.f32 %v180, %v181
  %v183 = vsel %vm123, %v89, 0.0
  %v184 = vadd.f32 %v182, %v183
  %v185 = vsel %vm123, %v90, 0.0
  %v186 = vadd.f32 %v184, %v185
  %v187 = vrot.slane %v186, 4
  %v188 = vadd.f32 %v186, %v187
  %v189 = vrot.slane %v188, 2
  %v190 = vadd.f32 %v188, %v189
  %v191 = vrot.slane %v190, 1
  %v192 = vadd.f32 %v190, %v191
  %v193 = vsel %vm123, %v91, 0.0
  %v194 = vsel %vm123, %v92, 0.0
  %v195 = vadd.f32 %v193, %v194
  %v196 = vsel %vm123, %v93, 0.0
  %v197 = vadd.f32 %v195, %v196
  %v198 = vsel %vm123, %v94, 0.0
  %v199 = vadd.f32 %v197, %v198
  %v200 = vsel %vm123, %v95, 0.0
  %v201 = vadd.f32 %v199, %v200
  %v202 = vsel %vm123, %v96, 0.0
  %v203 = vadd.f32 %v201, %v202
  %v204 = vsel %vm123, %v97, 0.0
  %v205 = vadd.f32 %v203, %v204
  %v206 = vsel %vm123, %v98, 0.0
  %v207 = vadd.f32 %v205, %v206
  %v208 = vsel %vm123, %v99, 0.0
  %v209 = vadd.f32 %v207, %v208
  %v210 = vsel %vm123, %v100, 0.0
  %v211 = vadd.f32 %v209, %v210
  %v212 = vsel %vm123, %v101, 0.0
  %v213 = vadd.f32 %v211, %v212
  %v214 = vsel %vm123, %v102, 0.0
  %v215 = vadd.f32 %v213, %v214
  %v216 = vsel %vm123, %v103, 0.0
  %v217 = vadd.f32 %v215, %v216
  %v218 = vsel %vm123, %v104, 0.0
  %v219 = vadd.f32 %v217, %v218
  %v220 = vsel %vm123, %v105, 0.0
  %v221 = vadd.f32 %v219, %v220
  %v222 = vsel %vm123, %v106, 0.0
  %v223 = vadd.f32 %v221, %v222
  %v224 = vsel %vm123, %v107, 0.0
  %v225 = vadd.f32 %v223, %v224
  %v226 = vsel %vm123, %v108, 0.0
  %v227 = vadd.f32 %v225, %v226
  %v228 = vsel %vm123, %v109, 0.0
  %v229 = vadd.f32 %v227, %v228
  %v230 = vsel %vm123, %v110, 0.0
  %v231 = vadd.f32 %v229, %v230
  %v232 = vsel %vm123, %v111, 0.0
  %v233 = vadd.f32 %v231, %v232
  %v234 = vsel %vm123, %v112, 0.0
  %v235 = vadd.f32 %v233, %v234
  %v236 = vsel %vm123, %v113, 0.0
  %v237 = vadd.f32 %v235, %v236
  %v238 = vsel %vm123, %v114, 0.0
  %v239 = vadd.f32 %v237, %v238
  %v240 = vsel %vm123, %v115, 0.0
  %v241 = vadd.f32 %v239, %v240
  %v242 = vsel %vm123, %v116, 0.0
  %v243 = vadd.f32 %v241, %v242
  %v244 = vsel %vm123, %v117, 0.0
  %v245 = vadd.f32 %v243, %v244
  %v246 = vsel %vm123, %v118, 0.0
  %v247 = vadd.f32 %v245, %v246
  %v248 = vsel %vm123, %v119, 0.0
  %v249 = vadd.f32 %v247, %v248
  %v250 = vsel %vm123, %v120, 0.0
  %v251 = vadd.f32 %v249, %v250
  %v252 = vsel %vm123, %v121, 0.0
  %v253 = vadd.f32 %v251, %v252
  %v254 = vsel %vm123, %v122, 0.0
  %v255 = vadd.f32 %v253, %v254
  %v256 = vrot.slane %v255, 4
  %v257 = vadd.f32 %v255, %v256
  %v258 = vrot.slane %v257, 2
  %v259 = vadd.f32 %v257, %v258
  %v260 = vrot.slane %v259, 1
  %v261 = vadd.f32 %v259, %v260
  %v262 = vrcp.pop 256.0
  %v263 = vmul.f32 256.0, %v262
  %v264 = vsub.f32 1.0, %v263
  %v265 = vmul.f32 %v262, %v264
  %v266 = vadd.f32 %v262, %v265
  %vm267 = vweird.f32 %v262
  %v268 = vsel %vm267, %v262, %v266
  %v269 = vmul.f32 %v192, %v268
  %v270 = vmul.f32 %v261, %v268
  %v271 = vld [vmem:[%s1] sm:$0xff]
  %v272 = vld [vmem:[%s1 + $0x8] sm:$0xff]
  %v273 = vld [vmem:[%s2] sm:$0x1]
  %vm276 = vcmask 1041409
  %v277 = vsel %vm276, %v270, %v269
  %v278 = vsel %vm123, %v277, 0
  %280 = vmatpush.msra.mxu0 0.0
  %281 = vmatpush.msra.mxu0 0.0
  %282 = vmatpush.msra.mxu0 0.0
  %283 = vmatpush.msra.mxu0 0.0
  %284 = vmatpush.msra.mxu0 0.0
  %285 = vmatpush.msra.mxu0 0.0
  %286 = vmatpush.msra.mxu0 0.0
  %287 = vmatpush.msra.mxu0 0.0
  %288 = vmatpush.msra.mxu0 0.0
  %289 = vmatpush.msra.mxu0 0.0
  %290 = vmatpush.msra.mxu0 0.0
  %291 = vmatpush.msra.mxu0 0.0
  %292 = vmatpush.msra.mxu0 0.0
  %293 = vmatpush.msra.mxu0 0.0
  %294 = vmatpush.msra.mxu0 %v272
  %295 = vmatpush.msra.mxu0 %v271
  %296 = vmatmul.f32.gmra.mxu0 %v278
  %v297 = vpop.f32.mrf.mxu0
  %v298 = vadd.f32 0.0, %v297
  %299 = vdwg.mxu0
  %vm300 = vcmp.gt.f32.partialorder %v298, 0.0
  %v301 = vmul.f32 %v298, 0.2
  %v302 = vsel %vm300, %v298, %v301
  %vm303 = vcmask 7168
  %v305 = vsel %vm303, %v302, 0
  %vm307 = vcmask 1040384
  %v309 = vsel %vm307, %v273, 0
  %311 = vmatpush.msra.mxu0 0.0
  %312 = vmatpush.msra.mxu0 0.0
  %313 = vmatpush.msra.mxu0 0.0
  %314 = vmatpush.msra.mxu0 0.0
  %315 = vmatpush.msra.mxu0 0.0
  %316 = vmatpush.msra.mxu0 0.0
  %317 = vmatpush.msra.mxu0 0.0
  %318 = vmatpush.msra.mxu0 0.0
  %319 = vmatpush.msra.mxu0 0.0
  %320 = vmatpush.msra.mxu0 0.0
  %321 = vmatpush.msra.mxu0 0.0
  %322 = vmatpush.msra.mxu0 0.0
  %323 = vmatpush.msra.mxu0 0.0
  %324 = vmatpush.msra.mxu0 0.0
  %325 = vmatpush.msra.mxu0 0.0
  %326 = vmatpush.msra.mxu0 %v309
  %327 = vmatmul.f32.gmra.mxu0 %v305
  %v328 = vpop.f32.mrf.mxu0
  %v329 = vadd.f32 0.0, %v328
  %330 = vdwg.mxu0
  %v331 = vxor.u32 %v329, 2147483648
  %v332 = vmul.f32 %v331, 1.442695
  %v333 = vpow.pop %v332
  %v334 = vadd.f32 %v333, 1.0
  %v335 = vrcp.pop %v334
  %v336 = vmul.f32 %v334, %v335
  %v337 = vsub.f32 1.0, %v336
  %v338 = vmul.f32 %v335, %v337
  %v339 = vadd.f32 %v335, %v338
  %vm340 = vweird.f32 %v334
  %vm341 = vweird.f32 %v335
  %vm342 = vmor %vm340, %vm341
  %v343 = vsel %vm342, %v335, %v339
  %v344 = vand.u32 2147483647, %v334
  %vm345 = vcmp.eq.f32.partialorder %v344, 8.507059e+37
  %v346 = vand.u32 %v334, 2147483648
  %v347 = vor.u32 1.1754944e-38, %v346
  %v348 = vsel %vm345, %v347, %v343
  %v349 = vmul.f32 1.0, %v348
  %v350 = vld [vmem:[%s3] sm:$0xff]
  %v351 = vld [vmem:[%s3 + $0x8] sm:$0xff]
  %v352 = vld [vmem:[%s4] sm:$0x1]
  %353 = vmatpush.msra.mxu0 0.0
  %354 = vmatpush.msra.mxu0 0.0
  %355 = vmatpush.msra.mxu0 0.0
  %356 = vmatpush.msra.mxu0 0.0
  %357 = vmatpush.msra.mxu0 0.0
  %358 = vmatpush.msra.mxu0 0.0
  %359 = vmatpush.msra.mxu0 0.0
  %360 = vmatpush.msra.mxu0 0.0
  %361 = vmatpush.msra.mxu0 0.0
  %362 = vmatpush.msra.mxu0 0.0
  %363 = vmatpush.msra.mxu0 0.0
  %364 = vmatpush.msra.mxu0 0.0
  %365 = vmatpush.msra.mxu0 0.0
  %366 = vmatpush.msra.mxu0 0.0
  %367 = vmatpush.msra.mxu0 %v351
  %368 = vmatpush.msra.mxu0 %v350
  %369 = vmatmul.f32.gmra.mxu0 %v278
  %v370 = vpop.f32.mrf.mxu0
  %v371 = vadd.f32 0.0, %v370
  %372 = vdwg.mxu0
  %vm373 = vcmp.gt.f32.partialorder %v371, 0.0
  %v374 = vmul.f32 %v371, 0.2
  %v375 = vsel %vm373, %v371, %v374
  %v377 = vsel %vm303, %v375, 0
  %v380 = vsel %vm307, %v352, 0
  %382 = vmatpush.msra.mxu0 0.0
  %383 = vmatpush.msra.mxu0 0.0
  %384 = vmatpush.msra.mxu0 0.0
  %385 = vmatpush.msra.mxu0 0.0
  %386 = vmatpush.msra.mxu0 0.0
  %387 = vmatpush.msra.mxu0 0.0
  %388 = vmatpush.msra.mxu0 0.0
  %389 = vmatpush.msra.mxu0 0.0
  %390 = vmatpush.msra.mxu0 0.0
  %391 = vmatpush.msra.mxu0 0.0
  %392 = vmatpush.msra.mxu0 0.0
  %393 = vmatpush.msra.mxu0 0.0
  %394 = vmatpush.msra.mxu0 0.0
  %395 = vmatpush.msra.mxu0 0.0
  %396 = vmatpush.msra.mxu0 0.0
  %397 = vmatpush.msra.mxu0 %v380
  %398 = vmatmul.f32.gmra.mxu0 %v377
  %v399 = vpop.f32.mrf.mxu0
  %v400 = vadd.f32 0.0, %v399
  %401 = vdwg.mxu0
  %v402 = vxor.u32 %v400, 2147483648
  %v403 = vmul.f32 %v402, 1.442695
  %v404 = vpow.pop %v403
  %v405 = vadd.f32 %v404, 1.0
  %v406 = vrcp.pop %v405
  %v407 = vmul.f32 %v405, %v406
  %v408 = vsub.f32 1.0, %v407
  %v409 = vmul.f32 %v406, %v408
  %v410 = vadd.f32 %v406, %v409
  %vm411 = vweird.f32 %v405
  %vm412 = vweird.f32 %v406
  %vm413 = vmor %vm411, %vm412
  %v414 = vsel %vm413, %v406, %v410
  %v415 = vand.u32 2147483647, %v405
  %vm416 = vcmp.eq.f32.partialorder %v415, 8.507059e+37
  %v417 = vand.u32 %v405, 2147483648
  %v418 = vor.u32 1.1754944e-38, %v417
  %v419 = vsel %vm416, %v418, %v414
  %v420 = vmul.f32 1.0, %v419
  %v453 = vrot.slane %v61, 1
  %v454 = vrot.slane %v59, 1
  %v455 = vrot.slane %v63, 1
  %v456 = vrot.slane %v65, 1
  %v457 = vrot.slane %v67, 1
  %v458 = vrot.slane %v69, 1
  %v459 = vrot.slane %v71, 1
  %v460 = vrot.slane %v73, 1
  %v461 = vrot.slane %v75, 1
  %v462 = vrot.slane %v77, 1
  %v463 = vrot.slane %v79, 1
  %v464 = vrot.slane %v81, 1
  %v465 = vrot.slane %v83, 1
  %v466 = vrot.slane %v85, 1
  %v467 = vrot.slane %v87, 1
  %v468 = vrot.slane %v89, 1
  %v469 = vrot.slane %v93, 1
  %v470 = vrot.slane %v91, 1
  %v471 = vrot.slane %v95, 1
  %v472 = vrot.slane %v97, 1
  %v473 = vrot.slane %v99, 1
  %v474 = vrot.slane %v101, 1
  %v475 = vrot.slane %v103, 1
  %v476 = vrot.slane %v105, 1
  %v477 = vrot.slane %v107, 1
  %v478 = vrot.slane %v109, 1
  %v479 = vrot.slane %v111, 1
  %v480 = vrot.slane %v113, 1
  %v481 = vrot.slane %v115, 1
  %v482 = vrot.slane %v117, 1
  %v483 = vrot.slane %v119, 1
  %v484 = vrot.slane %v121, 1
  %v549 = vrot.slane %v61, 7
  %v550 = vrot.slane %v62, 7
  %v551 = vsel %vm307, %v549, %v550
  %v552 = vrot.slane %v59, 7
  %v553 = vrot.slane %v60, 7
  %v554 = vsel %vm307, %v552, %v553
  %v555 = vrot.slane %v63, 7
  %v556 = vrot.slane %v64, 7
  %v557 = vsel %vm307, %v555, %v556
  %v558 = vrot.slane %v65, 7
  %v559 = vrot.slane %v66, 7
  %v560 = vsel %vm307, %v558, %v559
  %v561 = vrot.slane %v67, 7
  %v562 = vrot.slane %v68, 7
  %v563 = vsel %vm307, %v561, %v562
  %v564 = vrot.slane %v69, 7
  %v565 = vrot.slane %v70, 7
  %v566 = vsel %vm307, %v564, %v565
  %v567 = vrot.slane %v71, 7
  %v568 = vrot.slane %v72, 7
  %v569 = vsel %vm307, %v567, %v568
  %v570 = vrot.slane %v73, 7
  %v571 = vrot.slane %v74, 7
  %v572 = vsel %vm307, %v570, %v571
  %v573 = vrot.slane %v75, 7
  %v574 = vrot.slane %v76, 7
  %v575 = vsel %vm307, %v573, %v574
  %v576 = vrot.slane %v77, 7
  %v577 = vrot.slane %v78, 7
  %v578 = vsel %vm307, %v576, %v577
  %v579 = vrot.slane %v79, 7
  %v580 = vrot.slane %v80, 7
  %v581 = vsel %vm307, %v579, %v580
  %v582 = vrot.slane %v81, 7
  %v583 = vrot.slane %v82, 7
  %v584 = vsel %vm307, %v582, %v583
  %v585 = vrot.slane %v83, 7
  %v586 = vrot.slane %v84, 7
  %v587 = vsel %vm307, %v585, %v586
  %v588 = vrot.slane %v85, 7
  %v589 = vrot.slane %v86, 7
  %v590 = vsel %vm307, %v588, %v589
  %v591 = vrot.slane %v87, 7
  %v592 = vrot.slane %v88, 7
  %v593 = vsel %vm307, %v591, %v592
  %v594 = vrot.slane %v89, 7
  %v595 = vrot.slane %v90, 7
  %v596 = vsel %vm307, %v594, %v595
  %v597 = vrot.slane %v93, 7
  %v598 = vrot.slane %v94, 7
  %v599 = vsel %vm307, %v597, %v598
  %v600 = vrot.slane %v91, 7
  %v601 = vrot.slane %v92, 7
  %v602 = vsel %vm307, %v600, %v601
  %v603 = vrot.slane %v95, 7
  %v604 = vrot.slane %v96, 7
  %v605 = vsel %vm307, %v603, %v604
  %v606 = vrot.slane %v97, 7
  %v607 = vrot.slane %v98, 7
  %v608 = vsel %vm307, %v606, %v607
  %v609 = vrot.slane %v99, 7
  %v610 = vrot.slane %v100, 7
  %v611 = vsel %vm307, %v609, %v610
  %v612 = vrot.slane %v101, 7
  %v613 = vrot.slane %v102, 7
  %v614 = vsel %vm307, %v612, %v613
  %v615 = vrot.slane %v103, 7
  %v616 = vrot.slane %v104, 7
  %v617 = vsel %vm307, %v615, %v616
  %v618 = vrot.slane %v105, 7
  %v619 = vrot.slane %v106, 7
  %v620 = vsel %vm307, %v618, %v619
  %v621 = vrot.slane %v107, 7
  %v622 = vrot.slane %v108, 7
  %v623 = vsel %vm307, %v621, %v622
  %v624 = vrot.slane %v109, 7
  %v625 = vrot.slane %v110, 7
  %v626 = vsel %vm307, %v624, %v625
  %v627 = vrot.slane %v111, 7
  %v628 = vrot.slane %v112, 7
  %v629 = vsel %vm307, %v627, %v628
  %v630 = vrot.slane %v113, 7
  %v631 = vrot.slane %v114, 7
  %v632 = vsel %vm307, %v630, %v631
  %v633 = vrot.slane %v115, 7
  %v634 = vrot.slane %v116, 7
  %v635 = vsel %vm307, %v633, %v634
  %v636 = vrot.slane %v117, 7
  %v637 = vrot.slane %v118, 7
  %v638 = vsel %vm307, %v636, %v637
  %v639 = vrot.slane %v119, 7
  %v640 = vrot.slane %v120, 7
  %v641 = vsel %vm307, %v639, %v640
  %v642 = vrot.slane %v121, 7
  %v643 = vrot.slane %v122, 7
  %v644 = vsel %vm307, %v642, %v643
  %v739 = vrot.slane %v62, 5
  %v740 = vrot.slane %v60, 5
  %v741 = vrot.slane %v64, 5
  %v742 = vrot.slane %v66, 5
  %v743 = vrot.slane %v68, 5
  %v744 = vrot.slane %v70, 5
  %v745 = vrot.slane %v72, 5
  %v746 = vrot.slane %v74, 5
  %v747 = vrot.slane %v76, 5
  %v748 = vrot.slane %v78, 5
  %v749 = vrot.slane %v80, 5
  %v750 = vrot.slane %v82, 5
  %v751 = vrot.slane %v84, 5
  %v752 = vrot.slane %v86, 5
  %v753 = vrot.slane %v88, 5
  %v754 = vrot.slane %v90, 5
  %v755 = vrot.slane %v94, 5
  %v756 = vrot.slane %v92, 5
  %v757 = vrot.slane %v96, 5
  %v758 = vrot.slane %v98, 5
  %v759 = vrot.slane %v100, 5
  %v760 = vrot.slane %v102, 5
  %v761 = vrot.slane %v104, 5
  %v762 = vrot.slane %v106, 5
  %v763 = vrot.slane %v108, 5
  %v764 = vrot.slane %v110, 5
  %v765 = vrot.slane %v112, 5
  %v766 = vrot.slane %v114, 5
  %v767 = vrot.slane %v116, 5
  %v768 = vrot.slane %v118, 5
  %v769 = vrot.slane %v120, 5
  %v770 = vrot.slane %v122, 5
  %v803 = vsel %vm307, %v453, %v549
  %v804 = vsel %vm307, %v454, %v552
  %v805 = vsel %vm307, %v455, %v555
  %v806 = vsel %vm307, %v456, %v558
  %v807 = vsel %vm307, %v457, %v561
  %v808 = vsel %vm307, %v458, %v564
  %v809 = vsel %vm307, %v459, %v567
  %v810 = vsel %vm307, %v460, %v570
  %v811 = vsel %vm307, %v461, %v573
  %v812 = vsel %vm307, %v462, %v576
  %v813 = vsel %vm307, %v463, %v579
  %v814 = vsel %vm307, %v464, %v582
  %v815 = vsel %vm307, %v465, %v585
  %v816 = vsel %vm307, %v466, %v588
  %v817 = vsel %vm307, %v467, %v591
  %v818 = vsel %vm307, %v468, %v594
  %v819 = vsel %vm307, %v469, %v597
  %v820 = vsel %vm307, %v470, %v600
  %v821 = vsel %vm307, %v471, %v603
  %v822 = vsel %vm307, %v472, %v606
  %v823 = vsel %vm307, %v473, %v609
  %v824 = vsel %vm307, %v474, %v612
  %v825 = vsel %vm307, %v475, %v615
  %v826 = vsel %vm307, %v476, %v618
  %v827 = vsel %vm307, %v477, %v621
  %v828 = vsel %vm307, %v478, %v624
  %v829 = vsel %vm307, %v479, %v627
  %v830 = vsel %vm307, %v480, %v630
  %v831 = vsel %vm307, %v481, %v633
  %v832 = vsel %vm307, %v482, %v636
  %v833 = vsel %vm307, %v483, %v639
  %v834 = vsel %vm307, %v484, %v642
  %v835 = vsel %vm307, %v550, %v739
  %v836 = vsel %vm307, %v553, %v740
  %v837 = vsel %vm307, %v556, %v741
  %v838 = vsel %vm307, %v559, %v742
  %v839 = vsel %vm307, %v562, %v743
  %v840 = vsel %vm307, %v565, %v744
  %v841 = vsel %vm307, %v568, %v745
  %v842 = vsel %vm307, %v571, %v746
  %v843 = vsel %vm307, %v574, %v747
  %v844 = vsel %vm307, %v577, %v748
  %v845 = vsel %vm307, %v580, %v749
  %v846 = vsel %vm307, %v583, %v750
  %v847 = vsel %vm307, %v586, %v751
  %v848 = vsel %vm307, %v589, %v752
  %v849 = vsel %vm307, %v592, %v753
  %v850 = vsel %vm307, %v595, %v754
  %v851 = vsel %vm307, %v598, %v755
  %v852 = vsel %vm307, %v601, %v756
  %v853 = vsel %vm307, %v604, %v757
  %v854 = vsel %vm307, %v607, %v758
  %v855 = vsel %vm307, %v610, %v759
  %v856 = vsel %vm307, %v613, %v760
  %v857 = vsel %vm307, %v616, %v761
  %v858 = vsel %vm307, %v619, %v762
  %v859 = vsel %vm307, %v622, %v763
  %v860 = vsel %vm307, %v625, %v764
  %v861 = vsel %vm307, %v628, %v765
  %v862 = vsel %vm307, %v631, %v766
  %v863 = vsel %vm307, %v634, %v767
  %v864 = vsel %vm307, %v637, %v768
  %v865 = vsel %vm307, %v640, %v769
  %v866 = vsel %vm307, %v643, %v770
  %vm927 = vcmask 1046528
  %v928 = vrot.slane %v803, 1
  %v929 = vrot.slane %v551, 1
  %v930 = vsel %vm927, %v928, %v929
  %v931 = vrot.slane %v835, 1
  %v932 = vsel %vm927, %v929, %v931
  %v933 = vrot.slane %v804, 1
  %v934 = vrot.slane %v554, 1
  %v935 = vsel %vm927, %v933, %v934
  %v936 = vrot.slane %v836, 1
  %v937 = vsel %vm927, %v934, %v936
  %v938 = vrot.slane %v805, 1
  %v939 = vrot.slane %v557, 1
  %v940 = vsel %vm927, %v938, %v939
  %v941 = vrot.slane %v837, 1
  %v942 = vsel %vm927, %v939, %v941
  %v943 = vrot.slane %v806, 1
  %v944 = vrot.slane %v560, 1
  %v945 = vsel %vm927, %v943, %v944
  %v946 = vrot.slane %v838, 1
  %v947 = vsel %vm927, %v944, %v946
  %v948 = vrot.slane %v807, 1
  %v949 = vrot.slane %v563, 1
  %v950 = vsel %vm927, %v948, %v949
  %v951 = vrot.slane %v839, 1
  %v952 = vsel %vm927, %v949, %v951
  %v953 = vrot.slane %v808, 1
  %v954 = vrot.slane %v566, 1
  %v955 = vsel %vm927, %v953, %v954
  %v956 = vrot.slane %v840, 1
  %v957 = vsel %vm927, %v954, %v956
  %v958 = vrot.slane %v809, 1
  %v959 = vrot.slane %v569, 1
  %v960 = vsel %vm927, %v958, %v959
  %v961 = vrot.slane %v841, 1
  %v962 = vsel %vm927, %v959, %v961
  %v963 = vrot.slane %v810, 1
  %v964 = vrot.slane %v572, 1
  %v965 = vsel %vm927, %v963, %v964
  %v966 = vrot.slane %v842, 1
  %v967 = vsel %vm927, %v964, %v966
  %v968 = vrot.slane %v811, 1
  %v969 = vrot.slane %v575, 1
  %v970 = vsel %vm927, %v968, %v969
  %v971 = vrot.slane %v843, 1
  %v972 = vsel %vm927, %v969, %v971
  %v973 = vrot.slane %v812, 1
  %v974 = vrot.slane %v578, 1
  %v975 = vsel %vm927, %v973, %v974
  %v976 = vrot.slane %v844, 1
  %v977 = vsel %vm927, %v974, %v976
  %v978 = vrot.slane %v813, 1
  %v979 = vrot.slane %v581, 1
  %v980 = vsel %vm927, %v978, %v979
  %v981 = vrot.slane %v845, 1
  %v982 = vsel %vm927, %v979, %v981
  %v983 = vrot.slane %v814, 1
  %v984 = vrot.slane %v584, 1
  %v985 = vsel %vm927, %v983, %v984
  %v986 = vrot.slane %v846, 1
  %v987 = vsel %vm927, %v984, %v986
  %v988 = vrot.slane %v815, 1
  %v989 = vrot.slane %v587, 1
  %v990 = vsel %vm927, %v988, %v989
  %v991 = vrot.slane %v847, 1
  %v992 = vsel %vm927, %v989, %v991
  %v993 = vrot.slane %v816, 1
  %v994 = vrot.slane %v590, 1
  %v995 = vsel %vm927, %v993, %v994
  %v996 = vrot.slane %v848, 1
  %v997 = vsel %vm927, %v994, %v996
  %v998 = vrot.slane %v817, 1
  %v999 = vrot.slane %v593, 1
  %v1000 = vsel %vm927, %v998, %v999
  %v1001 = vrot.slane %v849, 1
  %v1002 = vsel %vm927, %v999, %v1001
  %v1003 = vrot.slane %v819, 1
  %v1004 = vrot.slane %v599, 1
  %v1005 = vsel %vm927, %v1003, %v1004
  %v1006 = vrot.slane %v851, 1
  %v1007 = vsel %vm927, %v1004, %v1006
  %v1008 = vrot.slane %v820, 1
  %v1009 = vrot.slane %v602, 1
  %v1010 = vsel %vm927, %v1008, %v1009
  %v1011 = vrot.slane %v852, 1
  %v1012 = vsel %vm927, %v1009, %v1011
  %v1013 = vrot.slane %v821, 1
  %v1014 = vrot.slane %v605, 1
  %v1015 = vsel %vm927, %v1013, %v1014
  %v1016 = vrot.slane %v853, 1
  %v1017 = vsel %vm927, %v1014, %v1016
  %v1018 = vrot.slane %v822, 1
  %v1019 = vrot.slane %v608, 1
  %v1020 = vsel %vm927, %v1018, %v1019
  %v1021 = vrot.slane %v854, 1
  %v1022 = vsel %vm927, %v1019, %v1021
  %v1023 = vrot.slane %v823, 1
  %v1024 = vrot.slane %v611, 1
  %v1025 = vsel %vm927, %v1023, %v1024
  %v1026 = vrot.slane %v855, 1
  %v1027 = vsel %vm927, %v1024, %v1026
  %v1028 = vrot.slane %v824, 1
  %v1029 = vrot.slane %v614, 1
  %v1030 = vsel %vm927, %v1028, %v1029
  %v1031 = vrot.slane %v856, 1
  %v1032 = vsel %vm927, %v1029, %v1031
  %v1033 = vrot.slane %v825, 1
  %v1034 = vrot.slane %v617, 1
  %v1035 = vsel %vm927, %v1033, %v1034
  %v1036 = vrot.slane %v857, 1
  %v1037 = vsel %vm927, %v1034, %v1036
  %v1038 = vrot.slane %v826, 1
  %v1039 = vrot.slane %v620, 1
  %v1040 = vsel %vm927, %v1038, %v1039
  %v1041 = vrot.slane %v858, 1
  %v1042 = vsel %vm927, %v1039, %v1041
  %v1043 = vrot.slane %v827, 1
  %v1044 = vrot.slane %v623, 1
  %v1045 = vsel %vm927, %v1043, %v1044
  %v1046 = vrot.slane %v859, 1
  %v1047 = vsel %vm927, %v1044, %v1046
  %v1048 = vrot.slane %v828, 1
  %v1049 = vrot.slane %v626, 1
  %v1050 = vsel %vm927, %v1048, %v1049
  %v1051 = vrot.slane %v860, 1
  %v1052 = vsel %vm927, %v1049, %v1051
  %v1053 = vrot.slane %v829, 1
  %v1054 = vrot.slane %v629, 1
  %v1055 = vsel %vm927, %v1053, %v1054
  %v1056 = vrot.slane %v861, 1
  %v1057 = vsel %vm927, %v1054, %v1056
  %v1058 = vrot.slane %v830, 1
  %v1059 = vrot.slane %v632, 1
  %v1060 = vsel %vm927, %v1058, %v1059
  %v1061 = vrot.slane %v862, 1
  %v1062 = vsel %vm927, %v1059, %v1061
  %v1063 = vrot.slane %v831, 1
  %v1064 = vrot.slane %v635, 1
  %v1065 = vsel %vm927, %v1063, %v1064
  %v1066 = vrot.slane %v863, 1
  %v1067 = vsel %vm927, %v1064, %v1066
  %v1068 = vrot.slane %v832, 1
  %v1069 = vrot.slane %v638, 1
  %v1070 = vsel %vm927, %v1068, %v1069
  %v1071 = vrot.slane %v864, 1
  %v1072 = vsel %vm927, %v1069, %v1071
  %v1073 = vrot.slane %v833, 1
  %v1074 = vrot.slane %v641, 1
  %v1075 = vsel %vm927, %v1073, %v1074
  %v1076 = vrot.slane %v865, 1
  %v1077 = vsel %vm927, %v1074, %v1076
  %1078 = vrot.lane.b32.xlu0 %v930, 16
  %v1079 = vpop.permute.xlu0 %1078
  %1080 = vrot.lane.b32.xlu0 %v932, 16
  %v1081 = vpop.permute.xlu0 %1080
  %1082 = vrot.lane.b32.xlu0 %v935, 16
  %v1083 = vpop.permute.xlu0 %1082
  %1084 = vrot.lane.b32.xlu0 %v937, 16
  %v1085 = vpop.permute.xlu0 %1084
  %1086 = vrot.lane.b32.xlu0 %v940, 16
  %v1087 = vpop.permute.xlu0 %1086
  %1088 = vrot.lane.b32.xlu0 %v942, 16
  %v1089 = vpop.permute.xlu0 %1088
  %1090 = vrot.lane.b32.xlu0 %v945, 16
  %v1091 = vpop.permute.xlu0 %1090
  %1092 = vrot.lane.b32.xlu0 %v947, 16
  %v1093 = vpop.permute.xlu0 %1092
  %1094 = vrot.lane.b32.xlu0 %v950, 16
  %v1095 = vpop.permute.xlu0 %1094
  %1096 = vrot.lane.b32.xlu0 %v952, 16
  %v1097 = vpop.permute.xlu0 %1096
  %1098 = vrot.lane.b32.xlu0 %v955, 16
  %v1099 = vpop.permute.xlu0 %1098
  %1100 = vrot.lane.b32.xlu0 %v957, 16
  %v1101 = vpop.permute.xlu0 %1100
  %1102 = vrot.lane.b32.xlu0 %v960, 16
  %v1103 = vpop.permute.xlu0 %1102
  %1104 = vrot.lane.b32.xlu0 %v962, 16
  %v1105 = vpop.permute.xlu0 %1104
  %1106 = vrot.lane.b32.xlu0 %v965, 16
  %v1107 = vpop.permute.xlu0 %1106
  %1108 = vrot.lane.b32.xlu0 %v967, 16
  %v1109 = vpop.permute.xlu0 %1108
  %1110 = vrot.lane.b32.xlu0 %v970, 16
  %v1111 = vpop.permute.xlu0 %1110
  %1112 = vrot.lane.b32.xlu0 %v972, 16
  %v1113 = vpop.permute.xlu0 %1112
  %1114 = vrot.lane.b32.xlu0 %v975, 16
  %v1115 = vpop.permute.xlu0 %1114
  %1116 = vrot.lane.b32.xlu0 %v977, 16
  %v1117 = vpop.permute.xlu0 %1116
  %1118 = vrot.lane.b32.xlu0 %v980, 16
  %v1119 = vpop.permute.xlu0 %1118
  %1120 = vrot.lane.b32.xlu0 %v982, 16
  %v1121 = vpop.permute.xlu0 %1120
  %1122 = vrot.lane.b32.xlu0 %v985, 16
  %v1123 = vpop.permute.xlu0 %1122
  %1124 = vrot.lane.b32.xlu0 %v987, 16
  %v1125 = vpop.permute.xlu0 %1124
  %1126 = vrot.lane.b32.xlu0 %v990, 16
  %v1127 = vpop.permute.xlu0 %1126
  %1128 = vrot.lane.b32.xlu0 %v992, 16
  %v1129 = vpop.permute.xlu0 %1128
  %1130 = vrot.lane.b32.xlu0 %v995, 16
  %v1131 = vpop.permute.xlu0 %1130
  %1132 = vrot.lane.b32.xlu0 %v997, 16
  %v1133 = vpop.permute.xlu0 %1132
  %1134 = vrot.lane.b32.xlu0 %v1000, 16
  %v1135 = vpop.permute.xlu0 %1134
  %1136 = vrot.lane.b32.xlu0 %v1002, 16
  %v1137 = vpop.permute.xlu0 %1136
  %1138 = vrot.lane.b32.xlu0 %v1005, 16
  %v1139 = vpop.permute.xlu0 %1138
  %1140 = vrot.lane.b32.xlu0 %v1007, 16
  %v1141 = vpop.permute.xlu0 %1140
  %1142 = vrot.lane.b32.xlu0 %v1010, 16
  %v1143 = vpop.permute.xlu0 %1142
  %1144 = vrot.lane.b32.xlu0 %v1012, 16
  %v1145 = vpop.permute.xlu0 %1144
  %1146 = vrot.lane.b32.xlu0 %v1015, 16
  %v1147 = vpop.permute.xlu0 %1146
  %1148 = vrot.lane.b32.xlu0 %v1017, 16
  %v1149 = vpop.permute.xlu0 %1148
  %1150 = vrot.lane.b32.xlu0 %v1020, 16
  %v1151 = vpop.permute.xlu0 %1150
  %1152 = vrot.lane.b32.xlu0 %v1022, 16
  %v1153 = vpop.permute.xlu0 %1152
  %1154 = vrot.lane.b32.xlu0 %v1025, 16
  %v1155 = vpop.permute.xlu0 %1154
  %1156 = vrot.lane.b32.xlu0 %v1027, 16
  %v1157 = vpop.permute.xlu0 %1156
  %1158 = vrot.lane.b32.xlu0 %v1030, 16
  %v1159 = vpop.permute.xlu0 %1158
  %1160 = vrot.lane.b32.xlu0 %v1032, 16
  %v1161 = vpop.permute.xlu0 %1160
  %1162 = vrot.lane.b32.xlu0 %v1035, 16
  %v1163 = vpop.permute.xlu0 %1162
  %1164 = vrot.lane.b32.xlu0 %v1037, 16
  %v1165 = vpop.permute.xlu0 %1164
  %1166 = vrot.lane.b32.xlu0 %v1040, 16
  %v1167 = vpop.permute.xlu0 %1166
  %1168 = vrot.lane.b32.xlu0 %v1042, 16
  %v1169 = vpop.permute.xlu0 %1168
  %1170 = vrot.lane.b32.xlu0 %v1045, 16
  %v1171 = vpop.permute.xlu0 %1170
  %1172 = vrot.lane.b32.xlu0 %v1047, 16
  %v1173 = vpop.permute.xlu0 %1172
  %1174 = vrot.lane.b32.xlu0 %v1050, 16
  %v1175 = vpop.permute.xlu0 %1174
  %1176 = vrot.lane.b32.xlu0 %v1052, 16
  %v1177 = vpop.permute.xlu0 %1176
  %1178 = vrot.lane.b32.xlu0 %v1055, 16
  %v1179 = vpop.permute.xlu0 %1178
  %1180 = vrot.lane.b32.xlu0 %v1057, 16
  %v1181 = vpop.permute.xlu0 %1180
  %1182 = vrot.lane.b32.xlu0 %v1060, 16
  %v1183 = vpop.permute.xlu0 %1182
  %1184 = vrot.lane.b32.xlu0 %v1062, 16
  %v1185 = vpop.permute.xlu0 %1184
  %1186 = vrot.lane.b32.xlu0 %v1065, 16
  %v1187 = vpop.permute.xlu0 %1186
  %1188 = vrot.lane.b32.xlu0 %v1067, 16
  %v1189 = vpop.permute.xlu0 %1188
  %1190 = vrot.lane.b32.xlu0 %v1070, 16
  %v1191 = vpop.permute.xlu0 %1190
  %1192 = vrot.lane.b32.xlu0 %v1072, 16
  %v1193 = vpop.permute.xlu0 %1192
  %1194 = vrot.lane.b32.xlu0 %v1075, 16
  %v1195 = vpop.permute.xlu0 %1194
  %1196 = vrot.lane.b32.xlu0 %v1077, 16
  %v1197 = vpop.permute.xlu0 %1196
  %vm1258 = vcmask 1045504
  %v1259 = vrot.slane %v803, 2
  %v1260 = vrot.slane %v551, 2
  %v1261 = vsel %vm1258, %v1259, %v1260
  %v1262 = vrot.slane %v835, 2
  %v1263 = vsel %vm1258, %v1260, %v1262
  %v1264 = vrot.slane %v804, 2
  %v1265 = vrot.slane %v554, 2
  %v1266 = vsel %vm1258, %v1264, %v1265
  %v1267 = vrot.slane %v836, 2
  %v1268 = vsel %vm1258, %v1265, %v1267
  %v1269 = vrot.slane %v805, 2
  %v1270 = vrot.slane %v557, 2
  %v1271 = vsel %vm1258, %v1269, %v1270
  %v1272 = vrot.slane %v837, 2
  %v1273 = vsel %vm1258, %v1270, %v1272
  %v1274 = vrot.slane %v806, 2
  %v1275 = vrot.slane %v560, 2
  %v1276 = vsel %vm1258, %v1274, %v1275
  %v1277 = vrot.slane %v838, 2
  %v1278 = vsel %vm1258, %v1275, %v1277
  %v1279 = vrot.slane %v807, 2
  %v1280 = vrot.slane %v563, 2
  %v1281 = vsel %vm1258, %v1279, %v1280
  %v1282 = vrot.slane %v839, 2
  %v1283 = vsel %vm1258, %v1280, %v1282
  %v1284 = vrot.slane %v808, 2
  %v1285 = vrot.slane %v566, 2
  %v1286 = vsel %vm1258, %v1284, %v1285
  %v1287 = vrot.slane %v840, 2
  %v1288 = vsel %vm1258, %v1285, %v1287
  %v1289 = vrot.slane %v809, 2
  %v1290 = vrot.slane %v569, 2
  %v1291 = vsel %vm1258, %v1289, %v1290
  %v1292 = vrot.slane %v841, 2
  %v1293 = vsel %vm1258, %v1290, %v1292
  %v1294 = vrot.slane %v810, 2
  %v1295 = vrot.slane %v572, 2
  %v1296 = vsel %vm1258, %v1294, %v1295
  %v1297 = vrot.slane %v842, 2
  %v1298 = vsel %vm1258, %v1295, %v1297
  %v1299 = vrot.slane %v811, 2
  %v1300 = vrot.slane %v575, 2
  %v1301 = vsel %vm1258, %v1299, %v1300
  %v1302 = vrot.slane %v843, 2
  %v1303 = vsel %vm1258, %v1300, %v1302
  %v1304 = vrot.slane %v812, 2
  %v1305 = vrot.slane %v578, 2
  %v1306 = vsel %vm1258, %v1304, %v1305
  %v1307 = vrot.slane %v844, 2
  %v1308 = vsel %vm1258, %v1305, %v1307
  %v1309 = vrot.slane %v813, 2
  %v1310 = vrot.slane %v581, 2
  %v1311 = vsel %vm1258, %v1309, %v1310
  %v1312 = vrot.slane %v845, 2
  %v1313 = vsel %vm1258, %v1310, %v1312
  %v1314 = vrot.slane %v814, 2
  %v1315 = vrot.slane %v584, 2
  %v1316 = vsel %vm1258, %v1314, %v1315
  %v1317 = vrot.slane %v846, 2
  %v1318 = vsel %vm1258, %v1315, %v1317
  %v1319 = vrot.slane %v815, 2
  %v1320 = vrot.slane %v587, 2
  %v1321 = vsel %vm1258, %v1319, %v1320
  %v1322 = vrot.slane %v847, 2
  %v1323 = vsel %vm1258, %v1320, %v1322
  %v1324 = vrot.slane %v816, 2
  %v1325 = vrot.slane %v590, 2
  %v1326 = vsel %vm1258, %v1324, %v1325
  %v1327 = vrot.slane %v848, 2
  %v1328 = vsel %vm1258, %v1325, %v1327
  %v1329 = vrot.slane %v817, 2
  %v1330 = vrot.slane %v593, 2
  %v1331 = vsel %vm1258, %v1329, %v1330
  %v1332 = vrot.slane %v849, 2
  %v1333 = vsel %vm1258, %v1330, %v1332
  %v1334 = vrot.slane %v819, 2
  %v1335 = vrot.slane %v599, 2
  %v1336 = vsel %vm1258, %v1334, %v1335
  %v1337 = vrot.slane %v851, 2
  %v1338 = vsel %vm1258, %v1335, %v1337
  %v1339 = vrot.slane %v820, 2
  %v1340 = vrot.slane %v602, 2
  %v1341 = vsel %vm1258, %v1339, %v1340
  %v1342 = vrot.slane %v852, 2
  %v1343 = vsel %vm1258, %v1340, %v1342
  %v1344 = vrot.slane %v821, 2
  %v1345 = vrot.slane %v605, 2
  %v1346 = vsel %vm1258, %v1344, %v1345
  %v1347 = vrot.slane %v853, 2
  %v1348 = vsel %vm1258, %v1345, %v1347
  %v1349 = vrot.slane %v822, 2
  %v1350 = vrot.slane %v608, 2
  %v1351 = vsel %vm1258, %v1349, %v1350
  %v1352 = vrot.slane %v854, 2
  %v1353 = vsel %vm1258, %v1350, %v1352
  %v1354 = vrot.slane %v823, 2
  %v1355 = vrot.slane %v611, 2
  %v1356 = vsel %vm1258, %v1354, %v1355
  %v1357 = vrot.slane %v855, 2
  %v1358 = vsel %vm1258, %v1355, %v1357
  %v1359 = vrot.slane %v824, 2
  %v1360 = vrot.slane %v614, 2
  %v1361 = vsel %vm1258, %v1359, %v1360
  %v1362 = vrot.slane %v856, 2
  %v1363 = vsel %vm1258, %v1360, %v1362
  %v1364 = vrot.slane %v825, 2
  %v1365 = vrot.slane %v617, 2
  %v1366 = vsel %vm1258, %v1364, %v1365
  %v1367 = vrot.slane %v857, 2
  %v1368 = vsel %vm1258, %v1365, %v1367
  %v1369 = vrot.slane %v826, 2
  %v1370 = vrot.slane %v620, 2
  %v1371 = vsel %vm1258, %v1369, %v1370
  %v1372 = vrot.slane %v858, 2
  %v1373 = vsel %vm1258, %v1370, %v1372
  %v1374 = vrot.slane %v827, 2
  %v1375 = vrot.slane %v623, 2
  %v1376 = vsel %vm1258, %v1374, %v1375
  %v1377 = vrot.slane %v859, 2
  %v1378 = vsel %vm1258, %v1375, %v1377
  %v1379 = vrot.slane %v828, 2
  %v1380 = vrot.slane %v626, 2
  %v1381 = vsel %vm1258, %v1379, %v1380
  %v1382 = vrot.slane %v860, 2
  %v1383 = vsel %vm1258, %v1380, %v1382
  %v1384 = vrot.slane %v829, 2
  %v1385 = vrot.slane %v629, 2
  %v1386 = vsel %vm1258, %v1384, %v1385
  %v1387 = vrot.slane %v861, 2
  %v1388 = vsel %vm1258, %v1385, %v1387
  %v1389 = vrot.slane %v830, 2
  %v1390 = vrot.slane %v632, 2
  %v1391 = vsel %vm1258, %v1389, %v1390
  %v1392 = vrot.slane %v862, 2
  %v1393 = vsel %vm1258, %v1390, %v1392
  %v1394 = vrot.slane %v831, 2
  %v1395 = vrot.slane %v635, 2
  %v1396 = vsel %vm1258, %v1394, %v1395
  %v1397 = vrot.slane %v863, 2
  %v1398 = vsel %vm1258, %v1395, %v1397
  %v1399 = vrot.slane %v832, 2
  %v1400 = vrot.slane %v638, 2
  %v1401 = vsel %vm1258, %v1399, %v1400
  %v1402 = vrot.slane %v864, 2
  %v1403 = vsel %vm1258, %v1400, %v1402
  %v1404 = vrot.slane %v833, 2
  %v1405 = vrot.slane %v641, 2
  %v1406 = vsel %vm1258, %v1404, %v1405
  %v1407 = vrot.slane %v865, 2
  %v1408 = vsel %vm1258, %v1405, %v1407
  %1409 = vrot.lane.b32.xlu0 %v1261, 32
  %v1410 = vpop.permute.xlu0 %1409
  %1411 = vrot.lane.b32.xlu0 %v1263, 32
  %v1412 = vpop.permute.xlu0 %1411
  %1413 = vrot.lane.b32.xlu0 %v1266, 32
  %v1414 = vpop.permute.xlu0 %1413
  %1415 = vrot.lane.b32.xlu0 %v1268, 32
  %v1416 = vpop.permute.xlu0 %1415
  %1417 = vrot.lane.b32.xlu0 %v1271, 32
  %v1418 = vpop.permute.xlu0 %1417
  %1419 = vrot.lane.b32.xlu0 %v1273, 32
  %v1420 = vpop.permute.xlu0 %1419
  %1421 = vrot.lane.b32.xlu0 %v1276, 32
  %v1422 = vpop.permute.xlu0 %1421
  %1423 = vrot.lane.b32.xlu0 %v1278, 32
  %v1424 = vpop.permute.xlu0 %1423
  %1425 = vrot.lane.b32.xlu0 %v1281, 32
  %v1426 = vpop.permute.xlu0 %1425
  %1427 = vrot.lane.b32.xlu0 %v1283, 32
  %v1428 = vpop.permute.xlu0 %1427
  %1429 = vrot.lane.b32.xlu0 %v1286, 32
  %v1430 = vpop.permute.xlu0 %1429
  %1431 = vrot.lane.b32.xlu0 %v1288, 32
  %v1432 = vpop.permute.xlu0 %1431
  %1433 = vrot.lane.b32.xlu0 %v1291, 32
  %v1434 = vpop.permute.xlu0 %1433
  %1435 = vrot.lane.b32.xlu0 %v1293, 32
  %v1436 = vpop.permute.xlu0 %1435
  %1437 = vrot.lane.b32.xlu0 %v1296, 32
  %v1438 = vpop.permute.xlu0 %1437
  %1439 = vrot.lane.b32.xlu0 %v1298, 32
  %v1440 = vpop.permute.xlu0 %1439
  %1441 = vrot.lane.b32.xlu0 %v1301, 32
  %v1442 = vpop.permute.xlu0 %1441
  %1443 = vrot.lane.b32.xlu0 %v1303, 32
  %v1444 = vpop.permute.xlu0 %1443
  %1445 = vrot.lane.b32.xlu0 %v1306, 32
  %v1446 = vpop.permute.xlu0 %1445
  %1447 = vrot.lane.b32.xlu0 %v1308, 32
  %v1448 = vpop.permute.xlu0 %1447
  %1449 = vrot.lane.b32.xlu0 %v1311, 32
  %v1450 = vpop.permute.xlu0 %1449
  %1451 = vrot.lane.b32.xlu0 %v1313, 32
  %v1452 = vpop.permute.xlu0 %1451
  %1453 = vrot.lane.b32.xlu0 %v1316, 32
  %v1454 = vpop.permute.xlu0 %1453
  %1455 = vrot.lane.b32.xlu0 %v1318, 32
  %v1456 = vpop.permute.xlu0 %1455
  %1457 = vrot.lane.b32.xlu0 %v1321, 32
  %v1458 = vpop.permute.xlu0 %1457
  %1459 = vrot.lane.b32.xlu0 %v1323, 32
  %v1460 = vpop.permute.xlu0 %1459
  %1461 = vrot.lane.b32.xlu0 %v1326, 32
  %v1462 = vpop.permute.xlu0 %1461
  %1463 = vrot.lane.b32.xlu0 %v1328, 32
  %v1464 = vpop.permute.xlu0 %1463
  %1465 = vrot.lane.b32.xlu0 %v1331, 32
  %v1466 = vpop.permute.xlu0 %1465
  %1467 = vrot.lane.b32.xlu0 %v1333, 32
  %v1468 = vpop.permute.xlu0 %1467
  %1469 = vrot.lane.b32.xlu0 %v1336, 32
  %v1470 = vpop.permute.xlu0 %1469
  %1471 = vrot.lane.b32.xlu0 %v1338, 32
  %v1472 = vpop.permute.xlu0 %1471
  %1473 = vrot.lane.b32.xlu0 %v1341, 32
  %v1474 = vpop.permute.xlu0 %1473
  %1475 = vrot.lane.b32.xlu0 %v1343, 32
  %v1476 = vpop.permute.xlu0 %1475
  %1477 = vrot.lane.b32.xlu0 %v1346, 32
  %v1478 = vpop.permute.xlu0 %1477
  %1479 = vrot.lane.b32.xlu0 %v1348, 32
  %v1480 = vpop.permute.xlu0 %1479
  %1481 = vrot.lane.b32.xlu0 %v1351, 32
  %v1482 = vpop.permute.xlu0 %1481
  %1483 = vrot.lane.b32.xlu0 %v1353, 32
  %v1484 = vpop.permute.xlu0 %1483
  %1485 = vrot.lane.b32.xlu0 %v1356, 32
  %v1486 = vpop.permute.xlu0 %1485
  %1487 = vrot.lane.b32.xlu0 %v1358, 32
  %v1488 = vpop.permute.xlu0 %1487
  %1489 = vrot.lane.b32.xlu0 %v1361, 32
  %v1490 = vpop.permute.xlu0 %1489
  %1491 = vrot.lane.b32.xlu0 %v1363, 32
  %v1492 = vpop.permute.xlu0 %1491
  %1493 = vrot.lane.b32.xlu0 %v1366, 32
  %v1494 = vpop.permute.xlu0 %1493
  %1495 = vrot.lane.b32.xlu0 %v1368, 32
  %v1496 = vpop.permute.xlu0 %1495
  %1497 = vrot.lane.b32.xlu0 %v1371, 32
  %v1498 = vpop.permute.xlu0 %1497
  %1499 = vrot.lane.b32.xlu0 %v1373, 32
  %v1500 = vpop.permute.xlu0 %1499
  %1501 = vrot.lane.b32.xlu0 %v1376, 32
  %v1502 = vpop.permute.xlu0 %1501
  %1503 = vrot.lane.b32.xlu0 %v1378, 32
  %v1504 = vpop.permute.xlu0 %1503
  %1505 = vrot.lane.b32.xlu0 %v1381, 32
  %v1506 = vpop.permute.xlu0 %1505
  %1507 = vrot.lane.b32.xlu0 %v1383, 32
  %v1508 = vpop.permute.xlu0 %1507
  %1509 = vrot.lane.b32.xlu0 %v1386, 32
  %v1510 = vpop.permute.xlu0 %1509
  %1511 = vrot.lane.b32.xlu0 %v1388, 32
  %v1512 = vpop.permute.xlu0 %1511
  %1513 = vrot.lane.b32.xlu0 %v1391, 32
  %v1514 = vpop.permute.xlu0 %1513
  %1515 = vrot.lane.b32.xlu0 %v1393, 32
  %v1516 = vpop.permute.xlu0 %1515
  %1517 = vrot.lane.b32.xlu0 %v1396, 32
  %v1518 = vpop.permute.xlu0 %1517
  %1519 = vrot.lane.b32.xlu0 %v1398, 32
  %v1520 = vpop.permute.xlu0 %1519
  %1521 = vrot.lane.b32.xlu0 %v1401, 32
  %v1522 = vpop.permute.xlu0 %1521
  %1523 = vrot.lane.b32.xlu0 %v1403, 32
  %v1524 = vpop.permute.xlu0 %1523
  %1525 = vrot.lane.b32.xlu0 %v1406, 32
  %v1526 = vpop.permute.xlu0 %1525
  %1527 = vrot.lane.b32.xlu0 %v1408, 32
  %v1528 = vpop.permute.xlu0 %1527
  %1591 = vrot.lane.b32.xlu0 %v804, 48
  %v1592 = vpop.permute.xlu0 %1591
  %1593 = vrot.lane.b32.xlu0 %v554, 48
  %v1594 = vpop.permute.xlu0 %1593
  %1595 = vrot.lane.b32.xlu0 %v803, 48
  %v1596 = vpop.permute.xlu0 %1595
  %1597 = vrot.lane.b32.xlu0 %v551, 48
  %v1598 = vpop.permute.xlu0 %1597
  %1599 = vrot.lane.b32.xlu0 %v805, 48
  %v1600 = vpop.permute.xlu0 %1599
  %1601 = vrot.lane.b32.xlu0 %v557, 48
  %v1602 = vpop.permute.xlu0 %1601
  %1603 = vrot.lane.b32.xlu0 %v806, 48
  %v1604 = vpop.permute.xlu0 %1603
  %1605 = vrot.lane.b32.xlu0 %v560, 48
  %v1606 = vpop.permute.xlu0 %1605
  %1607 = vrot.lane.b32.xlu0 %v807, 48
  %v1608 = vpop.permute.xlu0 %1607
  %1609 = vrot.lane.b32.xlu0 %v563, 48
  %v1610 = vpop.permute.xlu0 %1609
  %1611 = vrot.lane.b32.xlu0 %v808, 48
  %v1612 = vpop.permute.xlu0 %1611
  %1613 = vrot.lane.b32.xlu0 %v566, 48
  %v1614 = vpop.permute.xlu0 %1613
  %1615 = vrot.lane.b32.xlu0 %v809, 48
  %v1616 = vpop.permute.xlu0 %1615
  %1617 = vrot.lane.b32.xlu0 %v569, 48
  %v1618 = vpop.permute.xlu0 %1617
  %1619 = vrot.lane.b32.xlu0 %v810, 48
  %v1620 = vpop.permute.xlu0 %1619
  %1621 = vrot.lane.b32.xlu0 %v572, 48
  %v1622 = vpop.permute.xlu0 %1621
  %1623 = vrot.lane.b32.xlu0 %v811, 48
  %v1624 = vpop.permute.xlu0 %1623
  %1625 = vrot.lane.b32.xlu0 %v575, 48
  %v1626 = vpop.permute.xlu0 %1625
  %1627 = vrot.lane.b32.xlu0 %v812, 48
  %v1628 = vpop.permute.xlu0 %1627
  %1629 = vrot.lane.b32.xlu0 %v578, 48
  %v1630 = vpop.permute.xlu0 %1629
  %1631 = vrot.lane.b32.xlu0 %v813, 48
  %v1632 = vpop.permute.xlu0 %1631
  %1633 = vrot.lane.b32.xlu0 %v581, 48
  %v1634 = vpop.permute.xlu0 %1633
  %1635 = vrot.lane.b32.xlu0 %v814, 48
  %v1636 = vpop.permute.xlu0 %1635
  %1637 = vrot.lane.b32.xlu0 %v584, 48
  %v1638 = vpop.permute.xlu0 %1637
  %1639 = vrot.lane.b32.xlu0 %v815, 48
  %v1640 = vpop.permute.xlu0 %1639
  %1641 = vrot.lane.b32.xlu0 %v587, 48
  %v1642 = vpop.permute.xlu0 %1641
  %1643 = vrot.lane.b32.xlu0 %v816, 48
  %v1644 = vpop.permute.xlu0 %1643
  %1645 = vrot.lane.b32.xlu0 %v590, 48
  %v1646 = vpop.permute.xlu0 %1645
  %1647 = vrot.lane.b32.xlu0 %v817, 48
  %v1648 = vpop.permute.xlu0 %1647
  %1649 = vrot.lane.b32.xlu0 %v593, 48
  %v1650 = vpop.permute.xlu0 %1649
  %1651 = vrot.lane.b32.xlu0 %v818, 48
  %v1652 = vpop.permute.xlu0 %1651
  %1653 = vrot.lane.b32.xlu0 %v596, 48
  %v1654 = vpop.permute.xlu0 %1653
  %1655 = vrot.lane.b32.xlu0 %v820, 48
  %v1656 = vpop.permute.xlu0 %1655
  %1657 = vrot.lane.b32.xlu0 %v602, 48
  %v1658 = vpop.permute.xlu0 %1657
  %1659 = vrot.lane.b32.xlu0 %v819, 48
  %v1660 = vpop.permute.xlu0 %1659
  %1661 = vrot.lane.b32.xlu0 %v599, 48
  %v1662 = vpop.permute.xlu0 %1661
  %1663 = vrot.lane.b32.xlu0 %v821, 48
  %v1664 = vpop.permute.xlu0 %1663
  %1665 = vrot.lane.b32.xlu0 %v605, 48
  %v1666 = vpop.permute.xlu0 %1665
  %1667 = vrot.lane.b32.xlu0 %v822, 48
  %v1668 = vpop.permute.xlu0 %1667
  %1669 = vrot.lane.b32.xlu0 %v608, 48
  %v1670 = vpop.permute.xlu0 %1669
  %1671 = vrot.lane.b32.xlu0 %v823, 48
  %v1672 = vpop.permute.xlu0 %1671
  %1673 = vrot.lane.b32.xlu0 %v611, 48
  %v1674 = vpop.permute.xlu0 %1673
  %1675 = vrot.lane.b32.xlu0 %v824, 48
  %v1676 = vpop.permute.xlu0 %1675
  %1677 = vrot.lane.b32.xlu0 %v614, 48
  %v1678 = vpop.permute.xlu0 %1677
  %1679 = vrot.lane.b32.xlu0 %v825, 48
  %v1680 = vpop.permute.xlu0 %1679
  %1681 = vrot.lane.b32.xlu0 %v617, 48
  %v1682 = vpop.permute.xlu0 %1681
  %1683 = vrot.lane.b32.xlu0 %v826, 48
  %v1684 = vpop.permute.xlu0 %1683
  %1685 = vrot.lane.b32.xlu0 %v620, 48
  %v1686 = vpop.permute.xlu0 %1685
  %1687 = vrot.lane.b32.xlu0 %v827, 48
  %v1688 = vpop.permute.xlu0 %1687
  %1689 = vrot.lane.b32.xlu0 %v623, 48
  %v1690 = vpop.permute.xlu0 %1689
  %1691 = vrot.lane.b32.xlu0 %v828, 48
  %v1692 = vpop.permute.xlu0 %1691
  %1693 = vrot.lane.b32.xlu0 %v626, 48
  %v1694 = vpop.permute.xlu0 %1693
  %1695 = vrot.lane.b32.xlu0 %v829, 48
  %v1696 = vpop.permute.xlu0 %1695
  %1697 = vrot.lane.b32.xlu0 %v629, 48
  %v1698 = vpop.permute.xlu0 %1697
  %1699 = vrot.lane.b32.xlu0 %v830, 48
  %v1700 = vpop.permute.xlu0 %1699
  %1701 = vrot.lane.b32.xlu0 %v632, 48
  %v1702 = vpop.permute.xlu0 %1701
  %1703 = vrot.lane.b32.xlu0 %v831, 48
  %v1704 = vpop.permute.xlu0 %1703
  %1705 = vrot.lane.b32.xlu0 %v635, 48
  %v1706 = vpop.permute.xlu0 %1705
  %1707 = vrot.lane.b32.xlu0 %v832, 48
  %v1708 = vpop.permute.xlu0 %1707
  %1709 = vrot.lane.b32.xlu0 %v638, 48
  %v1710 = vpop.permute.xlu0 %1709
  %1711 = vrot.lane.b32.xlu0 %v833, 48
  %v1712 = vpop.permute.xlu0 %1711
  %1713 = vrot.lane.b32.xlu0 %v641, 48
  %v1714 = vpop.permute.xlu0 %1713
  %1715 = vrot.lane.b32.xlu0 %v834, 48
  %v1716 = vpop.permute.xlu0 %1715
  %1717 = vrot.lane.b32.xlu0 %v644, 48
  %v1718 = vpop.permute.xlu0 %1717
  %v1785 = vrot.slane %v818, 1
  %v1786 = vrot.slane %v596, 1
  %v1787 = vsel %vm927, %v1785, %v1786
  %v1788 = vrot.slane %v850, 1
  %v1789 = vsel %vm927, %v1786, %v1788
  %v1790 = vrot.slane %v834, 1
  %v1791 = vrot.slane %v644, 1
  %v1792 = vsel %vm927, %v1790, %v1791
  %v1793 = vrot.slane %v866, 1
  %v1794 = vsel %vm927, %v1791, %v1793
  %1795 = vrot.lane.b32.xlu0 %v935, 64
  %v1796 = vpop.permute.xlu0 %1795
  %1797 = vrot.lane.b32.xlu0 %v937, 64
  %v1798 = vpop.permute.xlu0 %1797
  %1799 = vrot.lane.b32.xlu0 %v930, 64
  %v1800 = vpop.permute.xlu0 %1799
  %1801 = vrot.lane.b32.xlu0 %v932, 64
  %v1802 = vpop.permute.xlu0 %1801
  %1803 = vrot.lane.b32.xlu0 %v940, 64
  %v1804 = vpop.permute.xlu0 %1803
  %1805 = vrot.lane.b32.xlu0 %v942, 64
  %v1806 = vpop.permute.xlu0 %1805
  %1807 = vrot.lane.b32.xlu0 %v945, 64
  %v1808 = vpop.permute.xlu0 %1807
  %1809 = vrot.lane.b32.xlu0 %v947, 64
  %v1810 = vpop.permute.xlu0 %1809
  %1811 = vrot.lane.b32.xlu0 %v950, 64
  %v1812 = vpop.permute.xlu0 %1811
  %1813 = vrot.lane.b32.xlu0 %v952, 64
  %v1814 = vpop.permute.xlu0 %1813
  %1815 = vrot.lane.b32.xlu0 %v955, 64
  %v1816 = vpop.permute.xlu0 %1815
  %1817 = vrot.lane.b32.xlu0 %v957, 64
  %v1818 = vpop.permute.xlu0 %1817
  %1819 = vrot.lane.b32.xlu0 %v960, 64
  %v1820 = vpop.permute.xlu0 %1819
  %1821 = vrot.lane.b32.xlu0 %v962, 64
  %v1822 = vpop.permute.xlu0 %1821
  %1823 = vrot.lane.b32.xlu0 %v965, 64
  %v1824 = vpop.permute.xlu0 %1823
  %1825 = vrot.lane.b32.xlu0 %v967, 64
  %v1826 = vpop.permute.xlu0 %1825
  %1827 = vrot.lane.b32.xlu0 %v970, 64
  %v1828 = vpop.permute.xlu0 %1827
  %1829 = vrot.lane.b32.xlu0 %v972, 64
  %v1830 = vpop.permute.xlu0 %1829
  %1831 = vrot.lane.b32.xlu0 %v975, 64
  %v1832 = vpop.permute.xlu0 %1831
  %1833 = vrot.lane.b32.xlu0 %v977, 64
  %v1834 = vpop.permute.xlu0 %1833
  %1835 = vrot.lane.b32.xlu0 %v980, 64
  %v1836 = vpop.permute.xlu0 %1835
  %1837 = vrot.lane.b32.xlu0 %v982, 64
  %v1838 = vpop.permute.xlu0 %1837
  %1839 = vrot.lane.b32.xlu0 %v985, 64
  %v1840 = vpop.permute.xlu0 %1839
  %1841 = vrot.lane.b32.xlu0 %v987, 64
  %v1842 = vpop.permute.xlu0 %1841
  %1843 = vrot.lane.b32.xlu0 %v990, 64
  %v1844 = vpop.permute.xlu0 %1843
  %1845 = vrot.lane.b32.xlu0 %v992, 64
  %v1846 = vpop.permute.xlu0 %1845
  %1847 = vrot.lane.b32.xlu0 %v995, 64
  %v1848 = vpop.permute.xlu0 %1847
  %1849 = vrot.lane.b32.xlu0 %v997, 64
  %v1850 = vpop.permute.xlu0 %1849
  %1851 = vrot.lane.b32.xlu0 %v1000, 64
  %v1852 = vpop.permute.xlu0 %1851
  %1853 = vrot.lane.b32.xlu0 %v1002, 64
  %v1854 = vpop.permute.xlu0 %1853
  %1855 = vrot.lane.b32.xlu0 %v1787, 64
  %v1856 = vpop.permute.xlu0 %1855
  %1857 = vrot.lane.b32.xlu0 %v1789, 64
  %v1858 = vpop.permute.xlu0 %1857
  %1859 = vrot.lane.b32.xlu0 %v1010, 64
  %v1860 = vpop.permute.xlu0 %1859
  %1861 = vrot.lane.b32.xlu0 %v1012, 64
  %v1862 = vpop.permute.xlu0 %1861
  %1863 = vrot.lane.b32.xlu0 %v1005, 64
  %v1864 = vpop.permute.xlu0 %1863
  %1865 = vrot.lane.b32.xlu0 %v1007, 64
  %v1866 = vpop.permute.xlu0 %1865
  %1867 = vrot.lane.b32.xlu0 %v1015, 64
  %v1868 = vpop.permute.xlu0 %1867
  %1869 = vrot.lane.b32.xlu0 %v1017, 64
  %v1870 = vpop.permute.xlu0 %1869
  %1871 = vrot.lane.b32.xlu0 %v1020, 64
  %v1872 = vpop.permute.xlu0 %1871
  %1873 = vrot.lane.b32.xlu0 %v1022, 64
  %v1874 = vpop.permute.xlu0 %1873
  %1875 = vrot.lane.b32.xlu0 %v1025, 64
  %v1876 = vpop.permute.xlu0 %1875
  %1877 = vrot.lane.b32.xlu0 %v1027, 64
  %v1878 = vpop.permute.xlu0 %1877
  %1879 = vrot.lane.b32.xlu0 %v1030, 64
  %v1880 = vpop.permute.xlu0 %1879
  %1881 = vrot.lane.b32.xlu0 %v1032, 64
  %v1882 = vpop.permute.xlu0 %1881
  %1883 = vrot.lane.b32.xlu0 %v1035, 64
  %v1884 = vpop.permute.xlu0 %1883
  %1885 = vrot.lane.b32.xlu0 %v1037, 64
  %v1886 = vpop.permute.xlu0 %1885
  %1887 = vrot.lane.b32.xlu0 %v1040, 64
  %v1888 = vpop.permute.xlu0 %1887
  %1889 = vrot.lane.b32.xlu0 %v1042, 64
  %v1890 = vpop.permute.xlu0 %1889
  %1891 = vrot.lane.b32.xlu0 %v1045, 64
  %v1892 = vpop.permute.xlu0 %1891
  %1893 = vrot.lane.b32.xlu0 %v1047, 64
  %v1894 = vpop.permute.xlu0 %1893
  %1895 = vrot.lane.b32.xlu0 %v1050, 64
  %v1896 = vpop.permute.xlu0 %1895
  %1897 = vrot.lane.b32.xlu0 %v1052, 64
  %v1898 = vpop.permute.xlu0 %1897
  %1899 = vrot.lane.b32.xlu0 %v1055, 64
  %v1900 = vpop.permute.xlu0 %1899
  %1901 = vrot.lane.b32.xlu0 %v1057, 64
  %v1902 = vpop.permute.xlu0 %1901
  %1903 = vrot.lane.b32.xlu0 %v1060, 64
  %v1904 = vpop.permute.xlu0 %1903
  %1905 = vrot.lane.b32.xlu0 %v1062, 64
  %v1906 = vpop.permute.xlu0 %1905
  %1907 = vrot.lane.b32.xlu0 %v1065, 64
  %v1908 = vpop.permute.xlu0 %1907
  %1909 = vrot.lane.b32.xlu0 %v1067, 64
  %v1910 = vpop.permute.xlu0 %1909
  %1911 = vrot.lane.b32.xlu0 %v1070, 64
  %v1912 = vpop.permute.xlu0 %1911
  %1913 = vrot.lane.b32.xlu0 %v1072, 64
  %v1914 = vpop.permute.xlu0 %1913
  %1915 = vrot.lane.b32.xlu0 %v1075, 64
  %v1916 = vpop.permute.xlu0 %1915
  %1917 = vrot.lane.b32.xlu0 %v1077, 64
  %v1918 = vpop.permute.xlu0 %1917
  %1919 = vrot.lane.b32.xlu0 %v1792, 64
  %v1920 = vpop.permute.xlu0 %1919
  %1921 = vrot.lane.b32.xlu0 %v1794, 64
  %v1922 = vpop.permute.xlu0 %1921
  %v1987 = vrot.slane %v818, 2
  %v1988 = vrot.slane %v596, 2
  %v1989 = vsel %vm1258, %v1987, %v1988
  %v1990 = vrot.slane %v850, 2
  %v1991 = vsel %vm1258, %v1988, %v1990
  %v1992 = vrot.slane %v834, 2
  %v1993 = vrot.slane %v644, 2
  %v1994 = vsel %vm1258, %v1992, %v1993
  %v1995 = vrot.slane %v866, 2
  %v1996 = vsel %vm1258, %v1993, %v1995
  %1997 = vrot.lane.b32.xlu0 %v1266, 80
  %v1998 = vpop.permute.xlu0 %1997
  %1999 = vrot.lane.b32.xlu0 %v1268, 80
  %v2000 = vpop.permute.xlu0 %1999
  %2001 = vrot.lane.b32.xlu0 %v1261, 80
  %v2002 = vpop.permute.xlu0 %2001
  %2003 = vrot.lane.b32.xlu0 %v1263, 80
  %v2004 = vpop.permute.xlu0 %2003
  %2005 = vrot.lane.b32.xlu0 %v1271, 80
  %v2006 = vpop.permute.xlu0 %2005
  %2007 = vrot.lane.b32.xlu0 %v1273, 80
  %v2008 = vpop.permute.xlu0 %2007
  %2009 = vrot.lane.b32.xlu0 %v1276, 80
  %v2010 = vpop.permute.xlu0 %2009
  %2011 = vrot.lane.b32.xlu0 %v1278, 80
  %v2012 = vpop.permute.xlu0 %2011
  %2013 = vrot.lane.b32.xlu0 %v1281, 80
  %v2014 = vpop.permute.xlu0 %2013
  %2015 = vrot.lane.b32.xlu0 %v1283, 80
  %v2016 = vpop.permute.xlu0 %2015
  %2017 = vrot.lane.b32.xlu0 %v1286, 80
  %v2018 = vpop.permute.xlu0 %2017
  %2019 = vrot.lane.b32.xlu0 %v1288, 80
  %v2020 = vpop.permute.xlu0 %2019
  %2021 = vrot.lane.b32.xlu0 %v1291, 80
  %v2022 = vpop.permute.xlu0 %2021
  %2023 = vrot.lane.b32.xlu0 %v1293, 80
  %v2024 = vpop.permute.xlu0 %2023
  %2025 = vrot.lane.b32.xlu0 %v1296, 80
  %v2026 = vpop.permute.xlu0 %2025
  %2027 = vrot.lane.b32.xlu0 %v1298, 80
  %v2028 = vpop.permute.xlu0 %2027
  %2029 = vrot.lane.b32.xlu0 %v1301, 80
  %v2030 = vpop.permute.xlu0 %2029
  %2031 = vrot.lane.b32.xlu0 %v1303, 80
  %v2032 = vpop.permute.xlu0 %2031
  %2033 = vrot.lane.b32.xlu0 %v1306, 80
  %v2034 = vpop.permute.xlu0 %2033
  %2035 = vrot.lane.b32.xlu0 %v1308, 80
  %v2036 = vpop.permute.xlu0 %2035
  %2037 = vrot.lane.b32.xlu0 %v1311, 80
  %v2038 = vpop.permute.xlu0 %2037
  %2039 = vrot.lane.b32.xlu0 %v1313, 80
  %v2040 = vpop.permute.xlu0 %2039
  %2041 = vrot.lane.b32.xlu0 %v1316, 80
  %v2042 = vpop.permute.xlu0 %2041
  %2043 = vrot.lane.b32.xlu0 %v1318, 80
  %v2044 = vpop.permute.xlu0 %2043
  %2045 = vrot.lane.b32.xlu0 %v1321, 80
  %v2046 = vpop.permute.xlu0 %2045
  %2047 = vrot.lane.b32.xlu0 %v1323, 80
  %v2048 = vpop.permute.xlu0 %2047
  %2049 = vrot.lane.b32.xlu0 %v1326, 80
  %v2050 = vpop.permute.xlu0 %2049
  %2051 = vrot.lane.b32.xlu0 %v1328, 80
  %v2052 = vpop.permute.xlu0 %2051
  %2053 = vrot.lane.b32.xlu0 %v1331, 80
  %v2054 = vpop.permute.xlu0 %2053
  %2055 = vrot.lane.b32.xlu0 %v1333, 80
  %v2056 = vpop.permute.xlu0 %2055
  %2057 = vrot.lane.b32.xlu0 %v1989, 80
  %v2058 = vpop.permute.xlu0 %2057
  %2059 = vrot.lane.b32.xlu0 %v1991, 80
  %v2060 = vpop.permute.xlu0 %2059
  %2061 = vrot.lane.b32.xlu0 %v1341, 80
  %v2062 = vpop.permute.xlu0 %2061
  %2063 = vrot.lane.b32.xlu0 %v1343, 80
  %v2064 = vpop.permute.xlu0 %2063
  %2065 = vrot.lane.b32.xlu0 %v1336, 80
  %v2066 = vpop.permute.xlu0 %2065
  %2067 = vrot.lane.b32.xlu0 %v1338, 80
  %v2068 = vpop.permute.xlu0 %2067
  %2069 = vrot.lane.b32.xlu0 %v1346, 80
  %v2070 = vpop.permute.xlu0 %2069
  %2071 = vrot.lane.b32.xlu0 %v1348, 80
  %v2072 = vpop.permute.xlu0 %2071
  %2073 = vrot.lane.b32.xlu0 %v1351, 80
  %v2074 = vpop.permute.xlu0 %2073
  %2075 = vrot.lane.b32.xlu0 %v1353, 80
  %v2076 = vpop.permute.xlu0 %2075
  %2077 = vrot.lane.b32.xlu0 %v1356, 80
  %v2078 = vpop.permute.xlu0 %2077
  %2079 = vrot.lane.b32.xlu0 %v1358, 80
  %v2080 = vpop.permute.xlu0 %2079
  %2081 = vrot.lane.b32.xlu0 %v1361, 80
  %v2082 = vpop.permute.xlu0 %2081
  %2083 = vrot.lane.b32.xlu0 %v1363, 80
  %v2084 = vpop.permute.xlu0 %2083
  %2085 = vrot.lane.b32.xlu0 %v1366, 80
  %v2086 = vpop.permute.xlu0 %2085
  %2087 = vrot.lane.b32.xlu0 %v1368, 80
  %v2088 = vpop.permute.xlu0 %2087
  %2089 = vrot.lane.b32.xlu0 %v1371, 80
  %v2090 = vpop.permute.xlu0 %2089
  %2091 = vrot.lane.b32.xlu0 %v1373, 80
  %v2092 = vpop.permute.xlu0 %2091
  %2093 = vrot.lane.b32.xlu0 %v1376, 80
  %v2094 = vpop.permute.xlu0 %2093
  %2095 = vrot.lane.b32.xlu0 %v1378, 80
  %v2096 = vpop.permute.xlu0 %2095
  %2097 = vrot.lane.b32.xlu0 %v1381, 80
  %v2098 = vpop.permute.xlu0 %2097
  %2099 = vrot.lane.b32.xlu0 %v1383, 80
  %v2100 = vpop.permute.xlu0 %2099
  %2101 = vrot.lane.b32.xlu0 %v1386, 80
  %v2102 = vpop.permute.xlu0 %2101
  %2103 = vrot.lane.b32.xlu0 %v1388, 80
  %v2104 = vpop.permute.xlu0 %2103
  %2105 = vrot.lane.b32.xlu0 %v1391, 80
  %v2106 = vpop.permute.xlu0 %2105
  %2107 = vrot.lane.b32.xlu0 %v1393, 80
  %v2108 = vpop.permute.xlu0 %2107
  %2109 = vrot.lane.b32.xlu0 %v1396, 80
  %v2110 = vpop.permute.xlu0 %2109
  %2111 = vrot.lane.b32.xlu0 %v1398, 80
  %v2112 = vpop.permute.xlu0 %2111
  %2113 = vrot.lane.b32.xlu0 %v1401, 80
  %v2114 = vpop.permute.xlu0 %2113
  %2115 = vrot.lane.b32.xlu0 %v1403, 80
  %v2116 = vpop.permute.xlu0 %2115
  %2117 = vrot.lane.b32.xlu0 %v1406, 80
  %v2118 = vpop.permute.xlu0 %2117
  %2119 = vrot.lane.b32.xlu0 %v1408, 80
  %v2120 = vpop.permute.xlu0 %2119
  %2121 = vrot.lane.b32.xlu0 %v1994, 80
  %v2122 = vpop.permute.xlu0 %2121
  %2123 = vrot.lane.b32.xlu0 %v1996, 80
  %v2124 = vpop.permute.xlu0 %2123
  %2189 = vrot.lane.b32.xlu0 %v803, 96
  %v2190 = vpop.permute.xlu0 %2189
  %2191 = vrot.lane.b32.xlu0 %v551, 96
  %v2192 = vpop.permute.xlu0 %2191
  %2193 = vrot.lane.b32.xlu0 %v805, 96
  %v2194 = vpop.permute.xlu0 %2193
  %2195 = vrot.lane.b32.xlu0 %v557, 96
  %v2196 = vpop.permute.xlu0 %2195
  %2197 = vrot.lane.b32.xlu0 %v806, 96
  %v2198 = vpop.permute.xlu0 %2197
  %2199 = vrot.lane.b32.xlu0 %v560, 96
  %v2200 = vpop.permute.xlu0 %2199
  %2201 = vrot.lane.b32.xlu0 %v807, 96
  %v2202 = vpop.permute.xlu0 %2201
  %2203 = vrot.lane.b32.xlu0 %v563, 96
  %v2204 = vpop.permute.xlu0 %2203
  %2205 = vrot.lane.b32.xlu0 %v808, 96
  %v2206 = vpop.permute.xlu0 %2205
  %2207 = vrot.lane.b32.xlu0 %v566, 96
  %v2208 = vpop.permute.xlu0 %2207
  %2209 = vrot.lane.b32.xlu0 %v809, 96
  %v2210 = vpop.permute.xlu0 %2209
  %2211 = vrot.lane.b32.xlu0 %v569, 96
  %v2212 = vpop.permute.xlu0 %2211
  %2213 = vrot.lane.b32.xlu0 %v810, 96
  %v2214 = vpop.permute.xlu0 %2213
  %2215 = vrot.lane.b32.xlu0 %v572, 96
  %v2216 = vpop.permute.xlu0 %2215
  %2217 = vrot.lane.b32.xlu0 %v811, 96
  %v2218 = vpop.permute.xlu0 %2217
  %2219 = vrot.lane.b32.xlu0 %v575, 96
  %v2220 = vpop.permute.xlu0 %2219
  %2221 = vrot.lane.b32.xlu0 %v812, 96
  %v2222 = vpop.permute.xlu0 %2221
  %2223 = vrot.lane.b32.xlu0 %v578, 96
  %v2224 = vpop.permute.xlu0 %2223
  %2225 = vrot.lane.b32.xlu0 %v813, 96
  %v2226 = vpop.permute.xlu0 %2225
  %2227 = vrot.lane.b32.xlu0 %v581, 96
  %v2228 = vpop.permute.xlu0 %2227
  %2229 = vrot.lane.b32.xlu0 %v814, 96
  %v2230 = vpop.permute.xlu0 %2229
  %2231 = vrot.lane.b32.xlu0 %v584, 96
  %v2232 = vpop.permute.xlu0 %2231
  %2233 = vrot.lane.b32.xlu0 %v815, 96
  %v2234 = vpop.permute.xlu0 %2233
  %2235 = vrot.lane.b32.xlu0 %v587, 96
  %v2236 = vpop.permute.xlu0 %2235
  %2237 = vrot.lane.b32.xlu0 %v816, 96
  %v2238 = vpop.permute.xlu0 %2237
  %2239 = vrot.lane.b32.xlu0 %v590, 96
  %v2240 = vpop.permute.xlu0 %2239
  %2241 = vrot.lane.b32.xlu0 %v817, 96
  %v2242 = vpop.permute.xlu0 %2241
  %2243 = vrot.lane.b32.xlu0 %v593, 96
  %v2244 = vpop.permute.xlu0 %2243
  %2245 = vrot.lane.b32.xlu0 %v818, 96
  %v2246 = vpop.permute.xlu0 %2245
  %2247 = vrot.lane.b32.xlu0 %v596, 96
  %v2248 = vpop.permute.xlu0 %2247
  %2249 = vrot.lane.b32.xlu0 %v819, 96
  %v2250 = vpop.permute.xlu0 %2249
  %2251 = vrot.lane.b32.xlu0 %v599, 96
  %v2252 = vpop.permute.xlu0 %2251
  %2253 = vrot.lane.b32.xlu0 %v821, 96
  %v2254 = vpop.permute.xlu0 %2253
  %2255 = vrot.lane.b32.xlu0 %v605, 96
  %v2256 = vpop.permute.xlu0 %2255
  %2257 = vrot.lane.b32.xlu0 %v822, 96
  %v2258 = vpop.permute.xlu0 %2257
  %2259 = vrot.lane.b32.xlu0 %v608, 96
  %v2260 = vpop.permute.xlu0 %2259
  %2261 = vrot.lane.b32.xlu0 %v823, 96
  %v2262 = vpop.permute.xlu0 %2261
  %2263 = vrot.lane.b32.xlu0 %v611, 96
  %v2264 = vpop.permute.xlu0 %2263
  %2265 = vrot.lane.b32.xlu0 %v824, 96
  %v2266 = vpop.permute.xlu0 %2265
  %2267 = vrot.lane.b32.xlu0 %v614, 96
  %v2268 = vpop.permute.xlu0 %2267
  %2269 = vrot.lane.b32.xlu0 %v825, 96
  %v2270 = vpop.permute.xlu0 %2269
  %2271 = vrot.lane.b32.xlu0 %v617, 96
  %v2272 = vpop.permute.xlu0 %2271
  %2273 = vrot.lane.b32.xlu0 %v826, 96
  %v2274 = vpop.permute.xlu0 %2273
  %2275 = vrot.lane.b32.xlu0 %v620, 96
  %v2276 = vpop.permute.xlu0 %2275
  %2277 = vrot.lane.b32.xlu0 %v827, 96
  %v2278 = vpop.permute.xlu0 %2277
  %2279 = vrot.lane.b32.xlu0 %v623, 96
  %v2280 = vpop.permute.xlu0 %2279
  %2281 = vrot.lane.b32.xlu0 %v828, 96
  %v2282 = vpop.permute.xlu0 %2281
  %2283 = vrot.lane.b32.xlu0 %v626, 96
  %v2284 = vpop.permute.xlu0 %2283
  %2285 = vrot.lane.b32.xlu0 %v829, 96
  %v2286 = vpop.permute.xlu0 %2285
  %2287 = vrot.lane.b32.xlu0 %v629, 96
  %v2288 = vpop.permute.xlu0 %2287
  %2289 = vrot.lane.b32.xlu0 %v830, 96
  %v2290 = vpop.permute.xlu0 %2289
  %2291 = vrot.lane.b32.xlu0 %v632, 96
  %v2292 = vpop.permute.xlu0 %2291
  %2293 = vrot.lane.b32.xlu0 %v831, 96
  %v2294 = vpop.permute.xlu0 %2293
  %2295 = vrot.lane.b32.xlu0 %v635, 96
  %v2296 = vpop.permute.xlu0 %2295
  %2297 = vrot.lane.b32.xlu0 %v832, 96
  %v2298 = vpop.permute.xlu0 %2297
  %2299 = vrot.lane.b32.xlu0 %v638, 96
  %v2300 = vpop.permute.xlu0 %2299
  %2301 = vrot.lane.b32.xlu0 %v833, 96
  %v2302 = vpop.permute.xlu0 %2301
  %2303 = vrot.lane.b32.xlu0 %v641, 96
  %v2304 = vpop.permute.xlu0 %2303
  %2305 = vrot.lane.b32.xlu0 %v834, 96
  %v2306 = vpop.permute.xlu0 %2305
  %2307 = vrot.lane.b32.xlu0 %v644, 96
  %v2308 = vpop.permute.xlu0 %2307
  %2369 = vrot.lane.b32.xlu0 %v930, 112
  %v2370 = vpop.permute.xlu0 %2369
  %2371 = vrot.lane.b32.xlu0 %v932, 112
  %v2372 = vpop.permute.xlu0 %2371
  %2373 = vrot.lane.b32.xlu0 %v940, 112
  %v2374 = vpop.permute.xlu0 %2373
  %2375 = vrot.lane.b32.xlu0 %v942, 112
  %v2376 = vpop.permute.xlu0 %2375
  %2377 = vrot.lane.b32.xlu0 %v945, 112
  %v2378 = vpop.permute.xlu0 %2377
  %2379 = vrot.lane.b32.xlu0 %v947, 112
  %v2380 = vpop.permute.xlu0 %2379
  %2381 = vrot.lane.b32.xlu0 %v950, 112
  %v2382 = vpop.permute.xlu0 %2381
  %2383 = vrot.lane.b32.xlu0 %v952, 112
  %v2384 = vpop.permute.xlu0 %2383
  %2385 = vrot.lane.b32.xlu0 %v955, 112
  %v2386 = vpop.permute.xlu0 %2385
  %2387 = vrot.lane.b32.xlu0 %v957, 112
  %v2388 = vpop.permute.xlu0 %2387
  %2389 = vrot.lane.b32.xlu0 %v960, 112
  %v2390 = vpop.permute.xlu0 %2389
  %2391 = vrot.lane.b32.xlu0 %v962, 112
  %v2392 = vpop.permute.xlu0 %2391
  %2393 = vrot.lane.b32.xlu0 %v965, 112
  %v2394 = vpop.permute.xlu0 %2393
  %2395 = vrot.lane.b32.xlu0 %v967, 112
  %v2396 = vpop.permute.xlu0 %2395
  %2397 = vrot.lane.b32.xlu0 %v970, 112
  %v2398 = vpop.permute.xlu0 %2397
  %2399 = vrot.lane.b32.xlu0 %v972, 112
  %v2400 = vpop.permute.xlu0 %2399
  %2401 = vrot.lane.b32.xlu0 %v975, 112
  %v2402 = vpop.permute.xlu0 %2401
  %2403 = vrot.lane.b32.xlu0 %v977, 112
  %v2404 = vpop.permute.xlu0 %2403
  %2405 = vrot.lane.b32.xlu0 %v980, 112
  %v2406 = vpop.permute.xlu0 %2405
  %2407 = vrot.lane.b32.xlu0 %v982, 112
  %v2408 = vpop.permute.xlu0 %2407
  %2409 = vrot.lane.b32.xlu0 %v985, 112
  %v2410 = vpop.permute.xlu0 %2409
  %2411 = vrot.lane.b32.xlu0 %v987, 112
  %v2412 = vpop.permute.xlu0 %2411
  %2413 = vrot.lane.b32.xlu0 %v990, 112
  %v2414 = vpop.permute.xlu0 %2413
  %2415 = vrot.lane.b32.xlu0 %v992, 112
  %v2416 = vpop.permute.xlu0 %2415
  %2417 = vrot.lane.b32.xlu0 %v995, 112
  %v2418 = vpop.permute.xlu0 %2417
  %2419 = vrot.lane.b32.xlu0 %v997, 112
  %v2420 = vpop.permute.xlu0 %2419
  %2421 = vrot.lane.b32.xlu0 %v1000, 112
  %v2422 = vpop.permute.xlu0 %2421
  %2423 = vrot.lane.b32.xlu0 %v1002, 112
  %v2424 = vpop.permute.xlu0 %2423
  %2425 = vrot.lane.b32.xlu0 %v1787, 112
  %v2426 = vpop.permute.xlu0 %2425
  %2427 = vrot.lane.b32.xlu0 %v1789, 112
  %v2428 = vpop.permute.xlu0 %2427
  %2429 = vrot.lane.b32.xlu0 %v1005, 112
  %v2430 = vpop.permute.xlu0 %2429
  %2431 = vrot.lane.b32.xlu0 %v1007, 112
  %v2432 = vpop.permute.xlu0 %2431
  %2433 = vrot.lane.b32.xlu0 %v1015, 112
  %v2434 = vpop.permute.xlu0 %2433
  %2435 = vrot.lane.b32.xlu0 %v1017, 112
  %v2436 = vpop.permute.xlu0 %2435
  %2437 = vrot.lane.b32.xlu0 %v1020, 112
  %v2438 = vpop.permute.xlu0 %2437
  %2439 = vrot.lane.b32.xlu0 %v1022, 112
  %v2440 = vpop.permute.xlu0 %2439
  %2441 = vrot.lane.b32.xlu0 %v1025, 112
  %v2442 = vpop.permute.xlu0 %2441
  %2443 = vrot.lane.b32.xlu0 %v1027, 112
  %v2444 = vpop.permute.xlu0 %2443
  %2445 = vrot.lane.b32.xlu0 %v1030, 112
  %v2446 = vpop.permute.xlu0 %2445
  %2447 = vrot.lane.b32.xlu0 %v1032, 112
  %v2448 = vpop.permute.xlu0 %2447
  %2449 = vrot.lane.b32.xlu0 %v1035, 112
  %v2450 = vpop.permute.xlu0 %2449
  %2451 = vrot.lane.b32.xlu0 %v1037, 112
  %v2452 = vpop.permute.xlu0 %2451
  %2453 = vrot.lane.b32.xlu0 %v1040, 112
  %v2454 = vpop.permute.xlu0 %2453
  %2455 = vrot.lane.b32.xlu0 %v1042, 112
  %v2456 = vpop.permute.xlu0 %2455
  %2457 = vrot.lane.b32.xlu0 %v1045, 112
  %v2458 = vpop.permute.xlu0 %2457
  %2459 = vrot.lane.b32.xlu0 %v1047, 112
  %v2460 = vpop.permute.xlu0 %2459
  %2461 = vrot.lane.b32.xlu0 %v1050, 112
  %v2462 = vpop.permute.xlu0 %2461
  %2463 = vrot.lane.b32.xlu0 %v1052, 112
  %v2464 = vpop.permute.xlu0 %2463
  %2465 = vrot.lane.b32.xlu0 %v1055, 112
  %v2466 = vpop.permute.xlu0 %2465
  %2467 = vrot.lane.b32.xlu0 %v1057, 112
  %v2468 = vpop.permute.xlu0 %2467
  %2469 = vrot.lane.b32.xlu0 %v1060, 112
  %v2470 = vpop.permute.xlu0 %2469
  %2471 = vrot.lane.b32.xlu0 %v1062, 112
  %v2472 = vpop.permute.xlu0 %2471
  %2473 = vrot.lane.b32.xlu0 %v1065, 112
  %v2474 = vpop.permute.xlu0 %2473
  %2475 = vrot.lane.b32.xlu0 %v1067, 112
  %v2476 = vpop.permute.xlu0 %2475
  %2477 = vrot.lane.b32.xlu0 %v1070, 112
  %v2478 = vpop.permute.xlu0 %2477
  %2479 = vrot.lane.b32.xlu0 %v1072, 112
  %v2480 = vpop.permute.xlu0 %2479
  %2481 = vrot.lane.b32.xlu0 %v1075, 112
  %v2482 = vpop.permute.xlu0 %2481
  %2483 = vrot.lane.b32.xlu0 %v1077, 112
  %v2484 = vpop.permute.xlu0 %2483
  %2485 = vrot.lane.b32.xlu0 %v1792, 112
  %v2486 = vpop.permute.xlu0 %2485
  %2487 = vrot.lane.b32.xlu0 %v1794, 112
  %v2488 = vpop.permute.xlu0 %2487
  %v2609 = vsel %vm123, %v803, %v1079
  %v2610 = vsel %vm123, %v551, %v1081
  %v2611 = vsel %vm123, %v804, %v1083
  %v2612 = vsel %vm123, %v554, %v1085
  %v2613 = vsel %vm123, %v805, %v1087
  %v2614 = vsel %vm123, %v557, %v1089
  %v2615 = vsel %vm123, %v806, %v1091
  %v2616 = vsel %vm123, %v560, %v1093
  %v2617 = vsel %vm123, %v807, %v1095
  %v2618 = vsel %vm123, %v563, %v1097
  %v2619 = vsel %vm123, %v808, %v1099
  %v2620 = vsel %vm123, %v566, %v1101
  %v2621 = vsel %vm123, %v809, %v1103
  %v2622 = vsel %vm123, %v569, %v1105
  %v2623 = vsel %vm123, %v810, %v1107
  %v2624 = vsel %vm123, %v572, %v1109
  %v2625 = vsel %vm123, %v811, %v1111
  %v2626 = vsel %vm123, %v575, %v1113
  %v2627 = vsel %vm123, %v812, %v1115
  %v2628 = vsel %vm123, %v578, %v1117
  %v2629 = vsel %vm123, %v813, %v1119
  %v2630 = vsel %vm123, %v581, %v1121
  %v2631 = vsel %vm123, %v814, %v1123
  %v2632 = vsel %vm123, %v584, %v1125
  %v2633 = vsel %vm123, %v815, %v1127
  %v2634 = vsel %vm123, %v587, %v1129
  %v2635 = vsel %vm123, %v816, %v1131
  %v2636 = vsel %vm123, %v590, %v1133
  %v2637 = vsel %vm123, %v817, %v1135
  %v2638 = vsel %vm123, %v593, %v1137
  %v2639 = vsel %vm123, %v819, %v1139
  %v2640 = vsel %vm123, %v599, %v1141
  %v2641 = vsel %vm123, %v820, %v1143
  %v2642 = vsel %vm123, %v602, %v1145
  %v2643 = vsel %vm123, %v821, %v1147
  %v2644 = vsel %vm123, %v605, %v1149
  %v2645 = vsel %vm123, %v822, %v1151
  %v2646 = vsel %vm123, %v608, %v1153
  %v2647 = vsel %vm123, %v823, %v1155
  %v2648 = vsel %vm123, %v611, %v1157
  %v2649 = vsel %vm123, %v824, %v1159
  %v2650 = vsel %vm123, %v614, %v1161
  %v2651 = vsel %vm123, %v825, %v1163
  %v2652 = vsel %vm123, %v617, %v1165
  %v2653 = vsel %vm123, %v826, %v1167
  %v2654 = vsel %vm123, %v620, %v1169
  %v2655 = vsel %vm123, %v827, %v1171
  %v2656 = vsel %vm123, %v623, %v1173
  %v2657 = vsel %vm123, %v828, %v1175
  %v2658 = vsel %vm123, %v626, %v1177
  %v2659 = vsel %vm123, %v829, %v1179
  %v2660 = vsel %vm123, %v629, %v1181
  %v2661 = vsel %vm123, %v830, %v1183
  %v2662 = vsel %vm123, %v632, %v1185
  %v2663 = vsel %vm123, %v831, %v1187
  %v2664 = vsel %vm123, %v635, %v1189
  %v2665 = vsel %vm123, %v832, %v1191
  %v2666 = vsel %vm123, %v638, %v1193
  %v2667 = vsel %vm123, %v833, %v1195
  %v2668 = vsel %vm123, %v641, %v1197
  %vm2669 = vcmask 261120
  %v2670 = vsel %vm2669, %v2609, %v1410
  %v2671 = vsel %vm2669, %v2610, %v1412
  %v2672 = vsel %vm2669, %v2611, %v1414
  %v2673 = vsel %vm2669, %v2612, %v1416
  %v2674 = vsel %vm2669, %v2613, %v1418
  %v2675 = vsel %vm2669, %v2614, %v1420
  %v2676 = vsel %vm2669, %v2615, %v1422
  %v2677 = vsel %vm2669, %v2616, %v1424
  %v2678 = vsel %vm2669, %v2617, %v1426
  %v2679 = vsel %vm2669, %v2618, %v1428
  %v2680 = vsel %vm2669, %v2619, %v1430
  %v2681 = vsel %vm2669, %v2620, %v1432
  %v2682 = vsel %vm2669, %v2621, %v1434
  %v2683 = vsel %vm2669, %v2622, %v1436
  %v2684 = vsel %vm2669, %v2623, %v1438
  %v2685 = vsel %vm2669, %v2624, %v1440
  %v2686 = vsel %vm2669, %v2625, %v1442
  %v2687 = vsel %vm2669, %v2626, %v1444
  %v2688 = vsel %vm2669, %v2627, %v1446
  %v2689 = vsel %vm2669, %v2628, %v1448
  %v2690 = vsel %vm2669, %v2629, %v1450
  %v2691 = vsel %vm2669, %v2630, %v1452
  %v2692 = vsel %vm2669, %v2631, %v1454
  %v2693 = vsel %vm2669, %v2632, %v1456
  %v2694 = vsel %vm2669, %v2633, %v1458
  %v2695 = vsel %vm2669, %v2634, %v1460
  %v2696 = vsel %vm2669, %v2635, %v1462
  %v2697 = vsel %vm2669, %v2636, %v1464
  %v2698 = vsel %vm2669, %v2637, %v1466
  %v2699 = vsel %vm2669, %v2638, %v1468
  %v2700 = vsel %vm2669, %v2639, %v1470
  %v2701 = vsel %vm2669, %v2640, %v1472
  %v2702 = vsel %vm2669, %v2641, %v1474
  %v2703 = vsel %vm2669, %v2642, %v1476
  %v2704 = vsel %vm2669, %v2643, %v1478
  %v2705 = vsel %vm2669, %v2644, %v1480
  %v2706 = vsel %vm2669, %v2645, %v1482
  %v2707 = vsel %vm2669, %v2646, %v1484
  %v2708 = vsel %vm2669, %v2647, %v1486
  %v2709 = vsel %vm2669, %v2648, %v1488
  %v2710 = vsel %vm2669, %v2649, %v1490
  %v2711 = vsel %vm2669, %v2650, %v1492
  %v2712 = vsel %vm2669, %v2651, %v1494
  %v2713 = vsel %vm2669, %v2652, %v1496
  %v2714 = vsel %vm2669, %v2653, %v1498
  %v2715 = vsel %vm2669, %v2654, %v1500
  %v2716 = vsel %vm2669, %v2655, %v1502
  %v2717 = vsel %vm2669, %v2656, %v1504
  %v2718 = vsel %vm2669, %v2657, %v1506
  %v2719 = vsel %vm2669, %v2658, %v1508
  %v2720 = vsel %vm2669, %v2659, %v1510
  %v2721 = vsel %vm2669, %v2660, %v1512
  %v2722 = vsel %vm2669, %v2661, %v1514
  %v2723 = vsel %vm2669, %v2662, %v1516
  %v2724 = vsel %vm2669, %v2663, %v1518
  %v2725 = vsel %vm2669, %v2664, %v1520
  %v2726 = vsel %vm2669, %v2665, %v1522
  %v2727 = vsel %vm2669, %v2666, %v1524
  %v2728 = vsel %vm2669, %v2667, %v1526
  %v2729 = vsel %vm2669, %v2668, %v1528
  %vm2730 = vcmask 392192
  %v2731 = vsel %vm2730, %v2670, %v1592
  %v2732 = vsel %vm2730, %v2671, %v1594
  %v2733 = vsel %vm2730, %v2672, %v1596
  %v2734 = vsel %vm2730, %v2673, %v1598
  %v2735 = vsel %vm2730, %v2670, %v1600
  %v2736 = vsel %vm2730, %v2671, %v1602
  %v2737 = vsel %vm2730, %v2674, %v1604
  %v2738 = vsel %vm2730, %v2675, %v1606
  %v2739 = vsel %vm2730, %v2676, %v1608
  %v2740 = vsel %vm2730, %v2677, %v1610
  %v2741 = vsel %vm2730, %v2678, %v1612
  %v2742 = vsel %vm2730, %v2679, %v1614
  %v2743 = vsel %vm2730, %v2680, %v1616
  %v2744 = vsel %vm2730, %v2681, %v1618
  %v2745 = vsel %vm2730, %v2682, %v1620
  %v2746 = vsel %vm2730, %v2683, %v1622
  %v2747 = vsel %vm2730, %v2684, %v1624
  %v2748 = vsel %vm2730, %v2685, %v1626
  %v2749 = vsel %vm2730, %v2686, %v1628
  %v2750 = vsel %vm2730, %v2687, %v1630
  %v2751 = vsel %vm2730, %v2688, %v1632
  %v2752 = vsel %vm2730, %v2689, %v1634
  %v2753 = vsel %vm2730, %v2690, %v1636
  %v2754 = vsel %vm2730, %v2691, %v1638
  %v2755 = vsel %vm2730, %v2692, %v1640
  %v2756 = vsel %vm2730, %v2693, %v1642
  %v2757 = vsel %vm2730, %v2694, %v1644
  %v2758 = vsel %vm2730, %v2695, %v1646
  %v2759 = vsel %vm2730, %v2696, %v1648
  %v2760 = vsel %vm2730, %v2697, %v1650
  %v2761 = vsel %vm2730, %v2698, %v1652
  %v2762 = vsel %vm2730, %v2699, %v1654
  %v2763 = vsel %vm2730, %v2700, %v1656
  %v2764 = vsel %vm2730, %v2701, %v1658
  %v2765 = vsel %vm2730, %v2702, %v1660
  %v2766 = vsel %vm2730, %v2703, %v1662
  %v2767 = vsel %vm2730, %v2700, %v1664
  %v2768 = vsel %vm2730, %v2701, %v1666
  %v2769 = vsel %vm2730, %v2704, %v1668
  %v2770 = vsel %vm2730, %v2705, %v1670
  %v2771 = vsel %vm2730, %v2706, %v1672
  %v2772 = vsel %vm2730, %v2707, %v1674
  %v2773 = vsel %vm2730, %v2708, %v1676
  %v2774 = vsel %vm2730, %v2709, %v1678
  %v2775 = vsel %vm2730, %v2710, %v1680
  %v2776 = vsel %vm2730, %v2711, %v1682
  %v2777 = vsel %vm2730, %v2712, %v1684
  %v2778 = vsel %vm2730, %v2713, %v1686
  %v2779 = vsel %vm2730, %v2714, %v1688
  %v2780 = vsel %vm2730, %v2715, %v1690
  %v2781 = vsel %vm2730, %v2716, %v1692
  %v2782 = vsel %vm2730, %v2717, %v1694
  %v2783 = vsel %vm2730, %v2718, %v1696
  %v2784 = vsel %vm2730, %v2719, %v1698
  %v2785 = vsel %vm2730, %v2720, %v1700
  %v2786 = vsel %vm2730, %v2721, %v1702
  %v2787 = vsel %vm2730, %v2722, %v1704
  %v2788 = vsel %vm2730, %v2723, %v1706
  %v2789 = vsel %vm2730, %v2724, %v1708
  %v2790 = vsel %vm2730, %v2725, %v1710
  %v2791 = vsel %vm2730, %v2726, %v1712
  %v2792 = vsel %vm2730, %v2727, %v1714
  %v2793 = vsel %vm2730, %v2728, %v1716
  %v2794 = vsel %vm2730, %v2729, %v1718
  %vm2795 = vcmask 523264
  %v2796 = vsel %vm2795, %v2731, %v1796
  %v2797 = vsel %vm2795, %v2732, %v1798
  %v2798 = vsel %vm2795, %v2733, %v1800
  %v2799 = vsel %vm2795, %v2734, %v1802
  %v2800 = vsel %vm2795, %v2735, %v1804
  %v2801 = vsel %vm2795, %v2736, %v1806
  %v2802 = vsel %vm2795, %v2737, %v1808
  %v2803 = vsel %vm2795, %v2738, %v1810
  %v2804 = vsel %vm2795, %v2739, %v1812
  %v2805 = vsel %vm2795, %v2740, %v1814
  %v2806 = vsel %vm2795, %v2741, %v1816
  %v2807 = vsel %vm2795, %v2742, %v1818
  %v2808 = vsel %vm2795, %v2743, %v1820
  %v2809 = vsel %vm2795, %v2744, %v1822
  %v2810 = vsel %vm2795, %v2745, %v1824
  %v2811 = vsel %vm2795, %v2746, %v1826
  %v2812 = vsel %vm2795, %v2747, %v1828
  %v2813 = vsel %vm2795, %v2748, %v1830
  %v2814 = vsel %vm2795, %v2749, %v1832
  %v2815 = vsel %vm2795, %v2750, %v1834
  %v2816 = vsel %vm2795, %v2751, %v1836
  %v2817 = vsel %vm2795, %v2752, %v1838
  %v2818 = vsel %vm2795, %v2753, %v1840
  %v2819 = vsel %vm2795, %v2754, %v1842
  %v2820 = vsel %vm2795, %v2755, %v1844
  %v2821 = vsel %vm2795, %v2756, %v1846
  %v2822 = vsel %vm2795, %v2757, %v1848
  %v2823 = vsel %vm2795, %v2758, %v1850
  %v2824 = vsel %vm2795, %v2759, %v1852
  %v2825 = vsel %vm2795, %v2760, %v1854
  %v2826 = vsel %vm2795, %v2761, %v1856
  %v2827 = vsel %vm2795, %v2762, %v1858
  %v2828 = vsel %vm2795, %v2763, %v1860
  %v2829 = vsel %vm2795, %v2764, %v1862
  %v2830 = vsel %vm2795, %v2765, %v1864
  %v2831 = vsel %vm2795, %v2766, %v1866
  %v2832 = vsel %vm2795, %v2767, %v1868
  %v2833 = vsel %vm2795, %v2768, %v1870
  %v2834 = vsel %vm2795, %v2769, %v1872
  %v2835 = vsel %vm2795, %v2770, %v1874
  %v2836 = vsel %vm2795, %v2771, %v1876
  %v2837 = vsel %vm2795, %v2772, %v1878
  %v2838 = vsel %vm2795, %v2773, %v1880
  %v2839 = vsel %vm2795, %v2774, %v1882
  %v2840 = vsel %vm2795, %v2775, %v1884
  %v2841 = vsel %vm2795, %v2776, %v1886
  %v2842 = vsel %vm2795, %v2777, %v1888
  %v2843 = vsel %vm2795, %v2778, %v1890
  %v2844 = vsel %vm2795, %v2779, %v1892
  %v2845 = vsel %vm2795, %v2780, %v1894
  %v2846 = vsel %vm2795, %v2781, %v1896
  %v2847 = vsel %vm2795, %v2782, %v1898
  %v2848 = vsel %vm2795, %v2783, %v1900
  %v2849 = vsel %vm2795, %v2784, %v1902
  %v2850 = vsel %vm2795, %v2785, %v1904
  %v2851 = vsel %vm2795, %v2786, %v1906
  %v2852 = vsel %vm2795, %v2787, %v1908
  %v2853 = vsel %vm2795, %v2788, %v1910
  %v2854 = vsel %vm2795, %v2789, %v1912
  %v2855 = vsel %vm2795, %v2790, %v1914
  %v2856 = vsel %vm2795, %v2791, %v1916
  %v2857 = vsel %vm2795, %v2792, %v1918
  %v2858 = vsel %vm2795, %v2793, %v1920
  %v2859 = vsel %vm2795, %v2794, %v1922
  %vm2860 = vcmask 654336
  %v2861 = vsel %vm2860, %v2796, %v1998
  %v2862 = vsel %vm2860, %v2797, %v2000
  %v2863 = vsel %vm2860, %v2798, %v2002
  %v2864 = vsel %vm2860, %v2799, %v2004
  %v2865 = vsel %vm2860, %v2800, %v2006
  %v2866 = vsel %vm2860, %v2801, %v2008
  %v2867 = vsel %vm2860, %v2802, %v2010
  %v2868 = vsel %vm2860, %v2803, %v2012
  %v2869 = vsel %vm2860, %v2804, %v2014
  %v2870 = vsel %vm2860, %v2805, %v2016
  %v2871 = vsel %vm2860, %v2806, %v2018
  %v2872 = vsel %vm2860, %v2807, %v2020
  %v2873 = vsel %vm2860, %v2808, %v2022
  %v2874 = vsel %vm2860, %v2809, %v2024
  %v2875 = vsel %vm2860, %v2810, %v2026
  %v2876 = vsel %vm2860, %v2811, %v2028
  %v2877 = vsel %vm2860, %v2812, %v2030
  %v2878 = vsel %vm2860, %v2813, %v2032
  %v2879 = vsel %vm2860, %v2814, %v2034
  %v2880 = vsel %vm2860, %v2815, %v2036
  %v2881 = vsel %vm2860, %v2816, %v2038
  %v2882 = vsel %vm2860, %v2817, %v2040
  %v2883 = vsel %vm2860, %v2818, %v2042
  %v2884 = vsel %vm2860, %v2819, %v2044
  %v2885 = vsel %vm2860, %v2820, %v2046
  %v2886 = vsel %vm2860, %v2821, %v2048
  %v2887 = vsel %vm2860, %v2822, %v2050
  %v2888 = vsel %vm2860, %v2823, %v2052
  %v2889 = vsel %vm2860, %v2824, %v2054
  %v2890 = vsel %vm2860, %v2825, %v2056
  %v2891 = vsel %vm2860, %v2826, %v2058
  %v2892 = vsel %vm2860, %v2827, %v2060
  %v2893 = vsel %vm2860, %v2828, %v2062
  %v2894 = vsel %vm2860, %v2829, %v2064
  %v2895 = vsel %vm2860, %v2830, %v2066
  %v2896 = vsel %vm2860, %v2831, %v2068
  %v2897 = vsel %vm2860, %v2832, %v2070
  %v2898 = vsel %vm2860, %v2833, %v2072
  %v2899 = vsel %vm2860, %v2834, %v2074
  %v2900 = vsel %vm2860, %v2835, %v2076
  %v2901 = vsel %vm2860, %v2836, %v2078
  %v2902 = vsel %vm2860, %v2837, %v2080
  %v2903 = vsel %vm2860, %v2838, %v2082
  %v2904 = vsel %vm2860, %v2839, %v2084
  %v2905 = vsel %vm2860, %v2840, %v2086
  %v2906 = vsel %vm2860, %v2841, %v2088
  %v2907 = vsel %vm2860, %v2842, %v2090
  %v2908 = vsel %vm2860, %v2843, %v2092
  %v2909 = vsel %vm2860, %v2844, %v2094
  %v2910 = vsel %vm2860, %v2845, %v2096
  %v2911 = vsel %vm2860, %v2846, %v2098
  %v2912 = vsel %vm2860, %v2847, %v2100
  %v2913 = vsel %vm2860, %v2848, %v2102
  %v2914 = vsel %vm2860, %v2849, %v2104
  %v2915 = vsel %vm2860, %v2850, %v2106
  %v2916 = vsel %vm2860, %v2851, %v2108
  %v2917 = vsel %vm2860, %v2852, %v2110
  %v2918 = vsel %vm2860, %v2853, %v2112
  %v2919 = vsel %vm2860, %v2854, %v2114
  %v2920 = vsel %vm2860, %v2855, %v2116
  %v2921 = vsel %vm2860, %v2856, %v2118
  %v2922 = vsel %vm2860, %v2857, %v2120
  %v2923 = vsel %vm2860, %v2858, %v2122
  %v2924 = vsel %vm2860, %v2859, %v2124
  %vm2925 = vcmask 785408
  %v2926 = vsel %vm2925, %v2861, %v2190
  %v2927 = vsel %vm2925, %v2862, %v2192
  %v2928 = vsel %vm2925, %v2863, %v2194
  %v2929 = vsel %vm2925, %v2864, %v2196
  %v2930 = vsel %vm2925, %v2865, %v2198
  %v2931 = vsel %vm2925, %v2866, %v2200
  %v2932 = vsel %vm2925, %v2867, %v2202
  %v2933 = vsel %vm2925, %v2868, %v2204
  %v2934 = vsel %vm2925, %v2869, %v2206
  %v2935 = vsel %vm2925, %v2870, %v2208
  %v2936 = vsel %vm2925, %v2871, %v2210
  %v2937 = vsel %vm2925, %v2872, %v2212
  %v2938 = vsel %vm2925, %v2873, %v2214
  %v2939 = vsel %vm2925, %v2874, %v2216
  %v2940 = vsel %vm2925, %v2875, %v2218
  %v2941 = vsel %vm2925, %v2876, %v2220
  %v2942 = vsel %vm2925, %v2877, %v2222
  %v2943 = vsel %vm2925, %v2878, %v2224
  %v2944 = vsel %vm2925, %v2879, %v2226
  %v2945 = vsel %vm2925, %v2880, %v2228
  %v2946 = vsel %vm2925, %v2881, %v2230
  %v2947 = vsel %vm2925, %v2882, %v2232
  %v2948 = vsel %vm2925, %v2883, %v2234
  %v2949 = vsel %vm2925, %v2884, %v2236
  %v2950 = vsel %vm2925, %v2885, %v2238
  %v2951 = vsel %vm2925, %v2886, %v2240
  %v2952 = vsel %vm2925, %v2887, %v2242
  %v2953 = vsel %vm2925, %v2888, %v2244
  %v2954 = vsel %vm2925, %v2889, %v2246
  %v2955 = vsel %vm2925, %v2890, %v2248
  %v2956 = vsel %vm2925, %v2891, %v2242
  %v2957 = vsel %vm2925, %v2892, %v2244
  %v2958 = vsel %vm2925, %v2893, %v2250
  %v2959 = vsel %vm2925, %v2894, %v2252
  %v2960 = vsel %vm2925, %v2895, %v2254
  %v2961 = vsel %vm2925, %v2896, %v2256
  %v2962 = vsel %vm2925, %v2897, %v2258
  %v2963 = vsel %vm2925, %v2898, %v2260
  %v2964 = vsel %vm2925, %v2899, %v2262
  %v2965 = vsel %vm2925, %v2900, %v2264
  %v2966 = vsel %vm2925, %v2901, %v2266
  %v2967 = vsel %vm2925, %v2902, %v2268
  %v2968 = vsel %vm2925, %v2903, %v2270
  %v2969 = vsel %vm2925, %v2904, %v2272
  %v2970 = vsel %vm2925, %v2905, %v2274
  %v2971 = vsel %vm2925, %v2906, %v2276
  %v2972 = vsel %vm2925, %v2907, %v2278
  %v2973 = vsel %vm2925, %v2908, %v2280
  %v2974 = vsel %vm2925, %v2909, %v2282
  %v2975 = vsel %vm2925, %v2910, %v2284
  %v2976 = vsel %vm2925, %v2911, %v2286
  %v2977 = vsel %vm2925, %v2912, %v2288
  %v2978 = vsel %vm2925, %v2913, %v2290
  %v2979 = vsel %vm2925, %v2914, %v2292
  %v2980 = vsel %vm2925, %v2915, %v2294
  %v2981 = vsel %vm2925, %v2916, %v2296
  %v2982 = vsel %vm2925, %v2917, %v2298
  %v2983 = vsel %vm2925, %v2918, %v2300
  %v2984 = vsel %vm2925, %v2919, %v2302
  %v2985 = vsel %vm2925, %v2920, %v2304
  %v2986 = vsel %vm2925, %v2921, %v2306
  %v2987 = vsel %vm2925, %v2922, %v2308
  %v2988 = vsel %vm2925, %v2923, %v2302
  %v2989 = vsel %vm2925, %v2924, %v2304
  %vm2990 = vcmask 916480
  %v2991 = vsel %vm2990, %v2926, %v2370
  %v2992 = vsel %vm2990, %v2927, %v2372
  %v2993 = vsel %vm2990, %v2928, %v2374
  %v2994 = vsel %vm2990, %v2929, %v2376
  %v2995 = vsel %vm2990, %v2930, %v2378
  %v2996 = vsel %vm2990, %v2931, %v2380
  %v2997 = vsel %vm2990, %v2932, %v2382
  %v2998 = vsel %vm2990, %v2933, %v2384
  %v2999 = vsel %vm2990, %v2934, %v2386
  %v3000 = vsel %vm2990, %v2935, %v2388
  %v3001 = vsel %vm2990, %v2936, %v2390
  %v3002 = vsel %vm2990, %v2937, %v2392
  %v3003 = vsel %vm2990, %v2938, %v2394
  %v3004 = vsel %vm2990, %v2939, %v2396
  %v3005 = vsel %vm2990, %v2940, %v2398
  %v3006 = vsel %vm2990, %v2941, %v2400
  %v3007 = vsel %vm2990, %v2942, %v2402
  %v3008 = vsel %vm2990, %v2943, %v2404
  %v3009 = vsel %vm2990, %v2944, %v2406
  %v3010 = vsel %vm2990, %v2945, %v2408
  %v3011 = vsel %vm2990, %v2946, %v2410
  %v3012 = vsel %vm2990, %v2947, %v2412
  %v3013 = vsel %vm2990, %v2948, %v2414
  %v3014 = vsel %vm2990, %v2949, %v2416
  %v3015 = vsel %vm2990, %v2950, %v2418
  %v3016 = vsel %vm2990, %v2951, %v2420
  %v3017 = vsel %vm2990, %v2952, %v2422
  %v3018 = vsel %vm2990, %v2953, %v2424
  %v3019 = vsel %vm2990, %v2954, %v2426
  %v3020 = vsel %vm2990, %v2955, %v2428
  %v3021 = vsel %vm2990, %v2956, %v2422
  %v3022 = vsel %vm2990, %v2957, %v2424
  %v3023 = vsel %vm2990, %v2958, %v2430
  %v3024 = vsel %vm2990, %v2959, %v2432
  %v3025 = vsel %vm2990, %v2960, %v2434
  %v3026 = vsel %vm2990, %v2961, %v2436
  %v3027 = vsel %vm2990, %v2962, %v2438
  %v3028 = vsel %vm2990, %v2963, %v2440
  %v3029 = vsel %vm2990, %v2964, %v2442
  %v3030 = vsel %vm2990, %v2965, %v2444
  %v3031 = vsel %vm2990, %v2966, %v2446
  %v3032 = vsel %vm2990, %v2967, %v2448
  %v3033 = vsel %vm2990, %v2968, %v2450
  %v3034 = vsel %vm2990, %v2969, %v2452
  %v3035 = vsel %vm2990, %v2970, %v2454
  %v3036 = vsel %vm2990, %v2971, %v2456
  %v3037 = vsel %vm2990, %v2972, %v2458
  %v3038 = vsel %vm2990, %v2973, %v2460
  %v3039 = vsel %vm2990, %v2974, %v2462
  %v3040 = vsel %vm2990, %v2975, %v2464
  %v3041 = vsel %vm2990, %v2976, %v2466
  %v3042 = vsel %vm2990, %v2977, %v2468
  %v3043 = vsel %vm2990, %v2978, %v2470
  %v3044 = vsel %vm2990, %v2979, %v2472
  %v3045 = vsel %vm2990, %v2980, %v2474
  %v3046 = vsel %vm2990, %v2981, %v2476
  %v3047 = vsel %vm2990, %v2982, %v2478
  %v3048 = vsel %vm2990, %v2983, %v2480
  %v3049 = vsel %vm2990, %v2984, %v2482
  %v3050 = vsel %vm2990, %v2985, %v2484
  %v3051 = vsel %vm2990, %v2986, %v2486
  %v3052 = vsel %vm2990, %v2987, %v2488
  %v3053 = vsel %vm2990, %v2988, %v2482
  %v3054 = vsel %vm2990, %v2989, %v2484
  %3056 = vrot.lane.b32.xlu0 %v349, 16
  %v3057 = vpop.permute.xlu0 %3056
  %3059 = vrot.lane.b32.xlu0 %v349, 32
  %v3060 = vpop.permute.xlu0 %3059
  %3062 = vrot.lane.b32.xlu0 %v349, 48
  %v3063 = vpop.permute.xlu0 %3062
  %3065 = vrot.lane.b32.xlu0 %v349, 64
  %v3066 = vpop.permute.xlu0 %3065
  %3068 = vrot.lane.b32.xlu0 %v349, 80
  %v3069 = vpop.permute.xlu0 %3068
  %3071 = vrot.lane.b32.xlu0 %v349, 96
  %v3072 = vpop.permute.xlu0 %3071
  %3074 = vrot.lane.b32.xlu0 %v349, 112
  %v3075 = vpop.permute.xlu0 %3074
  %v3077 = vsel %vm123, %v349, %v3057
  %v3078 = vsel %vm2669, %v3077, %v3060
  %v3079 = vsel %vm2730, %v3078, %v3063
  %v3080 = vsel %vm2795, %v3079, %v3066
  %v3081 = vsel %vm2860, %v3080, %v3069
  %v3082 = vsel %vm2925, %v3081, %v3072
  %v3083 = vsel %vm2990, %v3082, %v3075
  %v3085 = vrot.slane %v349, 7
  %v3086 = vsel %vm307, %v3083, %v3085
  %v3087 = vsel %vm276, %v3083, %v3085
  %v3088 = vrot.slane %v3087, 1
  %v3089 = vperm.slane %v3086, 0
  %v3090 = vperm.slane %v3086, 1
  %v3091 = vperm.slane %v3088, 0
  %v3092 = vperm.slane %v3088, 1
  %v3097 = vmul.f32 %v2991, %v3089
  %v3098 = vmul.f32 %v1261, %v3090
  %v3099 = vmul.f32 %v2992, %v3089
  %v3100 = vmul.f32 %v1263, %v3090
  %v3101 = vmul.f32 %v2993, %v3089
  %v3102 = vmul.f32 %v1271, %v3090
  %v3103 = vmul.f32 %v2994, %v3089
  %v3104 = vmul.f32 %v1273, %v3090
  %v3105 = vmul.f32 %v2995, %v3089
  %v3106 = vmul.f32 %v1276, %v3090
  %v3107 = vmul.f32 %v2996, %v3089
  %v3108 = vmul.f32 %v1278, %v3090
  %v3109 = vmul.f32 %v2997, %v3089
  %v3110 = vmul.f32 %v1281, %v3090
  %v3111 = vmul.f32 %v2998, %v3089
  %v3112 = vmul.f32 %v1283, %v3090
  %v3113 = vmul.f32 %v2999, %v3089
  %v3114 = vmul.f32 %v1286, %v3090
  %v3115 = vmul.f32 %v3000, %v3089
  %v3116 = vmul.f32 %v1288, %v3090
  %v3117 = vmul.f32 %v3001, %v3089
  %v3118 = vmul.f32 %v1291, %v3090
  %v3119 = vmul.f32 %v3002, %v3089
  %v3120 = vmul.f32 %v1293, %v3090
  %v3121 = vmul.f32 %v3003, %v3089
  %v3122 = vmul.f32 %v1296, %v3090
  %v3123 = vmul.f32 %v3004, %v3089
  %v3124 = vmul.f32 %v1298, %v3090
  %v3125 = vmul.f32 %v3005, %v3089
  %v3126 = vmul.f32 %v1301, %v3090
  %v3127 = vmul.f32 %v3006, %v3089
  %v3128 = vmul.f32 %v1303, %v3090
  %v3129 = vmul.f32 %v3007, %v3089
  %v3130 = vmul.f32 %v1306, %v3090
  %v3131 = vmul.f32 %v3008, %v3089
  %v3132 = vmul.f32 %v1308, %v3090
  %v3133 = vmul.f32 %v3009, %v3089
  %v3134 = vmul.f32 %v1311, %v3090
  %v3135 = vmul.f32 %v3010, %v3089
  %v3136 = vmul.f32 %v1313, %v3090
  %v3137 = vmul.f32 %v3011, %v3089
  %v3138 = vmul.f32 %v1316, %v3090
  %v3139 = vmul.f32 %v3012, %v3089
  %v3140 = vmul.f32 %v1318, %v3090
  %v3141 = vmul.f32 %v3013, %v3089
  %v3142 = vmul.f32 %v1321, %v3090
  %v3143 = vmul.f32 %v3014, %v3089
  %v3144 = vmul.f32 %v1323, %v3090
  %v3145 = vmul.f32 %v3015, %v3089
  %v3146 = vmul.f32 %v1326, %v3090
  %v3147 = vmul.f32 %v3016, %v3089
  %v3148 = vmul.f32 %v1328, %v3090
  %v3149 = vmul.f32 %v3017, %v3089
  %v3150 = vmul.f32 %v1331, %v3090
  %v3151 = vmul.f32 %v3018, %v3089
  %v3152 = vmul.f32 %v1333, %v3090
  %v3153 = vmul.f32 %v3019, %v3089
  %v3154 = vmul.f32 %v1989, %v3090
  %v3155 = vmul.f32 %v3020, %v3089
  %v3156 = vmul.f32 %v1991, %v3090
  %v3157 = vmul.f32 %v3021, %v3089
  %v3158 = vmul.f32 %v3022, %v3089
  %v3159 = vmul.f32 %v3023, %v3091
  %v3160 = vmul.f32 %v1336, %v3092
  %v3161 = vmul.f32 %v3024, %v3091
  %v3162 = vmul.f32 %v1338, %v3092
  %v3163 = vmul.f32 %v3025, %v3091
  %v3164 = vmul.f32 %v1346, %v3092
  %v3165 = vmul.f32 %v3026, %v3091
  %v3166 = vmul.f32 %v1348, %v3092
  %v3167 = vmul.f32 %v3027, %v3091
  %v3168 = vmul.f32 %v1351, %v3092
  %v3169 = vmul.f32 %v3028, %v3091
  %v3170 = vmul.f32 %v1353, %v3092
  %v3171 = vmul.f32 %v3029, %v3091
  %v3172 = vmul.f32 %v1356, %v3092
  %v3173 = vmul.f32 %v3030, %v3091
  %v3174 = vmul.f32 %v1358, %v3092
  %v3175 = vmul.f32 %v3031, %v3091
  %v3176 = vmul.f32 %v1361, %v3092
  %v3177 = vmul.f32 %v3032, %v3091
  %v3178 = vmul.f32 %v1363, %v3092
  %v3179 = vmul.f32 %v3033, %v3091
  %v3180 = vmul.f32 %v1366, %v3092
  %v3181 = vmul.f32 %v3034, %v3091
  %v3182 = vmul.f32 %v1368, %v3092
  %v3183 = vmul.f32 %v3035, %v3091
  %v3184 = vmul.f32 %v1371, %v3092
  %v3185 = vmul.f32 %v3036, %v3091
  %v3186 = vmul.f32 %v1373, %v3092
  %v3187 = vmul.f32 %v3037, %v3091
  %v3188 = vmul.f32 %v1376, %v3092
  %v3189 = vmul.f32 %v3038, %v3091
  %v3190 = vmul.f32 %v1378, %v3092
  %v3191 = vmul.f32 %v3039, %v3091
  %v3192 = vmul.f32 %v1381, %v3092
  %v3193 = vmul.f32 %v3040, %v3091
  %v3194 = vmul.f32 %v1383, %v3092
  %v3195 = vmul.f32 %v3041, %v3091
  %v3196 = vmul.f32 %v1386, %v3092
  %v3197 = vmul.f32 %v3042, %v3091
  %v3198 = vmul.f32 %v1388, %v3092
  %v3199 = vmul.f32 %v3043, %v3091
  %v3200 = vmul.f32 %v1391, %v3092
  %v3201 = vmul.f32 %v3044, %v3091
  %v3202 = vmul.f32 %v1393, %v3092
  %v3203 = vmul.f32 %v3045, %v3091
  %v3204 = vmul.f32 %v1396, %v3092
  %v3205 = vmul.f32 %v3046, %v3091
  %v3206 = vmul.f32 %v1398, %v3092
  %v3207 = vmul.f32 %v3047, %v3091
  %v3208 = vmul.f32 %v1401, %v3092
  %v3209 = vmul.f32 %v3048, %v3091
  %v3210 = vmul.f32 %v1403, %v3092
  %v3211 = vmul.f32 %v3049, %v3091
  %v3212 = vmul.f32 %v1406, %v3092
  %v3213 = vmul.f32 %v3050, %v3091
  %v3214 = vmul.f32 %v1408, %v3092
  %v3215 = vmul.f32 %v3051, %v3091
  %v3216 = vmul.f32 %v1994, %v3092
  %v3217 = vmul.f32 %v3052, %v3091
  %v3218 = vmul.f32 %v1996, %v3092
  %v3219 = vmul.f32 %v3053, %v3091
  %v3220 = vmul.f32 %v3054, %v3091
  %3222 = vrot.lane.b32.xlu0 %v420, 16
  %v3223 = vpop.permute.xlu0 %3222
  %3225 = vrot.lane.b32.xlu0 %v420, 32
  %v3226 = vpop.permute.xlu0 %3225
  %3228 = vrot.lane.b32.xlu0 %v420, 48
  %v3229 = vpop.permute.xlu0 %3228
  %3231 = vrot.lane.b32.xlu0 %v420, 64
  %v3232 = vpop.permute.xlu0 %3231
  %3234 = vrot.lane.b32.xlu0 %v420, 80
  %v3235 = vpop.permute.xlu0 %3234
  %3237 = vrot.lane.b32.xlu0 %v420, 96
  %v3238 = vpop.permute.xlu0 %3237
  %3240 = vrot.lane.b32.xlu0 %v420, 112
  %v3241 = vpop.permute.xlu0 %3240
  %v3243 = vsel %vm123, %v420, %v3223
  %v3244 = vsel %vm2669, %v3243, %v3226
  %v3245 = vsel %vm2730, %v3244, %v3229
  %v3246 = vsel %vm2795, %v3245, %v3232
  %v3247 = vsel %vm2860, %v3246, %v3235
  %v3248 = vsel %vm2925, %v3247, %v3238
  %v3249 = vsel %vm2990, %v3248, %v3241
  %v3251 = vrot.slane %v420, 7
  %v3252 = vsel %vm307, %v3249, %v3251
  %v3253 = vsel %vm276, %v3249, %v3251
  %v3254 = vrot.slane %v3253, 1
  %v3255 = vperm.slane %v3252, 0
  %v3256 = vperm.slane %v3252, 1
  %v3257 = vperm.slane %v3254, 0
  %v3258 = vperm.slane %v3254, 1
  %v3263 = vmul.f32 %v2991, %v3255
  %v3264 = vmul.f32 %v1261, %v3256
  %v3265 = vmul.f32 %v2992, %v3255
  %v3266 = vmul.f32 %v1263, %v3256
  %v3267 = vmul.f32 %v2993, %v3255
  %v3268 = vmul.f32 %v1271, %v3256
  %v3269 = vmul.f32 %v2994, %v3255
  %v3270 = vmul.f32 %v1273, %v3256
  %v3271 = vmul.f32 %v2995, %v3255
  %v3272 = vmul.f32 %v1276, %v3256
  %v3273 = vmul.f32 %v2996, %v3255
  %v3274 = vmul.f32 %v1278, %v3256
  %v3275 = vmul.f32 %v2997, %v3255
  %v3276 = vmul.f32 %v1281, %v3256
  %v3277 = vmul.f32 %v2998, %v3255
  %v3278 = vmul.f32 %v1283, %v3256
  %v3279 = vmul.f32 %v2999, %v3255
  %v3280 = vmul.f32 %v1286, %v3256
  %v3281 = vmul.f32 %v3000, %v3255
  %v3282 = vmul.f32 %v1288, %v3256
  %v3283 = vmul.f32 %v3001, %v3255
  %v3284 = vmul.f32 %v1291, %v3256
  %v3285 = vmul.f32 %v3002, %v3255
  %v3286 = vmul.f32 %v1293, %v3256
  %v3287 = vmul.f32 %v3003, %v3255
  %v3288 = vmul.f32 %v1296, %v3256
  %v3289 = vmul.f32 %v3004, %v3255
  %v3290 = vmul.f32 %v1298, %v3256
  %v3291 = vmul.f32 %v3005, %v3255
  %v3292 = vmul.f32 %v1301, %v3256
  %v3293 = vmul.f32 %v3006, %v3255
  %v3294 = vmul.f32 %v1303, %v3256
  %v3295 = vmul.f32 %v3007, %v3255
  %v3296 = vmul.f32 %v1306, %v3256
  %v3297 = vmul.f32 %v3008, %v3255
  %v3298 = vmul.f32 %v1308, %v3256
  %v3299 = vmul.f32 %v3009, %v3255
  %v3300 = vmul.f32 %v1311, %v3256
  %v3301 = vmul.f32 %v3010, %v3255
  %v3302 = vmul.f32 %v1313, %v3256
  %v3303 = vmul.f32 %v3011, %v3255
  %v3304 = vmul.f32 %v1316, %v3256
  %v3305 = vmul.f32 %v3012, %v3255
  %v3306 = vmul.f32 %v1318, %v3256
  %v3307 = vmul.f32 %v3013, %v3255
  %v3308 = vmul.f32 %v1321, %v3256
  %v3309 = vmul.f32 %v3014, %v3255
  %v3310 = vmul.f32 %v1323, %v3256
  %v3311 = vmul.f32 %v3015, %v3255
  %v3312 = vmul.f32 %v1326, %v3256
  %v3313 = vmul.f32 %v3016, %v3255
  %v3314 = vmul.f32 %v1328, %v3256
  %v3315 = vmul.f32 %v3017, %v3255
  %v3316 = vmul.f32 %v1331, %v3256
  %v3317 = vmul.f32 %v3018, %v3255
  %v3318 = vmul.f32 %v1333, %v3256
  %v3319 = vmul.f32 %v3019, %v3255
  %v3320 = vmul.f32 %v1989, %v3256
  %v3321 = vmul.f32 %v3020, %v3255
  %v3322 = vmul.f32 %v1991, %v3256
  %v3323 = vmul.f32 %v3021, %v3255
  %v3324 = vmul.f32 %v3022, %v3255
  %v3325 = vmul.f32 %v3023, %v3257
  %v3326 = vmul.f32 %v1336, %v3258
  %v3327 = vmul.f32 %v3024, %v3257
  %v3328 = vmul.f32 %v1338, %v3258
  %v3329 = vmul.f32 %v3025, %v3257
  %v3330 = vmul.f32 %v1346, %v3258
  %v3331 = vmul.f32 %v3026, %v3257
  %v3332 = vmul.f32 %v1348, %v3258
  %v3333 = vmul.f32 %v3027, %v3257
  %v3334 = vmul.f32 %v1351, %v3258
  %v3335 = vmul.f32 %v3028, %v3257
  %v3336 = vmul.f32 %v1353, %v3258
  %v3337 = vmul.f32 %v3029, %v3257
  %v3338 = vmul.f32 %v1356, %v3258
  %v3339 = vmul.f32 %v3030, %v3257
  %v3340 = vmul.f32 %v1358, %v3258
  %v3341 = vmul.f32 %v3031, %v3257
  %v3342 = vmul.f32 %v1361, %v3258
  %v3343 = vmul.f32 %v3032, %v3257
  %v3344 = vmul.f32 %v1363, %v3258
  %v3345 = vmul.f32 %v3033, %v3257
  %v3346 = vmul.f32 %v1366, %v3258
  %v3347 = vmul.f32 %v3034, %v3257
  %v3348 = vmul.f32 %v1368, %v3258
  %v3349 = vmul.f32 %v3035, %v3257
  %v3350 = vmul.f32 %v1371, %v3258
  %v3351 = vmul.f32 %v3036, %v3257
  %v3352 = vmul.f32 %v1373, %v3258
  %v3353 = vmul.f32 %v3037, %v3257
  %v3354 = vmul.f32 %v1376, %v3258
  %v3355 = vmul.f32 %v3038, %v3257
  %v3356 = vmul.f32 %v1378, %v3258
  %v3357 = vmul.f32 %v3039, %v3257
  %v3358 = vmul.f32 %v1381, %v3258
  %v3359 = vmul.f32 %v3040, %v3257
  %v3360 = vmul.f32 %v1383, %v3258
  %v3361 = vmul.f32 %v3041, %v3257
  %v3362 = vmul.f32 %v1386, %v3258
  %v3363 = vmul.f32 %v3042, %v3257
  %v3364 = vmul.f32 %v1388, %v3258
  %v3365 = vmul.f32 %v3043, %v3257
  %v3366 = vmul.f32 %v1391, %v3258
  %v3367 = vmul.f32 %v3044, %v3257
  %v3368 = vmul.f32 %v1393, %v3258
  %v3369 = vmul.f32 %v3045, %v3257
  %v3370 = vmul.f32 %v1396, %v3258
  %v3371 = vmul.f32 %v3046, %v3257
  %v3372 = vmul.f32 %v1398, %v3258
  %v3373 = vmul.f32 %v3047, %v3257
  %v3374 = vmul.f32 %v1401, %v3258
  %v3375 = vmul.f32 %v3048, %v3257
  %v3376 = vmul.f32 %v1403, %v3258
  %v3377 = vmul.f32 %v3049, %v3257
  %v3378 = vmul.f32 %v1406, %v3258
  %v3379 = vmul.f32 %v3050, %v3257
  %v3380 = vmul.f32 %v1408, %v3258
  %v3381 = vmul.f32 %v3051, %v3257
  %v3382 = vmul.f32 %v1994, %v3258
  %v3383 = vmul.f32 %v3052, %v3257
  %v3384 = vmul.f32 %v1996, %v3258
  %v3385 = vmul.f32 %v3053, %v3257
  %v3386 = vmul.f32 %v3054, %v3257
  %v3387 = vld [vmem:[%s5] sm:$0xff]
  %v3388 = vld [vmem:[%s5 + $0x8] sm:$0xff]
  %v3389 = vld [vmem:[%s5 + $0x10] sm:$0xff]
  %v3390 = vld [vmem:[%s5 + $0x18] sm:$0xff]
  %v3391 = vld [vmem:[%s5 + $0x20] sm:$0xff]
  %v3392 = vld [vmem:[%s5 + $0x28] sm:$0xff]
  %v3393 = vld [vmem:[%s5 + $0x30] sm:$0xff]
  %v3394 = vld [vmem:[%s5 + $0x38] sm:$0xff]
  %v3395 = vld [vmem:[%s5 + $0x40] sm:$0xff]
  %v3396 = vld [vmem:[%s5 + $0x48] sm:$0xff]
  %v3397 = vld [vmem:[%s5 + $0x50] sm:$0xff]
  %v3398 = vld [vmem:[%s5 + $0x58] sm:$0xff]
  %v3399 = vld [vmem:[%s5 + $0x60] sm:$0xff]
  %v3400 = vld [vmem:[%s5 + $0x68] sm:$0xff]
  %v3401 = vld [vmem:[%s5 + $0x70] sm:$0xff]
  %v3402 = vld [vmem:[%s5 + $0x78] sm:$0xff]
  %v3403 = vld [vmem:[%s5 + $0x80] sm:$0xff]
  %v3404 = vld [vmem:[%s5 + $0x88] sm:$0xff]
  %v3406 = vsel %vm123, %v3098, 0
  %v3409 = vsel %vm123, %v3100, 0
  %v3412 = vsel %vm123, %v3102, 0
  %v3415 = vsel %vm123, %v3104, 0
  %v3418 = vsel %vm123, %v3106, 0
  %v3421 = vsel %vm123, %v3108, 0
  %v3424 = vsel %vm123, %v3110, 0
  %v3427 = vsel %vm123, %v3112, 0
  %v3430 = vsel %vm123, %v3114, 0
  %v3433 = vsel %vm123, %v3116, 0
  %v3436 = vsel %vm123, %v3118, 0
  %v3439 = vsel %vm123, %v3120, 0
  %v3442 = vsel %vm123, %v3122, 0
  %v3445 = vsel %vm123, %v3124, 0
  %v3448 = vsel %vm123, %v3126, 0
  %v3451 = vsel %vm123, %v3128, 0
  %v3454 = vsel %vm123, %v3130, 0
  %v3457 = vsel %vm123, %v3132, 0
  %v3460 = vsel %vm123, %v3134, 0
  %v3463 = vsel %vm123, %v3136, 0
  %v3466 = vsel %vm123, %v3138, 0
  %v3469 = vsel %vm123, %v3140, 0
  %v3472 = vsel %vm123, %v3142, 0
  %v3475 = vsel %vm123, %v3144, 0
  %v3478 = vsel %vm123, %v3146, 0
  %v3481 = vsel %vm123, %v3148, 0
  %v3484 = vsel %vm123, %v3150, 0
  %v3487 = vsel %vm123, %v3152, 0
  %v3490 = vsel %vm123, %v3154, 0
  %v3493 = vsel %vm123, %v3156, 0
  %v3496 = vsel %vm123, %v3160, 0
  %v3499 = vsel %vm123, %v3162, 0
  %v3502 = vsel %vm123, %v3164, 0
  %v3505 = vsel %vm123, %v3166, 0
  %v3508 = vsel %vm123, %v3168, 0
  %v3511 = vsel %vm123, %v3170, 0
  %v3514 = vsel %vm123, %v3172, 0
  %v3517 = vsel %vm123, %v3174, 0
  %v3520 = vsel %vm123, %v3176, 0
  %v3523 = vsel %vm123, %v3178, 0
  %v3526 = vsel %vm123, %v3180, 0
  %v3529 = vsel %vm123, %v3182, 0
  %v3532 = vsel %vm123, %v3184, 0
  %v3535 = vsel %vm123, %v3186, 0
  %v3538 = vsel %vm123, %v3188, 0
  %v3541 = vsel %vm123, %v3190, 0
  %v3544 = vsel %vm123, %v3192, 0
  %v3547 = vsel %vm123, %v3194, 0
  %v3550 = vsel %vm123, %v3196, 0
  %v3553 = vsel %vm123, %v3198, 0
  %v3556 = vsel %vm123, %v3200, 0
  %v3559 = vsel %vm123, %v3202, 0
  %v3562 = vsel %vm123, %v3204, 0
  %v3565 = vsel %vm123, %v3206, 0
  %v3568 = vsel %vm123, %v3208, 0
  %v3571 = vsel %vm123, %v3210, 0
  %v3574 = vsel %vm123, %v3212, 0
  %v3577 = vsel %vm123, %v3214, 0
  %v3580 = vsel %vm123, %v3216, 0
  %v3583 = vsel %vm123, %v3218, 0
  %3585 = vmatpush.msra.mxu0 %v3402
  %3586 = vmatpush.msra.mxu0 %v3401
  %3587 = vmatpush.msra.mxu0 %v3400
  %3588 = vmatpush.msra.mxu0 %v3399
  %3589 = vmatpush.msra.mxu0 %v3398
  %3590 = vmatpush.msra.mxu0 %v3397
  %3591 = vmatpush.msra.mxu0 %v3396
  %3592 = vmatpush.msra.mxu0 %v3395
  %3593 = vmatpush.msra.mxu0 %v3394
  %3594 = vmatpush.msra.mxu0 %v3393
  %3595 = vmatpush.msra.mxu0 %v3392
  %3596 = vmatpush.msra.mxu0 %v3391
  %3597 = vmatpush.msra.mxu0 %v3390
  %3598 = vmatpush.msra.mxu0 %v3389
  %3599 = vmatpush.msra.mxu0 %v3388
  %3600 = vmatpush.msra.mxu0 %v3387
  %3601 = vmatmul.f32.gmra.mxu0 %v3097
  %v3602 = vpop.f32.mrf.mxu0
  %v3603 = vadd.f32 0.0, %v3602
  %3604 = vmatmul.f32.gmra.mxu0 %v3099
  %v3605 = vpop.f32.mrf.mxu0
  %v3606 = vadd.f32 0.0, %v3605
  %3607 = vmatmul.f32.gmra.mxu0 %v3101
  %v3608 = vpop.f32.mrf.mxu0
  %v3609 = vadd.f32 0.0, %v3608
  %3610 = vmatmul.f32.gmra.mxu0 %v3103
  %v3611 = vpop.f32.mrf.mxu0
  %v3612 = vadd.f32 0.0, %v3611
  %3613 = vmatmul.f32.gmra.mxu0 %v3105
  %v3614 = vpop.f32.mrf.mxu0
  %v3615 = vadd.f32 0.0, %v3614
  %3616 = vmatmul.f32.gmra.mxu0 %v3107
  %v3617 = vpop.f32.mrf.mxu0
  %v3618 = vadd.f32 0.0, %v3617
  %3619 = vmatmul.f32.gmra.mxu0 %v3109
  %v3620 = vpop.f32.mrf.mxu0
  %v3621 = vadd.f32 0.0, %v3620
  %3622 = vmatmul.f32.gmra.mxu0 %v3111
  %v3623 = vpop.f32.mrf.mxu0
  %v3624 = vadd.f32 0.0, %v3623
  %3625 = vmatmul.f32.gmra.mxu0 %v3113
  %v3626 = vpop.f32.mrf.mxu0
  %v3627 = vadd.f32 0.0, %v3626
  %3628 = vmatmul.f32.gmra.mxu0 %v3115
  %v3629 = vpop.f32.mrf.mxu0
  %v3630 = vadd.f32 0.0, %v3629
  %3631 = vmatmul.f32.gmra.mxu0 %v3117
  %v3632 = vpop.f32.mrf.mxu0
  %v3633 = vadd.f32 0.0, %v3632
  %3634 = vmatmul.f32.gmra.mxu0 %v3119
  %v3635 = vpop.f32.mrf.mxu0
  %v3636 = vadd.f32 0.0, %v3635
  %3637 = vmatmul.f32.gmra.mxu0 %v3121
  %v3638 = vpop.f32.mrf.mxu0
  %v3639 = vadd.f32 0.0, %v3638
  %3640 = vmatmul.f32.gmra.mxu0 %v3123
  %v3641 = vpop.f32.mrf.mxu0
  %v3642 = vadd.f32 0.0, %v3641
  %3643 = vmatmul.f32.gmra.mxu0 %v3125
  %v3644 = vpop.f32.mrf.mxu0
  %v3645 = vadd.f32 0.0, %v3644
  %3646 = vmatmul.f32.gmra.mxu0 %v3127
  %v3647 = vpop.f32.mrf.mxu0
  %v3648 = vadd.f32 0.0, %v3647
  %3649 = vmatmul.f32.gmra.mxu0 %v3129
  %v3650 = vpop.f32.mrf.mxu0
  %v3651 = vadd.f32 0.0, %v3650
  %3652 = vmatmul.f32.gmra.mxu0 %v3131
  %v3653 = vpop.f32.mrf.mxu0
  %v3654 = vadd.f32 0.0, %v3653
  %3655 = vmatmul.f32.gmra.mxu0 %v3133
  %v3656 = vpop.f32.mrf.mxu0
  %v3657 = vadd.f32 0.0, %v3656
  %3658 = vmatmul.f32.gmra.mxu0 %v3135
  %v3659 = vpop.f32.mrf.mxu0
  %v3660 = vadd.f32 0.0, %v3659
  %3661 = vmatmul.f32.gmra.mxu0 %v3137
  %v3662 = vpop.f32.mrf.mxu0
  %v3663 = vadd.f32 0.0, %v3662
  %3664 = vmatmul.f32.gmra.mxu0 %v3139
  %v3665 = vpop.f32.mrf.mxu0
  %v3666 = vadd.f32 0.0, %v3665
  %3667 = vmatmul.f32.gmra.mxu0 %v3141
  %v3668 = vpop.f32.mrf.mxu0
  %v3669 = vadd.f32 0.0, %v3668
  %3670 = vmatmul.f32.gmra.mxu0 %v3143
  %v3671 = vpop.f32.mrf.mxu0
  %v3672 = vadd.f32 0.0, %v3671
  %3673 = vmatmul.f32.gmra.mxu0 %v3145
  %v3674 = vpop.f32.mrf.mxu0
  %v3675 = vadd.f32 0.0, %v3674
  %3676 = vmatmul.f32.gmra.mxu0 %v3147
  %v3677 = vpop.f32.mrf.mxu0
  %v3678 = vadd.f32 0.0, %v3677
  %3679 = vmatmul.f32.gmra.mxu0 %v3149
  %v3680 = vpop.f32.mrf.mxu0
  %v3681 = vadd.f32 0.0, %v3680
  %3682 = vmatmul.f32.gmra.mxu0 %v3151
  %v3683 = vpop.f32.mrf.mxu0
  %v3684 = vadd.f32 0.0, %v3683
  %3685 = vmatmul.f32.gmra.mxu0 %v3153
  %v3686 = vpop.f32.mrf.mxu0
  %v3687 = vadd.f32 0.0, %v3686
  %3688 = vmatmul.f32.gmra.mxu0 %v3155
  %v3689 = vpop.f32.mrf.mxu0
  %v3690 = vadd.f32 0.0, %v3689
  %3691 = vmatmul.f32.gmra.mxu0 %v3157
  %v3692 = vpop.f32.mrf.mxu0
  %v3693 = vadd.f32 0.0, %v3692
  %3694 = vmatmul.f32.gmra.mxu0 %v3158
  %v3695 = vpop.f32.mrf.mxu0
  %v3696 = vadd.f32 0.0, %v3695
  %3697 = vmatmul.f32.gmra.mxu0 %v3159
  %v3698 = vpop.f32.mrf.mxu0
  %v3699 = vadd.f32 0.0, %v3698
  %3700 = vmatmul.f32.gmra.mxu0 %v3161
  %v3701 = vpop.f32.mrf.mxu0
  %v3702 = vadd.f32 0.0, %v3701
  %3703 = vmatmul.f32.gmra.mxu0 %v3163
  %v3704 = vpop.f32.mrf.mxu0
  %v3705 = vadd.f32 0.0, %v3704
  %3706 = vmatmul.f32.gmra.mxu0 %v3165
  %v3707 = vpop.f32.mrf.mxu0
  %v3708 = vadd.f32 0.0, %v3707
  %3709 = vmatmul.f32.gmra.mxu0 %v3167
  %v3710 = vpop.f32.mrf.mxu0
  %v3711 = vadd.f32 0.0, %v3710
  %3712 = vmatmul.f32.gmra.mxu0 %v3169
  %v3713 = vpop.f32.mrf.mxu0
  %v3714 = vadd.f32 0.0, %v3713
  %3715 = vmatmul.f32.gmra.mxu0 %v3171
  %v3716 = vpop.f32.mrf.mxu0
  %v3717 = vadd.f32 0.0, %v3716
  %3718 = vmatmul.f32.gmra.mxu0 %v3173
  %v3719 = vpop.f32.mrf.mxu0
  %v3720 = vadd.f32 0.0, %v3719
  %3721 = vmatmul.f32.gmra.mxu0 %v3175
  %v3722 = vpop.f32.mrf.mxu0
  %v3723 = vadd.f32 0.0, %v3722
  %3724 = vmatmul.f32.gmra.mxu0 %v3177
  %v3725 = vpop.f32.mrf.mxu0
  %v3726 = vadd.f32 0.0, %v3725
  %3727 = vmatmul.f32.gmra.mxu0 %v3179
  %v3728 = vpop.f32.mrf.mxu0
  %v3729 = vadd.f32 0.0, %v3728
  %3730 = vmatmul.f32.gmra.mxu0 %v3181
  %v3731 = vpop.f32.mrf.mxu0
  %v3732 = vadd.f32 0.0, %v3731
  %3733 = vmatmul.f32.gmra.mxu0 %v3183
  %v3734 = vpop.f32.mrf.mxu0
  %v3735 = vadd.f32 0.0, %v3734
  %3736 = vmatmul.f32.gmra.mxu0 %v3185
  %v3737 = vpop.f32.mrf.mxu0
  %v3738 = vadd.f32 0.0, %v3737
  %3739 = vmatmul.f32.gmra.mxu0 %v3187
  %v3740 = vpop.f32.mrf.mxu0
  %v3741 = vadd.f32 0.0, %v3740
  %3742 = vmatmul.f32.gmra.mxu0 %v3189
  %v3743 = vpop.f32.mrf.mxu0
  %v3744 = vadd.f32 0.0, %v3743
  %3745 = vmatmul.f32.gmra.mxu0 %v3191
  %v3746 = vpop.f32.mrf.mxu0
  %v3747 = vadd.f32 0.0, %v3746
  %3748 = vmatmul.f32.gmra.mxu0 %v3193
  %v3749 = vpop.f32.mrf.mxu0
  %v3750 = vadd.f32 0.0, %v3749
  %3751 = vmatmul.f32.gmra.mxu0 %v3195
  %v3752 = vpop.f32.mrf.mxu0
  %v3753 = vadd.f32 0.0, %v3752
  %3754 = vmatmul.f32.gmra.mxu0 %v3197
  %v3755 = vpop.f32.mrf.mxu0
  %v3756 = vadd.f32 0.0, %v3755
  %3757 = vmatmul.f32.gmra.mxu0 %v3199
  %v3758 = vpop.f32.mrf.mxu0
  %v3759 = vadd.f32 0.0, %v3758
  %3760 = vmatmul.f32.gmra.mxu0 %v3201
  %v3761 = vpop.f32.mrf.mxu0
  %v3762 = vadd.f32 0.0, %v3761
  %3763 = vmatmul.f32.gmra.mxu0 %v3203
  %v3764 = vpop.f32.mrf.mxu0
  %v3765 = vadd.f32 0.0, %v3764
  %3766 = vmatmul.f32.gmra.mxu0 %v3205
  %v3767 = vpop.f32.mrf.mxu0
  %v3768 = vadd.f32 0.0, %v3767
  %3769 = vmatmul.f32.gmra.mxu0 %v3207
  %v3770 = vpop.f32.mrf.mxu0
  %v3771 = vadd.f32 0.0, %v3770
  %3772 = vmatmul.f32.gmra.mxu0 %v3209
  %v3773 = vpop.f32.mrf.mxu0
  %v3774 = vadd.f32 0.0, %v3773
  %3775 = vmatmul.f32.gmra.mxu0 %v3211
  %v3776 = vpop.f32.mrf.mxu0
  %v3777 = vadd.f32 0.0, %v3776
  %3778 = vmatmul.f32.gmra.mxu0 %v3213
  %v3779 = vpop.f32.mrf.mxu0
  %v3780 = vadd.f32 0.0, %v3779
  %3781 = vmatmul.f32.gmra.mxu0 %v3215
  %v3782 = vpop.f32.mrf.mxu0
  %v3783 = vadd.f32 0.0, %v3782
  %3784 = vmatmul.f32.gmra.mxu0 %v3217
  %v3785 = vpop.f32.mrf.mxu0
  %v3786 = vadd.f32 0.0, %v3785
  %3787 = vmatmul.f32.gmra.mxu0 %v3219
  %v3788 = vpop.f32.mrf.mxu0
  %v3789 = vadd.f32 0.0, %v3788
  %3790 = vmatmul.f32.gmra.mxu0 %v3220
  %v3791 = vpop.f32.mrf.mxu0
  %v3792 = vadd.f32 0.0, %v3791
  %3793 = vdwg.mxu0
  %3794 = vmatpush.msra.mxu0 0.0
  %3795 = vmatpush.msra.mxu0 0.0
  %3796 = vmatpush.msra.mxu0 0.0
  %3797 = vmatpush.msra.mxu0 0.0
  %3798 = vmatpush.msra.mxu0 0.0
  %3799 = vmatpush.msra.mxu0 0.0
  %3800 = vmatpush.msra.mxu0 0.0
  %3801 = vmatpush.msra.mxu0 0.0
  %3802 = vmatpush.msra.mxu0 0.0
  %3803 = vmatpush.msra.mxu0 0.0
  %3804 = vmatpush.msra.mxu0 0.0
  %3805 = vmatpush.msra.mxu0 0.0
  %3806 = vmatpush.msra.mxu0 0.0
  %3807 = vmatpush.msra.mxu0 0.0
  %3808 = vmatpush.msra.mxu0 %v3404
  %3809 = vmatpush.msra.mxu0 %v3403
  %3810 = vmatmul.f32.gmra.mxu0 %v3406
  %v3811 = vpop.f32.mrf.mxu0
  %v3812 = vadd.f32 %v3603, %v3811
  %3813 = vmatmul.f32.gmra.mxu0 %v3409
  %v3814 = vpop.f32.mrf.mxu0
  %v3815 = vadd.f32 %v3606, %v3814
  %3816 = vmatmul.f32.gmra.mxu0 %v3412
  %v3817 = vpop.f32.mrf.mxu0
  %v3818 = vadd.f32 %v3609, %v3817
  %3819 = vmatmul.f32.gmra.mxu0 %v3415
  %v3820 = vpop.f32.mrf.mxu0
  %v3821 = vadd.f32 %v3612, %v3820
  %3822 = vmatmul.f32.gmra.mxu0 %v3418
  %v3823 = vpop.f32.mrf.mxu0
  %v3824 = vadd.f32 %v3615, %v3823
  %3825 = vmatmul.f32.gmra.mxu0 %v3421
  %v3826 = vpop.f32.mrf.mxu0
  %v3827 = vadd.f32 %v3618, %v3826
  %3828 = vmatmul.f32.gmra.mxu0 %v3424
  %v3829 = vpop.f32.mrf.mxu0
  %v3830 = vadd.f32 %v3621, %v3829
  %3831 = vmatmul.f32.gmra.mxu0 %v3427
  %v3832 = vpop.f32.mrf.mxu0
  %v3833 = vadd.f32 %v3624, %v3832
  %3834 = vmatmul.f32.gmra.mxu0 %v3430
  %v3835 = vpop.f32.mrf.mxu0
  %v3836 = vadd.f32 %v3627, %v3835
  %3837 = vmatmul.f32.gmra.mxu0 %v3433
  %v3838 = vpop.f32.mrf.mxu0
  %v3839 = vadd.f32 %v3630, %v3838
  %3840 = vmatmul.f32.gmra.mxu0 %v3436
  %v3841 = vpop.f32.mrf.mxu0
  %v3842 = vadd.f32 %v3633, %v3841
  %3843 = vmatmul.f32.gmra.mxu0 %v3439
  %v3844 = vpop.f32.mrf.mxu0
  %v3845 = vadd.f32 %v3636, %v3844
  %3846 = vmatmul.f32.gmra.mxu0 %v3442
  %v3847 = vpop.f32.mrf.mxu0
  %v3848 = vadd.f32 %v3639, %v3847
  %3849 = vmatmul.f32.gmra.mxu0 %v3445
  %v3850 = vpop.f32.mrf.mxu0
  %v3851 = vadd.f32 %v3642, %v3850
  %3852 = vmatmul.f32.gmra.mxu0 %v3448
  %v3853 = vpop.f32.mrf.mxu0
  %v3854 = vadd.f32 %v3645, %v3853
  %3855 = vmatmul.f32.gmra.mxu0 %v3451
  %v3856 = vpop.f32.mrf.mxu0
  %v3857 = vadd.f32 %v3648, %v3856
  %3858 = vmatmul.f32.gmra.mxu0 %v3454
  %v3859 = vpop.f32.mrf.mxu0
  %v3860 = vadd.f32 %v3651, %v3859
  %3861 = vmatmul.f32.gmra.mxu0 %v3457
  %v3862 = vpop.f32.mrf.mxu0
  %v3863 = vadd.f32 %v3654, %v3862
  %3864 = vmatmul.f32.gmra.mxu0 %v3460
  %v3865 = vpop.f32.mrf.mxu0
  %v3866 = vadd.f32 %v3657, %v3865
  %3867 = vmatmul.f32.gmra.mxu0 %v3463
  %v3868 = vpop.f32.mrf.mxu0
  %v3869 = vadd.f32 %v3660, %v3868
  %3870 = vmatmul.f32.gmra.mxu0 %v3466
  %v3871 = vpop.f32.mrf.mxu0
  %v3872 = vadd.f32 %v3663, %v3871
  %3873 = vmatmul.f32.gmra.mxu0 %v3469
  %v3874 = vpop.f32.mrf.mxu0
  %v3875 = vadd.f32 %v3666, %v3874
  %3876 = vmatmul.f32.gmra.mxu0 %v3472
  %v3877 = vpop.f32.mrf.mxu0
  %v3878 = vadd.f32 %v3669, %v3877
  %3879 = vmatmul.f32.gmra.mxu0 %v3475
  %v3880 = vpop.f32.mrf.mxu0
  %v3881 = vadd.f32 %v3672, %v3880
  %3882 = vmatmul.f32.gmra.mxu0 %v3478
  %v3883 = vpop.f32.mrf.mxu0
  %v3884 = vadd.f32 %v3675, %v3883
  %3885 = vmatmul.f32.gmra.mxu0 %v3481
  %v3886 = vpop.f32.mrf.mxu0
  %v3887 = vadd.f32 %v3678, %v3886
  %3888 = vmatmul.f32.gmra.mxu0 %v3484
  %v3889 = vpop.f32.mrf.mxu0
  %v3890 = vadd.f32 %v3681, %v3889
  %3891 = vmatmul.f32.gmra.mxu0 %v3487
  %v3892 = vpop.f32.mrf.mxu0
  %v3893 = vadd.f32 %v3684, %v3892
  %3894 = vmatmul.f32.gmra.mxu0 %v3490
  %v3895 = vpop.f32.mrf.mxu0
  %v3896 = vadd.f32 %v3687, %v3895
  %3897 = vmatmul.f32.gmra.mxu0 %v3493
  %v3898 = vpop.f32.mrf.mxu0
  %v3899 = vadd.f32 %v3690, %v3898
  %3900 = vmatmul.f32.gmra.mxu0 %v3484
  %v3901 = vpop.f32.mrf.mxu0
  %v3902 = vadd.f32 %v3693, %v3901
  %3903 = vmatmul.f32.gmra.mxu0 %v3487
  %v3904 = vpop.f32.mrf.mxu0
  %v3905 = vadd.f32 %v3696, %v3904
  %3906 = vmatmul.f32.gmra.mxu0 %v3496
  %v3907 = vpop.f32.mrf.mxu0
  %v3908 = vadd.f32 %v3699, %v3907
  %3909 = vmatmul.f32.gmra.mxu0 %v3499
  %v3910 = vpop.f32.mrf.mxu0
  %v3911 = vadd.f32 %v3702, %v3910
  %3912 = vmatmul.f32.gmra.mxu0 %v3502
  %v3913 = vpop.f32.mrf.mxu0
  %v3914 = vadd.f32 %v3705, %v3913
  %3915 = vmatmul.f32.gmra.mxu0 %v3505
  %v3916 = vpop.f32.mrf.mxu0
  %v3917 = vadd.f32 %v3708, %v3916
  %3918 = vmatmul.f32.gmra.mxu0 %v3508
  %v3919 = vpop.f32.mrf.mxu0
  %v3920 = vadd.f32 %v3711, %v3919
  %3921 = vmatmul.f32.gmra.mxu0 %v3511
  %v3922 = vpop.f32.mrf.mxu0
  %v3923 = vadd.f32 %v3714, %v3922
  %3924 = vmatmul.f32.gmra.mxu0 %v3514
  %v3925 = vpop.f32.mrf.mxu0
  %v3926 = vadd.f32 %v3717, %v3925
  %3927 = vmatmul.f32.gmra.mxu0 %v3517
  %v3928 = vpop.f32.mrf.mxu0
  %v3929 = vadd.f32 %v3720, %v3928
  %3930 = vmatmul.f32.gmra.mxu0 %v3520
  %v3931 = vpop.f32.mrf.mxu0
  %v3932 = vadd.f32 %v3723, %v3931
  %3933 = vmatmul.f32.gmra.mxu0 %v3523
  %v3934 = vpop.f32.mrf.mxu0
  %v3935 = vadd.f32 %v3726, %v3934
  %3936 = vmatmul.f32.gmra.mxu0 %v3526
  %v3937 = vpop.f32.mrf.mxu0
  %v3938 = vadd.f32 %v3729, %v3937
  %3939 = vmatmul.f32.gmra.mxu0 %v3529
  %v3940 = vpop.f32.mrf.mxu0
  %v3941 = vadd.f32 %v3732, %v3940
  %3942 = vmatmul.f32.gmra.mxu0 %v3532
  %v3943 = vpop.f32.mrf.mxu0
  %v3944 = vadd.f32 %v3735, %v3943
  %3945 = vmatmul.f32.gmra.mxu0 %v3535
  %v3946 = vpop.f32.mrf.mxu0
  %v3947 = vadd.f32 %v3738, %v3946
  %3948 = vmatmul.f32.gmra.mxu0 %v3538
  %v3949 = vpop.f32.mrf.mxu0
  %v3950 = vadd.f32 %v3741, %v3949
  %3951 = vmatmul.f32.gmra.mxu0 %v3541
  %v3952 = vpop.f32.mrf.mxu0
  %v3953 = vadd.f32 %v3744, %v3952
  %3954 = vmatmul.f32.gmra.mxu0 %v3544
  %v3955 = vpop.f32.mrf.mxu0
  %v3956 = vadd.f32 %v3747, %v3955
  %3957 = vmatmul.f32.gmra.mxu0 %v3547
  %v3958 = vpop.f32.mrf.mxu0
  %v3959 = vadd.f32 %v3750, %v3958
  %3960 = vmatmul.f32.gmra.mxu0 %v3550
  %v3961 = vpop.f32.mrf.mxu0
  %v3962 = vadd.f32 %v3753, %v3961
  %3963 = vmatmul.f32.gmra.mxu0 %v3553
  %v3964 = vpop.f32.mrf.mxu0
  %v3965 = vadd.f32 %v3756, %v3964
  %3966 = vmatmul.f32.gmra.mxu0 %v3556
  %v3967 = vpop.f32.mrf.mxu0
  %v3968 = vadd.f32 %v3759, %v3967
  %3969 = vmatmul.f32.gmra.mxu0 %v3559
  %v3970 = vpop.f32.mrf.mxu0
  %v3971 = vadd.f32 %v3762, %v3970
  %3972 = vmatmul.f32.gmra.mxu0 %v3562
  %v3973 = vpop.f32.mrf.mxu0
  %v3974 = vadd.f32 %v3765, %v3973
  %3975 = vmatmul.f32.gmra.mxu0 %v3565
  %v3976 = vpop.f32.mrf.mxu0
  %v3977 = vadd.f32 %v3768, %v3976
  %3978 = vmatmul.f32.gmra.mxu0 %v3568
  %v3979 = vpop.f32.mrf.mxu0
  %v3980 = vadd.f32 %v3771, %v3979
  %3981 = vmatmul.f32.gmra.mxu0 %v3571
  %v3982 = vpop.f32.mrf.mxu0
  %v3983 = vadd.f32 %v3774, %v3982
  %3984 = vmatmul.f32.gmra.mxu0 %v3574
  %v3985 = vpop.f32.mrf.mxu0
  %v3986 = vadd.f32 %v3777, %v3985
  %3987 = vmatmul.f32.gmra.mxu0 %v3577
  %v3988 = vpop.f32.mrf.mxu0
  %v3989 = vadd.f32 %v3780, %v3988
  %3990 = vmatmul.f32.gmra.mxu0 %v3580
  %v3991 = vpop.f32.mrf.mxu0
  %v3992 = vadd.f32 %v3783, %v3991
  %3993 = vmatmul.f32.gmra.mxu0 %v3583
  %v3994 = vpop.f32.mrf.mxu0
  %v3995 = vadd.f32 %v3786, %v3994
  %3996 = vmatmul.f32.gmra.mxu0 %v3574
  %v3997 = vpop.f32.mrf.mxu0
  %v3998 = vadd.f32 %v3789, %v3997
  %3999 = vmatmul.f32.gmra.mxu0 %v3577
  %v4000 = vpop.f32.mrf.mxu0
  %v4001 = vadd.f32 %v3792, %v4000
  %4002 = vdwg.mxu0
  %v4003 = vld [vmem:[%s6] sm:$0xff]
  %v4004 = vld [vmem:[%s6 + $0x8] sm:$0xff]
  %v4005 = vld [vmem:[%s6 + $0x10] sm:$0xff]
  %v4006 = vld [vmem:[%s6 + $0x18] sm:$0xff]
  %v4007 = vld [vmem:[%s6 + $0x20] sm:$0xff]
  %v4008 = vld [vmem:[%s6 + $0x28] sm:$0xff]
  %v4009 = vld [vmem:[%s6 + $0x30] sm:$0xff]
  %v4010 = vld [vmem:[%s6 + $0x38] sm:$0xff]
  %v4011 = vld [vmem:[%s6 + $0x40] sm:$0xff]
  %v4012 = vld [vmem:[%s6 + $0x48] sm:$0xff]
  %v4013 = vld [vmem:[%s6 + $0x50] sm:$0xff]
  %v4014 = vld [vmem:[%s6 + $0x58] sm:$0xff]
  %v4015 = vld [vmem:[%s6 + $0x60] sm:$0xff]
  %v4016 = vld [vmem:[%s6 + $0x68] sm:$0xff]
  %v4017 = vld [vmem:[%s6 + $0x70] sm:$0xff]
  %v4018 = vld [vmem:[%s6 + $0x78] sm:$0xff]
  %v4019 = vld [vmem:[%s6 + $0x80] sm:$0xff]
  %v4020 = vld [vmem:[%s6 + $0x88] sm:$0xff]
  %v4022 = vsel %vm123, %v3264, 0
  %v4025 = vsel %vm123, %v3266, 0
  %v4028 = vsel %vm123, %v3268, 0
  %v4031 = vsel %vm123, %v3270, 0
  %v4034 = vsel %vm123, %v3272, 0
  %v4037 = vsel %vm123, %v3274, 0
  %v4040 = vsel %vm123, %v3276, 0
  %v4043 = vsel %vm123, %v3278, 0
  %v4046 = vsel %vm123, %v3280, 0
  %v4049 = vsel %vm123, %v3282, 0
  %v4052 = vsel %vm123, %v3284, 0
  %v4055 = vsel %vm123, %v3286, 0
  %v4058 = vsel %vm123, %v3288, 0
  %v4061 = vsel %vm123, %v3290, 0
  %v4064 = vsel %vm123, %v3292, 0
  %v4067 = vsel %vm123, %v3294, 0
  %v4070 = vsel %vm123, %v3296, 0
  %v4073 = vsel %vm123, %v3298, 0
  %v4076 = vsel %vm123, %v3300, 0
  %v4079 = vsel %vm123, %v3302, 0
  %v4082 = vsel %vm123, %v3304, 0
  %v4085 = vsel %vm123, %v3306, 0
  %v4088 = vsel %vm123, %v3308, 0
  %v4091 = vsel %vm123, %v3310, 0
  %v4094 = vsel %vm123, %v3312, 0
  %v4097 = vsel %vm123, %v3314, 0
  %v4100 = vsel %vm123, %v3316, 0
  %v4103 = vsel %vm123, %v3318, 0
  %v4106 = vsel %vm123, %v3320, 0
  %v4109 = vsel %vm123, %v3322, 0
  %v4112 = vsel %vm123, %v3326, 0
  %v4115 = vsel %vm123, %v3328, 0
  %v4118 = vsel %vm123, %v3330, 0
  %v4121 = vsel %vm123, %v3332, 0
  %v4124 = vsel %vm123, %v3334, 0
  %v4127 = vsel %vm123, %v3336, 0
  %v4130 = vsel %vm123, %v3338, 0
  %v4133 = vsel %vm123, %v3340, 0
  %v4136 = vsel %vm123, %v3342, 0
  %v4139 = vsel %vm123, %v3344, 0
  %v4142 = vsel %vm123, %v3346, 0
  %v4145 = vsel %vm123, %v3348, 0
  %v4148 = vsel %vm123, %v3350, 0
  %v4151 = vsel %vm123, %v3352, 0
  %v4154 = vsel %vm123, %v3354, 0
  %v4157 = vsel %vm123, %v3356, 0
  %v4160 = vsel %vm123, %v3358, 0
  %v4163 = vsel %vm123, %v3360, 0
  %v4166 = vsel %vm123, %v3362, 0
  %v4169 = vsel %vm123, %v3364, 0
  %v4172 = vsel %vm123, %v3366, 0
  %v4175 = vsel %vm123, %v3368, 0
  %v4178 = vsel %vm123, %v3370, 0
  %v4181 = vsel %vm123, %v3372, 0
  %v4184 = vsel %vm123, %v3374, 0
  %v4187 = vsel %vm123, %v3376, 0
  %v4190 = vsel %vm123, %v3378, 0
  %v4193 = vsel %vm123, %v3380, 0
  %v4196 = vsel %vm123, %v3382, 0
  %v4199 = vsel %vm123, %v3384, 0
  %4201 = vmatpush.msra.mxu0 %v4018
  %4202 = vmatpush.msra.mxu0 %v4017
  %4203 = vmatpush.msra.mxu0 %v4016
  %4204 = vmatpush.msra.mxu0 %v4015
  %4205 = vmatpush.msra.mxu0 %v4014
  %4206 = vmatpush.msra.mxu0 %v4013
  %4207 = vmatpush.msra.mxu0 %v4012
  %4208 = vmatpush.msra.mxu0 %v4011
  %4209 = vmatpush.msra.mxu0 %v4010
  %4210 = vmatpush.msra.mxu0 %v4009
  %4211 = vmatpush.msra.mxu0 %v4008
  %4212 = vmatpush.msra.mxu0 %v4007
  %4213 = vmatpush.msra.mxu0 %v4006
  %4214 = vmatpush.msra.mxu0 %v4005
  %4215 = vmatpush.msra.mxu0 %v4004
  %4216 = vmatpush.msra.mxu0 %v4003
  %4217 = vmatmul.f32.gmra.mxu0 %v3263
  %v4218 = vpop.f32.mrf.mxu0
  %v4219 = vadd.f32 0.0, %v4218
  %4220 = vmatmul.f32.gmra.mxu0 %v3265
  %v4221 = vpop.f32.mrf.mxu0
  %v4222 = vadd.f32 0.0, %v4221
  %4223 = vmatmul.f32.gmra.mxu0 %v3267
  %v4224 = vpop.f32.mrf.mxu0
  %v4225 = vadd.f32 0.0, %v4224
  %4226 = vmatmul.f32.gmra.mxu0 %v3269
  %v4227 = vpop.f32.mrf.mxu0
  %v4228 = vadd.f32 0.0, %v4227
  %4229 = vmatmul.f32.gmra.mxu0 %v3271
  %v4230 = vpop.f32.mrf.mxu0
  %v4231 = vadd.f32 0.0, %v4230
  %4232 = vmatmul.f32.gmra.mxu0 %v3273
  %v4233 = vpop.f32.mrf.mxu0
  %v4234 = vadd.f32 0.0, %v4233
  %4235 = vmatmul.f32.gmra.mxu0 %v3275
  %v4236 = vpop.f32.mrf.mxu0
  %v4237 = vadd.f32 0.0, %v4236
  %4238 = vmatmul.f32.gmra.mxu0 %v3277
  %v4239 = vpop.f32.mrf.mxu0
  %v4240 = vadd.f32 0.0, %v4239
  %4241 = vmatmul.f32.gmra.mxu0 %v3279
  %v4242 = vpop.f32.mrf.mxu0
  %v4243 = vadd.f32 0.0, %v4242
  %4244 = vmatmul.f32.gmra.mxu0 %v3281
  %v4245 = vpop.f32.mrf.mxu0
  %v4246 = vadd.f32 0.0, %v4245
  %4247 = vmatmul.f32.gmra.mxu0 %v3283
  %v4248 = vpop.f32.mrf.mxu0
  %v4249 = vadd.f32 0.0, %v4248
  %4250 = vmatmul.f32.gmra.mxu0 %v3285
  %v4251 = vpop.f32.mrf.mxu0
  %v4252 = vadd.f32 0.0, %v4251
  %4253 = vmatmul.f32.gmra.mxu0 %v3287
  %v4254 = vpop.f32.mrf.mxu0
  %v4255 = vadd.f32 0.0, %v4254
  %4256 = vmatmul.f32.gmra.mxu0 %v3289
  %v4257 = vpop.f32.mrf.mxu0
  %v4258 = vadd.f32 0.0, %v4257
  %4259 = vmatmul.f32.gmra.mxu0 %v3291
  %v4260 = vpop.f32.mrf.mxu0
  %v4261 = vadd.f32 0.0, %v4260
  %4262 = vmatmul.f32.gmra.mxu0 %v3293
  %v4263 = vpop.f32.mrf.mxu0
  %v4264 = vadd.f32 0.0, %v4263
  %4265 = vmatmul.f32.gmra.mxu0 %v3295
  %v4266 = vpop.f32.mrf.mxu0
  %v4267 = vadd.f32 0.0, %v4266
  %4268 = vmatmul.f32.gmra.mxu0 %v3297
  %v4269 = vpop.f32.mrf.mxu0
  %v4270 = vadd.f32 0.0, %v4269
  %4271 = vmatmul.f32.gmra.mxu0 %v3299
  %v4272 = vpop.f32.mrf.mxu0
  %v4273 = vadd.f32 0.0, %v4272
  %4274 = vmatmul.f32.gmra.mxu0 %v3301
  %v4275 = vpop.f32.mrf.mxu0
  %v4276 = vadd.f32 0.0, %v4275
  %4277 = vmatmul.f32.gmra.mxu0 %v3303
  %v4278 = vpop.f32.mrf.mxu0
  %v4279 = vadd.f32 0.0, %v4278
  %4280 = vmatmul.f32.gmra.mxu0 %v3305
  %v4281 = vpop.f32.mrf.mxu0
  %v4282 = vadd.f32 0.0, %v4281
  %4283 = vmatmul.f32.gmra.mxu0 %v3307
  %v4284 = vpop.f32.mrf.mxu0
  %v4285 = vadd.f32 0.0, %v4284
  %4286 = vmatmul.f32.gmra.mxu0 %v3309
  %v4287 = vpop.f32.mrf.mxu0
  %v4288 = vadd.f32 0.0, %v4287
  %4289 = vmatmul.f32.gmra.mxu0 %v3311
  %v4290 = vpop.f32.mrf.mxu0
  %v4291 = vadd.f32 0.0, %v4290
  %4292 = vmatmul.f32.gmra.mxu0 %v3313
  %v4293 = vpop.f32.mrf.mxu0
  %v4294 = vadd.f32 0.0, %v4293
  %4295 = vmatmul.f32.gmra.mxu0 %v3315
  %v4296 = vpop.f32.mrf.mxu0
  %v4297 = vadd.f32 0.0, %v4296
  %4298 = vmatmul.f32.gmra.mxu0 %v3317
  %v4299 = vpop.f32.mrf.mxu0
  %v4300 = vadd.f32 0.0, %v4299
  %4301 = vmatmul.f32.gmra.mxu0 %v3319
  %v4302 = vpop.f32.mrf.mxu0
  %v4303 = vadd.f32 0.0, %v4302
  %4304 = vmatmul.f32.gmra.mxu0 %v3321
  %v4305 = vpop.f32.mrf.mxu0
  %v4306 = vadd.f32 0.0, %v4305
  %4307 = vmatmul.f32.gmra.mxu0 %v3323
  %v4308 = vpop.f32.mrf.mxu0
  %v4309 = vadd.f32 0.0, %v4308
  %4310 = vmatmul.f32.gmra.mxu0 %v3324
  %v4311 = vpop.f32.mrf.mxu0
  %v4312 = vadd.f32 0.0, %v4311
  %4313 = vmatmul.f32.gmra.mxu0 %v3325
  %v4314 = vpop.f32.mrf.mxu0
  %v4315 = vadd.f32 0.0, %v4314
  %4316 = vmatmul.f32.gmra.mxu0 %v3327
  %v4317 = vpop.f32.mrf.mxu0
  %v4318 = vadd.f32 0.0, %v4317
  %4319 = vmatmul.f32.gmra.mxu0 %v3329
  %v4320 = vpop.f32.mrf.mxu0
  %v4321 = vadd.f32 0.0, %v4320
  %4322 = vmatmul.f32.gmra.mxu0 %v3331
  %v4323 = vpop.f32.mrf.mxu0
  %v4324 = vadd.f32 0.0, %v4323
  %4325 = vmatmul.f32.gmra.mxu0 %v3333
  %v4326 = vpop.f32.mrf.mxu0
  %v4327 = vadd.f32 0.0, %v4326
  %4328 = vmatmul.f32.gmra.mxu0 %v3335
  %v4329 = vpop.f32.mrf.mxu0
  %v4330 = vadd.f32 0.0, %v4329
  %4331 = vmatmul.f32.gmra.mxu0 %v3337
  %v4332 = vpop.f32.mrf.mxu0
  %v4333 = vadd.f32 0.0, %v4332
  %4334 = vmatmul.f32.gmra.mxu0 %v3339
  %v4335 = vpop.f32.mrf.mxu0
  %v4336 = vadd.f32 0.0, %v4335
  %4337 = vmatmul.f32.gmra.mxu0 %v3341
  %v4338 = vpop.f32.mrf.mxu0
  %v4339 = vadd.f32 0.0, %v4338
  %4340 = vmatmul.f32.gmra.mxu0 %v3343
  %v4341 = vpop.f32.mrf.mxu0
  %v4342 = vadd.f32 0.0, %v4341
  %4343 = vmatmul.f32.gmra.mxu0 %v3345
  %v4344 = vpop.f32.mrf.mxu0
  %v4345 = vadd.f32 0.0, %v4344
  %4346 = vmatmul.f32.gmra.mxu0 %v3347
  %v4347 = vpop.f32.mrf.mxu0
  %v4348 = vadd.f32 0.0, %v4347
  %4349 = vmatmul.f32.gmra.mxu0 %v3349
  %v4350 = vpop.f32.mrf.mxu0
  %v4351 = vadd.f32 0.0, %v4350
  %4352 = vmatmul.f32.gmra.mxu0 %v3351
  %v4353 = vpop.f32.mrf.mxu0
  %v4354 = vadd.f32 0.0, %v4353
  %4355 = vmatmul.f32.gmra.mxu0 %v3353
  %v4356 = vpop.f32.mrf.mxu0
  %v4357 = vadd.f32 0.0, %v4356
  %4358 = vmatmul.f32.gmra.mxu0 %v3355
  %v4359 = vpop.f32.mrf.mxu0
  %v4360 = vadd.f32 0.0, %v4359
  %4361 = vmatmul.f32.gmra.mxu0 %v3357
  %v4362 = vpop.f32.mrf.mxu0
  %v4363 = vadd.f32 0.0, %v4362
  %4364 = vmatmul.f32.gmra.mxu0 %v3359
  %v4365 = vpop.f32.mrf.mxu0
  %v4366 = vadd.f32 0.0, %v4365
  %4367 = vmatmul.f32.gmra.mxu0 %v3361
  %v4368 = vpop.f32.mrf.mxu0
  %v4369 = vadd.f32 0.0, %v4368
  %4370 = vmatmul.f32.gmra.mxu0 %v3363
  %v4371 = vpop.f32.mrf.mxu0
  %v4372 = vadd.f32 0.0, %v4371
  %4373 = vmatmul.f32.gmra.mxu0 %v3365
  %v4374 = vpop.f32.mrf.mxu0
  %v4375 = vadd.f32 0.0, %v4374
  %4376 = vmatmul.f32.gmra.mxu0 %v3367
  %v4377 = vpop.f32.mrf.mxu0
  %v4378 = vadd.f32 0.0, %v4377
  %4379 = vmatmul.f32.gmra.mxu0 %v3369
  %v4380 = vpop.f32.mrf.mxu0
  %v4381 = vadd.f32 0.0, %v4380
  %4382 = vmatmul.f32.gmra.mxu0 %v3371
  %v4383 = vpop.f32.mrf.mxu0
  %v4384 = vadd.f32 0.0, %v4383
  %4385 = vmatmul.f32.gmra.mxu0 %v3373
  %v4386 = vpop.f32.mrf.mxu0
  %v4387 = vadd.f32 0.0, %v4386
  %4388 = vmatmul.f32.gmra.mxu0 %v3375
  %v4389 = vpop.f32.mrf.mxu0
  %v4390 = vadd.f32 0.0, %v4389
  %4391 = vmatmul.f32.gmra.mxu0 %v3377
  %v4392 = vpop.f32.mrf.mxu0
  %v4393 = vadd.f32 0.0, %v4392
  %4394 = vmatmul.f32.gmra.mxu0 %v3379
  %v4395 = vpop.f32.mrf.mxu0
  %v4396 = vadd.f32 0.0, %v4395
  %4397 = vmatmul.f32.gmra.mxu0 %v3381
  %v4398 = vpop.f32.mrf.mxu0
  %v4399 = vadd.f32 0.0, %v4398
  %4400 = vmatmul.f32.gmra.mxu0 %v3383
  %v4401 = vpop.f32.mrf.mxu0
  %v4402 = vadd.f32 0.0, %v4401
  %4403 = vmatmul.f32.gmra.mxu0 %v3385
  %v4404 = vpop.f32.mrf.mxu0
  %v4405 = vadd.f32 0.0, %v4404
  %4406 = vmatmul.f32.gmra.mxu0 %v3386
  %v4407 = vpop.f32.mrf.mxu0
  %v4408 = vadd.f32 0.0, %v4407
  %4409 = vdwg.mxu0
  %4410 = vmatpush.msra.mxu0 0.0
  %4411 = vmatpush.msra.mxu0 0.0
  %4412 = vmatpush.msra.mxu0 0.0
  %4413 = vmatpush.msra.mxu0 0.0
  %4414 = vmatpush.msra.mxu0 0.0
  %4415 = vmatpush.msra.mxu0 0.0
  %4416 = vmatpush.msra.mxu0 0.0
  %4417 = vmatpush.msra.mxu0 0.0
  %4418 = vmatpush.msra.mxu0 0.0
  %4419 = vmatpush.msra.mxu0 0.0
  %4420 = vmatpush.msra.mxu0 0.0
  %4421 = vmatpush.msra.mxu0 0.0
  %4422 = vmatpush.msra.mxu0 0.0
  %4423 = vmatpush.msra.mxu0 0.0
  %4424 = vmatpush.msra.mxu0 %v4020
  %4425 = vmatpush.msra.mxu0 %v4019
  %4426 = vmatmul.f32.gmra.mxu0 %v4022
  %v4427 = vpop.f32.mrf.mxu0
  %v4428 = vadd.f32 %v4219, %v4427
  %4429 = vmatmul.f32.gmra.mxu0 %v4025
  %v4430 = vpop.f32.mrf.mxu0
  %v4431 = vadd.f32 %v4222, %v4430
  %4432 = vmatmul.f32.gmra.mxu0 %v4028
  %v4433 = vpop.f32.mrf.mxu0
  %v4434 = vadd.f32 %v4225, %v4433
  %4435 = vmatmul.f32.gmra.mxu0 %v4031
  %v4436 = vpop.f32.mrf.mxu0
  %v4437 = vadd.f32 %v4228, %v4436
  %4438 = vmatmul.f32.gmra.mxu0 %v4034
  %v4439 = vpop.f32.mrf.mxu0
  %v4440 = vadd.f32 %v4231, %v4439
  %4441 = vmatmul.f32.gmra.mxu0 %v4037
  %v4442 = vpop.f32.mrf.mxu0
  %v4443 = vadd.f32 %v4234, %v4442
  %4444 = vmatmul.f32.gmra.mxu0 %v4040
  %v4445 = vpop.f32.mrf.mxu0
  %v4446 = vadd.f32 %v4237, %v4445
  %4447 = vmatmul.f32.gmra.mxu0 %v4043
  %v4448 = vpop.f32.mrf.mxu0
  %v4449 = vadd.f32 %v4240, %v4448
  %4450 = vmatmul.f32.gmra.mxu0 %v4046
  %v4451 = vpop.f32.mrf.mxu0
  %v4452 = vadd.f32 %v4243, %v4451
  %4453 = vmatmul.f32.gmra.mxu0 %v4049
  %v4454 = vpop.f32.mrf.mxu0
  %v4455 = vadd.f32 %v4246, %v4454
  %4456 = vmatmul.f32.gmra.mxu0 %v4052
  %v4457 = vpop.f32.mrf.mxu0
  %v4458 = vadd.f32 %v4249, %v4457
  %4459 = vmatmul.f32.gmra.mxu0 %v4055
  %v4460 = vpop.f32.mrf.mxu0
  %v4461 = vadd.f32 %v4252, %v4460
  %4462 = vmatmul.f32.gmra.mxu0 %v4058
  %v4463 = vpop.f32.mrf.mxu0
  %v4464 = vadd.f32 %v4255, %v4463
  %4465 = vmatmul.f32.gmra.mxu0 %v4061
  %v4466 = vpop.f32.mrf.mxu0
  %v4467 = vadd.f32 %v4258, %v4466
  %4468 = vmatmul.f32.gmra.mxu0 %v4064
  %v4469 = vpop.f32.mrf.mxu0
  %v4470 = vadd.f32 %v4261, %v4469
  %4471 = vmatmul.f32.gmra.mxu0 %v4067
  %v4472 = vpop.f32.mrf.mxu0
  %v4473 = vadd.f32 %v4264, %v4472
  %4474 = vmatmul.f32.gmra.mxu0 %v4070
  %v4475 = vpop.f32.mrf.mxu0
  %v4476 = vadd.f32 %v4267, %v4475
  %4477 = vmatmul.f32.gmra.mxu0 %v4073
  %v4478 = vpop.f32.mrf.mxu0
  %v4479 = vadd.f32 %v4270, %v4478
  %4480 = vmatmul.f32.gmra.mxu0 %v4076
  %v4481 = vpop.f32.mrf.mxu0
  %v4482 = vadd.f32 %v4273, %v4481
  %4483 = vmatmul.f32.gmra.mxu0 %v4079
  %v4484 = vpop.f32.mrf.mxu0
  %v4485 = vadd.f32 %v4276, %v4484
  %4486 = vmatmul.f32.gmra.mxu0 %v4082
  %v4487 = vpop.f32.mrf.mxu0
  %v4488 = vadd.f32 %v4279, %v4487
  %4489 = vmatmul.f32.gmra.mxu0 %v4085
  %v4490 = vpop.f32.mrf.mxu0
  %v4491 = vadd.f32 %v4282, %v4490
  %4492 = vmatmul.f32.gmra.mxu0 %v4088
  %v4493 = vpop.f32.mrf.mxu0
  %v4494 = vadd.f32 %v4285, %v4493
  %4495 = vmatmul.f32.gmra.mxu0 %v4091
  %v4496 = vpop.f32.mrf.mxu0
  %v4497 = vadd.f32 %v4288, %v4496
  %4498 = vmatmul.f32.gmra.mxu0 %v4094
  %v4499 = vpop.f32.mrf.mxu0
  %v4500 = vadd.f32 %v4291, %v4499
  %4501 = vmatmul.f32.gmra.mxu0 %v4097
  %v4502 = vpop.f32.mrf.mxu0
  %v4503 = vadd.f32 %v4294, %v4502
  %4504 = vmatmul.f32.gmra.mxu0 %v4100
  %v4505 = vpop.f32.mrf.mxu0
  %v4506 = vadd.f32 %v4297, %v4505
  %4507 = vmatmul.f32.gmra.mxu0 %v4103
  %v4508 = vpop.f32.mrf.mxu0
  %v4509 = vadd.f32 %v4300, %v4508
  %4510 = vmatmul.f32.gmra.mxu0 %v4106
  %v4511 = vpop.f32.mrf.mxu0
  %v4512 = vadd.f32 %v4303, %v4511
  %4513 = vmatmul.f32.gmra.mxu0 %v4109
  %v4514 = vpop.f32.mrf.mxu0
  %v4515 = vadd.f32 %v4306, %v4514
  %4516 = vmatmul.f32.gmra.mxu0 %v4100
  %v4517 = vpop.f32.mrf.mxu0
  %v4518 = vadd.f32 %v4309, %v4517
  %4519 = vmatmul.f32.gmra.mxu0 %v4103
  %v4520 = vpop.f32.mrf.mxu0
  %v4521 = vadd.f32 %v4312, %v4520
  %4522 = vmatmul.f32.gmra.mxu0 %v4112
  %v4523 = vpop.f32.mrf.mxu0
  %v4524 = vadd.f32 %v4315, %v4523
  %4525 = vmatmul.f32.gmra.mxu0 %v4115
  %v4526 = vpop.f32.mrf.mxu0
  %v4527 = vadd.f32 %v4318, %v4526
  %4528 = vmatmul.f32.gmra.mxu0 %v4118
  %v4529 = vpop.f32.mrf.mxu0
  %v4530 = vadd.f32 %v4321, %v4529
  %4531 = vmatmul.f32.gmra.mxu0 %v4121
  %v4532 = vpop.f32.mrf.mxu0
  %v4533 = vadd.f32 %v4324, %v4532
  %4534 = vmatmul.f32.gmra.mxu0 %v4124
  %v4535 = vpop.f32.mrf.mxu0
  %v4536 = vadd.f32 %v4327, %v4535
  %4537 = vmatmul.f32.gmra.mxu0 %v4127
  %v4538 = vpop.f32.mrf.mxu0
  %v4539 = vadd.f32 %v4330, %v4538
  %4540 = vmatmul.f32.gmra.mxu0 %v4130
  %v4541 = vpop.f32.mrf.mxu0
  %v4542 = vadd.f32 %v4333, %v4541
  %4543 = vmatmul.f32.gmra.mxu0 %v4133
  %v4544 = vpop.f32.mrf.mxu0
  %v4545 = vadd.f32 %v4336, %v4544
  %4546 = vmatmul.f32.gmra.mxu0 %v4136
  %v4547 = vpop.f32.mrf.mxu0
  %v4548 = vadd.f32 %v4339, %v4547
  %4549 = vmatmul.f32.gmra.mxu0 %v4139
  %v4550 = vpop.f32.mrf.mxu0
  %v4551 = vadd.f32 %v4342, %v4550
  %4552 = vmatmul.f32.gmra.mxu0 %v4142
  %v4553 = vpop.f32.mrf.mxu0
  %v4554 = vadd.f32 %v4345, %v4553
  %4555 = vmatmul.f32.gmra.mxu0 %v4145
  %v4556 = vpop.f32.mrf.mxu0
  %v4557 = vadd.f32 %v4348, %v4556
  %4558 = vmatmul.f32.gmra.mxu0 %v4148
  %v4559 = vpop.f32.mrf.mxu0
  %v4560 = vadd.f32 %v4351, %v4559
  %4561 = vmatmul.f32.gmra.mxu0 %v4151
  %v4562 = vpop.f32.mrf.mxu0
  %v4563 = vadd.f32 %v4354, %v4562
  %4564 = vmatmul.f32.gmra.mxu0 %v4154
  %v4565 = vpop.f32.mrf.mxu0
  %v4566 = vadd.f32 %v4357, %v4565
  %4567 = vmatmul.f32.gmra.mxu0 %v4157
  %v4568 = vpop.f32.mrf.mxu0
  %v4569 = vadd.f32 %v4360, %v4568
  %4570 = vmatmul.f32.gmra.mxu0 %v4160
  %v4571 = vpop.f32.mrf.mxu0
  %v4572 = vadd.f32 %v4363, %v4571
  %4573 = vmatmul.f32.gmra.mxu0 %v4163
  %v4574 = vpop.f32.mrf.mxu0
  %v4575 = vadd.f32 %v4366, %v4574
  %4576 = vmatmul.f32.gmra.mxu0 %v4166
  %v4577 = vpop.f32.mrf.mxu0
  %v4578 = vadd.f32 %v4369, %v4577
  %4579 = vmatmul.f32.gmra.mxu0 %v4169
  %v4580 = vpop.f32.mrf.mxu0
  %v4581 = vadd.f32 %v4372, %v4580
  %4582 = vmatmul.f32.gmra.mxu0 %v4172
  %v4583 = vpop.f32.mrf.mxu0
  %v4584 = vadd.f32 %v4375, %v4583
  %4585 = vmatmul.f32.gmra.mxu0 %v4175
  %v4586 = vpop.f32.mrf.mxu0
  %v4587 = vadd.f32 %v4378, %v4586
  %4588 = vmatmul.f32.gmra.mxu0 %v4178
  %v4589 = vpop.f32.mrf.mxu0
  %v4590 = vadd.f32 %v4381, %v4589
  %4591 = vmatmul.f32.gmra.mxu0 %v4181
  %v4592 = vpop.f32.mrf.mxu0
  %v4593 = vadd.f32 %v4384, %v4592
  %4594 = vmatmul.f32.gmra.mxu0 %v4184
  %v4595 = vpop.f32.mrf.mxu0
  %v4596 = vadd.f32 %v4387, %v4595
  %4597 = vmatmul.f32.gmra.mxu0 %v4187
  %v4598 = vpop.f32.mrf.mxu0
  %v4599 = vadd.f32 %v4390, %v4598
  %4600 = vmatmul.f32.gmra.mxu0 %v4190
  %v4601 = vpop.f32.mrf.mxu0
  %v4602 = vadd.f32 %v4393, %v4601
  %4603 = vmatmul.f32.gmra.mxu0 %v4193
  %v4604 = vpop.f32.mrf.mxu0
  %v4605 = vadd.f32 %v4396, %v4604
  %4606 = vmatmul.f32.gmra.mxu0 %v4196
  %v4607 = vpop.f32.mrf.mxu0
  %v4608 = vadd.f32 %v4399, %v4607
  %4609 = vmatmul.f32.gmra.mxu0 %v4199
  %v4610 = vpop.f32.mrf.mxu0
  %v4611 = vadd.f32 %v4402, %v4610
  %4612 = vmatmul.f32.gmra.mxu0 %v4190
  %v4613 = vpop.f32.mrf.mxu0
  %v4614 = vadd.f32 %v4405, %v4613
  %4615 = vmatmul.f32.gmra.mxu0 %v4193
  %v4616 = vpop.f32.mrf.mxu0
  %v4617 = vadd.f32 %v4408, %v4616
  %4618 = vdwg.mxu0
  %v4619 = vld [vmem:[%s7] sm:$0xff]
  %v4620 = vld [vmem:[%s7 + $0x8] sm:$0xff]
  %v4621 = vld [vmem:[%s7 + $0x10] sm:$0xff]
  %v4622 = vld [vmem:[%s7 + $0x18] sm:$0xff]
  %v4623 = vld [vmem:[%s7 + $0x20] sm:$0xff]
  %v4624 = vld [vmem:[%s7 + $0x28] sm:$0xff]
  %v4625 = vld [vmem:[%s7 + $0x30] sm:$0xff]
  %v4626 = vld [vmem:[%s7 + $0x38] sm:$0xff]
  %v4627 = vld [vmem:[%s7 + $0x40] sm:$0xff]
  %v4628 = vld [vmem:[%s7 + $0x48] sm:$0xff]
  %v4629 = vld [vmem:[%s7 + $0x50] sm:$0xff]
  %v4630 = vld [vmem:[%s7 + $0x58] sm:$0xff]
  %v4631 = vld [vmem:[%s7 + $0x60] sm:$0xff]
  %v4632 = vld [vmem:[%s7 + $0x68] sm:$0xff]
  %v4633 = vld [vmem:[%s7 + $0x70] sm:$0xff]
  %v4634 = vld [vmem:[%s7 + $0x78] sm:$0xff]
  %v4635 = vld [vmem:[%s7 + $0x80] sm:$0xff]
  %v4636 = vld [vmem:[%s7 + $0x88] sm:$0xff]
  %v4637 = vsel %vm123, %v1261, 0
  %v4639 = vsel %vm123, %v1263, 0
  %v4641 = vsel %vm123, %v1271, 0
  %v4643 = vsel %vm123, %v1273, 0
  %v4645 = vsel %vm123, %v1276, 0
  %v4647 = vsel %vm123, %v1278, 0
  %v4649 = vsel %vm123, %v1281, 0
  %v4651 = vsel %vm123, %v1283, 0
  %v4653 = vsel %vm123, %v1286, 0
  %v4655 = vsel %vm123, %v1288, 0
  %v4657 = vsel %vm123, %v1291, 0
  %v4659 = vsel %vm123, %v1293, 0
  %v4661 = vsel %vm123, %v1296, 0
  %v4663 = vsel %vm123, %v1298, 0
  %v4665 = vsel %vm123, %v1301, 0
  %v4667 = vsel %vm123, %v1303, 0
  %v4669 = vsel %vm123, %v1306, 0
  %v4671 = vsel %vm123, %v1308, 0
  %v4673 = vsel %vm123, %v1311, 0
  %v4675 = vsel %vm123, %v1313, 0
  %v4677 = vsel %vm123, %v1316, 0
  %v4679 = vsel %vm123, %v1318, 0
  %v4681 = vsel %vm123, %v1321, 0
  %v4683 = vsel %vm123, %v1323, 0
  %v4685 = vsel %vm123, %v1326, 0
  %v4687 = vsel %vm123, %v1328, 0
  %v4689 = vsel %vm123, %v1331, 0
  %v4691 = vsel %vm123, %v1333, 0
  %v4693 = vsel %vm123, %v1989, 0
  %v4695 = vsel %vm123, %v1991, 0
  %v4697 = vsel %vm123, %v1336, 0
  %v4699 = vsel %vm123, %v1338, 0
  %v4701 = vsel %vm123, %v1346, 0
  %v4703 = vsel %vm123, %v1348, 0
  %v4705 = vsel %vm123, %v1351, 0
  %v4707 = vsel %vm123, %v1353, 0
  %v4709 = vsel %vm123, %v1356, 0
  %v4711 = vsel %vm123, %v1358, 0
  %v4713 = vsel %vm123, %v1361, 0
  %v4715 = vsel %vm123, %v1363, 0
  %v4717 = vsel %vm123, %v1366, 0
  %v4719 = vsel %vm123, %v1368, 0
  %v4721 = vsel %vm123, %v1371, 0
  %v4723 = vsel %vm123, %v1373, 0
  %v4725 = vsel %vm123, %v1376, 0
  %v4727 = vsel %vm123, %v1378, 0
  %v4729 = vsel %vm123, %v1381, 0
  %v4731 = vsel %vm123, %v1383, 0
  %v4733 = vsel %vm123, %v1386, 0
  %v4735 = vsel %vm123, %v1388, 0
  %v4737 = vsel %vm123, %v1391, 0
  %v4739 = vsel %vm123, %v1393, 0
  %v4741 = vsel %vm123, %v1396, 0
  %v4743 = vsel %vm123, %v1398, 0
  %v4745 = vsel %vm123, %v1401, 0
  %v4747 = vsel %vm123, %v1403, 0
  %v4749 = vsel %vm123, %v1406, 0
  %v4751 = vsel %vm123, %v1408, 0
  %v4753 = vsel %vm123, %v1994, 0
  %v4755 = vsel %vm123, %v1996, 0
  %4757 = vmatpush.msra.mxu0 %v4634
  %4758 = vmatpush.msra.mxu0 %v4633
  %4759 = vmatpush.msra.mxu0 %v4632
  %4760 = vmatpush.msra.mxu0 %v4631
  %4761 = vmatpush.msra.mxu0 %v4630
  %4762 = vmatpush.msra.mxu0 %v4629
  %4763 = vmatpush.msra.mxu0 %v4628
  %4764 = vmatpush.msra.mxu0 %v4627
  %4765 = vmatpush.msra.mxu0 %v4626
  %4766 = vmatpush.msra.mxu0 %v4625
  %4767 = vmatpush.msra.mxu0 %v4624
  %4768 = vmatpush.msra.mxu0 %v4623
  %4769 = vmatpush.msra.mxu0 %v4622
  %4770 = vmatpush.msra.mxu0 %v4621
  %4771 = vmatpush.msra.mxu0 %v4620
  %4772 = vmatpush.msra.mxu0 %v4619
  %4773 = vmatmul.f32.gmra.mxu0 %v2991
  %v4774 = vpop.f32.mrf.mxu0
  %v4775 = vadd.f32 0.0, %v4774
  %4776 = vmatmul.f32.gmra.mxu0 %v2992
  %v4777 = vpop.f32.mrf.mxu0
  %v4778 = vadd.f32 0.0, %v4777
  %4779 = vmatmul.f32.gmra.mxu0 %v2993
  %v4780 = vpop.f32.mrf.mxu0
  %4781 = vmatmul.f32.gmra.mxu0 %v2994
  %v4782 = vpop.f32.mrf.mxu0
  %4783 = vmatmul.f32.gmra.mxu0 %v2995
  %v4784 = vpop.f32.mrf.mxu0
  %v4785 = vadd.f32 0.0, %v4784
  %4786 = vmatmul.f32.gmra.mxu0 %v2996
  %v4787 = vpop.f32.mrf.mxu0
  %v4788 = vadd.f32 0.0, %v4787
  %4789 = vmatmul.f32.gmra.mxu0 %v2997
  %v4790 = vpop.f32.mrf.mxu0
  %4791 = vmatmul.f32.gmra.mxu0 %v2998
  %v4792 = vpop.f32.mrf.mxu0
  %4793 = vmatmul.f32.gmra.mxu0 %v2999
  %v4794 = vpop.f32.mrf.mxu0
  %v4795 = vadd.f32 0.0, %v4794
  %4796 = vmatmul.f32.gmra.mxu0 %v3000
  %v4797 = vpop.f32.mrf.mxu0
  %v4798 = vadd.f32 0.0, %v4797
  %4799 = vmatmul.f32.gmra.mxu0 %v3001
  %v4800 = vpop.f32.mrf.mxu0
  %4801 = vmatmul.f32.gmra.mxu0 %v3002
  %v4802 = vpop.f32.mrf.mxu0
  %4803 = vmatmul.f32.gmra.mxu0 %v3003
  %v4804 = vpop.f32.mrf.mxu0
  %v4805 = vadd.f32 0.0, %v4804
  %4806 = vmatmul.f32.gmra.mxu0 %v3004
  %v4807 = vpop.f32.mrf.mxu0
  %v4808 = vadd.f32 0.0, %v4807
  %4809 = vmatmul.f32.gmra.mxu0 %v3005
  %v4810 = vpop.f32.mrf.mxu0
  %4811 = vmatmul.f32.gmra.mxu0 %v3006
  %v4812 = vpop.f32.mrf.mxu0
  %4813 = vmatmul.f32.gmra.mxu0 %v3007
  %v4814 = vpop.f32.mrf.mxu0
  %v4815 = vadd.f32 0.0, %v4814
  %4816 = vmatmul.f32.gmra.mxu0 %v3008
  %v4817 = vpop.f32.mrf.mxu0
  %v4818 = vadd.f32 0.0, %v4817
  %4819 = vmatmul.f32.gmra.mxu0 %v3009
  %v4820 = vpop.f32.mrf.mxu0
  %4821 = vmatmul.f32.gmra.mxu0 %v3010
  %v4822 = vpop.f32.mrf.mxu0
  %4823 = vmatmul.f32.gmra.mxu0 %v3011
  %v4824 = vpop.f32.mrf.mxu0
  %v4825 = vadd.f32 0.0, %v4824
  %4826 = vmatmul.f32.gmra.mxu0 %v3012
  %v4827 = vpop.f32.mrf.mxu0
  %v4828 = vadd.f32 0.0, %v4827
  %4829 = vmatmul.f32.gmra.mxu0 %v3013
  %v4830 = vpop.f32.mrf.mxu0
  %4831 = vmatmul.f32.gmra.mxu0 %v3014
  %v4832 = vpop.f32.mrf.mxu0
  %4833 = vmatmul.f32.gmra.mxu0 %v3015
  %v4834 = vpop.f32.mrf.mxu0
  %v4835 = vadd.f32 0.0, %v4834
  %4836 = vmatmul.f32.gmra.mxu0 %v3016
  %v4837 = vpop.f32.mrf.mxu0
  %v4838 = vadd.f32 0.0, %v4837
  %4839 = vmatmul.f32.gmra.mxu0 %v3017
  %v4840 = vpop.f32.mrf.mxu0
  %4841 = vmatmul.f32.gmra.mxu0 %v3018
  %v4842 = vpop.f32.mrf.mxu0
  %4843 = vmatmul.f32.gmra.mxu0 %v3019
  %v4844 = vpop.f32.mrf.mxu0
  %v4845 = vadd.f32 0.0, %v4844
  %4846 = vmatmul.f32.gmra.mxu0 %v3020
  %v4847 = vpop.f32.mrf.mxu0
  %v4848 = vadd.f32 0.0, %v4847
  %4849 = vmatmul.f32.gmra.mxu0 %v3021
  %v4850 = vpop.f32.mrf.mxu0
  %4851 = vmatmul.f32.gmra.mxu0 %v3022
  %v4852 = vpop.f32.mrf.mxu0
  %4853 = vmatmul.f32.gmra.mxu0 %v3023
  %v4854 = vpop.f32.mrf.mxu0
  %v4855 = vadd.f32 0.0, %v4854
  %4856 = vmatmul.f32.gmra.mxu0 %v3024
  %v4857 = vpop.f32.mrf.mxu0
  %v4858 = vadd.f32 0.0, %v4857
  %4859 = vmatmul.f32.gmra.mxu0 %v3025
  %v4860 = vpop.f32.mrf.mxu0
  %4861 = vmatmul.f32.gmra.mxu0 %v3026
  %v4862 = vpop.f32.mrf.mxu0
  %4863 = vmatmul.f32.gmra.mxu0 %v3027
  %v4864 = vpop.f32.mrf.mxu0
  %v4865 = vadd.f32 0.0, %v4864
  %4866 = vmatmul.f32.gmra.mxu0 %v3028
  %v4867 = vpop.f32.mrf.mxu0
  %v4868 = vadd.f32 0.0, %v4867
  %4869 = vmatmul.f32.gmra.mxu0 %v3029
  %v4870 = vpop.f32.mrf.mxu0
  %4871 = vmatmul.f32.gmra.mxu0 %v3030
  %v4872 = vpop.f32.mrf.mxu0
  %4873 = vmatmul.f32.gmra.mxu0 %v3031
  %v4874 = vpop.f32.mrf.mxu0
  %v4875 = vadd.f32 0.0, %v4874
  %4876 = vmatmul.f32.gmra.mxu0 %v3032
  %v4877 = vpop.f32.mrf.mxu0
  %v4878 = vadd.f32 0.0, %v4877
  %4879 = vmatmul.f32.gmra.mxu0 %v3033
  %v4880 = vpop.f32.mrf.mxu0
  %4881 = vmatmul.f32.gmra.mxu0 %v3034
  %v4882 = vpop.f32.mrf.mxu0
  %4883 = vmatmul.f32.gmra.mxu0 %v3035
  %v4884 = vpop.f32.mrf.mxu0
  %v4885 = vadd.f32 0.0, %v4884
  %4886 = vmatmul.f32.gmra.mxu0 %v3036
  %v4887 = vpop.f32.mrf.mxu0
  %v4888 = vadd.f32 0.0, %v4887
  %4889 = vmatmul.f32.gmra.mxu0 %v3037
  %v4890 = vpop.f32.mrf.mxu0
  %4891 = vmatmul.f32.gmra.mxu0 %v3038
  %v4892 = vpop.f32.mrf.mxu0
  %4893 = vmatmul.f32.gmra.mxu0 %v3039
  %v4894 = vpop.f32.mrf.mxu0
  %v4895 = vadd.f32 0.0, %v4894
  %4896 = vmatmul.f32.gmra.mxu0 %v3040
  %v4897 = vpop.f32.mrf.mxu0
  %v4898 = vadd.f32 0.0, %v4897
  %4899 = vmatmul.f32.gmra.mxu0 %v3041
  %v4900 = vpop.f32.mrf.mxu0
  %4901 = vmatmul.f32.gmra.mxu0 %v3042
  %v4902 = vpop.f32.mrf.mxu0
  %4903 = vmatmul.f32.gmra.mxu0 %v3043
  %v4904 = vpop.f32.mrf.mxu0
  %v4905 = vadd.f32 0.0, %v4904
  %4906 = vmatmul.f32.gmra.mxu0 %v3044
  %v4907 = vpop.f32.mrf.mxu0
  %v4908 = vadd.f32 0.0, %v4907
  %4909 = vmatmul.f32.gmra.mxu0 %v3045
  %v4910 = vpop.f32.mrf.mxu0
  %4911 = vmatmul.f32.gmra.mxu0 %v3046
  %v4912 = vpop.f32.mrf.mxu0
  %4913 = vmatmul.f32.gmra.mxu0 %v3047
  %v4914 = vpop.f32.mrf.mxu0
  %v4915 = vadd.f32 0.0, %v4914
  %4916 = vmatmul.f32.gmra.mxu0 %v3048
  %v4917 = vpop.f32.mrf.mxu0
  %v4918 = vadd.f32 0.0, %v4917
  %4919 = vmatmul.f32.gmra.mxu0 %v3049
  %v4920 = vpop.f32.mrf.mxu0
  %4921 = vmatmul.f32.gmra.mxu0 %v3050
  %v4922 = vpop.f32.mrf.mxu0
  %4923 = vmatmul.f32.gmra.mxu0 %v3051
  %v4924 = vpop.f32.mrf.mxu0
  %v4925 = vadd.f32 0.0, %v4924
  %4926 = vmatmul.f32.gmra.mxu0 %v3052
  %v4927 = vpop.f32.mrf.mxu0
  %v4928 = vadd.f32 0.0, %v4927
  %4929 = vmatmul.f32.gmra.mxu0 %v3053
  %v4930 = vpop.f32.mrf.mxu0
  %4931 = vmatmul.f32.gmra.mxu0 %v3054
  %v4932 = vpop.f32.mrf.mxu0
  %4933 = vdwg.mxu0
  %4934 = vmatpush.msra.mxu0 0.0
  %4935 = vmatpush.msra.mxu0 0.0
  %4936 = vmatpush.msra.mxu0 0.0
  %4937 = vmatpush.msra.mxu0 0.0
  %4938 = vmatpush.msra.mxu0 0.0
  %4939 = vmatpush.msra.mxu0 0.0
  %4940 = vmatpush.msra.mxu0 0.0
  %4941 = vmatpush.msra.mxu0 0.0
  %4942 = vmatpush.msra.mxu0 0.0
  %4943 = vmatpush.msra.mxu0 0.0
  %4944 = vmatpush.msra.mxu0 0.0
  %4945 = vmatpush.msra.mxu0 0.0
  %4946 = vmatpush.msra.mxu0 0.0
  %4947 = vmatpush.msra.mxu0 0.0
  %4948 = vmatpush.msra.mxu0 %v4636
  %4949 = vmatpush.msra.mxu0 %v4635
  %4950 = vmatmul.f32.gmra.mxu0 %v4637
  %v4951 = vpop.f32.mrf.mxu0
  %v4952 = vadd.f32 %v4775, %v4951
  %4953 = vmatmul.f32.gmra.mxu0 %v4639
  %v4954 = vpop.f32.mrf.mxu0
  %v4955 = vadd.f32 %v4778, %v4954
  %4956 = vmatmul.f32.gmra.mxu0 %v4641
  %v4957 = vpop.f32.mrf.mxu0
  %4958 = vmatmul.f32.gmra.mxu0 %v4643
  %v4959 = vpop.f32.mrf.mxu0
  %4960 = vmatmul.f32.gmra.mxu0 %v4645
  %v4961 = vpop.f32.mrf.mxu0
  %v4962 = vadd.f32 %v4785, %v4961
  %4963 = vmatmul.f32.gmra.mxu0 %v4647
  %v4964 = vpop.f32.mrf.mxu0
  %v4965 = vadd.f32 %v4788, %v4964
  %4966 = vmatmul.f32.gmra.mxu0 %v4649
  %v4967 = vpop.f32.mrf.mxu0
  %4968 = vmatmul.f32.gmra.mxu0 %v4651
  %v4969 = vpop.f32.mrf.mxu0
  %4970 = vmatmul.f32.gmra.mxu0 %v4653
  %v4971 = vpop.f32.mrf.mxu0
  %v4972 = vadd.f32 %v4795, %v4971
  %4973 = vmatmul.f32.gmra.mxu0 %v4655
  %v4974 = vpop.f32.mrf.mxu0
  %v4975 = vadd.f32 %v4798, %v4974
  %4976 = vmatmul.f32.gmra.mxu0 %v4657
  %v4977 = vpop.f32.mrf.mxu0
  %4978 = vmatmul.f32.gmra.mxu0 %v4659
  %v4979 = vpop.f32.mrf.mxu0
  %4980 = vmatmul.f32.gmra.mxu0 %v4661
  %v4981 = vpop.f32.mrf.mxu0
  %v4982 = vadd.f32 %v4805, %v4981
  %4983 = vmatmul.f32.gmra.mxu0 %v4663
  %v4984 = vpop.f32.mrf.mxu0
  %v4985 = vadd.f32 %v4808, %v4984
  %4986 = vmatmul.f32.gmra.mxu0 %v4665
  %v4987 = vpop.f32.mrf.mxu0
  %4988 = vmatmul.f32.gmra.mxu0 %v4667
  %v4989 = vpop.f32.mrf.mxu0
  %4990 = vmatmul.f32.gmra.mxu0 %v4669
  %v4991 = vpop.f32.mrf.mxu0
  %v4992 = vadd.f32 %v4815, %v4991
  %4993 = vmatmul.f32.gmra.mxu0 %v4671
  %v4994 = vpop.f32.mrf.mxu0
  %v4995 = vadd.f32 %v4818, %v4994
  %4996 = vmatmul.f32.gmra.mxu0 %v4673
  %v4997 = vpop.f32.mrf.mxu0
  %4998 = vmatmul.f32.gmra.mxu0 %v4675
  %v4999 = vpop.f32.mrf.mxu0
  %5000 = vmatmul.f32.gmra.mxu0 %v4677
  %v5001 = vpop.f32.mrf.mxu0
  %v5002 = vadd.f32 %v4825, %v5001
  %5003 = vmatmul.f32.gmra.mxu0 %v4679
  %v5004 = vpop.f32.mrf.mxu0
  %v5005 = vadd.f32 %v4828, %v5004
  %5006 = vmatmul.f32.gmra.mxu0 %v4681
  %v5007 = vpop.f32.mrf.mxu0
  %5008 = vmatmul.f32.gmra.mxu0 %v4683
  %v5009 = vpop.f32.mrf.mxu0
  %5010 = vmatmul.f32.gmra.mxu0 %v4685
  %v5011 = vpop.f32.mrf.mxu0
  %v5012 = vadd.f32 %v4835, %v5011
  %5013 = vmatmul.f32.gmra.mxu0 %v4687
  %v5014 = vpop.f32.mrf.mxu0
  %v5015 = vadd.f32 %v4838, %v5014
  %5016 = vmatmul.f32.gmra.mxu0 %v4689
  %v5017 = vpop.f32.mrf.mxu0
  %5018 = vmatmul.f32.gmra.mxu0 %v4691
  %v5019 = vpop.f32.mrf.mxu0
  %5020 = vmatmul.f32.gmra.mxu0 %v4693
  %v5021 = vpop.f32.mrf.mxu0
  %v5022 = vadd.f32 %v4845, %v5021
  %5023 = vmatmul.f32.gmra.mxu0 %v4695
  %v5024 = vpop.f32.mrf.mxu0
  %v5025 = vadd.f32 %v4848, %v5024
  %5026 = vmatmul.f32.gmra.mxu0 %v4689
  %v5027 = vpop.f32.mrf.mxu0
  %5028 = vmatmul.f32.gmra.mxu0 %v4691
  %v5029 = vpop.f32.mrf.mxu0
  %5030 = vmatmul.f32.gmra.mxu0 %v4697
  %v5031 = vpop.f32.mrf.mxu0
  %v5032 = vadd.f32 %v4855, %v5031
  %5033 = vmatmul.f32.gmra.mxu0 %v4699
  %v5034 = vpop.f32.mrf.mxu0
  %v5035 = vadd.f32 %v4858, %v5034
  %5036 = vmatmul.f32.gmra.mxu0 %v4701
  %v5037 = vpop.f32.mrf.mxu0
  %5038 = vmatmul.f32.gmra.mxu0 %v4703
  %v5039 = vpop.f32.mrf.mxu0
  %5040 = vmatmul.f32.gmra.mxu0 %v4705
  %v5041 = vpop.f32.mrf.mxu0
  %v5042 = vadd.f32 %v4865, %v5041
  %5043 = vmatmul.f32.gmra.mxu0 %v4707
  %v5044 = vpop.f32.mrf.mxu0
  %v5045 = vadd.f32 %v4868, %v5044
  %5046 = vmatmul.f32.gmra.mxu0 %v4709
  %v5047 = vpop.f32.mrf.mxu0
  %5048 = vmatmul.f32.gmra.mxu0 %v4711
  %v5049 = vpop.f32.mrf.mxu0
  %5050 = vmatmul.f32.gmra.mxu0 %v4713
  %v5051 = vpop.f32.mrf.mxu0
  %v5052 = vadd.f32 %v4875, %v5051
  %5053 = vmatmul.f32.gmra.mxu0 %v4715
  %v5054 = vpop.f32.mrf.mxu0
  %v5055 = vadd.f32 %v4878, %v5054
  %5056 = vmatmul.f32.gmra.mxu0 %v4717
  %v5057 = vpop.f32.mrf.mxu0
  %5058 = vmatmul.f32.gmra.mxu0 %v4719
  %v5059 = vpop.f32.mrf.mxu0
  %5060 = vmatmul.f32.gmra.mxu0 %v4721
  %v5061 = vpop.f32.mrf.mxu0
  %v5062 = vadd.f32 %v4885, %v5061
  %5063 = vmatmul.f32.gmra.mxu0 %v4723
  %v5064 = vpop.f32.mrf.mxu0
  %v5065 = vadd.f32 %v4888, %v5064
  %5066 = vmatmul.f32.gmra.mxu0 %v4725
  %v5067 = vpop.f32.mrf.mxu0
  %5068 = vmatmul.f32.gmra.mxu0 %v4727
  %v5069 = vpop.f32.mrf.mxu0
  %5070 = vmatmul.f32.gmra.mxu0 %v4729
  %v5071 = vpop.f32.mrf.mxu0
  %v5072 = vadd.f32 %v4895, %v5071
  %5073 = vmatmul.f32.gmra.mxu0 %v4731
  %v5074 = vpop.f32.mrf.mxu0
  %v5075 = vadd.f32 %v4898, %v5074
  %5076 = vmatmul.f32.gmra.mxu0 %v4733
  %v5077 = vpop.f32.mrf.mxu0
  %5078 = vmatmul.f32.gmra.mxu0 %v4735
  %v5079 = vpop.f32.mrf.mxu0
  %5080 = vmatmul.f32.gmra.mxu0 %v4737
  %v5081 = vpop.f32.mrf.mxu0
  %v5082 = vadd.f32 %v4905, %v5081
  %5083 = vmatmul.f32.gmra.mxu0 %v4739
  %v5084 = vpop.f32.mrf.mxu0
  %v5085 = vadd.f32 %v4908, %v5084
  %5086 = vmatmul.f32.gmra.mxu0 %v4741
  %v5087 = vpop.f32.mrf.mxu0
  %5088 = vmatmul.f32.gmra.mxu0 %v4743
  %v5089 = vpop.f32.mrf.mxu0
  %5090 = vmatmul.f32.gmra.mxu0 %v4745
  %v5091 = vpop.f32.mrf.mxu0
  %v5092 = vadd.f32 %v4915, %v5091
  %5093 = vmatmul.f32.gmra.mxu0 %v4747
  %v5094 = vpop.f32.mrf.mxu0
  %v5095 = vadd.f32 %v4918, %v5094
  %5096 = vmatmul.f32.gmra.mxu0 %v4749
  %v5097 = vpop.f32.mrf.mxu0
  %5098 = vmatmul.f32.gmra.mxu0 %v4751
  %v5099 = vpop.f32.mrf.mxu0
  %5100 = vmatmul.f32.gmra.mxu0 %v4753
  %v5101 = vpop.f32.mrf.mxu0
  %v5102 = vadd.f32 %v4925, %v5101
  %5103 = vmatmul.f32.gmra.mxu0 %v4755
  %v5104 = vpop.f32.mrf.mxu0
  %v5105 = vadd.f32 %v4928, %v5104
  %5106 = vmatmul.f32.gmra.mxu0 %v4749
  %v5107 = vpop.f32.mrf.mxu0
  %5108 = vmatmul.f32.gmra.mxu0 %v4751
  %v5109 = vpop.f32.mrf.mxu0
  %5110 = vdwg.mxu0
  %v5127 = vrot.slane %v4952, 1
  %v5128 = vrot.slane %v4962, 1
  %v5129 = vrot.slane %v4972, 1
  %v5130 = vrot.slane %v4982, 1
  %v5131 = vrot.slane %v4992, 1
  %v5132 = vrot.slane %v5002, 1
  %v5133 = vrot.slane %v5012, 1
  %v5134 = vrot.slane %v5022, 1
  %v5135 = vrot.slane %v5032, 1
  %v5136 = vrot.slane %v5042, 1
  %v5137 = vrot.slane %v5052, 1
  %v5138 = vrot.slane %v5062, 1
  %v5139 = vrot.slane %v5072, 1
  %v5140 = vrot.slane %v5082, 1
  %v5141 = vrot.slane %v5092, 1
  %v5142 = vrot.slane %v5102, 1
  %v5159 = vrot.slane %v4952, 2
  %v5160 = vrot.slane %v4962, 2
  %v5161 = vrot.slane %v4972, 2
  %v5162 = vrot.slane %v4982, 2
  %v5163 = vrot.slane %v4992, 2
  %v5164 = vrot.slane %v5002, 2
  %v5165 = vrot.slane %v5012, 2
  %v5166 = vrot.slane %v5022, 2
  %v5167 = vrot.slane %v5032, 2
  %v5168 = vrot.slane %v5042, 2
  %v5169 = vrot.slane %v5052, 2
  %v5170 = vrot.slane %v5062, 2
  %v5171 = vrot.slane %v5072, 2
  %v5172 = vrot.slane %v5082, 2
  %v5173 = vrot.slane %v5092, 2
  %v5174 = vrot.slane %v5102, 2
  %v5191 = vrot.slane %v4952, 3
  %v5192 = vrot.slane %v4962, 3
  %v5193 = vrot.slane %v4972, 3
  %v5194 = vrot.slane %v4982, 3
  %v5195 = vrot.slane %v4992, 3
  %v5196 = vrot.slane %v5002, 3
  %v5197 = vrot.slane %v5012, 3
  %v5198 = vrot.slane %v5022, 3
  %v5199 = vrot.slane %v5032, 3
  %v5200 = vrot.slane %v5042, 3
  %v5201 = vrot.slane %v5052, 3
  %v5202 = vrot.slane %v5062, 3
  %v5203 = vrot.slane %v5072, 3
  %v5204 = vrot.slane %v5082, 3
  %v5205 = vrot.slane %v5092, 3
  %v5206 = vrot.slane %v5102, 3
  %v5239 = vrot.slane %v4955, 4
  %v5240 = vrot.slane %v4965, 4
  %v5241 = vrot.slane %v4975, 4
  %v5242 = vrot.slane %v4985, 4
  %v5243 = vrot.slane %v4995, 4
  %v5244 = vrot.slane %v5005, 4
  %v5245 = vrot.slane %v5015, 4
  %v5246 = vrot.slane %v5025, 4
  %v5247 = vrot.slane %v5035, 4
  %v5248 = vrot.slane %v5045, 4
  %v5249 = vrot.slane %v5055, 4
  %v5250 = vrot.slane %v5065, 4
  %v5251 = vrot.slane %v5075, 4
  %v5252 = vrot.slane %v5085, 4
  %v5253 = vrot.slane %v5095, 4
  %v5254 = vrot.slane %v5105, 4
  %v5271 = vrot.slane %v4955, 5
  %v5272 = vrot.slane %v4965, 5
  %v5273 = vrot.slane %v4975, 5
  %v5274 = vrot.slane %v4985, 5
  %v5275 = vrot.slane %v4995, 5
  %v5276 = vrot.slane %v5005, 5
  %v5277 = vrot.slane %v5015, 5
  %v5278 = vrot.slane %v5025, 5
  %v5279 = vrot.slane %v5035, 5
  %v5280 = vrot.slane %v5045, 5
  %v5281 = vrot.slane %v5055, 5
  %v5282 = vrot.slane %v5065, 5
  %v5283 = vrot.slane %v5075, 5
  %v5284 = vrot.slane %v5085, 5
  %v5285 = vrot.slane %v5095, 5
  %v5286 = vrot.slane %v5105, 5
  %v5303 = vrot.slane %v4955, 6
  %v5304 = vrot.slane %v4965, 6
  %v5305 = vrot.slane %v4975, 6
  %v5306 = vrot.slane %v4985, 6
  %v5307 = vrot.slane %v4995, 6
  %v5308 = vrot.slane %v5005, 6
  %v5309 = vrot.slane %v5015, 6
  %v5310 = vrot.slane %v5025, 6
  %v5311 = vrot.slane %v5035, 6
  %v5312 = vrot.slane %v5045, 6
  %v5313 = vrot.slane %v5055, 6
  %v5314 = vrot.slane %v5065, 6
  %v5315 = vrot.slane %v5075, 6
  %v5316 = vrot.slane %v5085, 6
  %v5317 = vrot.slane %v5095, 6
  %v5318 = vrot.slane %v5105, 6
  %v5335 = vrot.slane %v4955, 7
  %v5336 = vrot.slane %v4965, 7
  %v5337 = vrot.slane %v4975, 7
  %v5338 = vrot.slane %v4985, 7
  %v5339 = vrot.slane %v4995, 7
  %v5340 = vrot.slane %v5005, 7
  %v5341 = vrot.slane %v5015, 7
  %v5342 = vrot.slane %v5025, 7
  %v5343 = vrot.slane %v5035, 7
  %v5344 = vrot.slane %v5045, 7
  %v5345 = vrot.slane %v5055, 7
  %v5346 = vrot.slane %v5065, 7
  %v5347 = vrot.slane %v5075, 7
  %v5348 = vrot.slane %v5085, 7
  %v5349 = vrot.slane %v5095, 7
  %v5350 = vrot.slane %v5105, 7
  %v5367 = vsel %vm307, %v4952, %v5127
  %v5368 = vsel %vm307, %v4962, %v5128
  %v5369 = vsel %vm307, %v4972, %v5129
  %v5370 = vsel %vm307, %v4982, %v5130
  %v5371 = vsel %vm307, %v4992, %v5131
  %v5372 = vsel %vm307, %v5002, %v5132
  %v5373 = vsel %vm307, %v5012, %v5133
  %v5374 = vsel %vm307, %v5022, %v5134
  %v5375 = vsel %vm307, %v5032, %v5135
  %v5376 = vsel %vm307, %v5042, %v5136
  %v5377 = vsel %vm307, %v5052, %v5137
  %v5378 = vsel %vm307, %v5062, %v5138
  %v5379 = vsel %vm307, %v5072, %v5139
  %v5380 = vsel %vm307, %v5082, %v5140
  %v5381 = vsel %vm307, %v5092, %v5141
  %v5382 = vsel %vm307, %v5102, %v5142
  %vm5383 = vcmask 1041408
  %v5384 = vsel %vm5383, %v5367, %v5159
  %v5385 = vsel %vm5383, %v5368, %v5160
  %v5386 = vsel %vm5383, %v5369, %v5161
  %v5387 = vsel %vm5383, %v5370, %v5162
  %v5388 = vsel %vm5383, %v5371, %v5163
  %v5389 = vsel %vm5383, %v5372, %v5164
  %v5390 = vsel %vm5383, %v5373, %v5165
  %v5391 = vsel %vm5383, %v5374, %v5166
  %v5392 = vsel %vm5383, %v5375, %v5167
  %v5393 = vsel %vm5383, %v5376, %v5168
  %v5394 = vsel %vm5383, %v5377, %v5169
  %v5395 = vsel %vm5383, %v5378, %v5170
  %v5396 = vsel %vm5383, %v5379, %v5171
  %v5397 = vsel %vm5383, %v5380, %v5172
  %v5398 = vsel %vm5383, %v5381, %v5173
  %v5399 = vsel %vm5383, %v5382, %v5174
  %vm5400 = vcmask 1042432
  %v5401 = vsel %vm5400, %v5384, %v5191
  %v5402 = vsel %vm5400, %v5385, %v5192
  %v5403 = vsel %vm5400, %v5386, %v5193
  %v5404 = vsel %vm5400, %v5387, %v5194
  %v5405 = vsel %vm5400, %v5388, %v5195
  %v5406 = vsel %vm5400, %v5389, %v5196
  %v5407 = vsel %vm5400, %v5390, %v5197
  %v5408 = vsel %vm5400, %v5391, %v5198
  %v5409 = vsel %vm5400, %v5392, %v5199
  %v5410 = vsel %vm5400, %v5393, %v5200
  %v5411 = vsel %vm5400, %v5394, %v5201
  %v5412 = vsel %vm5400, %v5395, %v5202
  %v5413 = vsel %vm5400, %v5396, %v5203
  %v5414 = vsel %vm5400, %v5397, %v5204
  %v5415 = vsel %vm5400, %v5398, %v5205
  %v5416 = vsel %vm5400, %v5399, %v5206
  %vm5417 = vcmask 1043456
  %v5418 = vsel %vm5417, %v5401, %v5239
  %v5419 = vsel %vm5417, %v5402, %v5240
  %v5420 = vsel %vm5417, %v5403, %v5241
  %v5421 = vsel %vm5417, %v5404, %v5242
  %v5422 = vsel %vm5417, %v5405, %v5243
  %v5423 = vsel %vm5417, %v5406, %v5244
  %v5424 = vsel %vm5417, %v5407, %v5245
  %v5425 = vsel %vm5417, %v5408, %v5246
  %v5426 = vsel %vm5417, %v5409, %v5247
  %v5427 = vsel %vm5417, %v5410, %v5248
  %v5428 = vsel %vm5417, %v5411, %v5249
  %v5429 = vsel %vm5417, %v5412, %v5250
  %v5430 = vsel %vm5417, %v5413, %v5251
  %v5431 = vsel %vm5417, %v5414, %v5252
  %v5432 = vsel %vm5417, %v5415, %v5253
  %v5433 = vsel %vm5417, %v5416, %v5254
  %vm5434 = vcmask 1044480
  %v5435 = vsel %vm5434, %v5418, %v5271
  %v5436 = vsel %vm5434, %v5419, %v5272
  %v5437 = vsel %vm5434, %v5420, %v5273
  %v5438 = vsel %vm5434, %v5421, %v5274
  %v5439 = vsel %vm5434, %v5422, %v5275
  %v5440 = vsel %vm5434, %v5423, %v5276
  %v5441 = vsel %vm5434, %v5424, %v5277
  %v5442 = vsel %vm5434, %v5425, %v5278
  %v5443 = vsel %vm5434, %v5426, %v5279
  %v5444 = vsel %vm5434, %v5427, %v5280
  %v5445 = vsel %vm5434, %v5428, %v5281
  %v5446 = vsel %vm5434, %v5429, %v5282
  %v5447 = vsel %vm5434, %v5430, %v5283
  %v5448 = vsel %vm5434, %v5431, %v5284
  %v5449 = vsel %vm5434, %v5432, %v5285
  %v5450 = vsel %vm5434, %v5433, %v5286
  %v5451 = vsel %vm1258, %v5435, %v5303
  %v5452 = vsel %vm1258, %v5436, %v5304
  %v5453 = vsel %vm1258, %v5437, %v5305
  %v5454 = vsel %vm1258, %v5438, %v5306
  %v5455 = vsel %vm1258, %v5439, %v5307
  %v5456 = vsel %vm1258, %v5440, %v5308
  %v5457 = vsel %vm1258, %v5441, %v5309
  %v5458 = vsel %vm1258, %v5442, %v5310
  %v5459 = vsel %vm1258, %v5443, %v5311
  %v5460 = vsel %vm1258, %v5444, %v5312
  %v5461 = vsel %vm1258, %v5445, %v5313
  %v5462 = vsel %vm1258, %v5446, %v5314
  %v5463 = vsel %vm1258, %v5447, %v5315
  %v5464 = vsel %vm1258, %v5448, %v5316
  %v5465 = vsel %vm1258, %v5449, %v5317
  %v5466 = vsel %vm1258, %v5450, %v5318
  %v5467 = vsel %vm927, %v5451, %v5335
  %v5468 = vsel %vm927, %v5452, %v5336
  %v5469 = vsel %vm927, %v5453, %v5337
  %v5470 = vsel %vm927, %v5454, %v5338
  %v5471 = vsel %vm927, %v5455, %v5339
  %v5472 = vsel %vm927, %v5456, %v5340
  %v5473 = vsel %vm927, %v5457, %v5341
  %v5474 = vsel %vm927, %v5458, %v5342
  %v5475 = vsel %vm927, %v5459, %v5343
  %v5476 = vsel %vm927, %v5460, %v5344
  %v5477 = vsel %vm927, %v5461, %v5345
  %v5478 = vsel %vm927, %v5462, %v5346
  %v5479 = vsel %vm927, %v5463, %v5347
  %v5480 = vsel %vm927, %v5464, %v5348
  %v5481 = vsel %vm927, %v5465, %v5349
  %v5482 = vsel %vm927, %v5466, %v5350
  %v5483 = vld [vmem:[%s9] sm:$0x1]
  %v5484 = vld [vmem:[%s10] sm:$0x1]
  %vm5485 = vcmask 64512
  %v5486 = vsel %vm5485, %v3812, 0.0
  %v5487 = vsel %vm5485, %v3815, 0.0
  %v5488 = vadd.f32 %v5486, %v5487
  %v5489 = vsel %vm5485, %v3818, 0.0
  %v5490 = vadd.f32 %v5488, %v5489
  %v5491 = vsel %vm5485, %v3821, 0.0
  %v5492 = vadd.f32 %v5490, %v5491
  %v5493 = vsel %vm5485, %v3824, 0.0
  %v5494 = vadd.f32 %v5492, %v5493
  %v5495 = vsel %vm5485, %v3827, 0.0
  %v5496 = vadd.f32 %v5494, %v5495
  %v5497 = vsel %vm5485, %v3830, 0.0
  %v5498 = vadd.f32 %v5496, %v5497
  %v5499 = vsel %vm5485, %v3833, 0.0
  %v5500 = vadd.f32 %v5498, %v5499
  %v5501 = vsel %vm5485, %v3836, 0.0
  %v5502 = vadd.f32 %v5500, %v5501
  %v5503 = vsel %vm5485, %v3839, 0.0
  %v5504 = vadd.f32 %v5502, %v5503
  %v5505 = vsel %vm5485, %v3842, 0.0
  %v5506 = vadd.f32 %v5504, %v5505
  %v5507 = vsel %vm5485, %v3845, 0.0
  %v5508 = vadd.f32 %v5506, %v5507
  %v5509 = vsel %vm5485, %v3848, 0.0
  %v5510 = vadd.f32 %v5508, %v5509
  %v5511 = vsel %vm5485, %v3851, 0.0
  %v5512 = vadd.f32 %v5510, %v5511
  %v5513 = vsel %vm5485, %v3854, 0.0
  %v5514 = vadd.f32 %v5512, %v5513
  %v5515 = vsel %vm5485, %v3857, 0.0
  %v5516 = vadd.f32 %v5514, %v5515
  %v5517 = vsel %vm5485, %v3860, 0.0
  %v5518 = vadd.f32 %v5516, %v5517
  %v5519 = vsel %vm5485, %v3863, 0.0
  %v5520 = vadd.f32 %v5518, %v5519
  %v5521 = vsel %vm5485, %v3866, 0.0
  %v5522 = vadd.f32 %v5520, %v5521
  %v5523 = vsel %vm5485, %v3869, 0.0
  %v5524 = vadd.f32 %v5522, %v5523
  %v5525 = vsel %vm5485, %v3872, 0.0
  %v5526 = vadd.f32 %v5524, %v5525
  %v5527 = vsel %vm5485, %v3875, 0.0
  %v5528 = vadd.f32 %v5526, %v5527
  %v5529 = vsel %vm5485, %v3878, 0.0
  %v5530 = vadd.f32 %v5528, %v5529
  %v5531 = vsel %vm5485, %v3881, 0.0
  %v5532 = vadd.f32 %v5530, %v5531
  %v5533 = vsel %vm5485, %v3884, 0.0
  %v5534 = vadd.f32 %v5532, %v5533
  %v5535 = vsel %vm5485, %v3887, 0.0
  %v5536 = vadd.f32 %v5534, %v5535
  %v5537 = vsel %vm5485, %v3890, 0.0
  %v5538 = vadd.f32 %v5536, %v5537
  %v5539 = vsel %vm5485, %v3893, 0.0
  %v5540 = vadd.f32 %v5538, %v5539
  %v5541 = vsel %vm5485, %v3896, 0.0
  %v5542 = vadd.f32 %v5540, %v5541
  %v5543 = vsel %vm5485, %v3899, 0.0
  %v5544 = vadd.f32 %v5542, %v5543
  %v5545 = vsel %vm5485, %v3902, 0.0
  %v5546 = vadd.f32 %v5544, %v5545
  %v5547 = vsel %vm5485, %v3905, 0.0
  %v5548 = vadd.f32 %v5546, %v5547
  %v5549 = vsel %vm5485, %v3908, 0.0
  %v5550 = vadd.f32 %v5548, %v5549
  %v5551 = vsel %vm5485, %v3911, 0.0
  %v5552 = vadd.f32 %v5550, %v5551
  %v5553 = vsel %vm5485, %v3914, 0.0
  %v5554 = vadd.f32 %v5552, %v5553
  %v5555 = vsel %vm5485, %v3917, 0.0
  %v5556 = vadd.f32 %v5554, %v5555
  %v5557 = vsel %vm5485, %v3920, 0.0
  %v5558 = vadd.f32 %v5556, %v5557
  %v5559 = vsel %vm5485, %v3923, 0.0
  %v5560 = vadd.f32 %v5558, %v5559
  %v5561 = vsel %vm5485, %v3926, 0.0
  %v5562 = vadd.f32 %v5560, %v5561
  %v5563 = vsel %vm5485, %v3929, 0.0
  %v5564 = vadd.f32 %v5562, %v5563
  %v5565 = vsel %vm5485, %v3932, 0.0
  %v5566 = vadd.f32 %v5564, %v5565
  %v5567 = vsel %vm5485, %v3935, 0.0
  %v5568 = vadd.f32 %v5566, %v5567
  %v5569 = vsel %vm5485, %v3938, 0.0
  %v5570 = vadd.f32 %v5568, %v5569
  %v5571 = vsel %vm5485, %v3941, 0.0
  %v5572 = vadd.f32 %v5570, %v5571
  %v5573 = vsel %vm5485, %v3944, 0.0
  %v5574 = vadd.f32 %v5572, %v5573
  %v5575 = vsel %vm5485, %v3947, 0.0
  %v5576 = vadd.f32 %v5574, %v5575
  %v5577 = vsel %vm5485, %v3950, 0.0
  %v5578 = vadd.f32 %v5576, %v5577
  %v5579 = vsel %vm5485, %v3953, 0.0
  %v5580 = vadd.f32 %v5578, %v5579
  %v5581 = vsel %vm5485, %v3956, 0.0
  %v5582 = vadd.f32 %v5580, %v5581
  %v5583 = vsel %vm5485, %v3959, 0.0
  %v5584 = vadd.f32 %v5582, %v5583
  %v5585 = vsel %vm5485, %v3962, 0.0
  %v5586 = vadd.f32 %v5584, %v5585
  %v5587 = vsel %vm5485, %v3965, 0.0
  %v5588 = vadd.f32 %v5586, %v5587
  %v5589 = vsel %vm5485, %v3968, 0.0
  %v5590 = vadd.f32 %v5588, %v5589
  %v5591 = vsel %vm5485, %v3971, 0.0
  %v5592 = vadd.f32 %v5590, %v5591
  %v5593 = vsel %vm5485, %v3974, 0.0
  %v5594 = vadd.f32 %v5592, %v5593
  %v5595 = vsel %vm5485, %v3977, 0.0
  %v5596 = vadd.f32 %v5594, %v5595
  %v5597 = vsel %vm5485, %v3980, 0.0
  %v5598 = vadd.f32 %v5596, %v5597
  %v5599 = vsel %vm5485, %v3983, 0.0
  %v5600 = vadd.f32 %v5598, %v5599
  %v5601 = vsel %vm5485, %v3986, 0.0
  %v5602 = vadd.f32 %v5600, %v5601
  %v5603 = vsel %vm5485, %v3989, 0.0
  %v5604 = vadd.f32 %v5602, %v5603
  %v5605 = vsel %vm5485, %v3992, 0.0
  %v5606 = vadd.f32 %v5604, %v5605
  %v5607 = vsel %vm5485, %v3995, 0.0
  %v5608 = vadd.f32 %v5606, %v5607
  %v5609 = vsel %vm5485, %v3998, 0.0
  %v5610 = vadd.f32 %v5608, %v5609
  %v5611 = vsel %vm5485, %v4001, 0.0
  %v5612 = vadd.f32 %v5610, %v5611
  %v5613 = vrot.slane %v5612, 4
  %v5614 = vadd.f32 %v5612, %v5613
  %v5615 = vrot.slane %v5614, 2
  %v5616 = vadd.f32 %v5614, %v5615
  %v5617 = vrot.slane %v5616, 1
  %v5618 = vadd.f32 %v5616, %v5617
  %v5619 = vrcp.pop 512.0
  %v5620 = vmul.f32 512.0, %v5619
  %v5621 = vsub.f32 1.0, %v5620
  %v5622 = vmul.f32 %v5619, %v5621
  %v5623 = vadd.f32 %v5619, %v5622
  %vm5624 = vweird.f32 %v5619
  %v5625 = vsel %vm5624, %v5619, %v5623
  %v5626 = vmul.f32 %v5618, %v5625
  %v5627 = vsub.f32 %v3812, %v5626
  %v5628 = vsub.f32 %v3815, %v5626
  %v5629 = vsub.f32 %v3818, %v5626
  %v5630 = vsub.f32 %v3821, %v5626
  %v5631 = vsub.f32 %v3824, %v5626
  %v5632 = vsub.f32 %v3827, %v5626
  %v5633 = vsub.f32 %v3830, %v5626
  %v5634 = vsub.f32 %v3833, %v5626
  %v5635 = vsub.f32 %v3836, %v5626
  %v5636 = vsub.f32 %v3839, %v5626
  %v5637 = vsub.f32 %v3842, %v5626
  %v5638 = vsub.f32 %v3845, %v5626
  %v5639 = vsub.f32 %v3848, %v5626
  %v5640 = vsub.f32 %v3851, %v5626
  %v5641 = vsub.f32 %v3854, %v5626
  %v5642 = vsub.f32 %v3857, %v5626
  %v5643 = vsub.f32 %v3860, %v5626
  %v5644 = vsub.f32 %v3863, %v5626
  %v5645 = vsub.f32 %v3866, %v5626
  %v5646 = vsub.f32 %v3869, %v5626
  %v5647 = vsub.f32 %v3872, %v5626
  %v5648 = vsub.f32 %v3875, %v5626
  %v5649 = vsub.f32 %v3878, %v5626
  %v5650 = vsub.f32 %v3881, %v5626
  %v5651 = vsub.f32 %v3884, %v5626
  %v5652 = vsub.f32 %v3887, %v5626
  %v5653 = vsub.f32 %v3890, %v5626
  %v5654 = vsub.f32 %v3893, %v5626
  %v5655 = vsub.f32 %v3896, %v5626
  %v5656 = vsub.f32 %v3899, %v5626
  %v5657 = vsub.f32 %v3902, %v5626
  %v5658 = vsub.f32 %v3905, %v5626
  %v5659 = vsub.f32 %v3908, %v5626
  %v5660 = vsub.f32 %v3911, %v5626
  %v5661 = vsub.f32 %v3914, %v5626
  %v5662 = vsub.f32 %v3917, %v5626
  %v5663 = vsub.f32 %v3920, %v5626
  %v5664 = vsub.f32 %v3923, %v5626
  %v5665 = vsub.f32 %v3926, %v5626
  %v5666 = vsub.f32 %v3929, %v5626
  %v5667 = vsub.f32 %v3932, %v5626
  %v5668 = vsub.f32 %v3935, %v5626
  %v5669 = vsub.f32 %v3938, %v5626
  %v5670 = vsub.f32 %v3941, %v5626
  %v5671 = vsub.f32 %v3944, %v5626
  %v5672 = vsub.f32 %v3947, %v5626
  %v5673 = vsub.f32 %v3950, %v5626
  %v5674 = vsub.f32 %v3953, %v5626
  %v5675 = vsub.f32 %v3956, %v5626
  %v5676 = vsub.f32 %v3959, %v5626
  %v5677 = vsub.f32 %v3962, %v5626
  %v5678 = vsub.f32 %v3965, %v5626
  %v5679 = vsub.f32 %v3968, %v5626
  %v5680 = vsub.f32 %v3971, %v5626
  %v5681 = vsub.f32 %v3974, %v5626
  %v5682 = vsub.f32 %v3977, %v5626
  %v5683 = vsub.f32 %v3980, %v5626
  %v5684 = vsub.f32 %v3983, %v5626
  %v5685 = vsub.f32 %v3986, %v5626
  %v5686 = vsub.f32 %v3989, %v5626
  %v5687 = vsub.f32 %v3992, %v5626
  %v5688 = vsub.f32 %v3995, %v5626
  %v5689 = vsub.f32 %v3998, %v5626
  %v5690 = vsub.f32 %v4001, %v5626
  %v5691 = vmul.f32 %v5627, %v5627
  %v5692 = vmul.f32 %v5628, %v5628
  %v5693 = vmul.f32 %v5629, %v5629
  %v5694 = vmul.f32 %v5630, %v5630
  %v5695 = vmul.f32 %v5631, %v5631
  %v5696 = vmul.f32 %v5632, %v5632
  %v5697 = vmul.f32 %v5633, %v5633
  %v5698 = vmul.f32 %v5634, %v5634
  %v5699 = vmul.f32 %v5635, %v5635
  %v5700 = vmul.f32 %v5636, %v5636
  %v5701 = vmul.f32 %v5637, %v5637
  %v5702 = vmul.f32 %v5638, %v5638
  %v5703 = vmul.f32 %v5639, %v5639
  %v5704 = vmul.f32 %v5640, %v5640
  %v5705 = vmul.f32 %v5641, %v5641
  %v5706 = vmul.f32 %v5642, %v5642
  %v5707 = vmul.f32 %v5643, %v5643
  %v5708 = vmul.f32 %v5644, %v5644
  %v5709 = vmul.f32 %v5645, %v5645
  %v5710 = vmul.f32 %v5646, %v5646
  %v5711 = vmul.f32 %v5647, %v5647
  %v5712 = vmul.f32 %v5648, %v5648
  %v5713 = vmul.f32 %v5649, %v5649
  %v5714 = vmul.f32 %v5650, %v5650
  %v5715 = vmul.f32 %v5651, %v5651
  %v5716 = vmul.f32 %v5652, %v5652
  %v5717 = vmul.f32 %v5653, %v5653
  %v5718 = vmul.f32 %v5654, %v5654
  %v5719 = vmul.f32 %v5655, %v5655
  %v5720 = vmul.f32 %v5656, %v5656
  %v5721 = vmul.f32 %v5657, %v5657
  %v5722 = vmul.f32 %v5658, %v5658
  %v5723 = vmul.f32 %v5659, %v5659
  %v5724 = vmul.f32 %v5660, %v5660
  %v5725 = vmul.f32 %v5661, %v5661
  %v5726 = vmul.f32 %v5662, %v5662
  %v5727 = vmul.f32 %v5663, %v5663
  %v5728 = vmul.f32 %v5664, %v5664
  %v5729 = vmul.f32 %v5665, %v5665
  %v5730 = vmul.f32 %v5666, %v5666
  %v5731 = vmul.f32 %v5667, %v5667
  %v5732 = vmul.f32 %v5668, %v5668
  %v5733 = vmul.f32 %v5669, %v5669
  %v5734 = vmul.f32 %v5670, %v5670
  %v5735 = vmul.f32 %v5671, %v5671
  %v5736 = vmul.f32 %v5672, %v5672
  %v5737 = vmul.f32 %v5673, %v5673
  %v5738 = vmul.f32 %v5674, %v5674
  %v5739 = vmul.f32 %v5675, %v5675
  %v5740 = vmul.f32 %v5676, %v5676
  %v5741 = vmul.f32 %v5677, %v5677
  %v5742 = vmul.f32 %v5678, %v5678
  %v5743 = vmul.f32 %v5679, %v5679
  %v5744 = vmul.f32 %v5680, %v5680
  %v5745 = vmul.f32 %v5681, %v5681
  %v5746 = vmul.f32 %v5682, %v5682
  %v5747 = vmul.f32 %v5683, %v5683
  %v5748 = vmul.f32 %v5684, %v5684
  %v5749 = vmul.f32 %v5685, %v5685
  %v5750 = vmul.f32 %v5686, %v5686
  %v5751 = vmul.f32 %v5687, %v5687
  %v5752 = vmul.f32 %v5688, %v5688
  %v5753 = vmul.f32 %v5689, %v5689
  %v5754 = vmul.f32 %v5690, %v5690
  %v5755 = vsel %vm5485, %v5691, 0.0
  %v5756 = vsel %vm5485, %v5692, 0.0
  %v5757 = vadd.f32 %v5755, %v5756
  %v5758 = vsel %vm5485, %v5693, 0.0
  %v5759 = vadd.f32 %v5757, %v5758
  %v5760 = vsel %vm5485, %v5694, 0.0
  %v5761 = vadd.f32 %v5759, %v5760
  %v5762 = vsel %vm5485, %v5695, 0.0
  %v5763 = vadd.f32 %v5761, %v5762
  %v5764 = vsel %vm5485, %v5696, 0.0
  %v5765 = vadd.f32 %v5763, %v5764
  %v5766 = vsel %vm5485, %v5697, 0.0
  %v5767 = vadd.f32 %v5765, %v5766
  %v5768 = vsel %vm5485, %v5698, 0.0
  %v5769 = vadd.f32 %v5767, %v5768
  %v5770 = vsel %vm5485, %v5699, 0.0
  %v5771 = vadd.f32 %v5769, %v5770
  %v5772 = vsel %vm5485, %v5700, 0.0
  %v5773 = vadd.f32 %v5771, %v5772
  %v5774 = vsel %vm5485, %v5701, 0.0
  %v5775 = vadd.f32 %v5773, %v5774
  %v5776 = vsel %vm5485, %v5702, 0.0
  %v5777 = vadd.f32 %v5775, %v5776
  %v5778 = vsel %vm5485, %v5703, 0.0
  %v5779 = vadd.f32 %v5777, %v5778
  %v5780 = vsel %vm5485, %v5704, 0.0
  %v5781 = vadd.f32 %v5779, %v5780
  %v5782 = vsel %vm5485, %v5705, 0.0
  %v5783 = vadd.f32 %v5781, %v5782
  %v5784 = vsel %vm5485, %v5706, 0.0
  %v5785 = vadd.f32 %v5783, %v5784
  %v5786 = vsel %vm5485, %v5707, 0.0
  %v5787 = vadd.f32 %v5785, %v5786
  %v5788 = vsel %vm5485, %v5708, 0.0
  %v5789 = vadd.f32 %v5787, %v5788
  %v5790 = vsel %vm5485, %v5709, 0.0
  %v5791 = vadd.f32 %v5789, %v5790
  %v5792 = vsel %vm5485, %v5710, 0.0
  %v5793 = vadd.f32 %v5791, %v5792
  %v5794 = vsel %vm5485, %v5711, 0.0
  %v5795 = vadd.f32 %v5793, %v5794
  %v5796 = vsel %vm5485, %v5712, 0.0
  %v5797 = vadd.f32 %v5795, %v5796
  %v5798 = vsel %vm5485, %v5713, 0.0
  %v5799 = vadd.f32 %v5797, %v5798
  %v5800 = vsel %vm5485, %v5714, 0.0
  %v5801 = vadd.f32 %v5799, %v5800
  %v5802 = vsel %vm5485, %v5715, 0.0
  %v5803 = vadd.f32 %v5801, %v5802
  %v5804 = vsel %vm5485, %v5716, 0.0
  %v5805 = vadd.f32 %v5803, %v5804
  %v5806 = vsel %vm5485, %v5717, 0.0
  %v5807 = vadd.f32 %v5805, %v5806
  %v5808 = vsel %vm5485, %v5718, 0.0
  %v5809 = vadd.f32 %v5807, %v5808
  %v5810 = vsel %vm5485, %v5719, 0.0
  %v5811 = vadd.f32 %v5809, %v5810
  %v5812 = vsel %vm5485, %v5720, 0.0
  %v5813 = vadd.f32 %v5811, %v5812
  %v5814 = vsel %vm5485, %v5721, 0.0
  %v5815 = vadd.f32 %v5813, %v5814
  %v5816 = vsel %vm5485, %v5722, 0.0
  %v5817 = vadd.f32 %v5815, %v5816
  %v5818 = vsel %vm5485, %v5723, 0.0
  %v5819 = vadd.f32 %v5817, %v5818
  %v5820 = vsel %vm5485, %v5724, 0.0
  %v5821 = vadd.f32 %v5819, %v5820
  %v5822 = vsel %vm5485, %v5725, 0.0
  %v5823 = vadd.f32 %v5821, %v5822
  %v5824 = vsel %vm5485, %v5726, 0.0
  %v5825 = vadd.f32 %v5823, %v5824
  %v5826 = vsel %vm5485, %v5727, 0.0
  %v5827 = vadd.f32 %v5825, %v5826
  %v5828 = vsel %vm5485, %v5728, 0.0
  %v5829 = vadd.f32 %v5827, %v5828
  %v5830 = vsel %vm5485, %v5729, 0.0
  %v5831 = vadd.f32 %v5829, %v5830
  %v5832 = vsel %vm5485, %v5730, 0.0
  %v5833 = vadd.f32 %v5831, %v5832
  %v5834 = vsel %vm5485, %v5731, 0.0
  %v5835 = vadd.f32 %v5833, %v5834
  %v5836 = vsel %vm5485, %v5732, 0.0
  %v5837 = vadd.f32 %v5835, %v5836
  %v5838 = vsel %vm5485, %v5733, 0.0
  %v5839 = vadd.f32 %v5837, %v5838
  %v5840 = vsel %vm5485, %v5734, 0.0
  %v5841 = vadd.f32 %v5839, %v5840
  %v5842 = vsel %vm5485, %v5735, 0.0
  %v5843 = vadd.f32 %v5841, %v5842
  %v5844 = vsel %vm5485, %v5736, 0.0
  %v5845 = vadd.f32 %v5843, %v5844
  %v5846 = vsel %vm5485, %v5737, 0.0
  %v5847 = vadd.f32 %v5845, %v5846
  %v5848 = vsel %vm5485, %v5738, 0.0
  %v5849 = vadd.f32 %v5847, %v5848
  %v5850 = vsel %vm5485, %v5739, 0.0
  %v5851 = vadd.f32 %v5849, %v5850
  %v5852 = vsel %vm5485, %v5740, 0.0
  %v5853 = vadd.f32 %v5851, %v5852
  %v5854 = vsel %vm5485, %v5741, 0.0
  %v5855 = vadd.f32 %v5853, %v5854
  %v5856 = vsel %vm5485, %v5742, 0.0
  %v5857 = vadd.f32 %v5855, %v5856
  %v5858 = vsel %vm5485, %v5743, 0.0
  %v5859 = vadd.f32 %v5857, %v5858
  %v5860 = vsel %vm5485, %v5744, 0.0
  %v5861 = vadd.f32 %v5859, %v5860
  %v5862 = vsel %vm5485, %v5745, 0.0
  %v5863 = vadd.f32 %v5861, %v5862
  %v5864 = vsel %vm5485, %v5746, 0.0
  %v5865 = vadd.f32 %v5863, %v5864
  %v5866 = vsel %vm5485, %v5747, 0.0
  %v5867 = vadd.f32 %v5865, %v5866
  %v5868 = vsel %vm5485, %v5748, 0.0
  %v5869 = vadd.f32 %v5867, %v5868
  %v5870 = vsel %vm5485, %v5749, 0.0
  %v5871 = vadd.f32 %v5869, %v5870
  %v5872 = vsel %vm5485, %v5750, 0.0
  %v5873 = vadd.f32 %v5871, %v5872
  %v5874 = vsel %vm5485, %v5751, 0.0
  %v5875 = vadd.f32 %v5873, %v5874
  %v5876 = vsel %vm5485, %v5752, 0.0
  %v5877 = vadd.f32 %v5875, %v5876
  %v5878 = vsel %vm5485, %v5753, 0.0
  %v5879 = vadd.f32 %v5877, %v5878
  %v5880 = vsel %vm5485, %v5754, 0.0
  %v5881 = vadd.f32 %v5879, %v5880
  %v5882 = vrot.slane %v5881, 4
  %v5883 = vadd.f32 %v5881, %v5882
  %v5884 = vrot.slane %v5883, 2
  %v5885 = vadd.f32 %v5883, %v5884
  %v5886 = vrot.slane %v5885, 1
  %v5887 = vadd.f32 %v5885, %v5886
  %v5888 = vmul.f32 %v5887, %v5625
  %v5889 = vadd.f32 %v5888, 1e-05
  %v5890 = vrsqrt.pop %v5889
  %v5891 = vmul.f32 %v5890, %v5889
  %v5892 = vmul.f32 %v5891, %v5890
  %v5893 = vmul.f32 0.5, %v5892
  %v5894 = vsub.f32 1.5, %v5893
  %v5895 = vmul.f32 %v5890, %v5894
  %vm5896 = vweird.f32 %v5889
  %vm5897 = vweird.f32 %v5890
  %vm5898 = vmor %vm5896, %vm5897
  %v5899 = vsel %vm5898, %v5890, %v5895
  %v5900 = vmul.f32 %v5627, %v5899
  %v5901 = vmul.f32 %v5628, %v5899
  %v5902 = vmul.f32 %v5629, %v5899
  %v5903 = vmul.f32 %v5630, %v5899
  %v5904 = vmul.f32 %v5631, %v5899
  %v5905 = vmul.f32 %v5632, %v5899
  %v5906 = vmul.f32 %v5633, %v5899
  %v5907 = vmul.f32 %v5634, %v5899
  %v5908 = vmul.f32 %v5635, %v5899
  %v5909 = vmul.f32 %v5636, %v5899
  %v5910 = vmul.f32 %v5637, %v5899
  %v5911 = vmul.f32 %v5638, %v5899
  %v5912 = vmul.f32 %v5639, %v5899
  %v5913 = vmul.f32 %v5640, %v5899
  %v5914 = vmul.f32 %v5641, %v5899
  %v5915 = vmul.f32 %v5642, %v5899
  %v5916 = vmul.f32 %v5643, %v5899
  %v5917 = vmul.f32 %v5644, %v5899
  %v5918 = vmul.f32 %v5645, %v5899
  %v5919 = vmul.f32 %v5646, %v5899
  %v5920 = vmul.f32 %v5647, %v5899
  %v5921 = vmul.f32 %v5648, %v5899
  %v5922 = vmul.f32 %v5649, %v5899
  %v5923 = vmul.f32 %v5650, %v5899
  %v5924 = vmul.f32 %v5651, %v5899
  %v5925 = vmul.f32 %v5652, %v5899
  %v5926 = vmul.f32 %v5653, %v5899
  %v5927 = vmul.f32 %v5654, %v5899
  %v5928 = vmul.f32 %v5655, %v5899
  %v5929 = vmul.f32 %v5656, %v5899
  %v5930 = vmul.f32 %v5657, %v5899
  %v5931 = vmul.f32 %v5658, %v5899
  %v5932 = vmul.f32 %v5659, %v5899
  %v5933 = vmul.f32 %v5660, %v5899
  %v5934 = vmul.f32 %v5661, %v5899
  %v5935 = vmul.f32 %v5662, %v5899
  %v5936 = vmul.f32 %v5663, %v5899
  %v5937 = vmul.f32 %v5664, %v5899
  %v5938 = vmul.f32 %v5665, %v5899
  %v5939 = vmul.f32 %v5666, %v5899
  %v5940 = vmul.f32 %v5667, %v5899
  %v5941 = vmul.f32 %v5668, %v5899
  %v5942 = vmul.f32 %v5669, %v5899
  %v5943 = vmul.f32 %v5670, %v5899
  %v5944 = vmul.f32 %v5671, %v5899
  %v5945 = vmul.f32 %v5672, %v5899
  %v5946 = vmul.f32 %v5673, %v5899
  %v5947 = vmul.f32 %v5674, %v5899
  %v5948 = vmul.f32 %v5675, %v5899
  %v5949 = vmul.f32 %v5676, %v5899
  %v5950 = vmul.f32 %v5677, %v5899
  %v5951 = vmul.f32 %v5678, %v5899
  %v5952 = vmul.f32 %v5679, %v5899
  %v5953 = vmul.f32 %v5680, %v5899
  %v5954 = vmul.f32 %v5681, %v5899
  %v5955 = vmul.f32 %v5682, %v5899
  %v5956 = vmul.f32 %v5683, %v5899
  %v5957 = vmul.f32 %v5684, %v5899
  %v5958 = vmul.f32 %v5685, %v5899
  %v5959 = vmul.f32 %v5686, %v5899
  %v5960 = vmul.f32 %v5687, %v5899
  %v5961 = vmul.f32 %v5688, %v5899
  %v5962 = vmul.f32 %v5689, %v5899
  %v5963 = vmul.f32 %v5690, %v5899
  %v5965 = vperm.slane %v5483, 0
  %v5967 = vmul.f32 %v5900, %v5965
  %v5968 = vmul.f32 %v5901, %v5965
  %v5969 = vmul.f32 %v5902, %v5965
  %v5970 = vmul.f32 %v5903, %v5965
  %v5971 = vmul.f32 %v5904, %v5965
  %v5972 = vmul.f32 %v5905, %v5965
  %v5973 = vmul.f32 %v5906, %v5965
  %v5974 = vmul.f32 %v5907, %v5965
  %v5975 = vmul.f32 %v5908, %v5965
  %v5976 = vmul.f32 %v5909, %v5965
  %v5977 = vmul.f32 %v5910, %v5965
  %v5978 = vmul.f32 %v5911, %v5965
  %v5979 = vmul.f32 %v5912, %v5965
  %v5980 = vmul.f32 %v5913, %v5965
  %v5981 = vmul.f32 %v5914, %v5965
  %v5982 = vmul.f32 %v5915, %v5965
  %v5983 = vmul.f32 %v5916, %v5965
  %v5984 = vmul.f32 %v5917, %v5965
  %v5985 = vmul.f32 %v5918, %v5965
  %v5986 = vmul.f32 %v5919, %v5965
  %v5987 = vmul.f32 %v5920, %v5965
  %v5988 = vmul.f32 %v5921, %v5965
  %v5989 = vmul.f32 %v5922, %v5965
  %v5990 = vmul.f32 %v5923, %v5965
  %v5991 = vmul.f32 %v5924, %v5965
  %v5992 = vmul.f32 %v5925, %v5965
  %v5993 = vmul.f32 %v5926, %v5965
  %v5994 = vmul.f32 %v5927, %v5965
  %v5995 = vmul.f32 %v5928, %v5965
  %v5996 = vmul.f32 %v5929, %v5965
  %v5997 = vmul.f32 %v5930, %v5965
  %v5998 = vmul.f32 %v5931, %v5965
  %v5999 = vmul.f32 %v5932, %v5965
  %v6000 = vmul.f32 %v5933, %v5965
  %v6001 = vmul.f32 %v5934, %v5965
  %v6002 = vmul.f32 %v5935, %v5965
  %v6003 = vmul.f32 %v5936, %v5965
  %v6004 = vmul.f32 %v5937, %v5965
  %v6005 = vmul.f32 %v5938, %v5965
  %v6006 = vmul.f32 %v5939, %v5965
  %v6007 = vmul.f32 %v5940, %v5965
  %v6008 = vmul.f32 %v5941, %v5965
  %v6009 = vmul.f32 %v5942, %v5965
  %v6010 = vmul.f32 %v5943, %v5965
  %v6011 = vmul.f32 %v5944, %v5965
  %v6012 = vmul.f32 %v5945, %v5965
  %v6013 = vmul.f32 %v5946, %v5965
  %v6014 = vmul.f32 %v5947, %v5965
  %v6015 = vmul.f32 %v5948, %v5965
  %v6016 = vmul.f32 %v5949, %v5965
  %v6017 = vmul.f32 %v5950, %v5965
  %v6018 = vmul.f32 %v5951, %v5965
  %v6019 = vmul.f32 %v5952, %v5965
  %v6020 = vmul.f32 %v5953, %v5965
  %v6021 = vmul.f32 %v5954, %v5965
  %v6022 = vmul.f32 %v5955, %v5965
  %v6023 = vmul.f32 %v5956, %v5965
  %v6024 = vmul.f32 %v5957, %v5965
  %v6025 = vmul.f32 %v5958, %v5965
  %v6026 = vmul.f32 %v5959, %v5965
  %v6027 = vmul.f32 %v5960, %v5965
  %v6028 = vmul.f32 %v5961, %v5965
  %v6029 = vmul.f32 %v5962, %v5965
  %v6030 = vmul.f32 %v5963, %v5965
  %v6032 = vperm.slane %v5484, 0
  %v6034 = vadd.f32 %v5967, %v6032
  %v6035 = vadd.f32 %v5968, %v6032
  %v6036 = vadd.f32 %v5969, %v6032
  %v6037 = vadd.f32 %v5970, %v6032
  %v6038 = vadd.f32 %v5971, %v6032
  %v6039 = vadd.f32 %v5972, %v6032
  %v6040 = vadd.f32 %v5973, %v6032
  %v6041 = vadd.f32 %v5974, %v6032
  %v6042 = vadd.f32 %v5975, %v6032
  %v6043 = vadd.f32 %v5976, %v6032
  %v6044 = vadd.f32 %v5977, %v6032
  %v6045 = vadd.f32 %v5978, %v6032
  %v6046 = vadd.f32 %v5979, %v6032
  %v6047 = vadd.f32 %v5980, %v6032
  %v6048 = vadd.f32 %v5981, %v6032
  %v6049 = vadd.f32 %v5982, %v6032
  %v6050 = vadd.f32 %v5983, %v6032
  %v6051 = vadd.f32 %v5984, %v6032
  %v6052 = vadd.f32 %v5985, %v6032
  %v6053 = vadd.f32 %v5986, %v6032
  %v6054 = vadd.f32 %v5987, %v6032
  %v6055 = vadd.f32 %v5988, %v6032
  %v6056 = vadd.f32 %v5989, %v6032
  %v6057 = vadd.f32 %v5990, %v6032
  %v6058 = vadd.f32 %v5991, %v6032
  %v6059 = vadd.f32 %v5992, %v6032
  %v6060 = vadd.f32 %v5993, %v6032
  %v6061 = vadd.f32 %v5994, %v6032
  %v6062 = vadd.f32 %v5995, %v6032
  %v6063 = vadd.f32 %v5996, %v6032
  %v6064 = vadd.f32 %v5997, %v6032
  %v6065 = vadd.f32 %v5998, %v6032
  %v6066 = vadd.f32 %v5999, %v6032
  %v6067 = vadd.f32 %v6000, %v6032
  %v6068 = vadd.f32 %v6001, %v6032
  %v6069 = vadd.f32 %v6002, %v6032
  %v6070 = vadd.f32 %v6003, %v6032
  %v6071 = vadd.f32 %v6004, %v6032
  %v6072 = vadd.f32 %v6005, %v6032
  %v6073 = vadd.f32 %v6006, %v6032
  %v6074 = vadd.f32 %v6007, %v6032
  %v6075 = vadd.f32 %v6008, %v6032
  %v6076 = vadd.f32 %v6009, %v6032
  %v6077 = vadd.f32 %v6010, %v6032
  %v6078 = vadd.f32 %v6011, %v6032
  %v6079 = vadd.f32 %v6012, %v6032
  %v6080 = vadd.f32 %v6013, %v6032
  %v6081 = vadd.f32 %v6014, %v6032
  %v6082 = vadd.f32 %v6015, %v6032
  %v6083 = vadd.f32 %v6016, %v6032
  %v6084 = vadd.f32 %v6017, %v6032
  %v6085 = vadd.f32 %v6018, %v6032
  %v6086 = vadd.f32 %v6019, %v6032
  %v6087 = vadd.f32 %v6020, %v6032
  %v6088 = vadd.f32 %v6021, %v6032
  %v6089 = vadd.f32 %v6022, %v6032
  %v6090 = vadd.f32 %v6023, %v6032
  %v6091 = vadd.f32 %v6024, %v6032
  %v6092 = vadd.f32 %v6025, %v6032
  %v6093 = vadd.f32 %v6026, %v6032
  %v6094 = vadd.f32 %v6027, %v6032
  %v6095 = vadd.f32 %v6028, %v6032
  %v6096 = vadd.f32 %v6029, %v6032
  %v6097 = vadd.f32 %v6030, %v6032
  %vm6098 = vcmp.gt.f32.partialorder %v6034, 0.0
  %vm6099 = vcmp.gt.f32.partialorder %v6035, 0.0
  %vm6100 = vcmp.gt.f32.partialorder %v6036, 0.0
  %vm6101 = vcmp.gt.f32.partialorder %v6037, 0.0
  %vm6102 = vcmp.gt.f32.partialorder %v6038, 0.0
  %vm6103 = vcmp.gt.f32.partialorder %v6039, 0.0
  %vm6104 = vcmp.gt.f32.partialorder %v6040, 0.0
  %vm6105 = vcmp.gt.f32.partialorder %v6041, 0.0
  %vm6106 = vcmp.gt.f32.partialorder %v6042, 0.0
  %vm6107 = vcmp.gt.f32.partialorder %v6043, 0.0
  %vm6108 = vcmp.gt.f32.partialorder %v6044, 0.0
  %vm6109 = vcmp.gt.f32.partialorder %v6045, 0.0
  %vm6110 = vcmp.gt.f32.partialorder %v6046, 0.0
  %vm6111 = vcmp.gt.f32.partialorder %v6047, 0.0
  %vm6112 = vcmp.gt.f32.partialorder %v6048, 0.0
  %vm6113 = vcmp.gt.f32.partialorder %v6049, 0.0
  %vm6114 = vcmp.gt.f32.partialorder %v6050, 0.0
  %vm6115 = vcmp.gt.f32.partialorder %v6051, 0.0
  %vm6116 = vcmp.gt.f32.partialorder %v6052, 0.0
  %vm6117 = vcmp.gt.f32.partialorder %v6053, 0.0
  %vm6118 = vcmp.gt.f32.partialorder %v6054, 0.0
  %vm6119 = vcmp.gt.f32.partialorder %v6055, 0.0
  %vm6120 = vcmp.gt.f32.partialorder %v6056, 0.0
  %vm6121 = vcmp.gt.f32.partialorder %v6057, 0.0
  %vm6122 = vcmp.gt.f32.partialorder %v6058, 0.0
  %vm6123 = vcmp.gt.f32.partialorder %v6059, 0.0
  %vm6124 = vcmp.gt.f32.partialorder %v6060, 0.0
  %vm6125 = vcmp.gt.f32.partialorder %v6061, 0.0
  %vm6126 = vcmp.gt.f32.partialorder %v6062, 0.0
  %vm6127 = vcmp.gt.f32.partialorder %v6063, 0.0
  %vm6128 = vcmp.gt.f32.partialorder %v6064, 0.0
  %vm6129 = vcmp.gt.f32.partialorder %v6065, 0.0
  %vm6130 = vcmp.gt.f32.partialorder %v6066, 0.0
  %vm6131 = vcmp.gt.f32.partialorder %v6067, 0.0
  %vm6132 = vcmp.gt.f32.partialorder %v6068, 0.0
  %vm6133 = vcmp.gt.f32.partialorder %v6069, 0.0
  %vm6134 = vcmp.gt.f32.partialorder %v6070, 0.0
  %vm6135 = vcmp.gt.f32.partialorder %v6071, 0.0
  %vm6136 = vcmp.gt.f32.partialorder %v6072, 0.0
  %vm6137 = vcmp.gt.f32.partialorder %v6073, 0.0
  %vm6138 = vcmp.gt.f32.partialorder %v6074, 0.0
  %vm6139 = vcmp.gt.f32.partialorder %v6075, 0.0
  %vm6140 = vcmp.gt.f32.partialorder %v6076, 0.0
  %vm6141 = vcmp.gt.f32.partialorder %v6077, 0.0
  %vm6142 = vcmp.gt.f32.partialorder %v6078, 0.0
  %vm6143 = vcmp.gt.f32.partialorder %v6079, 0.0
  %vm6144 = vcmp.gt.f32.partialorder %v6080, 0.0
  %vm6145 = vcmp.gt.f32.partialorder %v6081, 0.0
  %vm6146 = vcmp.gt.f32.partialorder %v6082, 0.0
  %vm6147 = vcmp.gt.f32.partialorder %v6083, 0.0
  %vm6148 = vcmp.gt.f32.partialorder %v6084, 0.0
  %vm6149 = vcmp.gt.f32.partialorder %v6085, 0.0
  %vm6150 = vcmp.gt.f32.partialorder %v6086, 0.0
  %vm6151 = vcmp.gt.f32.partialorder %v6087, 0.0
  %vm6152 = vcmp.gt.f32.partialorder %v6088, 0.0
  %vm6153 = vcmp.gt.f32.partialorder %v6089, 0.0
  %vm6154 = vcmp.gt.f32.partialorder %v6090, 0.0
  %vm6155 = vcmp.gt.f32.partialorder %v6091, 0.0
  %vm6156 = vcmp.gt.f32.partialorder %v6092, 0.0
  %vm6157 = vcmp.gt.f32.partialorder %v6093, 0.0
  %vm6158 = vcmp.gt.f32.partialorder %v6094, 0.0
  %vm6159 = vcmp.gt.f32.partialorder %v6095, 0.0
  %vm6160 = vcmp.gt.f32.partialorder %v6096, 0.0
  %vm6161 = vcmp.gt.f32.partialorder %v6097, 0.0
  %v6162 = vmul.f32 %v6034, 0.2
  %v6163 = vmul.f32 %v6035, 0.2
  %v6164 = vmul.f32 %v6036, 0.2
  %v6165 = vmul.f32 %v6037, 0.2
  %v6166 = vmul.f32 %v6038, 0.2
  %v6167 = vmul.f32 %v6039, 0.2
  %v6168 = vmul.f32 %v6040, 0.2
  %v6169 = vmul.f32 %v6041, 0.2
  %v6170 = vmul.f32 %v6042, 0.2
  %v6171 = vmul.f32 %v6043, 0.2
  %v6172 = vmul.f32 %v6044, 0.2
  %v6173 = vmul.f32 %v6045, 0.2
  %v6174 = vmul.f32 %v6046, 0.2
  %v6175 = vmul.f32 %v6047, 0.2
  %v6176 = vmul.f32 %v6048, 0.2
  %v6177 = vmul.f32 %v6049, 0.2
  %v6178 = vmul.f32 %v6050, 0.2
  %v6179 = vmul.f32 %v6051, 0.2
  %v6180 = vmul.f32 %v6052, 0.2
  %v6181 = vmul.f32 %v6053, 0.2
  %v6182 = vmul.f32 %v6054, 0.2
  %v6183 = vmul.f32 %v6055, 0.2
  %v6184 = vmul.f32 %v6056, 0.2
  %v6185 = vmul.f32 %v6057, 0.2
  %v6186 = vmul.f32 %v6058, 0.2
  %v6187 = vmul.f32 %v6059, 0.2
  %v6188 = vmul.f32 %v6060, 0.2
  %v6189 = vmul.f32 %v6061, 0.2
  %v6190 = vmul.f32 %v6062, 0.2
  %v6191 = vmul.f32 %v6063, 0.2
  %v6192 = vmul.f32 %v6064, 0.2
  %v6193 = vmul.f32 %v6065, 0.2
  %v6194 = vmul.f32 %v6066, 0.2
  %v6195 = vmul.f32 %v6067, 0.2
  %v6196 = vmul.f32 %v6068, 0.2
  %v6197 = vmul.f32 %v6069, 0.2
  %v6198 = vmul.f32 %v6070, 0.2
  %v6199 = vmul.f32 %v6071, 0.2
  %v6200 = vmul.f32 %v6072, 0.2
  %v6201 = vmul.f32 %v6073, 0.2
  %v6202 = vmul.f32 %v6074, 0.2
  %v6203 = vmul.f32 %v6075, 0.2
  %v6204 = vmul.f32 %v6076, 0.2
  %v6205 = vmul.f32 %v6077, 0.2
  %v6206 = vmul.f32 %v6078, 0.2
  %v6207 = vmul.f32 %v6079, 0.2
  %v6208 = vmul.f32 %v6080, 0.2
  %v6209 = vmul.f32 %v6081, 0.2
  %v6210 = vmul.f32 %v6082, 0.2
  %v6211 = vmul.f32 %v6083, 0.2
  %v6212 = vmul.f32 %v6084, 0.2
  %v6213 = vmul.f32 %v6085, 0.2
  %v6214 = vmul.f32 %v6086, 0.2
  %v6215 = vmul.f32 %v6087, 0.2
  %v6216 = vmul.f32 %v6088, 0.2
  %v6217 = vmul.f32 %v6089, 0.2
  %v6218 = vmul.f32 %v6090, 0.2
  %v6219 = vmul.f32 %v6091, 0.2
  %v6220 = vmul.f32 %v6092, 0.2
  %v6221 = vmul.f32 %v6093, 0.2
  %v6222 = vmul.f32 %v6094, 0.2
  %v6223 = vmul.f32 %v6095, 0.2
  %v6224 = vmul.f32 %v6096, 0.2
  %v6225 = vmul.f32 %v6097, 0.2
  %v6226 = vsel %vm6098, %v6034, %v6162
  %v6227 = vsel %vm6099, %v6035, %v6163
  %v6228 = vsel %vm6100, %v6036, %v6164
  %v6229 = vsel %vm6101, %v6037, %v6165
  %v6230 = vsel %vm6102, %v6038, %v6166
  %v6231 = vsel %vm6103, %v6039, %v6167
  %v6232 = vsel %vm6104, %v6040, %v6168
  %v6233 = vsel %vm6105, %v6041, %v6169
  %v6234 = vsel %vm6106, %v6042, %v6170
  %v6235 = vsel %vm6107, %v6043, %v6171
  %v6236 = vsel %vm6108, %v6044, %v6172
  %v6237 = vsel %vm6109, %v6045, %v6173
  %v6238 = vsel %vm6110, %v6046, %v6174
  %v6239 = vsel %vm6111, %v6047, %v6175
  %v6240 = vsel %vm6112, %v6048, %v6176
  %v6241 = vsel %vm6113, %v6049, %v6177
  %v6242 = vsel %vm6114, %v6050, %v6178
  %v6243 = vsel %vm6115, %v6051, %v6179
  %v6244 = vsel %vm6116, %v6052, %v6180
  %v6245 = vsel %vm6117, %v6053, %v6181
  %v6246 = vsel %vm6118, %v6054, %v6182
  %v6247 = vsel %vm6119, %v6055, %v6183
  %v6248 = vsel %vm6120, %v6056, %v6184
  %v6249 = vsel %vm6121, %v6057, %v6185
  %v6250 = vsel %vm6122, %v6058, %v6186
  %v6251 = vsel %vm6123, %v6059, %v6187
  %v6252 = vsel %vm6124, %v6060, %v6188
  %v6253 = vsel %vm6125, %v6061, %v6189
  %v6254 = vsel %vm6126, %v6062, %v6190
  %v6255 = vsel %vm6127, %v6063, %v6191
  %v6256 = vsel %vm6128, %v6064, %v6192
  %v6257 = vsel %vm6129, %v6065, %v6193
  %v6258 = vsel %vm6130, %v6066, %v6194
  %v6259 = vsel %vm6131, %v6067, %v6195
  %v6260 = vsel %vm6132, %v6068, %v6196
  %v6261 = vsel %vm6133, %v6069, %v6197
  %v6262 = vsel %vm6134, %v6070, %v6198
  %v6263 = vsel %vm6135, %v6071, %v6199
  %v6264 = vsel %vm6136, %v6072, %v6200
  %v6265 = vsel %vm6137, %v6073, %v6201
  %v6266 = vsel %vm6138, %v6074, %v6202
  %v6267 = vsel %vm6139, %v6075, %v6203
  %v6268 = vsel %vm6140, %v6076, %v6204
  %v6269 = vsel %vm6141, %v6077, %v6205
  %v6270 = vsel %vm6142, %v6078, %v6206
  %v6271 = vsel %vm6143, %v6079, %v6207
  %v6272 = vsel %vm6144, %v6080, %v6208
  %v6273 = vsel %vm6145, %v6081, %v6209
  %v6274 = vsel %vm6146, %v6082, %v6210
  %v6275 = vsel %vm6147, %v6083, %v6211
  %v6276 = vsel %vm6148, %v6084, %v6212
  %v6277 = vsel %vm6149, %v6085, %v6213
  %v6278 = vsel %vm6150, %v6086, %v6214
  %v6279 = vsel %vm6151, %v6087, %v6215
  %v6280 = vsel %vm6152, %v6088, %v6216
  %v6281 = vsel %vm6153, %v6089, %v6217
  %v6282 = vsel %vm6154, %v6090, %v6218
  %v6283 = vsel %vm6155, %v6091, %v6219
  %v6284 = vsel %vm6156, %v6092, %v6220
  %v6285 = vsel %vm6157, %v6093, %v6221
  %v6286 = vsel %vm6158, %v6094, %v6222
  %v6287 = vsel %vm6159, %v6095, %v6223
  %v6288 = vsel %vm6160, %v6096, %v6224
  %v6289 = vsel %vm6161, %v6097, %v6225
  %v6290 = vld [vmem:[%s11] sm:$0x1]
  %v6291 = vld [vmem:[%s12] sm:$0x1]
  %v6292 = vsel %vm5485, %v4428, 0.0
  %v6293 = vsel %vm5485, %v4431, 0.0
  %v6294 = vadd.f32 %v6292, %v6293
  %v6295 = vsel %vm5485, %v4434, 0.0
  %v6296 = vadd.f32 %v6294, %v6295
  %v6297 = vsel %vm5485, %v4437, 0.0
  %v6298 = vadd.f32 %v6296, %v6297
  %v6299 = vsel %vm5485, %v4440, 0.0
  %v6300 = vadd.f32 %v6298, %v6299
  %v6301 = vsel %vm5485, %v4443, 0.0
  %v6302 = vadd.f32 %v6300, %v6301
  %v6303 = vsel %vm5485, %v4446, 0.0
  %v6304 = vadd.f32 %v6302, %v6303
  %v6305 = vsel %vm5485, %v4449, 0.0
  %v6306 = vadd.f32 %v6304, %v6305
  %v6307 = vsel %vm5485, %v4452, 0.0
  %v6308 = vadd.f32 %v6306, %v6307
  %v6309 = vsel %vm5485, %v4455, 0.0
  %v6310 = vadd.f32 %v6308, %v6309
  %v6311 = vsel %vm5485, %v4458, 0.0
  %v6312 = vadd.f32 %v6310, %v6311
  %v6313 = vsel %vm5485, %v4461, 0.0
  %v6314 = vadd.f32 %v6312, %v6313
  %v6315 = vsel %vm5485, %v4464, 0.0
  %v6316 = vadd.f32 %v6314, %v6315
  %v6317 = vsel %vm5485, %v4467, 0.0
  %v6318 = vadd.f32 %v6316, %v6317
  %v6319 = vsel %vm5485, %v4470, 0.0
  %v6320 = vadd.f32 %v6318, %v6319
  %v6321 = vsel %vm5485, %v4473, 0.0
  %v6322 = vadd.f32 %v6320, %v6321
  %v6323 = vsel %vm5485, %v4476, 0.0
  %v6324 = vadd.f32 %v6322, %v6323
  %v6325 = vsel %vm5485, %v4479, 0.0
  %v6326 = vadd.f32 %v6324, %v6325
  %v6327 = vsel %vm5485, %v4482, 0.0
  %v6328 = vadd.f32 %v6326, %v6327
  %v6329 = vsel %vm5485, %v4485, 0.0
  %v6330 = vadd.f32 %v6328, %v6329
  %v6331 = vsel %vm5485, %v4488, 0.0
  %v6332 = vadd.f32 %v6330, %v6331
  %v6333 = vsel %vm5485, %v4491, 0.0
  %v6334 = vadd.f32 %v6332, %v6333
  %v6335 = vsel %vm5485, %v4494, 0.0
  %v6336 = vadd.f32 %v6334, %v6335
  %v6337 = vsel %vm5485, %v4497, 0.0
  %v6338 = vadd.f32 %v6336, %v6337
  %v6339 = vsel %vm5485, %v4500, 0.0
  %v6340 = vadd.f32 %v6338, %v6339
  %v6341 = vsel %vm5485, %v4503, 0.0
  %v6342 = vadd.f32 %v6340, %v6341
  %v6343 = vsel %vm5485, %v4506, 0.0
  %v6344 = vadd.f32 %v6342, %v6343
  %v6345 = vsel %vm5485, %v4509, 0.0
  %v6346 = vadd.f32 %v6344, %v6345
  %v6347 = vsel %vm5485, %v4512, 0.0
  %v6348 = vadd.f32 %v6346, %v6347
  %v6349 = vsel %vm5485, %v4515, 0.0
  %v6350 = vadd.f32 %v6348, %v6349
  %v6351 = vsel %vm5485, %v4518, 0.0
  %v6352 = vadd.f32 %v6350, %v6351
  %v6353 = vsel %vm5485, %v4521, 0.0
  %v6354 = vadd.f32 %v6352, %v6353
  %v6355 = vsel %vm5485, %v4524, 0.0
  %v6356 = vadd.f32 %v6354, %v6355
  %v6357 = vsel %vm5485, %v4527, 0.0
  %v6358 = vadd.f32 %v6356, %v6357
  %v6359 = vsel %vm5485, %v4530, 0.0
  %v6360 = vadd.f32 %v6358, %v6359
  %v6361 = vsel %vm5485, %v4533, 0.0
  %v6362 = vadd.f32 %v6360, %v6361
  %v6363 = vsel %vm5485, %v4536, 0.0
  %v6364 = vadd.f32 %v6362, %v6363
  %v6365 = vsel %vm5485, %v4539, 0.0
  %v6366 = vadd.f32 %v6364, %v6365
  %v6367 = vsel %vm5485, %v4542, 0.0
  %v6368 = vadd.f32 %v6366, %v6367
  %v6369 = vsel %vm5485, %v4545, 0.0
  %v6370 = vadd.f32 %v6368, %v6369
  %v6371 = vsel %vm5485, %v4548, 0.0
  %v6372 = vadd.f32 %v6370, %v6371
  %v6373 = vsel %vm5485, %v4551, 0.0
  %v6374 = vadd.f32 %v6372, %v6373
  %v6375 = vsel %vm5485, %v4554, 0.0
  %v6376 = vadd.f32 %v6374, %v6375
  %v6377 = vsel %vm5485, %v4557, 0.0
  %v6378 = vadd.f32 %v6376, %v6377
  %v6379 = vsel %vm5485, %v4560, 0.0
  %v6380 = vadd.f32 %v6378, %v6379
  %v6381 = vsel %vm5485, %v4563, 0.0
  %v6382 = vadd.f32 %v6380, %v6381
  %v6383 = vsel %vm5485, %v4566, 0.0
  %v6384 = vadd.f32 %v6382, %v6383
  %v6385 = vsel %vm5485, %v4569, 0.0
  %v6386 = vadd.f32 %v6384, %v6385
  %v6387 = vsel %vm5485, %v4572, 0.0
  %v6388 = vadd.f32 %v6386, %v6387
  %v6389 = vsel %vm5485, %v4575, 0.0
  %v6390 = vadd.f32 %v6388, %v6389
  %v6391 = vsel %vm5485, %v4578, 0.0
  %v6392 = vadd.f32 %v6390, %v6391
  %v6393 = vsel %vm5485, %v4581, 0.0
  %v6394 = vadd.f32 %v6392, %v6393
  %v6395 = vsel %vm5485, %v4584, 0.0
  %v6396 = vadd.f32 %v6394, %v6395
  %v6397 = vsel %vm5485, %v4587, 0.0
  %v6398 = vadd.f32 %v6396, %v6397
  %v6399 = vsel %vm5485, %v4590, 0.0
  %v6400 = vadd.f32 %v6398, %v6399
  %v6401 = vsel %vm5485, %v4593, 0.0
  %v6402 = vadd.f32 %v6400, %v6401
  %v6403 = vsel %vm5485, %v4596, 0.0
  %v6404 = vadd.f32 %v6402, %v6403
  %v6405 = vsel %vm5485, %v4599, 0.0
  %v6406 = vadd.f32 %v6404, %v6405
  %v6407 = vsel %vm5485, %v4602, 0.0
  %v6408 = vadd.f32 %v6406, %v6407
  %v6409 = vsel %vm5485, %v4605, 0.0
  %v6410 = vadd.f32 %v6408, %v6409
  %v6411 = vsel %vm5485, %v4608, 0.0
  %v6412 = vadd.f32 %v6410, %v6411
  %v6413 = vsel %vm5485, %v4611, 0.0
  %v6414 = vadd.f32 %v6412, %v6413
  %v6415 = vsel %vm5485, %v4614, 0.0
  %v6416 = vadd.f32 %v6414, %v6415
  %v6417 = vsel %vm5485, %v4617, 0.0
  %v6418 = vadd.f32 %v6416, %v6417
  %v6419 = vrot.slane %v6418, 4
  %v6420 = vadd.f32 %v6418, %v6419
  %v6421 = vrot.slane %v6420, 2
  %v6422 = vadd.f32 %v6420, %v6421
  %v6423 = vrot.slane %v6422, 1
  %v6424 = vadd.f32 %v6422, %v6423
  %v6425 = vmul.f32 %v6424, %v5625
  %v6426 = vsub.f32 %v4428, %v6425
  %v6427 = vsub.f32 %v4431, %v6425
  %v6428 = vsub.f32 %v4434, %v6425
  %v6429 = vsub.f32 %v4437, %v6425
  %v6430 = vsub.f32 %v4440, %v6425
  %v6431 = vsub.f32 %v4443, %v6425
  %v6432 = vsub.f32 %v4446, %v6425
  %v6433 = vsub.f32 %v4449, %v6425
  %v6434 = vsub.f32 %v4452, %v6425
  %v6435 = vsub.f32 %v4455, %v6425
  %v6436 = vsub.f32 %v4458, %v6425
  %v6437 = vsub.f32 %v4461, %v6425
  %v6438 = vsub.f32 %v4464, %v6425
  %v6439 = vsub.f32 %v4467, %v6425
  %v6440 = vsub.f32 %v4470, %v6425
  %v6441 = vsub.f32 %v4473, %v6425
  %v6442 = vsub.f32 %v4476, %v6425
  %v6443 = vsub.f32 %v4479, %v6425
  %v6444 = vsub.f32 %v4482, %v6425
  %v6445 = vsub.f32 %v4485, %v6425
  %v6446 = vsub.f32 %v4488, %v6425
  %v6447 = vsub.f32 %v4491, %v6425
  %v6448 = vsub.f32 %v4494, %v6425
  %v6449 = vsub.f32 %v4497, %v6425
  %v6450 = vsub.f32 %v4500, %v6425
  %v6451 = vsub.f32 %v4503, %v6425
  %v6452 = vsub.f32 %v4506, %v6425
  %v6453 = vsub.f32 %v4509, %v6425
  %v6454 = vsub.f32 %v4512, %v6425
  %v6455 = vsub.f32 %v4515, %v6425
  %v6456 = vsub.f32 %v4518, %v6425
  %v6457 = vsub.f32 %v4521, %v6425
  %v6458 = vsub.f32 %v4524, %v6425
  %v6459 = vsub.f32 %v4527, %v6425
  %v6460 = vsub.f32 %v4530, %v6425
  %v6461 = vsub.f32 %v4533, %v6425
  %v6462 = vsub.f32 %v4536, %v6425
  %v6463 = vsub.f32 %v4539, %v6425
  %v6464 = vsub.f32 %v4542, %v6425
  %v6465 = vsub.f32 %v4545, %v6425
  %v6466 = vsub.f32 %v4548, %v6425
  %v6467 = vsub.f32 %v4551, %v6425
  %v6468 = vsub.f32 %v4554, %v6425
  %v6469 = vsub.f32 %v4557, %v6425
  %v6470 = vsub.f32 %v4560, %v6425
  %v6471 = vsub.f32 %v4563, %v6425
  %v6472 = vsub.f32 %v4566, %v6425
  %v6473 = vsub.f32 %v4569, %v6425
  %v6474 = vsub.f32 %v4572, %v6425
  %v6475 = vsub.f32 %v4575, %v6425
  %v6476 = vsub.f32 %v4578, %v6425
  %v6477 = vsub.f32 %v4581, %v6425
  %v6478 = vsub.f32 %v4584, %v6425
  %v6479 = vsub.f32 %v4587, %v6425
  %v6480 = vsub.f32 %v4590, %v6425
  %v6481 = vsub.f32 %v4593, %v6425
  %v6482 = vsub.f32 %v4596, %v6425
  %v6483 = vsub.f32 %v4599, %v6425
  %v6484 = vsub.f32 %v4602, %v6425
  %v6485 = vsub.f32 %v4605, %v6425
  %v6486 = vsub.f32 %v4608, %v6425
  %v6487 = vsub.f32 %v4611, %v6425
  %v6488 = vsub.f32 %v4614, %v6425
  %v6489 = vsub.f32 %v4617, %v6425
  %v6490 = vmul.f32 %v6426, %v6426
  %v6491 = vmul.f32 %v6427, %v6427
  %v6492 = vmul.f32 %v6428, %v6428
  %v6493 = vmul.f32 %v6429, %v6429
  %v6494 = vmul.f32 %v6430, %v6430
  %v6495 = vmul.f32 %v6431, %v6431
  %v6496 = vmul.f32 %v6432, %v6432
  %v6497 = vmul.f32 %v6433, %v6433
  %v6498 = vmul.f32 %v6434, %v6434
  %v6499 = vmul.f32 %v6435, %v6435
  %v6500 = vmul.f32 %v6436, %v6436
  %v6501 = vmul.f32 %v6437, %v6437
  %v6502 = vmul.f32 %v6438, %v6438
  %v6503 = vmul.f32 %v6439, %v6439
  %v6504 = vmul.f32 %v6440, %v6440
  %v6505 = vmul.f32 %v6441, %v6441
  %v6506 = vmul.f32 %v6442, %v6442
  %v6507 = vmul.f32 %v6443, %v6443
  %v6508 = vmul.f32 %v6444, %v6444
  %v6509 = vmul.f32 %v6445, %v6445
  %v6510 = vmul.f32 %v6446, %v6446
  %v6511 = vmul.f32 %v6447, %v6447
  %v6512 = vmul.f32 %v6448, %v6448
  %v6513 = vmul.f32 %v6449, %v6449
  %v6514 = vmul.f32 %v6450, %v6450
  %v6515 = vmul.f32 %v6451, %v6451
  %v6516 = vmul.f32 %v6452, %v6452
  %v6517 = vmul.f32 %v6453, %v6453
  %v6518 = vmul.f32 %v6454, %v6454
  %v6519 = vmul.f32 %v6455, %v6455
  %v6520 = vmul.f32 %v6456, %v6456
  %v6521 = vmul.f32 %v6457, %v6457
  %v6522 = vmul.f32 %v6458, %v6458
  %v6523 = vmul.f32 %v6459, %v6459
  %v6524 = vmul.f32 %v6460, %v6460
  %v6525 = vmul.f32 %v6461, %v6461
  %v6526 = vmul.f32 %v6462, %v6462
  %v6527 = vmul.f32 %v6463, %v6463
  %v6528 = vmul.f32 %v6464, %v6464
  %v6529 = vmul.f32 %v6465, %v6465
  %v6530 = vmul.f32 %v6466, %v6466
  %v6531 = vmul.f32 %v6467, %v6467
  %v6532 = vmul.f32 %v6468, %v6468
  %v6533 = vmul.f32 %v6469, %v6469
  %v6534 = vmul.f32 %v6470, %v6470
  %v6535 = vmul.f32 %v6471, %v6471
  %v6536 = vmul.f32 %v6472, %v6472
  %v6537 = vmul.f32 %v6473, %v6473
  %v6538 = vmul.f32 %v6474, %v6474
  %v6539 = vmul.f32 %v6475, %v6475
  %v6540 = vmul.f32 %v6476, %v6476
  %v6541 = vmul.f32 %v6477, %v6477
  %v6542 = vmul.f32 %v6478, %v6478
  %v6543 = vmul.f32 %v6479, %v6479
  %v6544 = vmul.f32 %v6480, %v6480
  %v6545 = vmul.f32 %v6481, %v6481
  %v6546 = vmul.f32 %v6482, %v6482
  %v6547 = vmul.f32 %v6483, %v6483
  %v6548 = vmul.f32 %v6484, %v6484
  %v6549 = vmul.f32 %v6485, %v6485
  %v6550 = vmul.f32 %v6486, %v6486
  %v6551 = vmul.f32 %v6487, %v6487
  %v6552 = vmul.f32 %v6488, %v6488
  %v6553 = vmul.f32 %v6489, %v6489
  %v6554 = vsel %vm5485, %v6490, 0.0
  %v6555 = vsel %vm5485, %v6491, 0.0
  %v6556 = vadd.f32 %v6554, %v6555
  %v6557 = vsel %vm5485, %v6492, 0.0
  %v6558 = vadd.f32 %v6556, %v6557
  %v6559 = vsel %vm5485, %v6493, 0.0
  %v6560 = vadd.f32 %v6558, %v6559
  %v6561 = vsel %vm5485, %v6494, 0.0
  %v6562 = vadd.f32 %v6560, %v6561
  %v6563 = vsel %vm5485, %v6495, 0.0
  %v6564 = vadd.f32 %v6562, %v6563
  %v6565 = vsel %vm5485, %v6496, 0.0
  %v6566 = vadd.f32 %v6564, %v6565
  %v6567 = vsel %vm5485, %v6497, 0.0
  %v6568 = vadd.f32 %v6566, %v6567
  %v6569 = vsel %vm5485, %v6498, 0.0
  %v6570 = vadd.f32 %v6568, %v6569
  %v6571 = vsel %vm5485, %v6499, 0.0
  %v6572 = vadd.f32 %v6570, %v6571
  %v6573 = vsel %vm5485, %v6500, 0.0
  %v6574 = vadd.f32 %v6572, %v6573
  %v6575 = vsel %vm5485, %v6501, 0.0
  %v6576 = vadd.f32 %v6574, %v6575
  %v6577 = vsel %vm5485, %v6502, 0.0
  %v6578 = vadd.f32 %v6576, %v6577
  %v6579 = vsel %vm5485, %v6503, 0.0
  %v6580 = vadd.f32 %v6578, %v6579
  %v6581 = vsel %vm5485, %v6504, 0.0
  %v6582 = vadd.f32 %v6580, %v6581
  %v6583 = vsel %vm5485, %v6505, 0.0
  %v6584 = vadd.f32 %v6582, %v6583
  %v6585 = vsel %vm5485, %v6506, 0.0
  %v6586 = vadd.f32 %v6584, %v6585
  %v6587 = vsel %vm5485, %v6507, 0.0
  %v6588 = vadd.f32 %v6586, %v6587
  %v6589 = vsel %vm5485, %v6508, 0.0
  %v6590 = vadd.f32 %v6588, %v6589
  %v6591 = vsel %vm5485, %v6509, 0.0
  %v6592 = vadd.f32 %v6590, %v6591
  %v6593 = vsel %vm5485, %v6510, 0.0
  %v6594 = vadd.f32 %v6592, %v6593
  %v6595 = vsel %vm5485, %v6511, 0.0
  %v6596 = vadd.f32 %v6594, %v6595
  %v6597 = vsel %vm5485, %v6512, 0.0
  %v6598 = vadd.f32 %v6596, %v6597
  %v6599 = vsel %vm5485, %v6513, 0.0
  %v6600 = vadd.f32 %v6598, %v6599
  %v6601 = vsel %vm5485, %v6514, 0.0
  %v6602 = vadd.f32 %v6600, %v6601
  %v6603 = vsel %vm5485, %v6515, 0.0
  %v6604 = vadd.f32 %v6602, %v6603
  %v6605 = vsel %vm5485, %v6516, 0.0
  %v6606 = vadd.f32 %v6604, %v6605
  %v6607 = vsel %vm5485, %v6517, 0.0
  %v6608 = vadd.f32 %v6606, %v6607
  %v6609 = vsel %vm5485, %v6518, 0.0
  %v6610 = vadd.f32 %v6608, %v6609
  %v6611 = vsel %vm5485, %v6519, 0.0
  %v6612 = vadd.f32 %v6610, %v6611
  %v6613 = vsel %vm5485, %v6520, 0.0
  %v6614 = vadd.f32 %v6612, %v6613
  %v6615 = vsel %vm5485, %v6521, 0.0
  %v6616 = vadd.f32 %v6614, %v6615
  %v6617 = vsel %vm5485, %v6522, 0.0
  %v6618 = vadd.f32 %v6616, %v6617
  %v6619 = vsel %vm5485, %v6523, 0.0
  %v6620 = vadd.f32 %v6618, %v6619
  %v6621 = vsel %vm5485, %v6524, 0.0
  %v6622 = vadd.f32 %v6620, %v6621
  %v6623 = vsel %vm5485, %v6525, 0.0
  %v6624 = vadd.f32 %v6622, %v6623
  %v6625 = vsel %vm5485, %v6526, 0.0
  %v6626 = vadd.f32 %v6624, %v6625
  %v6627 = vsel %vm5485, %v6527, 0.0
  %v6628 = vadd.f32 %v6626, %v6627
  %v6629 = vsel %vm5485, %v6528, 0.0
  %v6630 = vadd.f32 %v6628, %v6629
  %v6631 = vsel %vm5485, %v6529, 0.0
  %v6632 = vadd.f32 %v6630, %v6631
  %v6633 = vsel %vm5485, %v6530, 0.0
  %v6634 = vadd.f32 %v6632, %v6633
  %v6635 = vsel %vm5485, %v6531, 0.0
  %v6636 = vadd.f32 %v6634, %v6635
  %v6637 = vsel %vm5485, %v6532, 0.0
  %v6638 = vadd.f32 %v6636, %v6637
  %v6639 = vsel %vm5485, %v6533, 0.0
  %v6640 = vadd.f32 %v6638, %v6639
  %v6641 = vsel %vm5485, %v6534, 0.0
  %v6642 = vadd.f32 %v6640, %v6641
  %v6643 = vsel %vm5485, %v6535, 0.0
  %v6644 = vadd.f32 %v6642, %v6643
  %v6645 = vsel %vm5485, %v6536, 0.0
  %v6646 = vadd.f32 %v6644, %v6645
  %v6647 = vsel %vm5485, %v6537, 0.0
  %v6648 = vadd.f32 %v6646, %v6647
  %v6649 = vsel %vm5485, %v6538, 0.0
  %v6650 = vadd.f32 %v6648, %v6649
  %v6651 = vsel %vm5485, %v6539, 0.0
  %v6652 = vadd.f32 %v6650, %v6651
  %v6653 = vsel %vm5485, %v6540, 0.0
  %v6654 = vadd.f32 %v6652, %v6653
  %v6655 = vsel %vm5485, %v6541, 0.0
  %v6656 = vadd.f32 %v6654, %v6655
  %v6657 = vsel %vm5485, %v6542, 0.0
  %v6658 = vadd.f32 %v6656, %v6657
  %v6659 = vsel %vm5485, %v6543, 0.0
  %v6660 = vadd.f32 %v6658, %v6659
  %v6661 = vsel %vm5485, %v6544, 0.0
  %v6662 = vadd.f32 %v6660, %v6661
  %v6663 = vsel %vm5485, %v6545, 0.0
  %v6664 = vadd.f32 %v6662, %v6663
  %v6665 = vsel %vm5485, %v6546, 0.0
  %v6666 = vadd.f32 %v6664, %v6665
  %v6667 = vsel %vm5485, %v6547, 0.0
  %v6668 = vadd.f32 %v6666, %v6667
  %v6669 = vsel %vm5485, %v6548, 0.0
  %v6670 = vadd.f32 %v6668, %v6669
  %v6671 = vsel %vm5485, %v6549, 0.0
  %v6672 = vadd.f32 %v6670, %v6671
  %v6673 = vsel %vm5485, %v6550, 0.0
  %v6674 = vadd.f32 %v6672, %v6673
  %v6675 = vsel %vm5485, %v6551, 0.0
  %v6676 = vadd.f32 %v6674, %v6675
  %v6677 = vsel %vm5485, %v6552, 0.0
  %v6678 = vadd.f32 %v6676, %v6677
  %v6679 = vsel %vm5485, %v6553, 0.0
  %v6680 = vadd.f32 %v6678, %v6679
  %v6681 = vrot.slane %v6680, 4
  %v6682 = vadd.f32 %v6680, %v6681
  %v6683 = vrot.slane %v6682, 2
  %v6684 = vadd.f32 %v6682, %v6683
  %v6685 = vrot.slane %v6684, 1
  %v6686 = vadd.f32 %v6684, %v6685
  %v6687 = vmul.f32 %v6686, %v5625
  %v6688 = vadd.f32 %v6687, 1e-05
  %v6689 = vrsqrt.pop %v6688
  %v6690 = vmul.f32 %v6689, %v6688
  %v6691 = vmul.f32 %v6690, %v6689
  %v6692 = vmul.f32 0.5, %v6691
  %v6693 = vsub.f32 1.5, %v6692
  %v6694 = vmul.f32 %v6689, %v6693
  %vm6695 = vweird.f32 %v6688
  %vm6696 = vweird.f32 %v6689
  %vm6697 = vmor %vm6695, %vm6696
  %v6698 = vsel %vm6697, %v6689, %v6694
  %v6699 = vmul.f32 %v6426, %v6698
  %v6700 = vmul.f32 %v6427, %v6698
  %v6701 = vmul.f32 %v6428, %v6698
  %v6702 = vmul.f32 %v6429, %v6698
  %v6703 = vmul.f32 %v6430, %v6698
  %v6704 = vmul.f32 %v6431, %v6698
  %v6705 = vmul.f32 %v6432, %v6698
  %v6706 = vmul.f32 %v6433, %v6698
  %v6707 = vmul.f32 %v6434, %v6698
  %v6708 = vmul.f32 %v6435, %v6698
  %v6709 = vmul.f32 %v6436, %v6698
  %v6710 = vmul.f32 %v6437, %v6698
  %v6711 = vmul.f32 %v6438, %v6698
  %v6712 = vmul.f32 %v6439, %v6698
  %v6713 = vmul.f32 %v6440, %v6698
  %v6714 = vmul.f32 %v6441, %v6698
  %v6715 = vmul.f32 %v6442, %v6698
  %v6716 = vmul.f32 %v6443, %v6698
  %v6717 = vmul.f32 %v6444, %v6698
  %v6718 = vmul.f32 %v6445, %v6698
  %v6719 = vmul.f32 %v6446, %v6698
  %v6720 = vmul.f32 %v6447, %v6698
  %v6721 = vmul.f32 %v6448, %v6698
  %v6722 = vmul.f32 %v6449, %v6698
  %v6723 = vmul.f32 %v6450, %v6698
  %v6724 = vmul.f32 %v6451, %v6698
  %v6725 = vmul.f32 %v6452, %v6698
  %v6726 = vmul.f32 %v6453, %v6698
  %v6727 = vmul.f32 %v6454, %v6698
  %v6728 = vmul.f32 %v6455, %v6698
  %v6729 = vmul.f32 %v6456, %v6698
  %v6730 = vmul.f32 %v6457, %v6698
  %v6731 = vmul.f32 %v6458, %v6698
  %v6732 = vmul.f32 %v6459, %v6698
  %v6733 = vmul.f32 %v6460, %v6698
  %v6734 = vmul.f32 %v6461, %v6698
  %v6735 = vmul.f32 %v6462, %v6698
  %v6736 = vmul.f32 %v6463, %v6698
  %v6737 = vmul.f32 %v6464, %v6698
  %v6738 = vmul.f32 %v6465, %v6698
  %v6739 = vmul.f32 %v6466, %v6698
  %v6740 = vmul.f32 %v6467, %v6698
  %v6741 = vmul.f32 %v6468, %v6698
  %v6742 = vmul.f32 %v6469, %v6698
  %v6743 = vmul.f32 %v6470, %v6698
  %v6744 = vmul.f32 %v6471, %v6698
  %v6745 = vmul.f32 %v6472, %v6698
  %v6746 = vmul.f32 %v6473, %v6698
  %v6747 = vmul.f32 %v6474, %v6698
  %v6748 = vmul.f32 %v6475, %v6698
  %v6749 = vmul.f32 %v6476, %v6698
  %v6750 = vmul.f32 %v6477, %v6698
  %v6751 = vmul.f32 %v6478, %v6698
  %v6752 = vmul.f32 %v6479, %v6698
  %v6753 = vmul.f32 %v6480, %v6698
  %v6754 = vmul.f32 %v6481, %v6698
  %v6755 = vmul.f32 %v6482, %v6698
  %v6756 = vmul.f32 %v6483, %v6698
  %v6757 = vmul.f32 %v6484, %v6698
  %v6758 = vmul.f32 %v6485, %v6698
  %v6759 = vmul.f32 %v6486, %v6698
  %v6760 = vmul.f32 %v6487, %v6698
  %v6761 = vmul.f32 %v6488, %v6698
  %v6762 = vmul.f32 %v6489, %v6698
  %v6764 = vperm.slane %v6290, 0
  %v6766 = vmul.f32 %v6699, %v6764
  %v6767 = vmul.f32 %v6700, %v6764
  %v6768 = vmul.f32 %v6701, %v6764
  %v6769 = vmul.f32 %v6702, %v6764
  %v6770 = vmul.f32 %v6703, %v6764
  %v6771 = vmul.f32 %v6704, %v6764
  %v6772 = vmul.f32 %v6705, %v6764
  %v6773 = vmul.f32 %v6706, %v6764
  %v6774 = vmul.f32 %v6707, %v6764
  %v6775 = vmul.f32 %v6708, %v6764
  %v6776 = vmul.f32 %v6709, %v6764
  %v6777 = vmul.f32 %v6710, %v6764
  %v6778 = vmul.f32 %v6711, %v6764
  %v6779 = vmul.f32 %v6712, %v6764
  %v6780 = vmul.f32 %v6713, %v6764
  %v6781 = vmul.f32 %v6714, %v6764
  %v6782 = vmul.f32 %v6715, %v6764
  %v6783 = vmul.f32 %v6716, %v6764
  %v6784 = vmul.f32 %v6717, %v6764
  %v6785 = vmul.f32 %v6718, %v6764
  %v6786 = vmul.f32 %v6719, %v6764
  %v6787 = vmul.f32 %v6720, %v6764
  %v6788 = vmul.f32 %v6721, %v6764
  %v6789 = vmul.f32 %v6722, %v6764
  %v6790 = vmul.f32 %v6723, %v6764
  %v6791 = vmul.f32 %v6724, %v6764
  %v6792 = vmul.f32 %v6725, %v6764
  %v6793 = vmul.f32 %v6726, %v6764
  %v6794 = vmul.f32 %v6727, %v6764
  %v6795 = vmul.f32 %v6728, %v6764
  %v6796 = vmul.f32 %v6729, %v6764
  %v6797 = vmul.f32 %v6730, %v6764
  %v6798 = vmul.f32 %v6731, %v6764
  %v6799 = vmul.f32 %v6732, %v6764
  %v6800 = vmul.f32 %v6733, %v6764
  %v6801 = vmul.f32 %v6734, %v6764
  %v6802 = vmul.f32 %v6735, %v6764
  %v6803 = vmul.f32 %v6736, %v6764
  %v6804 = vmul.f32 %v6737, %v6764
  %v6805 = vmul.f32 %v6738, %v6764
  %v6806 = vmul.f32 %v6739, %v6764
  %v6807 = vmul.f32 %v6740, %v6764
  %v6808 = vmul.f32 %v6741, %v6764
  %v6809 = vmul.f32 %v6742, %v6764
  %v6810 = vmul.f32 %v6743, %v6764
  %v6811 = vmul.f32 %v6744, %v6764
  %v6812 = vmul.f32 %v6745, %v6764
  %v6813 = vmul.f32 %v6746, %v6764
  %v6814 = vmul.f32 %v6747, %v6764
  %v6815 = vmul.f32 %v6748, %v6764
  %v6816 = vmul.f32 %v6749, %v6764
  %v6817 = vmul.f32 %v6750, %v6764
  %v6818 = vmul.f32 %v6751, %v6764
  %v6819 = vmul.f32 %v6752, %v6764
  %v6820 = vmul.f32 %v6753, %v6764
  %v6821 = vmul.f32 %v6754, %v6764
  %v6822 = vmul.f32 %v6755, %v6764
  %v6823 = vmul.f32 %v6756, %v6764
  %v6824 = vmul.f32 %v6757, %v6764
  %v6825 = vmul.f32 %v6758, %v6764
  %v6826 = vmul.f32 %v6759, %v6764
  %v6827 = vmul.f32 %v6760, %v6764
  %v6828 = vmul.f32 %v6761, %v6764
  %v6829 = vmul.f32 %v6762, %v6764
  %v6831 = vperm.slane %v6291, 0
  %v6833 = vadd.f32 %v6766, %v6831
  %v6834 = vadd.f32 %v6767, %v6831
  %v6835 = vadd.f32 %v6768, %v6831
  %v6836 = vadd.f32 %v6769, %v6831
  %v6837 = vadd.f32 %v6770, %v6831
  %v6838 = vadd.f32 %v6771, %v6831
  %v6839 = vadd.f32 %v6772, %v6831
  %v6840 = vadd.f32 %v6773, %v6831
  %v6841 = vadd.f32 %v6774, %v6831
  %v6842 = vadd.f32 %v6775, %v6831
  %v6843 = vadd.f32 %v6776, %v6831
  %v6844 = vadd.f32 %v6777, %v6831
  %v6845 = vadd.f32 %v6778, %v6831
  %v6846 = vadd.f32 %v6779, %v6831
  %v6847 = vadd.f32 %v6780, %v6831
  %v6848 = vadd.f32 %v6781, %v6831
  %v6849 = vadd.f32 %v6782, %v6831
  %v6850 = vadd.f32 %v6783, %v6831
  %v6851 = vadd.f32 %v6784, %v6831
  %v6852 = vadd.f32 %v6785, %v6831
  %v6853 = vadd.f32 %v6786, %v6831
  %v6854 = vadd.f32 %v6787, %v6831
  %v6855 = vadd.f32 %v6788, %v6831
  %v6856 = vadd.f32 %v6789, %v6831
  %v6857 = vadd.f32 %v6790, %v6831
  %v6858 = vadd.f32 %v6791, %v6831
  %v6859 = vadd.f32 %v6792, %v6831
  %v6860 = vadd.f32 %v6793, %v6831
  %v6861 = vadd.f32 %v6794, %v6831
  %v6862 = vadd.f32 %v6795, %v6831
  %v6863 = vadd.f32 %v6796, %v6831
  %v6864 = vadd.f32 %v6797, %v6831
  %v6865 = vadd.f32 %v6798, %v6831
  %v6866 = vadd.f32 %v6799, %v6831
  %v6867 = vadd.f32 %v6800, %v6831
  %v6868 = vadd.f32 %v6801, %v6831
  %v6869 = vadd.f32 %v6802, %v6831
  %v6870 = vadd.f32 %v6803, %v6831
  %v6871 = vadd.f32 %v6804, %v6831
  %v6872 = vadd.f32 %v6805, %v6831
  %v6873 = vadd.f32 %v6806, %v6831
  %v6874 = vadd.f32 %v6807, %v6831
  %v6875 = vadd.f32 %v6808, %v6831
  %v6876 = vadd.f32 %v6809, %v6831
  %v6877 = vadd.f32 %v6810, %v6831
  %v6878 = vadd.f32 %v6811, %v6831
  %v6879 = vadd.f32 %v6812, %v6831
  %v6880 = vadd.f32 %v6813, %v6831
  %v6881 = vadd.f32 %v6814, %v6831
  %v6882 = vadd.f32 %v6815, %v6831
  %v6883 = vadd.f32 %v6816, %v6831
  %v6884 = vadd.f32 %v6817, %v6831
  %v6885 = vadd.f32 %v6818, %v6831
  %v6886 = vadd.f32 %v6819, %v6831
  %v6887 = vadd.f32 %v6820, %v6831
  %v6888 = vadd.f32 %v6821, %v6831
  %v6889 = vadd.f32 %v6822, %v6831
  %v6890 = vadd.f32 %v6823, %v6831
  %v6891 = vadd.f32 %v6824, %v6831
  %v6892 = vadd.f32 %v6825, %v6831
  %v6893 = vadd.f32 %v6826, %v6831
  %v6894 = vadd.f32 %v6827, %v6831
  %v6895 = vadd.f32 %v6828, %v6831
  %v6896 = vadd.f32 %v6829, %v6831
  %vm6897 = vcmp.gt.f32.partialorder %v6833, 0.0
  %vm6898 = vcmp.gt.f32.partialorder %v6834, 0.0
  %vm6899 = vcmp.gt.f32.partialorder %v6835, 0.0
  %vm6900 = vcmp.gt.f32.partialorder %v6836, 0.0
  %vm6901 = vcmp.gt.f32.partialorder %v6837, 0.0
  %vm6902 = vcmp.gt.f32.partialorder %v6838, 0.0
  %vm6903 = vcmp.gt.f32.partialorder %v6839, 0.0
  %vm6904 = vcmp.gt.f32.partialorder %v6840, 0.0
  %vm6905 = vcmp.gt.f32.partialorder %v6841, 0.0
  %vm6906 = vcmp.gt.f32.partialorder %v6842, 0.0
  %vm6907 = vcmp.gt.f32.partialorder %v6843, 0.0
  %vm6908 = vcmp.gt.f32.partialorder %v6844, 0.0
  %vm6909 = vcmp.gt.f32.partialorder %v6845, 0.0
  %vm6910 = vcmp.gt.f32.partialorder %v6846, 0.0
  %vm6911 = vcmp.gt.f32.partialorder %v6847, 0.0
  %vm6912 = vcmp.gt.f32.partialorder %v6848, 0.0
  %vm6913 = vcmp.gt.f32.partialorder %v6849, 0.0
  %vm6914 = vcmp.gt.f32.partialorder %v6850, 0.0
  %vm6915 = vcmp.gt.f32.partialorder %v6851, 0.0
  %vm6916 = vcmp.gt.f32.partialorder %v6852, 0.0
  %vm6917 = vcmp.gt.f32.partialorder %v6853, 0.0
  %vm6918 = vcmp.gt.f32.partialorder %v6854, 0.0
  %vm6919 = vcmp.gt.f32.partialorder %v6855, 0.0
  %vm6920 = vcmp.gt.f32.partialorder %v6856, 0.0
  %vm6921 = vcmp.gt.f32.partialorder %v6857, 0.0
  %vm6922 = vcmp.gt.f32.partialorder %v6858, 0.0
  %vm6923 = vcmp.gt.f32.partialorder %v6859, 0.0
  %vm6924 = vcmp.gt.f32.partialorder %v6860, 0.0
  %vm6925 = vcmp.gt.f32.partialorder %v6861, 0.0
  %vm6926 = vcmp.gt.f32.partialorder %v6862, 0.0
  %vm6927 = vcmp.gt.f32.partialorder %v6863, 0.0
  %vm6928 = vcmp.gt.f32.partialorder %v6864, 0.0
  %vm6929 = vcmp.gt.f32.partialorder %v6865, 0.0
  %vm6930 = vcmp.gt.f32.partialorder %v6866, 0.0
  %vm6931 = vcmp.gt.f32.partialorder %v6867, 0.0
  %vm6932 = vcmp.gt.f32.partialorder %v6868, 0.0
  %vm6933 = vcmp.gt.f32.partialorder %v6869, 0.0
  %vm6934 = vcmp.gt.f32.partialorder %v6870, 0.0
  %vm6935 = vcmp.gt.f32.partialorder %v6871, 0.0
  %vm6936 = vcmp.gt.f32.partialorder %v6872, 0.0
  %vm6937 = vcmp.gt.f32.partialorder %v6873, 0.0
  %vm6938 = vcmp.gt.f32.partialorder %v6874, 0.0
  %vm6939 = vcmp.gt.f32.partialorder %v6875, 0.0
  %vm6940 = vcmp.gt.f32.partialorder %v6876, 0.0
  %vm6941 = vcmp.gt.f32.partialorder %v6877, 0.0
  %vm6942 = vcmp.gt.f32.partialorder %v6878, 0.0
  %vm6943 = vcmp.gt.f32.partialorder %v6879, 0.0
  %vm6944 = vcmp.gt.f32.partialorder %v6880, 0.0
  %vm6945 = vcmp.gt.f32.partialorder %v6881, 0.0
  %vm6946 = vcmp.gt.f32.partialorder %v6882, 0.0
  %vm6947 = vcmp.gt.f32.partialorder %v6883, 0.0
  %vm6948 = vcmp.gt.f32.partialorder %v6884, 0.0
  %vm6949 = vcmp.gt.f32.partialorder %v6885, 0.0
  %vm6950 = vcmp.gt.f32.partialorder %v6886, 0.0
  %vm6951 = vcmp.gt.f32.partialorder %v6887, 0.0
  %vm6952 = vcmp.gt.f32.partialorder %v6888, 0.0
  %vm6953 = vcmp.gt.f32.partialorder %v6889, 0.0
  %vm6954 = vcmp.gt.f32.partialorder %v6890, 0.0
  %vm6955 = vcmp.gt.f32.partialorder %v6891, 0.0
  %vm6956 = vcmp.gt.f32.partialorder %v6892, 0.0
  %vm6957 = vcmp.gt.f32.partialorder %v6893, 0.0
  %vm6958 = vcmp.gt.f32.partialorder %v6894, 0.0
  %vm6959 = vcmp.gt.f32.partialorder %v6895, 0.0
  %vm6960 = vcmp.gt.f32.partialorder %v6896, 0.0
  %v6961 = vmul.f32 %v6833, 0.2
  %v6962 = vmul.f32 %v6834, 0.2
  %v6963 = vmul.f32 %v6835, 0.2
  %v6964 = vmul.f32 %v6836, 0.2
  %v6965 = vmul.f32 %v6837, 0.2
  %v6966 = vmul.f32 %v6838, 0.2
  %v6967 = vmul.f32 %v6839, 0.2
  %v6968 = vmul.f32 %v6840, 0.2
  %v6969 = vmul.f32 %v6841, 0.2
  %v6970 = vmul.f32 %v6842, 0.2
  %v6971 = vmul.f32 %v6843, 0.2
  %v6972 = vmul.f32 %v6844, 0.2
  %v6973 = vmul.f32 %v6845, 0.2
  %v6974 = vmul.f32 %v6846, 0.2
  %v6975 = vmul.f32 %v6847, 0.2
  %v6976 = vmul.f32 %v6848, 0.2
  %v6977 = vmul.f32 %v6849, 0.2
  %v6978 = vmul.f32 %v6850, 0.2
  %v6979 = vmul.f32 %v6851, 0.2
  %v6980 = vmul.f32 %v6852, 0.2
  %v6981 = vmul.f32 %v6853, 0.2
  %v6982 = vmul.f32 %v6854, 0.2
  %v6983 = vmul.f32 %v6855, 0.2
  %v6984 = vmul.f32 %v6856, 0.2
  %v6985 = vmul.f32 %v6857, 0.2
  %v6986 = vmul.f32 %v6858, 0.2
  %v6987 = vmul.f32 %v6859, 0.2
  %v6988 = vmul.f32 %v6860, 0.2
  %v6989 = vmul.f32 %v6861, 0.2
  %v6990 = vmul.f32 %v6862, 0.2
  %v6991 = vmul.f32 %v6863, 0.2
  %v6992 = vmul.f32 %v6864, 0.2
  %v6993 = vmul.f32 %v6865, 0.2
  %v6994 = vmul.f32 %v6866, 0.2
  %v6995 = vmul.f32 %v6867, 0.2
  %v6996 = vmul.f32 %v6868, 0.2
  %v6997 = vmul.f32 %v6869, 0.2
  %v6998 = vmul.f32 %v6870, 0.2
  %v6999 = vmul.f32 %v6871, 0.2
  %v7000 = vmul.f32 %v6872, 0.2
  %v7001 = vmul.f32 %v6873, 0.2
  %v7002 = vmul.f32 %v6874, 0.2
  %v7003 = vmul.f32 %v6875, 0.2
  %v7004 = vmul.f32 %v6876, 0.2
  %v7005 = vmul.f32 %v6877, 0.2
  %v7006 = vmul.f32 %v6878, 0.2
  %v7007 = vmul.f32 %v6879, 0.2
  %v7008 = vmul.f32 %v6880, 0.2
  %v7009 = vmul.f32 %v6881, 0.2
  %v7010 = vmul.f32 %v6882, 0.2
  %v7011 = vmul.f32 %v6883, 0.2
  %v7012 = vmul.f32 %v6884, 0.2
  %v7013 = vmul.f32 %v6885, 0.2
  %v7014 = vmul.f32 %v6886, 0.2
  %v7015 = vmul.f32 %v6887, 0.2
  %v7016 = vmul.f32 %v6888, 0.2
  %v7017 = vmul.f32 %v6889, 0.2
  %v7018 = vmul.f32 %v6890, 0.2
  %v7019 = vmul.f32 %v6891, 0.2
  %v7020 = vmul.f32 %v6892, 0.2
  %v7021 = vmul.f32 %v6893, 0.2
  %v7022 = vmul.f32 %v6894, 0.2
  %v7023 = vmul.f32 %v6895, 0.2
  %v7024 = vmul.f32 %v6896, 0.2
  %v7025 = vsel %vm6897, %v6833, %v6961
  %v7026 = vsel %vm6898, %v6834, %v6962
  %v7027 = vsel %vm6899, %v6835, %v6963
  %v7028 = vsel %vm6900, %v6836, %v6964
  %v7029 = vsel %vm6901, %v6837, %v6965
  %v7030 = vsel %vm6902, %v6838, %v6966
  %v7031 = vsel %vm6903, %v6839, %v6967
  %v7032 = vsel %vm6904, %v6840, %v6968
  %v7033 = vsel %vm6905, %v6841, %v6969
  %v7034 = vsel %vm6906, %v6842, %v6970
  %v7035 = vsel %vm6907, %v6843, %v6971
  %v7036 = vsel %vm6908, %v6844, %v6972
  %v7037 = vsel %vm6909, %v6845, %v6973
  %v7038 = vsel %vm6910, %v6846, %v6974
  %v7039 = vsel %vm6911, %v6847, %v6975
  %v7040 = vsel %vm6912, %v6848, %v6976
  %v7041 = vsel %vm6913, %v6849, %v6977
  %v7042 = vsel %vm6914, %v6850, %v6978
  %v7043 = vsel %vm6915, %v6851, %v6979
  %v7044 = vsel %vm6916, %v6852, %v6980
  %v7045 = vsel %vm6917, %v6853, %v6981
  %v7046 = vsel %vm6918, %v6854, %v6982
  %v7047 = vsel %vm6919, %v6855, %v6983
  %v7048 = vsel %vm6920, %v6856, %v6984
  %v7049 = vsel %vm6921, %v6857, %v6985
  %v7050 = vsel %vm6922, %v6858, %v6986
  %v7051 = vsel %vm6923, %v6859, %v6987
  %v7052 = vsel %vm6924, %v6860, %v6988
  %v7053 = vsel %vm6925, %v6861, %v6989
  %v7054 = vsel %vm6926, %v6862, %v6990
  %v7055 = vsel %vm6927, %v6863, %v6991
  %v7056 = vsel %vm6928, %v6864, %v6992
  %v7057 = vsel %vm6929, %v6865, %v6993
  %v7058 = vsel %vm6930, %v6866, %v6994
  %v7059 = vsel %vm6931, %v6867, %v6995
  %v7060 = vsel %vm6932, %v6868, %v6996
  %v7061 = vsel %vm6933, %v6869, %v6997
  %v7062 = vsel %vm6934, %v6870, %v6998
  %v7063 = vsel %vm6935, %v6871, %v6999
  %v7064 = vsel %vm6936, %v6872, %v7000
  %v7065 = vsel %vm6937, %v6873, %v7001
  %v7066 = vsel %vm6938, %v6874, %v7002
  %v7067 = vsel %vm6939, %v6875, %v7003
  %v7068 = vsel %vm6940, %v6876, %v7004
  %v7069 = vsel %vm6941, %v6877, %v7005
  %v7070 = vsel %vm6942, %v6878, %v7006
  %v7071 = vsel %vm6943, %v6879, %v7007
  %v7072 = vsel %vm6944, %v6880, %v7008
  %v7073 = vsel %vm6945, %v6881, %v7009
  %v7074 = vsel %vm6946, %v6882, %v7010
  %v7075 = vsel %vm6947, %v6883, %v7011
  %v7076 = vsel %vm6948, %v6884, %v7012
  %v7077 = vsel %vm6949, %v6885, %v7013
  %v7078 = vsel %vm6950, %v6886, %v7014
  %v7079 = vsel %vm6951, %v6887, %v7015
  %v7080 = vsel %vm6952, %v6888, %v7016
  %v7081 = vsel %vm6953, %v6889, %v7017
  %v7082 = vsel %vm6954, %v6890, %v7018
  %v7083 = vsel %vm6955, %v6891, %v7019
  %v7084 = vsel %vm6956, %v6892, %v7020
  %v7085 = vsel %vm6957, %v6893, %v7021
  %v7086 = vsel %vm6958, %v6894, %v7022
  %v7087 = vsel %vm6959, %v6895, %v7023
  %v7088 = vsel %vm6960, %v6896, %v7024
  %v7089 = vld [vmem:[%s13] sm:$0x1]
  %v7090 = vld [vmem:[%s14] sm:$0x1]
  %v7091 = vsel %vm123, %v5467, 0.0
  %v7092 = vsel %vm123, %v5468, 0.0
  %v7093 = vadd.f32 %v7091, %v7092
  %v7094 = vsel %vm123, %v5469, 0.0
  %v7095 = vadd.f32 %v7093, %v7094
  %v7096 = vsel %vm123, %v5470, 0.0
  %v7097 = vadd.f32 %v7095, %v7096
  %v7098 = vsel %vm123, %v5471, 0.0
  %v7099 = vadd.f32 %v7097, %v7098
  %v7100 = vsel %vm123, %v5472, 0.0
  %v7101 = vadd.f32 %v7099, %v7100
  %v7102 = vsel %vm123, %v5473, 0.0
  %v7103 = vadd.f32 %v7101, %v7102
  %v7104 = vsel %vm123, %v5474, 0.0
  %v7105 = vadd.f32 %v7103, %v7104
  %v7106 = vsel %vm123, %v5475, 0.0
  %v7107 = vadd.f32 %v7105, %v7106
  %v7108 = vsel %vm123, %v5476, 0.0
  %v7109 = vadd.f32 %v7107, %v7108
  %v7110 = vsel %vm123, %v5477, 0.0
  %v7111 = vadd.f32 %v7109, %v7110
  %v7112 = vsel %vm123, %v5478, 0.0
  %v7113 = vadd.f32 %v7111, %v7112
  %v7114 = vsel %vm123, %v5479, 0.0
  %v7115 = vadd.f32 %v7113, %v7114
  %v7116 = vsel %vm123, %v5480, 0.0
  %v7117 = vadd.f32 %v7115, %v7116
  %v7118 = vsel %vm123, %v5481, 0.0
  %v7119 = vadd.f32 %v7117, %v7118
  %v7120 = vsel %vm123, %v5482, 0.0
  %v7121 = vadd.f32 %v7119, %v7120
  %v7122 = vrot.slane %v7121, 4
  %v7123 = vadd.f32 %v7121, %v7122
  %v7124 = vrot.slane %v7123, 2
  %v7125 = vadd.f32 %v7123, %v7124
  %v7126 = vrot.slane %v7125, 1
  %v7127 = vadd.f32 %v7125, %v7126
  %v7128 = vrcp.pop 128.0
  %v7129 = vmul.f32 128.0, %v7128
  %v7130 = vsub.f32 1.0, %v7129
  %v7131 = vmul.f32 %v7128, %v7130
  %v7132 = vadd.f32 %v7128, %v7131
  %vm7133 = vweird.f32 %v7128
  %v7134 = vsel %vm7133, %v7128, %v7132
  %v7135 = vmul.f32 %v7127, %v7134
  %v7136 = vsub.f32 %v5467, %v7135
  %v7137 = vsub.f32 %v5468, %v7135
  %v7138 = vsub.f32 %v5469, %v7135
  %v7139 = vsub.f32 %v5470, %v7135
  %v7140 = vsub.f32 %v5471, %v7135
  %v7141 = vsub.f32 %v5472, %v7135
  %v7142 = vsub.f32 %v5473, %v7135
  %v7143 = vsub.f32 %v5474, %v7135
  %v7144 = vsub.f32 %v5475, %v7135
  %v7145 = vsub.f32 %v5476, %v7135
  %v7146 = vsub.f32 %v5477, %v7135
  %v7147 = vsub.f32 %v5478, %v7135
  %v7148 = vsub.f32 %v5479, %v7135
  %v7149 = vsub.f32 %v5480, %v7135
  %v7150 = vsub.f32 %v5481, %v7135
  %v7151 = vsub.f32 %v5482, %v7135
  %v7152 = vmul.f32 %v7136, %v7136
  %v7153 = vmul.f32 %v7137, %v7137
  %v7154 = vmul.f32 %v7138, %v7138
  %v7155 = vmul.f32 %v7139, %v7139
  %v7156 = vmul.f32 %v7140, %v7140
  %v7157 = vmul.f32 %v7141, %v7141
  %v7158 = vmul.f32 %v7142, %v7142
  %v7159 = vmul.f32 %v7143, %v7143
  %v7160 = vmul.f32 %v7144, %v7144
  %v7161 = vmul.f32 %v7145, %v7145
  %v7162 = vmul.f32 %v7146, %v7146
  %v7163 = vmul.f32 %v7147, %v7147
  %v7164 = vmul.f32 %v7148, %v7148
  %v7165 = vmul.f32 %v7149, %v7149
  %v7166 = vmul.f32 %v7150, %v7150
  %v7167 = vmul.f32 %v7151, %v7151
  %v7168 = vsel %vm123, %v7152, 0.0
  %v7169 = vsel %vm123, %v7153, 0.0
  %v7170 = vadd.f32 %v7168, %v7169
  %v7171 = vsel %vm123, %v7154, 0.0
  %v7172 = vadd.f32 %v7170, %v7171
  %v7173 = vsel %vm123, %v7155, 0.0
  %v7174 = vadd.f32 %v7172, %v7173
  %v7175 = vsel %vm123, %v7156, 0.0
  %v7176 = vadd.f32 %v7174, %v7175
  %v7177 = vsel %vm123, %v7157, 0.0
  %v7178 = vadd.f32 %v7176, %v7177
  %v7179 = vsel %vm123, %v7158, 0.0
  %v7180 = vadd.f32 %v7178, %v7179
  %v7181 = vsel %vm123, %v7159, 0.0
  %v7182 = vadd.f32 %v7180, %v7181
  %v7183 = vsel %vm123, %v7160, 0.0
  %v7184 = vadd.f32 %v7182, %v7183
  %v7185 = vsel %vm123, %v7161, 0.0
  %v7186 = vadd.f32 %v7184, %v7185
  %v7187 = vsel %vm123, %v7162, 0.0
  %v7188 = vadd.f32 %v7186, %v7187
  %v7189 = vsel %vm123, %v7163, 0.0
  %v7190 = vadd.f32 %v7188, %v7189
  %v7191 = vsel %vm123, %v7164, 0.0
  %v7192 = vadd.f32 %v7190, %v7191
  %v7193 = vsel %vm123, %v7165, 0.0
  %v7194 = vadd.f32 %v7192, %v7193
  %v7195 = vsel %vm123, %v7166, 0.0
  %v7196 = vadd.f32 %v7194, %v7195
  %v7197 = vsel %vm123, %v7167, 0.0
  %v7198 = vadd.f32 %v7196, %v7197
  %v7199 = vrot.slane %v7198, 4
  %v7200 = vadd.f32 %v7198, %v7199
  %v7201 = vrot.slane %v7200, 2
  %v7202 = vadd.f32 %v7200, %v7201
  %v7203 = vrot.slane %v7202, 1
  %v7204 = vadd.f32 %v7202, %v7203
  %v7205 = vmul.f32 %v7204, %v7134
  %v7206 = vadd.f32 %v7205, 1e-05
  %v7207 = vrsqrt.pop %v7206
  %v7208 = vmul.f32 %v7207, %v7206
  %v7209 = vmul.f32 %v7208, %v7207
  %v7210 = vmul.f32 0.5, %v7209
  %v7211 = vsub.f32 1.5, %v7210
  %v7212 = vmul.f32 %v7207, %v7211
  %vm7213 = vweird.f32 %v7206
  %vm7214 = vweird.f32 %v7207
  %vm7215 = vmor %vm7213, %vm7214
  %v7216 = vsel %vm7215, %v7207, %v7212
  %v7217 = vmul.f32 %v7136, %v7216
  %v7218 = vmul.f32 %v7137, %v7216
  %v7219 = vmul.f32 %v7138, %v7216
  %v7220 = vmul.f32 %v7139, %v7216
  %v7221 = vmul.f32 %v7140, %v7216
  %v7222 = vmul.f32 %v7141, %v7216
  %v7223 = vmul.f32 %v7142, %v7216
  %v7224 = vmul.f32 %v7143, %v7216
  %v7225 = vmul.f32 %v7144, %v7216
  %v7226 = vmul.f32 %v7145, %v7216
  %v7227 = vmul.f32 %v7146, %v7216
  %v7228 = vmul.f32 %v7147, %v7216
  %v7229 = vmul.f32 %v7148, %v7216
  %v7230 = vmul.f32 %v7149, %v7216
  %v7231 = vmul.f32 %v7150, %v7216
  %v7232 = vmul.f32 %v7151, %v7216
  %v7234 = vperm.slane %v7089, 0
  %v7236 = vmul.f32 %v7217, %v7234
  %v7237 = vmul.f32 %v7218, %v7234
  %v7238 = vmul.f32 %v7219, %v7234
  %v7239 = vmul.f32 %v7220, %v7234
  %v7240 = vmul.f32 %v7221, %v7234
  %v7241 = vmul.f32 %v7222, %v7234
  %v7242 = vmul.f32 %v7223, %v7234
  %v7243 = vmul.f32 %v7224, %v7234
  %v7244 = vmul.f32 %v7225, %v7234
  %v7245 = vmul.f32 %v7226, %v7234
  %v7246 = vmul.f32 %v7227, %v7234
  %v7247 = vmul.f32 %v7228, %v7234
  %v7248 = vmul.f32 %v7229, %v7234
  %v7249 = vmul.f32 %v7230, %v7234
  %v7250 = vmul.f32 %v7231, %v7234
  %v7251 = vmul.f32 %v7232, %v7234
  %v7253 = vperm.slane %v7090, 0
  %v7255 = vadd.f32 %v7236, %v7253
  %v7256 = vadd.f32 %v7237, %v7253
  %v7257 = vadd.f32 %v7238, %v7253
  %v7258 = vadd.f32 %v7239, %v7253
  %v7259 = vadd.f32 %v7240, %v7253
  %v7260 = vadd.f32 %v7241, %v7253
  %v7261 = vadd.f32 %v7242, %v7253
  %v7262 = vadd.f32 %v7243, %v7253
  %v7263 = vadd.f32 %v7244, %v7253
  %v7264 = vadd.f32 %v7245, %v7253
  %v7265 = vadd.f32 %v7246, %v7253
  %v7266 = vadd.f32 %v7247, %v7253
  %v7267 = vadd.f32 %v7248, %v7253
  %v7268 = vadd.f32 %v7249, %v7253
  %v7269 = vadd.f32 %v7250, %v7253
  %v7270 = vadd.f32 %v7251, %v7253
  %vm7271 = vcmp.gt.f32.partialorder %v7255, 0.0
  %vm7272 = vcmp.gt.f32.partialorder %v7256, 0.0
  %vm7273 = vcmp.gt.f32.partialorder %v7257, 0.0
  %vm7274 = vcmp.gt.f32.partialorder %v7258, 0.0
  %vm7275 = vcmp.gt.f32.partialorder %v7259, 0.0
  %vm7276 = vcmp.gt.f32.partialorder %v7260, 0.0
  %vm7277 = vcmp.gt.f32.partialorder %v7261, 0.0
  %vm7278 = vcmp.gt.f32.partialorder %v7262, 0.0
  %vm7279 = vcmp.gt.f32.partialorder %v7263, 0.0
  %vm7280 = vcmp.gt.f32.partialorder %v7264, 0.0
  %vm7281 = vcmp.gt.f32.partialorder %v7265, 0.0
  %vm7282 = vcmp.gt.f32.partialorder %v7266, 0.0
  %vm7283 = vcmp.gt.f32.partialorder %v7267, 0.0
  %vm7284 = vcmp.gt.f32.partialorder %v7268, 0.0
  %vm7285 = vcmp.gt.f32.partialorder %v7269, 0.0
  %vm7286 = vcmp.gt.f32.partialorder %v7270, 0.0
  %v7287 = vmul.f32 %v7255, 0.2
  %v7288 = vmul.f32 %v7256, 0.2
  %v7289 = vmul.f32 %v7257, 0.2
  %v7290 = vmul.f32 %v7258, 0.2
  %v7291 = vmul.f32 %v7259, 0.2
  %v7292 = vmul.f32 %v7260, 0.2
  %v7293 = vmul.f32 %v7261, 0.2
  %v7294 = vmul.f32 %v7262, 0.2
  %v7295 = vmul.f32 %v7263, 0.2
  %v7296 = vmul.f32 %v7264, 0.2
  %v7297 = vmul.f32 %v7265, 0.2
  %v7298 = vmul.f32 %v7266, 0.2
  %v7299 = vmul.f32 %v7267, 0.2
  %v7300 = vmul.f32 %v7268, 0.2
  %v7301 = vmul.f32 %v7269, 0.2
  %v7302 = vmul.f32 %v7270, 0.2
  %v7303 = vsel %vm7271, %v7255, %v7287
  %v7304 = vsel %vm7272, %v7256, %v7288
  %v7305 = vsel %vm7273, %v7257, %v7289
  %v7306 = vsel %vm7274, %v7258, %v7290
  %v7307 = vsel %vm7275, %v7259, %v7291
  %v7308 = vsel %vm7276, %v7260, %v7292
  %v7309 = vsel %vm7277, %v7261, %v7293
  %v7310 = vsel %vm7278, %v7262, %v7294
  %v7311 = vsel %vm7279, %v7263, %v7295
  %v7312 = vsel %vm7280, %v7264, %v7296
  %v7313 = vsel %vm7281, %v7265, %v7297
  %v7314 = vsel %vm7282, %v7266, %v7298
  %v7315 = vsel %vm7283, %v7267, %v7299
  %v7316 = vsel %vm7284, %v7268, %v7300
  %v7317 = vsel %vm7285, %v7269, %v7301
  %v7318 = vsel %vm7286, %v7270, %v7302
  %v7335 = vrot.slane %v7304, 1
  %v7336 = vrot.slane %v7303, 1
  %v7337 = vrot.slane %v7305, 1
  %v7338 = vrot.slane %v7306, 1
  %v7339 = vrot.slane %v7307, 1
  %v7340 = vrot.slane %v7308, 1
  %v7341 = vrot.slane %v7309, 1
  %v7342 = vrot.slane %v7310, 1
  %v7343 = vrot.slane %v7312, 1
  %v7344 = vrot.slane %v7311, 1
  %v7345 = vrot.slane %v7313, 1
  %v7346 = vrot.slane %v7314, 1
  %v7347 = vrot.slane %v7315, 1
  %v7348 = vrot.slane %v7316, 1
  %v7349 = vrot.slane %v7317, 1
  %v7350 = vrot.slane %v7318, 1
  %v7367 = vrot.slane %v7304, 7
  %v7368 = vrot.slane %v7303, 7
  %v7369 = vrot.slane %v7305, 7
  %v7370 = vrot.slane %v7306, 7
  %v7371 = vrot.slane %v7307, 7
  %v7372 = vrot.slane %v7308, 7
  %v7373 = vrot.slane %v7309, 7
  %v7374 = vrot.slane %v7310, 7
  %v7375 = vrot.slane %v7312, 7
  %v7376 = vrot.slane %v7311, 7
  %v7377 = vrot.slane %v7313, 7
  %v7378 = vrot.slane %v7314, 7
  %v7379 = vrot.slane %v7315, 7
  %v7380 = vrot.slane %v7316, 7
  %v7381 = vrot.slane %v7317, 7
  %v7382 = vrot.slane %v7318, 7
  %v7399 = vrot.slane %v7304, 5
  %v7400 = vrot.slane %v7303, 5
  %v7401 = vrot.slane %v7305, 5
  %v7402 = vrot.slane %v7306, 5
  %v7403 = vrot.slane %v7307, 5
  %v7404 = vrot.slane %v7308, 5
  %v7405 = vrot.slane %v7309, 5
  %v7406 = vrot.slane %v7310, 5
  %v7407 = vrot.slane %v7312, 5
  %v7408 = vrot.slane %v7311, 5
  %v7409 = vrot.slane %v7313, 5
  %v7410 = vrot.slane %v7314, 5
  %v7411 = vrot.slane %v7315, 5
  %v7412 = vrot.slane %v7316, 5
  %v7413 = vrot.slane %v7317, 5
  %v7414 = vrot.slane %v7318, 5
  %v7431 = vsel %vm307, %v7335, %v7367
  %v7432 = vsel %vm307, %v7336, %v7368
  %v7433 = vsel %vm307, %v7337, %v7369
  %v7434 = vsel %vm307, %v7338, %v7370
  %v7435 = vsel %vm307, %v7339, %v7371
  %v7436 = vsel %vm307, %v7340, %v7372
  %v7437 = vsel %vm307, %v7341, %v7373
  %v7438 = vsel %vm307, %v7342, %v7374
  %v7439 = vsel %vm307, %v7343, %v7375
  %v7440 = vsel %vm307, %v7344, %v7376
  %v7441 = vsel %vm307, %v7345, %v7377
  %v7442 = vsel %vm307, %v7346, %v7378
  %v7443 = vsel %vm307, %v7347, %v7379
  %v7444 = vsel %vm307, %v7348, %v7380
  %v7445 = vsel %vm307, %v7349, %v7381
  %v7446 = vsel %vm307, %v7350, %v7382
  %v7447 = vsel %vm307, %v7367, %v7399
  %v7448 = vsel %vm307, %v7368, %v7400
  %v7449 = vsel %vm307, %v7369, %v7401
  %v7450 = vsel %vm307, %v7370, %v7402
  %v7451 = vsel %vm307, %v7371, %v7403
  %v7452 = vsel %vm307, %v7372, %v7404
  %v7453 = vsel %vm307, %v7373, %v7405
  %v7454 = vsel %vm307, %v7374, %v7406
  %v7455 = vsel %vm307, %v7375, %v7407
  %v7456 = vsel %vm307, %v7376, %v7408
  %v7457 = vsel %vm307, %v7377, %v7409
  %v7458 = vsel %vm307, %v7378, %v7410
  %v7459 = vsel %vm307, %v7379, %v7411
  %v7460 = vsel %vm307, %v7380, %v7412
  %v7461 = vsel %vm307, %v7381, %v7413
  %v7462 = vsel %vm307, %v7382, %v7414
  %v7491 = vrot.slane %v7431, 1
  %v7492 = vrot.slane %v7447, 1
  %v7493 = vsel %vm927, %v7491, %v7492
  %v7494 = vrot.slane %v7432, 1
  %v7495 = vrot.slane %v7448, 1
  %v7496 = vsel %vm927, %v7494, %v7495
  %v7497 = vrot.slane %v7433, 1
  %v7498 = vrot.slane %v7449, 1
  %v7499 = vsel %vm927, %v7497, %v7498
  %v7500 = vrot.slane %v7434, 1
  %v7501 = vrot.slane %v7450, 1
  %v7502 = vsel %vm927, %v7500, %v7501
  %v7503 = vrot.slane %v7435, 1
  %v7504 = vrot.slane %v7451, 1
  %v7505 = vsel %vm927, %v7503, %v7504
  %v7506 = vrot.slane %v7436, 1
  %v7507 = vrot.slane %v7452, 1
  %v7508 = vsel %vm927, %v7506, %v7507
  %v7509 = vrot.slane %v7437, 1
  %v7510 = vrot.slane %v7453, 1
  %v7511 = vsel %vm927, %v7509, %v7510
  %v7512 = vrot.slane %v7439, 1
  %v7513 = vrot.slane %v7455, 1
  %v7514 = vsel %vm927, %v7512, %v7513
  %v7515 = vrot.slane %v7440, 1
  %v7516 = vrot.slane %v7456, 1
  %v7517 = vsel %vm927, %v7515, %v7516
  %v7518 = vrot.slane %v7441, 1
  %v7519 = vrot.slane %v7457, 1
  %v7520 = vsel %vm927, %v7518, %v7519
  %v7521 = vrot.slane %v7442, 1
  %v7522 = vrot.slane %v7458, 1
  %v7523 = vsel %vm927, %v7521, %v7522
  %v7524 = vrot.slane %v7443, 1
  %v7525 = vrot.slane %v7459, 1
  %v7526 = vsel %vm927, %v7524, %v7525
  %v7527 = vrot.slane %v7444, 1
  %v7528 = vrot.slane %v7460, 1
  %v7529 = vsel %vm927, %v7527, %v7528
  %v7530 = vrot.slane %v7445, 1
  %v7531 = vrot.slane %v7461, 1
  %v7532 = vsel %vm927, %v7530, %v7531
  %7533 = vrot.lane.b32.xlu0 %v7493, 16
  %v7534 = vpop.permute.xlu0 %7533
  %7535 = vrot.lane.b32.xlu0 %v7496, 16
  %v7536 = vpop.permute.xlu0 %7535
  %7537 = vrot.lane.b32.xlu0 %v7499, 16
  %v7538 = vpop.permute.xlu0 %7537
  %7539 = vrot.lane.b32.xlu0 %v7502, 16
  %v7540 = vpop.permute.xlu0 %7539
  %7541 = vrot.lane.b32.xlu0 %v7505, 16
  %v7542 = vpop.permute.xlu0 %7541
  %7543 = vrot.lane.b32.xlu0 %v7508, 16
  %v7544 = vpop.permute.xlu0 %7543
  %7545 = vrot.lane.b32.xlu0 %v7511, 16
  %v7546 = vpop.permute.xlu0 %7545
  %7547 = vrot.lane.b32.xlu0 %v7514, 16
  %v7548 = vpop.permute.xlu0 %7547
  %7549 = vrot.lane.b32.xlu0 %v7517, 16
  %v7550 = vpop.permute.xlu0 %7549
  %7551 = vrot.lane.b32.xlu0 %v7520, 16
  %v7552 = vpop.permute.xlu0 %7551
  %7553 = vrot.lane.b32.xlu0 %v7523, 16
  %v7554 = vpop.permute.xlu0 %7553
  %7555 = vrot.lane.b32.xlu0 %v7526, 16
  %v7556 = vpop.permute.xlu0 %7555
  %7557 = vrot.lane.b32.xlu0 %v7529, 16
  %v7558 = vpop.permute.xlu0 %7557
  %7559 = vrot.lane.b32.xlu0 %v7532, 16
  %v7560 = vpop.permute.xlu0 %7559
  %v7575 = vrot.slane %v7431, 2
  %v7576 = vrot.slane %v7447, 2
  %v7577 = vsel %vm1258, %v7575, %v7576
  %v7578 = vrot.slane %v7432, 2
  %v7579 = vrot.slane %v7448, 2
  %v7580 = vsel %vm1258, %v7578, %v7579
  %v7581 = vrot.slane %v7433, 2
  %v7582 = vrot.slane %v7449, 2
  %v7583 = vsel %vm1258, %v7581, %v7582
  %v7584 = vrot.slane %v7434, 2
  %v7585 = vrot.slane %v7450, 2
  %v7586 = vsel %vm1258, %v7584, %v7585
  %v7587 = vrot.slane %v7435, 2
  %v7588 = vrot.slane %v7451, 2
  %v7589 = vsel %vm1258, %v7587, %v7588
  %v7590 = vrot.slane %v7436, 2
  %v7591 = vrot.slane %v7452, 2
  %v7592 = vsel %vm1258, %v7590, %v7591
  %v7593 = vrot.slane %v7437, 2
  %v7594 = vrot.slane %v7453, 2
  %v7595 = vsel %vm1258, %v7593, %v7594
  %v7596 = vrot.slane %v7439, 2
  %v7597 = vrot.slane %v7455, 2
  %v7598 = vsel %vm1258, %v7596, %v7597
  %v7599 = vrot.slane %v7440, 2
  %v7600 = vrot.slane %v7456, 2
  %v7601 = vsel %vm1258, %v7599, %v7600
  %v7602 = vrot.slane %v7441, 2
  %v7603 = vrot.slane %v7457, 2
  %v7604 = vsel %vm1258, %v7602, %v7603
  %v7605 = vrot.slane %v7442, 2
  %v7606 = vrot.slane %v7458, 2
  %v7607 = vsel %vm1258, %v7605, %v7606
  %v7608 = vrot.slane %v7443, 2
  %v7609 = vrot.slane %v7459, 2
  %v7610 = vsel %vm1258, %v7608, %v7609
  %v7611 = vrot.slane %v7444, 2
  %v7612 = vrot.slane %v7460, 2
  %v7613 = vsel %vm1258, %v7611, %v7612
  %v7614 = vrot.slane %v7445, 2
  %v7615 = vrot.slane %v7461, 2
  %v7616 = vsel %vm1258, %v7614, %v7615
  %7617 = vrot.lane.b32.xlu0 %v7577, 32
  %v7618 = vpop.permute.xlu0 %7617
  %7619 = vrot.lane.b32.xlu0 %v7580, 32
  %v7620 = vpop.permute.xlu0 %7619
  %7621 = vrot.lane.b32.xlu0 %v7583, 32
  %v7622 = vpop.permute.xlu0 %7621
  %7623 = vrot.lane.b32.xlu0 %v7586, 32
  %v7624 = vpop.permute.xlu0 %7623
  %7625 = vrot.lane.b32.xlu0 %v7589, 32
  %v7626 = vpop.permute.xlu0 %7625
  %7627 = vrot.lane.b32.xlu0 %v7592, 32
  %v7628 = vpop.permute.xlu0 %7627
  %7629 = vrot.lane.b32.xlu0 %v7595, 32
  %v7630 = vpop.permute.xlu0 %7629
  %7631 = vrot.lane.b32.xlu0 %v7598, 32
  %v7632 = vpop.permute.xlu0 %7631
  %7633 = vrot.lane.b32.xlu0 %v7601, 32
  %v7634 = vpop.permute.xlu0 %7633
  %7635 = vrot.lane.b32.xlu0 %v7604, 32
  %v7636 = vpop.permute.xlu0 %7635
  %7637 = vrot.lane.b32.xlu0 %v7607, 32
  %v7638 = vpop.permute.xlu0 %7637
  %7639 = vrot.lane.b32.xlu0 %v7610, 32
  %v7640 = vpop.permute.xlu0 %7639
  %7641 = vrot.lane.b32.xlu0 %v7613, 32
  %v7642 = vpop.permute.xlu0 %7641
  %7643 = vrot.lane.b32.xlu0 %v7616, 32
  %v7644 = vpop.permute.xlu0 %7643
  %7661 = vrot.lane.b32.xlu0 %v7432, 48
  %v7662 = vpop.permute.xlu0 %7661
  %7663 = vrot.lane.b32.xlu0 %v7431, 48
  %v7664 = vpop.permute.xlu0 %7663
  %7665 = vrot.lane.b32.xlu0 %v7433, 48
  %v7666 = vpop.permute.xlu0 %7665
  %7667 = vrot.lane.b32.xlu0 %v7434, 48
  %v7668 = vpop.permute.xlu0 %7667
  %7669 = vrot.lane.b32.xlu0 %v7435, 48
  %v7670 = vpop.permute.xlu0 %7669
  %7671 = vrot.lane.b32.xlu0 %v7436, 48
  %v7672 = vpop.permute.xlu0 %7671
  %7673 = vrot.lane.b32.xlu0 %v7437, 48
  %v7674 = vpop.permute.xlu0 %7673
  %7675 = vrot.lane.b32.xlu0 %v7438, 48
  %v7676 = vpop.permute.xlu0 %7675
  %7677 = vrot.lane.b32.xlu0 %v7440, 48
  %v7678 = vpop.permute.xlu0 %7677
  %7679 = vrot.lane.b32.xlu0 %v7439, 48
  %v7680 = vpop.permute.xlu0 %7679
  %7681 = vrot.lane.b32.xlu0 %v7441, 48
  %v7682 = vpop.permute.xlu0 %7681
  %7683 = vrot.lane.b32.xlu0 %v7442, 48
  %v7684 = vpop.permute.xlu0 %7683
  %7685 = vrot.lane.b32.xlu0 %v7443, 48
  %v7686 = vpop.permute.xlu0 %7685
  %7687 = vrot.lane.b32.xlu0 %v7444, 48
  %v7688 = vpop.permute.xlu0 %7687
  %7689 = vrot.lane.b32.xlu0 %v7445, 48
  %v7690 = vpop.permute.xlu0 %7689
  %7691 = vrot.lane.b32.xlu0 %v7446, 48
  %v7692 = vpop.permute.xlu0 %7691
  %v7711 = vrot.slane %v7438, 1
  %v7712 = vrot.slane %v7454, 1
  %v7713 = vsel %vm927, %v7711, %v7712
  %v7714 = vrot.slane %v7446, 1
  %v7715 = vrot.slane %v7462, 1
  %v7716 = vsel %vm927, %v7714, %v7715
  %7717 = vrot.lane.b32.xlu0 %v7496, 64
  %v7718 = vpop.permute.xlu0 %7717
  %7719 = vrot.lane.b32.xlu0 %v7493, 64
  %v7720 = vpop.permute.xlu0 %7719
  %7721 = vrot.lane.b32.xlu0 %v7499, 64
  %v7722 = vpop.permute.xlu0 %7721
  %7723 = vrot.lane.b32.xlu0 %v7502, 64
  %v7724 = vpop.permute.xlu0 %7723
  %7725 = vrot.lane.b32.xlu0 %v7505, 64
  %v7726 = vpop.permute.xlu0 %7725
  %7727 = vrot.lane.b32.xlu0 %v7508, 64
  %v7728 = vpop.permute.xlu0 %7727
  %7729 = vrot.lane.b32.xlu0 %v7511, 64
  %v7730 = vpop.permute.xlu0 %7729
  %7731 = vrot.lane.b32.xlu0 %v7713, 64
  %v7732 = vpop.permute.xlu0 %7731
  %7733 = vrot.lane.b32.xlu0 %v7517, 64
  %v7734 = vpop.permute.xlu0 %7733
  %7735 = vrot.lane.b32.xlu0 %v7514, 64
  %v7736 = vpop.permute.xlu0 %7735
  %7737 = vrot.lane.b32.xlu0 %v7520, 64
  %v7738 = vpop.permute.xlu0 %7737
  %7739 = vrot.lane.b32.xlu0 %v7523, 64
  %v7740 = vpop.permute.xlu0 %7739
  %7741 = vrot.lane.b32.xlu0 %v7526, 64
  %v7742 = vpop.permute.xlu0 %7741
  %7743 = vrot.lane.b32.xlu0 %v7529, 64
  %v7744 = vpop.permute.xlu0 %7743
  %7745 = vrot.lane.b32.xlu0 %v7532, 64
  %v7746 = vpop.permute.xlu0 %7745
  %7747 = vrot.lane.b32.xlu0 %v7716, 64
  %v7748 = vpop.permute.xlu0 %7747
  %v7765 = vrot.slane %v7438, 2
  %v7766 = vrot.slane %v7454, 2
  %v7767 = vsel %vm1258, %v7765, %v7766
  %v7768 = vrot.slane %v7446, 2
  %v7769 = vrot.slane %v7462, 2
  %v7770 = vsel %vm1258, %v7768, %v7769
  %7771 = vrot.lane.b32.xlu0 %v7580, 80
  %v7772 = vpop.permute.xlu0 %7771
  %7773 = vrot.lane.b32.xlu0 %v7577, 80
  %v7774 = vpop.permute.xlu0 %7773
  %7775 = vrot.lane.b32.xlu0 %v7583, 80
  %v7776 = vpop.permute.xlu0 %7775
  %7777 = vrot.lane.b32.xlu0 %v7586, 80
  %v7778 = vpop.permute.xlu0 %7777
  %7779 = vrot.lane.b32.xlu0 %v7589, 80
  %v7780 = vpop.permute.xlu0 %7779
  %7781 = vrot.lane.b32.xlu0 %v7592, 80
  %v7782 = vpop.permute.xlu0 %7781
  %7783 = vrot.lane.b32.xlu0 %v7595, 80
  %v7784 = vpop.permute.xlu0 %7783
  %7785 = vrot.lane.b32.xlu0 %v7767, 80
  %v7786 = vpop.permute.xlu0 %7785
  %7787 = vrot.lane.b32.xlu0 %v7601, 80
  %v7788 = vpop.permute.xlu0 %7787
  %7789 = vrot.lane.b32.xlu0 %v7598, 80
  %v7790 = vpop.permute.xlu0 %7789
  %7791 = vrot.lane.b32.xlu0 %v7604, 80
  %v7792 = vpop.permute.xlu0 %7791
  %7793 = vrot.lane.b32.xlu0 %v7607, 80
  %v7794 = vpop.permute.xlu0 %7793
  %7795 = vrot.lane.b32.xlu0 %v7610, 80
  %v7796 = vpop.permute.xlu0 %7795
  %7797 = vrot.lane.b32.xlu0 %v7613, 80
  %v7798 = vpop.permute.xlu0 %7797
  %7799 = vrot.lane.b32.xlu0 %v7616, 80
  %v7800 = vpop.permute.xlu0 %7799
  %7801 = vrot.lane.b32.xlu0 %v7770, 80
  %v7802 = vpop.permute.xlu0 %7801
  %7819 = vrot.lane.b32.xlu0 %v7431, 96
  %v7820 = vpop.permute.xlu0 %7819
  %7821 = vrot.lane.b32.xlu0 %v7433, 96
  %v7822 = vpop.permute.xlu0 %7821
  %7823 = vrot.lane.b32.xlu0 %v7434, 96
  %v7824 = vpop.permute.xlu0 %7823
  %7825 = vrot.lane.b32.xlu0 %v7435, 96
  %v7826 = vpop.permute.xlu0 %7825
  %7827 = vrot.lane.b32.xlu0 %v7436, 96
  %v7828 = vpop.permute.xlu0 %7827
  %7829 = vrot.lane.b32.xlu0 %v7437, 96
  %v7830 = vpop.permute.xlu0 %7829
  %7831 = vrot.lane.b32.xlu0 %v7438, 96
  %v7832 = vpop.permute.xlu0 %7831
  %7833 = vrot.lane.b32.xlu0 %v7439, 96
  %v7834 = vpop.permute.xlu0 %7833
  %7835 = vrot.lane.b32.xlu0 %v7441, 96
  %v7836 = vpop.permute.xlu0 %7835
  %7837 = vrot.lane.b32.xlu0 %v7442, 96
  %v7838 = vpop.permute.xlu0 %7837
  %7839 = vrot.lane.b32.xlu0 %v7443, 96
  %v7840 = vpop.permute.xlu0 %7839
  %7841 = vrot.lane.b32.xlu0 %v7444, 96
  %v7842 = vpop.permute.xlu0 %7841
  %7843 = vrot.lane.b32.xlu0 %v7445, 96
  %v7844 = vpop.permute.xlu0 %7843
  %7845 = vrot.lane.b32.xlu0 %v7446, 96
  %v7846 = vpop.permute.xlu0 %7845
  %7861 = vrot.lane.b32.xlu0 %v7493, 112
  %v7862 = vpop.permute.xlu0 %7861
  %7863 = vrot.lane.b32.xlu0 %v7499, 112
  %v7864 = vpop.permute.xlu0 %7863
  %7865 = vrot.lane.b32.xlu0 %v7502, 112
  %v7866 = vpop.permute.xlu0 %7865
  %7867 = vrot.lane.b32.xlu0 %v7505, 112
  %v7868 = vpop.permute.xlu0 %7867
  %7869 = vrot.lane.b32.xlu0 %v7508, 112
  %v7870 = vpop.permute.xlu0 %7869
  %7871 = vrot.lane.b32.xlu0 %v7511, 112
  %v7872 = vpop.permute.xlu0 %7871
  %7873 = vrot.lane.b32.xlu0 %v7713, 112
  %v7874 = vpop.permute.xlu0 %7873
  %7875 = vrot.lane.b32.xlu0 %v7514, 112
  %v7876 = vpop.permute.xlu0 %7875
  %7877 = vrot.lane.b32.xlu0 %v7520, 112
  %v7878 = vpop.permute.xlu0 %7877
  %7879 = vrot.lane.b32.xlu0 %v7523, 112
  %v7880 = vpop.permute.xlu0 %7879
  %7881 = vrot.lane.b32.xlu0 %v7526, 112
  %v7882 = vpop.permute.xlu0 %7881
  %7883 = vrot.lane.b32.xlu0 %v7529, 112
  %v7884 = vpop.permute.xlu0 %7883
  %7885 = vrot.lane.b32.xlu0 %v7532, 112
  %v7886 = vpop.permute.xlu0 %7885
  %7887 = vrot.lane.b32.xlu0 %v7716, 112
  %v7888 = vpop.permute.xlu0 %7887
  %v7903 = vsel %vm123, %v7431, %v7534
  %v7904 = vsel %vm123, %v7432, %v7536
  %v7905 = vsel %vm123, %v7433, %v7538
  %v7906 = vsel %vm123, %v7434, %v7540
  %v7907 = vsel %vm123, %v7435, %v7542
  %v7908 = vsel %vm123, %v7436, %v7544
  %v7909 = vsel %vm123, %v7437, %v7546
  %v7910 = vsel %vm123, %v7439, %v7548
  %v7911 = vsel %vm123, %v7440, %v7550
  %v7912 = vsel %vm123, %v7441, %v7552
  %v7913 = vsel %vm123, %v7442, %v7554
  %v7914 = vsel %vm123, %v7443, %v7556
  %v7915 = vsel %vm123, %v7444, %v7558
  %v7916 = vsel %vm123, %v7445, %v7560
  %v7917 = vsel %vm2669, %v7903, %v7618
  %v7918 = vsel %vm2669, %v7904, %v7620
  %v7919 = vsel %vm2669, %v7905, %v7622
  %v7920 = vsel %vm2669, %v7906, %v7624
  %v7921 = vsel %vm2669, %v7907, %v7626
  %v7922 = vsel %vm2669, %v7908, %v7628
  %v7923 = vsel %vm2669, %v7909, %v7630
  %v7924 = vsel %vm2669, %v7910, %v7632
  %v7925 = vsel %vm2669, %v7911, %v7634
  %v7926 = vsel %vm2669, %v7912, %v7636
  %v7927 = vsel %vm2669, %v7913, %v7638
  %v7928 = vsel %vm2669, %v7914, %v7640
  %v7929 = vsel %vm2669, %v7915, %v7642
  %v7930 = vsel %vm2669, %v7916, %v7644
  %v7931 = vsel %vm2730, %v7917, %v7662
  %v7932 = vsel %vm2730, %v7918, %v7664
  %v7933 = vsel %vm2730, %v7917, %v7666
  %v7934 = vsel %vm2730, %v7919, %v7668
  %v7935 = vsel %vm2730, %v7920, %v7670
  %v7936 = vsel %vm2730, %v7921, %v7672
  %v7937 = vsel %vm2730, %v7922, %v7674
  %v7938 = vsel %vm2730, %v7923, %v7676
  %v7939 = vsel %vm2730, %v7924, %v7678
  %v7940 = vsel %vm2730, %v7925, %v7680
  %v7941 = vsel %vm2730, %v7924, %v7682
  %v7942 = vsel %vm2730, %v7926, %v7684
  %v7943 = vsel %vm2730, %v7927, %v7686
  %v7944 = vsel %vm2730, %v7928, %v7688
  %v7945 = vsel %vm2730, %v7929, %v7690
  %v7946 = vsel %vm2730, %v7930, %v7692
  %v7947 = vsel %vm2795, %v7931, %v7718
  %v7948 = vsel %vm2795, %v7932, %v7720
  %v7949 = vsel %vm2795, %v7933, %v7722
  %v7950 = vsel %vm2795, %v7934, %v7724
  %v7951 = vsel %vm2795, %v7935, %v7726
  %v7952 = vsel %vm2795, %v7936, %v7728
  %v7953 = vsel %vm2795, %v7937, %v7730
  %v7954 = vsel %vm2795, %v7938, %v7732
  %v7955 = vsel %vm2795, %v7939, %v7734
  %v7956 = vsel %vm2795, %v7940, %v7736
  %v7957 = vsel %vm2795, %v7941, %v7738
  %v7958 = vsel %vm2795, %v7942, %v7740
  %v7959 = vsel %vm2795, %v7943, %v7742
  %v7960 = vsel %vm2795, %v7944, %v7744
  %v7961 = vsel %vm2795, %v7945, %v7746
  %v7962 = vsel %vm2795, %v7946, %v7748
  %v7963 = vsel %vm2860, %v7947, %v7772
  %v7964 = vsel %vm2860, %v7948, %v7774
  %v7965 = vsel %vm2860, %v7949, %v7776
  %v7966 = vsel %vm2860, %v7950, %v7778
  %v7967 = vsel %vm2860, %v7951, %v7780
  %v7968 = vsel %vm2860, %v7952, %v7782
  %v7969 = vsel %vm2860, %v7953, %v7784
  %v7970 = vsel %vm2860, %v7954, %v7786
  %v7971 = vsel %vm2860, %v7955, %v7788
  %v7972 = vsel %vm2860, %v7956, %v7790
  %v7973 = vsel %vm2860, %v7957, %v7792
  %v7974 = vsel %vm2860, %v7958, %v7794
  %v7975 = vsel %vm2860, %v7959, %v7796
  %v7976 = vsel %vm2860, %v7960, %v7798
  %v7977 = vsel %vm2860, %v7961, %v7800
  %v7978 = vsel %vm2860, %v7962, %v7802
  %v7979 = vsel %vm2925, %v7963, %v7820
  %v7980 = vsel %vm2925, %v7964, %v7822
  %v7981 = vsel %vm2925, %v7965, %v7824
  %v7982 = vsel %vm2925, %v7966, %v7826
  %v7983 = vsel %vm2925, %v7967, %v7828
  %v7984 = vsel %vm2925, %v7968, %v7830
  %v7985 = vsel %vm2925, %v7969, %v7832
  %v7986 = vsel %vm2925, %v7970, %v7830
  %v7987 = vsel %vm2925, %v7971, %v7834
  %v7988 = vsel %vm2925, %v7972, %v7836
  %v7989 = vsel %vm2925, %v7973, %v7838
  %v7990 = vsel %vm2925, %v7974, %v7840
  %v7991 = vsel %vm2925, %v7975, %v7842
  %v7992 = vsel %vm2925, %v7976, %v7844
  %v7993 = vsel %vm2925, %v7977, %v7846
  %v7994 = vsel %vm2925, %v7978, %v7844
  %v7995 = vsel %vm2990, %v7979, %v7862
  %v7996 = vsel %vm2990, %v7980, %v7864
  %v7997 = vsel %vm2990, %v7981, %v7866
  %v7998 = vsel %vm2990, %v7982, %v7868
  %v7999 = vsel %vm2990, %v7983, %v7870
  %v8000 = vsel %vm2990, %v7984, %v7872
  %v8001 = vsel %vm2990, %v7985, %v7874
  %v8002 = vsel %vm2990, %v7986, %v7872
  %v8003 = vsel %vm2990, %v7987, %v7876
  %v8004 = vsel %vm2990, %v7988, %v7878
  %v8005 = vsel %vm2990, %v7989, %v7880
  %v8006 = vsel %vm2990, %v7990, %v7882
  %v8007 = vsel %vm2990, %v7991, %v7884
  %v8008 = vsel %vm2990, %v7992, %v7886
  %v8009 = vsel %vm2990, %v7993, %v7888
  %v8010 = vsel %vm2990, %v7994, %v7886
  %v8011 = vld [vmem:[%s8] sm:$0xff]
  %v8012 = vld [vmem:[%s8 + $0x8] sm:$0xff]
  %v8013 = vld [vmem:[%s8 + $0x10] sm:$0xff]
  %v8014 = vld [vmem:[%s8 + $0x18] sm:$0xff]
  %v8015 = vld [vmem:[%s8 + $0x20] sm:$0xff]
  %v8016 = vld [vmem:[%s8 + $0x28] sm:$0xff]
  %v8017 = vld [vmem:[%s8 + $0x30] sm:$0xff]
  %v8018 = vld [vmem:[%s8 + $0x38] sm:$0xff]
  %v8019 = vld [vmem:[%s8 + $0x40] sm:$0xff]
  %v8020 = vld [vmem:[%s8 + $0x48] sm:$0xff]
  %v8021 = vld [vmem:[%s8 + $0x50] sm:$0xff]
  %v8022 = vld [vmem:[%s8 + $0x58] sm:$0xff]
  %v8023 = vld [vmem:[%s8 + $0x60] sm:$0xff]
  %v8024 = vld [vmem:[%s8 + $0x68] sm:$0xff]
  %v8025 = vld [vmem:[%s8 + $0x70] sm:$0xff]
  %v8026 = vld [vmem:[%s8 + $0x78] sm:$0xff]
  %v8027 = vld [vmem:[%s8 + $0x80] sm:$0xff]
  %v8028 = vld [vmem:[%s8 + $0x88] sm:$0xff]
  %v8029 = vsel %vm123, %v7577, 0
  %v8031 = vsel %vm123, %v7583, 0
  %v8033 = vsel %vm123, %v7586, 0
  %v8035 = vsel %vm123, %v7589, 0
  %v8037 = vsel %vm123, %v7592, 0
  %v8039 = vsel %vm123, %v7595, 0
  %v8041 = vsel %vm123, %v7767, 0
  %v8043 = vsel %vm123, %v7598, 0
  %v8045 = vsel %vm123, %v7604, 0
  %v8047 = vsel %vm123, %v7607, 0
  %v8049 = vsel %vm123, %v7610, 0
  %v8051 = vsel %vm123, %v7613, 0
  %v8053 = vsel %vm123, %v7616, 0
  %v8055 = vsel %vm123, %v7770, 0
  %8057 = vmatpush.msra.mxu0 %v8026
  %8058 = vmatpush.msra.mxu0 %v8025
  %8059 = vmatpush.msra.mxu0 %v8024
  %8060 = vmatpush.msra.mxu0 %v8023
  %8061 = vmatpush.msra.mxu0 %v8022
  %8062 = vmatpush.msra.mxu0 %v8021
  %8063 = vmatpush.msra.mxu0 %v8020
  %8064 = vmatpush.msra.mxu0 %v8019
  %8065 = vmatpush.msra.mxu0 %v8018
  %8066 = vmatpush.msra.mxu0 %v8017
  %8067 = vmatpush.msra.mxu0 %v8016
  %8068 = vmatpush.msra.mxu0 %v8015
  %8069 = vmatpush.msra.mxu0 %v8014
  %8070 = vmatpush.msra.mxu0 %v8013
  %8071 = vmatpush.msra.mxu0 %v8012
  %8072 = vmatpush.msra.mxu0 %v8011
  %8073 = vmatmul.f32.gmra.mxu0 %v7995
  %v8074 = vpop.f32.mrf.mxu0
  %v8075 = vadd.f32 0.0, %v8074
  %8076 = vmatmul.f32.gmra.mxu0 %v7996
  %v8077 = vpop.f32.mrf.mxu0
  %v8078 = vadd.f32 0.0, %v8077
  %8079 = vmatmul.f32.gmra.mxu0 %v7997
  %v8080 = vpop.f32.mrf.mxu0
  %v8081 = vadd.f32 0.0, %v8080
  %8082 = vmatmul.f32.gmra.mxu0 %v7998
  %v8083 = vpop.f32.mrf.mxu0
  %v8084 = vadd.f32 0.0, %v8083
  %8085 = vmatmul.f32.gmra.mxu0 %v7999
  %v8086 = vpop.f32.mrf.mxu0
  %v8087 = vadd.f32 0.0, %v8086
  %8088 = vmatmul.f32.gmra.mxu0 %v8000
  %v8089 = vpop.f32.mrf.mxu0
  %v8090 = vadd.f32 0.0, %v8089
  %8091 = vmatmul.f32.gmra.mxu0 %v8001
  %v8092 = vpop.f32.mrf.mxu0
  %v8093 = vadd.f32 0.0, %v8092
  %8094 = vmatmul.f32.gmra.mxu0 %v8002
  %v8095 = vpop.f32.mrf.mxu0
  %v8096 = vadd.f32 0.0, %v8095
  %8097 = vmatmul.f32.gmra.mxu0 %v8003
  %v8098 = vpop.f32.mrf.mxu0
  %v8099 = vadd.f32 0.0, %v8098
  %8100 = vmatmul.f32.gmra.mxu0 %v8004
  %v8101 = vpop.f32.mrf.mxu0
  %v8102 = vadd.f32 0.0, %v8101
  %8103 = vmatmul.f32.gmra.mxu0 %v8005
  %v8104 = vpop.f32.mrf.mxu0
  %v8105 = vadd.f32 0.0, %v8104
  %8106 = vmatmul.f32.gmra.mxu0 %v8006
  %v8107 = vpop.f32.mrf.mxu0
  %v8108 = vadd.f32 0.0, %v8107
  %8109 = vmatmul.f32.gmra.mxu0 %v8007
  %v8110 = vpop.f32.mrf.mxu0
  %v8111 = vadd.f32 0.0, %v8110
  %8112 = vmatmul.f32.gmra.mxu0 %v8008
  %v8113 = vpop.f32.mrf.mxu0
  %v8114 = vadd.f32 0.0, %v8113
  %8115 = vmatmul.f32.gmra.mxu0 %v8009
  %v8116 = vpop.f32.mrf.mxu0
  %v8117 = vadd.f32 0.0, %v8116
  %8118 = vmatmul.f32.gmra.mxu0 %v8010
  %v8119 = vpop.f32.mrf.mxu0
  %v8120 = vadd.f32 0.0, %v8119
  %8121 = vdwg.mxu0
  %8122 = vmatpush.msra.mxu0 0.0
  %8123 = vmatpush.msra.mxu0 0.0
  %8124 = vmatpush.msra.mxu0 0.0
  %8125 = vmatpush.msra.mxu0 0.0
  %8126 = vmatpush.msra.mxu0 0.0
  %8127 = vmatpush.msra.mxu0 0.0
  %8128 = vmatpush.msra.mxu0 0.0
  %8129 = vmatpush.msra.mxu0 0.0
  %8130 = vmatpush.msra.mxu0 0.0
  %8131 = vmatpush.msra.mxu0 0.0
  %8132 = vmatpush.msra.mxu0 0.0
  %8133 = vmatpush.msra.mxu0 0.0
  %8134 = vmatpush.msra.mxu0 0.0
  %8135 = vmatpush.msra.mxu0 0.0
  %8136 = vmatpush.msra.mxu0 %v8028
  %8137 = vmatpush.msra.mxu0 %v8027
  %8138 = vmatmul.f32.gmra.mxu0 %v8029
  %v8139 = vpop.f32.mrf.mxu0
  %v8140 = vadd.f32 %v8075, %v8139
  %8141 = vmatmul.f32.gmra.mxu0 %v8031
  %v8142 = vpop.f32.mrf.mxu0
  %v8143 = vadd.f32 %v8078, %v8142
  %8144 = vmatmul.f32.gmra.mxu0 %v8033
  %v8145 = vpop.f32.mrf.mxu0
  %v8146 = vadd.f32 %v8081, %v8145
  %8147 = vmatmul.f32.gmra.mxu0 %v8035
  %v8148 = vpop.f32.mrf.mxu0
  %v8149 = vadd.f32 %v8084, %v8148
  %8150 = vmatmul.f32.gmra.mxu0 %v8037
  %v8151 = vpop.f32.mrf.mxu0
  %v8152 = vadd.f32 %v8087, %v8151
  %8153 = vmatmul.f32.gmra.mxu0 %v8039
  %v8154 = vpop.f32.mrf.mxu0
  %v8155 = vadd.f32 %v8090, %v8154
  %8156 = vmatmul.f32.gmra.mxu0 %v8041
  %v8157 = vpop.f32.mrf.mxu0
  %v8158 = vadd.f32 %v8093, %v8157
  %8159 = vmatmul.f32.gmra.mxu0 %v8039
  %v8160 = vpop.f32.mrf.mxu0
  %v8161 = vadd.f32 %v8096, %v8160
  %8162 = vmatmul.f32.gmra.mxu0 %v8043
  %v8163 = vpop.f32.mrf.mxu0
  %v8164 = vadd.f32 %v8099, %v8163
  %8165 = vmatmul.f32.gmra.mxu0 %v8045
  %v8166 = vpop.f32.mrf.mxu0
  %v8167 = vadd.f32 %v8102, %v8166
  %8168 = vmatmul.f32.gmra.mxu0 %v8047
  %v8169 = vpop.f32.mrf.mxu0
  %v8170 = vadd.f32 %v8105, %v8169
  %8171 = vmatmul.f32.gmra.mxu0 %v8049
  %v8172 = vpop.f32.mrf.mxu0
  %v8173 = vadd.f32 %v8108, %v8172
  %8174 = vmatmul.f32.gmra.mxu0 %v8051
  %v8175 = vpop.f32.mrf.mxu0
  %v8176 = vadd.f32 %v8111, %v8175
  %8177 = vmatmul.f32.gmra.mxu0 %v8053
  %v8178 = vpop.f32.mrf.mxu0
  %v8179 = vadd.f32 %v8114, %v8178
  %8180 = vmatmul.f32.gmra.mxu0 %v8055
  %v8181 = vpop.f32.mrf.mxu0
  %v8182 = vadd.f32 %v8117, %v8181
  %8183 = vmatmul.f32.gmra.mxu0 %v8053
  %v8184 = vpop.f32.mrf.mxu0
  %v8185 = vadd.f32 %v8120, %v8184
  %8186 = vdwg.mxu0
  %v8187 = vld [vmem:[%s15] sm:$0x1]
  %v8188 = vld [vmem:[%s16] sm:$0x1]
  %v8189 = vsel %vm123, %v8140, 0.0
  %v8190 = vsel %vm123, %v8143, 0.0
  %v8191 = vadd.f32 %v8189, %v8190
  %v8192 = vsel %vm123, %v8146, 0.0
  %v8193 = vadd.f32 %v8191, %v8192
  %v8194 = vsel %vm123, %v8149, 0.0
  %v8195 = vadd.f32 %v8193, %v8194
  %v8196 = vsel %vm123, %v8152, 0.0
  %v8197 = vadd.f32 %v8195, %v8196
  %v8198 = vsel %vm123, %v8155, 0.0
  %v8199 = vadd.f32 %v8197, %v8198
  %v8200 = vsel %vm123, %v8158, 0.0
  %v8201 = vadd.f32 %v8199, %v8200
  %v8202 = vsel %vm123, %v8161, 0.0
  %v8203 = vadd.f32 %v8201, %v8202
  %v8204 = vsel %vm123, %v8164, 0.0
  %v8205 = vadd.f32 %v8203, %v8204
  %v8206 = vsel %vm123, %v8167, 0.0
  %v8207 = vadd.f32 %v8205, %v8206
  %v8208 = vsel %vm123, %v8170, 0.0
  %v8209 = vadd.f32 %v8207, %v8208
  %v8210 = vsel %vm123, %v8173, 0.0
  %v8211 = vadd.f32 %v8209, %v8210
  %v8212 = vsel %vm123, %v8176, 0.0
  %v8213 = vadd.f32 %v8211, %v8212
  %v8214 = vsel %vm123, %v8179, 0.0
  %v8215 = vadd.f32 %v8213, %v8214
  %v8216 = vsel %vm123, %v8182, 0.0
  %v8217 = vadd.f32 %v8215, %v8216
  %v8218 = vsel %vm123, %v8185, 0.0
  %v8219 = vadd.f32 %v8217, %v8218
  %v8220 = vrot.slane %v8219, 4
  %v8221 = vadd.f32 %v8219, %v8220
  %v8222 = vrot.slane %v8221, 2
  %v8223 = vadd.f32 %v8221, %v8222
  %v8224 = vrot.slane %v8223, 1
  %v8225 = vadd.f32 %v8223, %v8224
  %v8226 = vmul.f32 %v8225, %v7134
  %v8227 = vsub.f32 %v8140, %v8226
  %v8228 = vsub.f32 %v8143, %v8226
  %v8229 = vsub.f32 %v8146, %v8226
  %v8230 = vsub.f32 %v8149, %v8226
  %v8231 = vsub.f32 %v8152, %v8226
  %v8232 = vsub.f32 %v8155, %v8226
  %v8233 = vsub.f32 %v8158, %v8226
  %v8234 = vsub.f32 %v8161, %v8226
  %v8235 = vsub.f32 %v8164, %v8226
  %v8236 = vsub.f32 %v8167, %v8226
  %v8237 = vsub.f32 %v8170, %v8226
  %v8238 = vsub.f32 %v8173, %v8226
  %v8239 = vsub.f32 %v8176, %v8226
  %v8240 = vsub.f32 %v8179, %v8226
  %v8241 = vsub.f32 %v8182, %v8226
  %v8242 = vsub.f32 %v8185, %v8226
  %v8243 = vmul.f32 %v8227, %v8227
  %v8244 = vmul.f32 %v8228, %v8228
  %v8245 = vmul.f32 %v8229, %v8229
  %v8246 = vmul.f32 %v8230, %v8230
  %v8247 = vmul.f32 %v8231, %v8231
  %v8248 = vmul.f32 %v8232, %v8232
  %v8249 = vmul.f32 %v8233, %v8233
  %v8250 = vmul.f32 %v8234, %v8234
  %v8251 = vmul.f32 %v8235, %v8235
  %v8252 = vmul.f32 %v8236, %v8236
  %v8253 = vmul.f32 %v8237, %v8237
  %v8254 = vmul.f32 %v8238, %v8238
  %v8255 = vmul.f32 %v8239, %v8239
  %v8256 = vmul.f32 %v8240, %v8240
  %v8257 = vmul.f32 %v8241, %v8241
  %v8258 = vmul.f32 %v8242, %v8242
  %v8259 = vsel %vm123, %v8243, 0.0
  %v8260 = vsel %vm123, %v8244, 0.0
  %v8261 = vadd.f32 %v8259, %v8260
  %v8262 = vsel %vm123, %v8245, 0.0
  %v8263 = vadd.f32 %v8261, %v8262
  %v8264 = vsel %vm123, %v8246, 0.0
  %v8265 = vadd.f32 %v8263, %v8264
  %v8266 = vsel %vm123, %v8247, 0.0
  %v8267 = vadd.f32 %v8265, %v8266
  %v8268 = vsel %vm123, %v8248, 0.0
  %v8269 = vadd.f32 %v8267, %v8268
  %v8270 = vsel %vm123, %v8249, 0.0
  %v8271 = vadd.f32 %v8269, %v8270
  %v8272 = vsel %vm123, %v8250, 0.0
  %v8273 = vadd.f32 %v8271, %v8272
  %v8274 = vsel %vm123, %v8251, 0.0
  %v8275 = vadd.f32 %v8273, %v8274
  %v8276 = vsel %vm123, %v8252, 0.0
  %v8277 = vadd.f32 %v8275, %v8276
  %v8278 = vsel %vm123, %v8253, 0.0
  %v8279 = vadd.f32 %v8277, %v8278
  %v8280 = vsel %vm123, %v8254, 0.0
  %v8281 = vadd.f32 %v8279, %v8280
  %v8282 = vsel %vm123, %v8255, 0.0
  %v8283 = vadd.f32 %v8281, %v8282
  %v8284 = vsel %vm123, %v8256, 0.0
  %v8285 = vadd.f32 %v8283, %v8284
  %v8286 = vsel %vm123, %v8257, 0.0
  %v8287 = vadd.f32 %v8285, %v8286
  %v8288 = vsel %vm123, %v8258, 0.0
  %v8289 = vadd.f32 %v8287, %v8288
  %v8290 = vrot.slane %v8289, 4
  %v8291 = vadd.f32 %v8289, %v8290
  %v8292 = vrot.slane %v8291, 2
  %v8293 = vadd.f32 %v8291, %v8292
  %v8294 = vrot.slane %v8293, 1
  %v8295 = vadd.f32 %v8293, %v8294
  %v8296 = vmul.f32 %v8295, %v7134
  %v8297 = vadd.f32 %v8296, 1e-05
  %v8298 = vrsqrt.pop %v8297
  %v8299 = vmul.f32 %v8298, %v8297
  %v8300 = vmul.f32 %v8299, %v8298
  %v8301 = vmul.f32 0.5, %v8300
  %v8302 = vsub.f32 1.5, %v8301
  %v8303 = vmul.f32 %v8298, %v8302
  %vm8304 = vweird.f32 %v8297
  %vm8305 = vweird.f32 %v8298
  %vm8306 = vmor %vm8304, %vm8305
  %v8307 = vsel %vm8306, %v8298, %v8303
  %v8308 = vmul.f32 %v8227, %v8307
  %v8309 = vmul.f32 %v8228, %v8307
  %v8310 = vmul.f32 %v8229, %v8307
  %v8311 = vmul.f32 %v8230, %v8307
  %v8312 = vmul.f32 %v8231, %v8307
  %v8313 = vmul.f32 %v8232, %v8307
  %v8314 = vmul.f32 %v8233, %v8307
  %v8315 = vmul.f32 %v8234, %v8307
  %v8316 = vmul.f32 %v8235, %v8307
  %v8317 = vmul.f32 %v8236, %v8307
  %v8318 = vmul.f32 %v8237, %v8307
  %v8319 = vmul.f32 %v8238, %v8307
  %v8320 = vmul.f32 %v8239, %v8307
  %v8321 = vmul.f32 %v8240, %v8307
  %v8322 = vmul.f32 %v8241, %v8307
  %v8323 = vmul.f32 %v8242, %v8307
  %v8325 = vperm.slane %v8187, 0
  %v8327 = vmul.f32 %v8308, %v8325
  %v8328 = vmul.f32 %v8309, %v8325
  %v8329 = vmul.f32 %v8310, %v8325
  %v8330 = vmul.f32 %v8311, %v8325
  %v8331 = vmul.f32 %v8312, %v8325
  %v8332 = vmul.f32 %v8313, %v8325
  %v8333 = vmul.f32 %v8314, %v8325
  %v8334 = vmul.f32 %v8315, %v8325
  %v8335 = vmul.f32 %v8316, %v8325
  %v8336 = vmul.f32 %v8317, %v8325
  %v8337 = vmul.f32 %v8318, %v8325
  %v8338 = vmul.f32 %v8319, %v8325
  %v8339 = vmul.f32 %v8320, %v8325
  %v8340 = vmul.f32 %v8321, %v8325
  %v8341 = vmul.f32 %v8322, %v8325
  %v8342 = vmul.f32 %v8323, %v8325
  %v8344 = vperm.slane %v8188, 0
  %v8346 = vadd.f32 %v8327, %v8344
  %v8347 = vadd.f32 %v8328, %v8344
  %v8348 = vadd.f32 %v8329, %v8344
  %v8349 = vadd.f32 %v8330, %v8344
  %v8350 = vadd.f32 %v8331, %v8344
  %v8351 = vadd.f32 %v8332, %v8344
  %v8352 = vadd.f32 %v8333, %v8344
  %v8353 = vadd.f32 %v8334, %v8344
  %v8354 = vadd.f32 %v8335, %v8344
  %v8355 = vadd.f32 %v8336, %v8344
  %v8356 = vadd.f32 %v8337, %v8344
  %v8357 = vadd.f32 %v8338, %v8344
  %v8358 = vadd.f32 %v8339, %v8344
  %v8359 = vadd.f32 %v8340, %v8344
  %v8360 = vadd.f32 %v8341, %v8344
  %v8361 = vadd.f32 %v8342, %v8344
  %vm8362 = vcmp.gt.f32.partialorder %v8346, 0.0
  %vm8363 = vcmp.gt.f32.partialorder %v8347, 0.0
  %vm8364 = vcmp.gt.f32.partialorder %v8348, 0.0
  %vm8365 = vcmp.gt.f32.partialorder %v8349, 0.0
  %vm8366 = vcmp.gt.f32.partialorder %v8350, 0.0
  %vm8367 = vcmp.gt.f32.partialorder %v8351, 0.0
  %vm8368 = vcmp.gt.f32.partialorder %v8352, 0.0
  %vm8369 = vcmp.gt.f32.partialorder %v8353, 0.0
  %vm8370 = vcmp.gt.f32.partialorder %v8354, 0.0
  %vm8371 = vcmp.gt.f32.partialorder %v8355, 0.0
  %vm8372 = vcmp.gt.f32.partialorder %v8356, 0.0
  %vm8373 = vcmp.gt.f32.partialorder %v8357, 0.0
  %vm8374 = vcmp.gt.f32.partialorder %v8358, 0.0
  %vm8375 = vcmp.gt.f32.partialorder %v8359, 0.0
  %vm8376 = vcmp.gt.f32.partialorder %v8360, 0.0
  %vm8377 = vcmp.gt.f32.partialorder %v8361, 0.0
  %v8378 = vmul.f32 %v8346, 0.2
  %v8379 = vmul.f32 %v8347, 0.2
  %v8380 = vmul.f32 %v8348, 0.2
  %v8381 = vmul.f32 %v8349, 0.2
  %v8382 = vmul.f32 %v8350, 0.2
  %v8383 = vmul.f32 %v8351, 0.2
  %v8384 = vmul.f32 %v8352, 0.2
  %v8385 = vmul.f32 %v8353, 0.2
  %v8386 = vmul.f32 %v8354, 0.2
  %v8387 = vmul.f32 %v8355, 0.2
  %v8388 = vmul.f32 %v8356, 0.2
  %v8389 = vmul.f32 %v8357, 0.2
  %v8390 = vmul.f32 %v8358, 0.2
  %v8391 = vmul.f32 %v8359, 0.2
  %v8392 = vmul.f32 %v8360, 0.2
  %v8393 = vmul.f32 %v8361, 0.2
  %v8394 = vsel %vm8362, %v8346, %v8378
  %v8395 = vsel %vm8363, %v8347, %v8379
  %v8396 = vsel %vm8364, %v8348, %v8380
  %v8397 = vsel %vm8365, %v8349, %v8381
  %v8398 = vsel %vm8366, %v8350, %v8382
  %v8399 = vsel %vm8367, %v8351, %v8383
  %v8400 = vsel %vm8368, %v8352, %v8384
  %v8401 = vsel %vm8369, %v8353, %v8385
  %v8402 = vsel %vm8370, %v8354, %v8386
  %v8403 = vsel %vm8371, %v8355, %v8387
  %v8404 = vsel %vm8372, %v8356, %v8388
  %v8405 = vsel %vm8373, %v8357, %v8389
  %v8406 = vsel %vm8374, %v8358, %v8390
  %v8407 = vsel %vm8375, %v8359, %v8391
  %v8408 = vsel %vm8376, %v8360, %v8392
  %v8409 = vsel %vm8377, %v8361, %v8393
  %8410 = vxpose.xlu0.b32.start [1/16] %v6226, 128
  %8411 = vxpose.xlu0.b32.cont [2/16] %v6227, 128
  %8412 = vxpose.xlu0.b32.cont [3/16] %v6228, 128
  %8413 = vxpose.xlu0.b32.cont [4/16] %v6229, 128
  %8414 = vxpose.xlu0.b32.cont [5/16] %v6230, 128
  %8415 = vxpose.xlu0.b32.cont [6/16] %v6231, 128
  %8416 = vxpose.xlu0.b32.cont [7/16] %v6232, 128
  %8417 = vxpose.xlu0.b32.cont [8/16] %v6233, 128
  %8418 = vxpose.xlu0.b32.cont [9/16] %v6234, 128
  %8419 = vxpose.xlu0.b32.cont [10/16] %v6235, 128
  %8420 = vxpose.xlu0.b32.cont [11/16] %v6236, 128
  %8421 = vxpose.xlu0.b32.cont [12/16] %v6237, 128
  %8422 = vxpose.xlu0.b32.cont [13/16] %v6238, 128
  %8423 = vxpose.xlu0.b32.cont [14/16] %v6239, 128
  %8424 = vxpose.xlu0.b32.cont [15/16] %v6240, 128
  %8425 = vxpose.xlu0.b32.end [16/16] %v6241, 128
  %v8426 = vpop.trf.xlu0
  %v8427 = vpop.trf.xlu0
  %v8428 = vpop.trf.xlu0
  %v8429 = vpop.trf.xlu0
  %v8430 = vpop.trf.xlu0
  %v8431 = vpop.trf.xlu0
  %v8432 = vpop.trf.xlu0
  %v8433 = vpop.trf.xlu0
  %v8434 = vpop.trf.xlu0
  %v8435 = vpop.trf.xlu0
  %v8436 = vpop.trf.xlu0
  %v8437 = vpop.trf.xlu0
  %v8438 = vpop.trf.xlu0
  %v8439 = vpop.trf.xlu0
  %v8440 = vpop.trf.xlu0
  %v8441 = vpop.trf.xlu0
  %8442 = vxpose.xlu0.b32.start [1/16] %v6242, 128
  %8443 = vxpose.xlu0.b32.cont [2/16] %v6243, 128
  %8444 = vxpose.xlu0.b32.cont [3/16] %v6244, 128
  %8445 = vxpose.xlu0.b32.cont [4/16] %v6245, 128
  %8446 = vxpose.xlu0.b32.cont [5/16] %v6246, 128
  %8447 = vxpose.xlu0.b32.cont [6/16] %v6247, 128
  %8448 = vxpose.xlu0.b32.cont [7/16] %v6248, 128
  %8449 = vxpose.xlu0.b32.cont [8/16] %v6249, 128
  %8450 = vxpose.xlu0.b32.cont [9/16] %v6250, 128
  %8451 = vxpose.xlu0.b32.cont [10/16] %v6251, 128
  %8452 = vxpose.xlu0.b32.cont [11/16] %v6252, 128
  %8453 = vxpose.xlu0.b32.cont [12/16] %v6253, 128
  %8454 = vxpose.xlu0.b32.cont [13/16] %v6254, 128
  %8455 = vxpose.xlu0.b32.cont [14/16] %v6255, 128
  %8456 = vxpose.xlu0.b32.cont [15/16] %v6256, 128
  %8457 = vxpose.xlu0.b32.end [16/16] %v6257, 128
  %v8458 = vpop.trf.xlu0
  %v8459 = vpop.trf.xlu0
  %v8460 = vpop.trf.xlu0
  %v8461 = vpop.trf.xlu0
  %v8462 = vpop.trf.xlu0
  %v8463 = vpop.trf.xlu0
  %v8464 = vpop.trf.xlu0
  %v8465 = vpop.trf.xlu0
  %v8466 = vpop.trf.xlu0
  %v8467 = vpop.trf.xlu0
  %v8468 = vpop.trf.xlu0
  %v8469 = vpop.trf.xlu0
  %v8470 = vpop.trf.xlu0
  %v8471 = vpop.trf.xlu0
  %v8472 = vpop.trf.xlu0
  %v8473 = vpop.trf.xlu0
  %8474 = vst [vmem:[%s17] sm:$0xff] %v8426
  %8475 = vst [vmem:[%s17 + $0x8] sm:$0xff] %v8458
  %8476 = vxpose.xlu0.b32.start [1/16] %v7025, 128
  %8477 = vxpose.xlu0.b32.cont [2/16] %v7026, 128
  %8478 = vxpose.xlu0.b32.cont [3/16] %v7027, 128
  %8479 = vxpose.xlu0.b32.cont [4/16] %v7028, 128
  %8480 = vxpose.xlu0.b32.cont [5/16] %v7029, 128
  %8481 = vxpose.xlu0.b32.cont [6/16] %v7030, 128
  %8482 = vxpose.xlu0.b32.cont [7/16] %v7031, 128
  %8483 = vxpose.xlu0.b32.cont [8/16] %v7032, 128
  %8484 = vxpose.xlu0.b32.cont [9/16] %v7033, 128
  %8485 = vxpose.xlu0.b32.cont [10/16] %v7034, 128
  %8486 = vxpose.xlu0.b32.cont [11/16] %v7035, 128
  %8487 = vxpose.xlu0.b32.cont [12/16] %v7036, 128
  %8488 = vxpose.xlu0.b32.cont [13/16] %v7037, 128
  %8489 = vxpose.xlu0.b32.cont [14/16] %v7038, 128
  %8490 = vxpose.xlu0.b32.cont [15/16] %v7039, 128
  %8491 = vxpose.xlu0.b32.end [16/16] %v7040, 128
  %v8492 = vpop.trf.xlu0
  %v8493 = vpop.trf.xlu0
  %v8494 = vpop.trf.xlu0
  %v8495 = vpop.trf.xlu0
  %v8496 = vpop.trf.xlu0
  %v8497 = vpop.trf.xlu0
  %v8498 = vpop.trf.xlu0
  %v8499 = vpop.trf.xlu0
  %v8500 = vpop.trf.xlu0
  %v8501 = vpop.trf.xlu0
  %v8502 = vpop.trf.xlu0
  %v8503 = vpop.trf.xlu0
  %v8504 = vpop.trf.xlu0
  %v8505 = vpop.trf.xlu0
  %v8506 = vpop.trf.xlu0
  %v8507 = vpop.trf.xlu0
  %8508 = vxpose.xlu0.b32.start [1/16] %v7041, 128
  %8509 = vxpose.xlu0.b32.cont [2/16] %v7042, 128
  %8510 = vxpose.xlu0.b32.cont [3/16] %v7043, 128
  %8511 = vxpose.xlu0.b32.cont [4/16] %v7044, 128
  %8512 = vxpose.xlu0.b32.cont [5/16] %v7045, 128
  %8513 = vxpose.xlu0.b32.cont [6/16] %v7046, 128
  %8514 = vxpose.xlu0.b32.cont [7/16] %v7047, 128
  %8515 = vxpose.xlu0.b32.cont [8/16] %v7048, 128
  %8516 = vxpose.xlu0.b32.cont [9/16] %v7049, 128
  %8517 = vxpose.xlu0.b32.cont [10/16] %v7050, 128
  %8518 = vxpose.xlu0.b32.cont [11/16] %v7051, 128
  %8519 = vxpose.xlu0.b32.cont [12/16] %v7052, 128
  %8520 = vxpose.xlu0.b32.cont [13/16] %v7053, 128
  %8521 = vxpose.xlu0.b32.cont [14/16] %v7054, 128
  %8522 = vxpose.xlu0.b32.cont [15/16] %v7055, 128
  %8523 = vxpose.xlu0.b32.end [16/16] %v7056, 128
  %v8524 = vpop.trf.xlu0
  %v8525 = vpop.trf.xlu0
  %v8526 = vpop.trf.xlu0
  %v8527 = vpop.trf.xlu0
  %v8528 = vpop.trf.xlu0
  %v8529 = vpop.trf.xlu0
  %v8530 = vpop.trf.xlu0
  %v8531 = vpop.trf.xlu0
  %v8532 = vpop.trf.xlu0
  %v8533 = vpop.trf.xlu0
  %v8534 = vpop.trf.xlu0
  %v8535 = vpop.trf.xlu0
  %v8536 = vpop.trf.xlu0
  %v8537 = vpop.trf.xlu0
  %v8538 = vpop.trf.xlu0
  %v8539 = vpop.trf.xlu0
  %8540 = vst [vmem:[%s19] sm:$0xff] %v8492
  %8541 = vst [vmem:[%s19 + $0x8] sm:$0xff] %v8524
  %8542 = vxpose.xlu0.b32.start [1/16] %v8394, 128
  %8543 = vxpose.xlu0.b32.cont [2/16] %v8395, 128
  %8544 = vxpose.xlu0.b32.cont [3/16] %v8396, 128
  %8545 = vxpose.xlu0.b32.cont [4/16] %v8397, 128
  %8546 = vxpose.xlu0.b32.cont [5/16] %v8398, 128
  %8547 = vxpose.xlu0.b32.cont [6/16] %v8399, 128
  %8548 = vxpose.xlu0.b32.cont [7/16] %v8400, 128
  %8549 = vxpose.xlu0.b32.cont [8/16] %v8401, 128
  %8550 = vxpose.xlu0.b32.cont [9/16] 0.0, 128
  %8551 = vxpose.xlu0.b32.cont [10/16] 0.0, 128
  %8552 = vxpose.xlu0.b32.cont [11/16] 0.0, 128
  %8553 = vxpose.xlu0.b32.cont [12/16] 0.0, 128
  %8554 = vxpose.xlu0.b32.cont [13/16] 0.0, 128
  %8555 = vxpose.xlu0.b32.cont [14/16] 0.0, 128
  %8556 = vxpose.xlu0.b32.cont [15/16] 0.0, 128
  %8557 = vxpose.xlu0.b32.end [16/16] 0.0, 128
  %v8558 = vpop.trf.xlu0
  %v8559 = vpop.trf.xlu0
  %v8560 = vpop.trf.xlu0
  %v8561 = vpop.trf.xlu0
  %v8562 = vpop.trf.xlu0
  %v8563 = vpop.trf.xlu0
  %v8564 = vpop.trf.xlu0
  %v8565 = vpop.trf.xlu0
  %v8566 = vpop.trf.xlu0
  %v8567 = vpop.trf.xlu0
  %v8568 = vpop.trf.xlu0
  %v8569 = vpop.trf.xlu0
  %v8570 = vpop.trf.xlu0
  %v8571 = vpop.trf.xlu0
  %v8572 = vpop.trf.xlu0
  %v8573 = vpop.trf.xlu0
  %8574 = vst.msk [vmem:[%s18] sm:$0xff] %vm2795, %v8558
  %8575 = vst.msk [vmem:[%s18 + $0x8] sm:$0xff] %vm2795, %v8559
  %8576 = vxpose.xlu0.b32.start [1/16] %v6258, 128
  %8577 = vxpose.xlu0.b32.cont [2/16] %v6259, 128
  %8578 = vxpose.xlu0.b32.cont [3/16] %v6260, 128
  %8579 = vxpose.xlu0.b32.cont [4/16] %v6261, 128
  %8580 = vxpose.xlu0.b32.cont [5/16] %v6262, 128
  %8581 = vxpose.xlu0.b32.cont [6/16] %v6263, 128
  %8582 = vxpose.xlu0.b32.cont [7/16] %v6264, 128
  %8583 = vxpose.xlu0.b32.cont [8/16] %v6265, 128
  %8584 = vxpose.xlu0.b32.cont [9/16] %v6266, 128
  %8585 = vxpose.xlu0.b32.cont [10/16] %v6267, 128
  %8586 = vxpose.xlu0.b32.cont [11/16] %v6268, 128
  %8587 = vxpose.xlu0.b32.cont [12/16] %v6269, 128
  %8588 = vxpose.xlu0.b32.cont [13/16] %v6270, 128
  %8589 = vxpose.xlu0.b32.cont [14/16] %v6271, 128
  %8590 = vxpose.xlu0.b32.cont [15/16] %v6272, 128
  %8591 = vxpose.xlu0.b32.end [16/16] %v6273, 128
  %v8592 = vpop.trf.xlu0
  %v8593 = vpop.trf.xlu0
  %v8594 = vpop.trf.xlu0
  %v8595 = vpop.trf.xlu0
  %v8596 = vpop.trf.xlu0
  %v8597 = vpop.trf.xlu0
  %v8598 = vpop.trf.xlu0
  %v8599 = vpop.trf.xlu0
  %v8600 = vpop.trf.xlu0
  %v8601 = vpop.trf.xlu0
  %v8602 = vpop.trf.xlu0
  %v8603 = vpop.trf.xlu0
  %v8604 = vpop.trf.xlu0
  %v8605 = vpop.trf.xlu0
  %v8606 = vpop.trf.xlu0
  %v8607 = vpop.trf.xlu0
  %8608 = vxpose.xlu0.b32.start [1/16] %v6274, 128
  %8609 = vxpose.xlu0.b32.cont [2/16] %v6275, 128
  %8610 = vxpose.xlu0.b32.cont [3/16] %v6276, 128
  %8611 = vxpose.xlu0.b32.cont [4/16] %v6277, 128
  %8612 = vxpose.xlu0.b32.cont [5/16] %v6278, 128
  %8613 = vxpose.xlu0.b32.cont [6/16] %v6279, 128
  %8614 = vxpose.xlu0.b32.cont [7/16] %v6280, 128
  %8615 = vxpose.xlu0.b32.cont [8/16] %v6281, 128
  %8616 = vxpose.xlu0.b32.cont [9/16] %v6282, 128
  %8617 = vxpose.xlu0.b32.cont [10/16] %v6283, 128
  %8618 = vxpose.xlu0.b32.cont [11/16] %v6284, 128
  %8619 = vxpose.xlu0.b32.cont [12/16] %v6285, 128
  %8620 = vxpose.xlu0.b32.cont [13/16] %v6286, 128
  %8621 = vxpose.xlu0.b32.cont [14/16] %v6287, 128
  %8622 = vxpose.xlu0.b32.cont [15/16] %v6288, 128
  %8623 = vxpose.xlu0.b32.end [16/16] %v6289, 128
  %v8624 = vpop.trf.xlu0
  %v8625 = vpop.trf.xlu0
  %v8626 = vpop.trf.xlu0
  %v8627 = vpop.trf.xlu0
  %v8628 = vpop.trf.xlu0
  %v8629 = vpop.trf.xlu0
  %v8630 = vpop.trf.xlu0
  %v8631 = vpop.trf.xlu0
  %v8632 = vpop.trf.xlu0
  %v8633 = vpop.trf.xlu0
  %v8634 = vpop.trf.xlu0
  %v8635 = vpop.trf.xlu0
  %v8636 = vpop.trf.xlu0
  %v8637 = vpop.trf.xlu0
  %v8638 = vpop.trf.xlu0
  %v8639 = vpop.trf.xlu0
  %s8640 = scalar_lea.vmem %s17, 16
  %8641 = vst [vmem:[%s8640] sm:$0xff] %v8592
  %8642 = vst [vmem:[%s8640 + $0x8] sm:$0xff] %v8624
  %8643 = vxpose.xlu0.b32.start [1/16] %v7057, 128
  %8644 = vxpose.xlu0.b32.cont [2/16] %v7058, 128
  %8645 = vxpose.xlu0.b32.cont [3/16] %v7059, 128
  %8646 = vxpose.xlu0.b32.cont [4/16] %v7060, 128
  %8647 = vxpose.xlu0.b32.cont [5/16] %v7061, 128
  %8648 = vxpose.xlu0.b32.cont [6/16] %v7062, 128
  %8649 = vxpose.xlu0.b32.cont [7/16] %v7063, 128
  %8650 = vxpose.xlu0.b32.cont [8/16] %v7064, 128
  %8651 = vxpose.xlu0.b32.cont [9/16] %v7065, 128
  %8652 = vxpose.xlu0.b32.cont [10/16] %v7066, 128
  %8653 = vxpose.xlu0.b32.cont [11/16] %v7067, 128
  %8654 = vxpose.xlu0.b32.cont [12/16] %v7068, 128
  %8655 = vxpose.xlu0.b32.cont [13/16] %v7069, 128
  %8656 = vxpose.xlu0.b32.cont [14/16] %v7070, 128
  %8657 = vxpose.xlu0.b32.cont [15/16] %v7071, 128
  %8658 = vxpose.xlu0.b32.end [16/16] %v7072, 128
  %v8659 = vpop.trf.xlu0
  %v8660 = vpop.trf.xlu0
  %v8661 = vpop.trf.xlu0
  %v8662 = vpop.trf.xlu0
  %v8663 = vpop.trf.xlu0
  %v8664 = vpop.trf.xlu0
  %v8665 = vpop.trf.xlu0
  %v8666 = vpop.trf.xlu0
  %v8667 = vpop.trf.xlu0
  %v8668 = vpop.trf.xlu0
  %v8669 = vpop.trf.xlu0
  %v8670 = vpop.trf.xlu0
  %v8671 = vpop.trf.xlu0
  %v8672 = vpop.trf.xlu0
  %v8673 = vpop.trf.xlu0
  %v8674 = vpop.trf.xlu0
  %8675 = vxpose.xlu0.b32.start [1/16] %v7073, 128
  %8676 = vxpose.xlu0.b32.cont [2/16] %v7074, 128
  %8677 = vxpose.xlu0.b32.cont [3/16] %v7075, 128
  %8678 = vxpose.xlu0.b32.cont [4/16] %v7076, 128
  %8679 = vxpose.xlu0.b32.cont [5/16] %v7077, 128
  %8680 = vxpose.xlu0.b32.cont [6/16] %v7078, 128
  %8681 = vxpose.xlu0.b32.cont [7/16] %v7079, 128
  %8682 = vxpose.xlu0.b32.cont [8/16] %v7080, 128
  %8683 = vxpose.xlu0.b32.cont [9/16] %v7081, 128
  %8684 = vxpose.xlu0.b32.cont [10/16] %v7082, 128
  %8685 = vxpose.xlu0.b32.cont [11/16] %v7083, 128
  %8686 = vxpose.xlu0.b32.cont [12/16] %v7084, 128
  %8687 = vxpose.xlu0.b32.cont [13/16] %v7085, 128
  %8688 = vxpose.xlu0.b32.cont [14/16] %v7086, 128
  %8689 = vxpose.xlu0.b32.cont [15/16] %v7087, 128
  %8690 = vxpose.xlu0.b32.end [16/16] %v7088, 128
  %v8691 = vpop.trf.xlu0
  %v8692 = vpop.trf.xlu0
  %v8693 = vpop.trf.xlu0
  %v8694 = vpop.trf.xlu0
  %v8695 = vpop.trf.xlu0
  %v8696 = vpop.trf.xlu0
  %v8697 = vpop.trf.xlu0
  %v8698 = vpop.trf.xlu0
  %v8699 = vpop.trf.xlu0
  %v8700 = vpop.trf.xlu0
  %v8701 = vpop.trf.xlu0
  %v8702 = vpop.trf.xlu0
  %v8703 = vpop.trf.xlu0
  %v8704 = vpop.trf.xlu0
  %v8705 = vpop.trf.xlu0
  %v8706 = vpop.trf.xlu0
  %s8707 = scalar_lea.vmem %s19, 16
  %8708 = vst [vmem:[%s8707] sm:$0xff] %v8659
  %8709 = vst [vmem:[%s8707 + $0x8] sm:$0xff] %v8691
  %8710 = vxpose.xlu0.b32.start [1/16] %v8402, 128
  %8711 = vxpose.xlu0.b32.cont [2/16] %v8403, 128
  %8712 = vxpose.xlu0.b32.cont [3/16] %v8404, 128
  %8713 = vxpose.xlu0.b32.cont [4/16] %v8405, 128
  %8714 = vxpose.xlu0.b32.cont [5/16] %v8406, 128
  %8715 = vxpose.xlu0.b32.cont [6/16] %v8407, 128
  %8716 = vxpose.xlu0.b32.cont [7/16] %v8408, 128
  %8717 = vxpose.xlu0.b32.cont [8/16] %v8409, 128
  %8718 = vxpose.xlu0.b32.cont [9/16] 0.0, 128
  %8719 = vxpose.xlu0.b32.cont [10/16] 0.0, 128
  %8720 = vxpose.xlu0.b32.cont [11/16] 0.0, 128
  %8721 = vxpose.xlu0.b32.cont [12/16] 0.0, 128
  %8722 = vxpose.xlu0.b32.cont [13/16] 0.0, 128
  %8723 = vxpose.xlu0.b32.cont [14/16] 0.0, 128
  %8724 = vxpose.xlu0.b32.cont [15/16] 0.0, 128
  %8725 = vxpose.xlu0.b32.end [16/16] 0.0, 128
  %v8726 = vpop.trf.xlu0
  %v8727 = vpop.trf.xlu0
  %v8728 = vpop.trf.xlu0
  %v8729 = vpop.trf.xlu0
  %v8730 = vpop.trf.xlu0
  %v8731 = vpop.trf.xlu0
  %v8732 = vpop.trf.xlu0
  %v8733 = vpop.trf.xlu0
  %v8734 = vpop.trf.xlu0
  %v8735 = vpop.trf.xlu0
  %v8736 = vpop.trf.xlu0
  %v8737 = vpop.trf.xlu0
  %v8738 = vpop.trf.xlu0
  %v8739 = vpop.trf.xlu0
  %v8740 = vpop.trf.xlu0
  %v8741 = vpop.trf.xlu0
  %s8742 = scalar_lea.vmem %s18, 16
  %8743 = vst.msk [vmem:[%s8742] sm:$0xff] %vm2795, %v8726
  %8744 = vst.msk [vmem:[%s8742 + $0x8] sm:$0xff] %vm2795, %v8727
  // Predicated region
  $region70: #{skips_encoder_skipt_forward.1} parent=0 // pred_check
    _
  $region71: #{skips_encoder_skipt_forward.1} parent=0 // pred_check_branch
    %8746 = sbr.rel (0) target = $region73
  $region72: #{skips_encoder_skipt_forward.1} parent=0 // pred_region
    _
  $region73: #{skips_encoder_skipt_forward.1} parent=0 // pred_fallthru
    _
  // Predicated region
  $region74: #{skips_encoder_skipt_forward.1} parent=0 // pred_check
    _
  $region75: #{skips_encoder_skipt_forward.1} parent=0 // pred_check_branch
    %8748 = sbr.rel (0) target = $region77
  $region76: #{skips_encoder_skipt_forward.1} parent=0 // pred_region
    _
  $region77: #{skips_encoder_skipt_forward.1} parent=0 // pred_fallthru
    _
  // Predicated region
  $region78: #{skips_encoder_skipt_forward.1} parent=0 // pred_check
    _
  $region79: #{skips_encoder_skipt_forward.1} parent=0 // pred_check_branch
    %8750 = sbr.rel (0) target = $region81
  $region80: #{skips_encoder_skipt_forward.1} parent=0 // pred_region
    _
  $region81: #{skips_encoder_skipt_forward.1} parent=0 // pred_fallthru
    _
  // Predicated region
  $region82: #{skips_encoder_skipt_forward.1} parent=0 // pred_check
    _
  $region83: #{skips_encoder_skipt_forward.1} parent=0 // pred_check_branch
    %8752 = sbr.rel (0) target = $region85
  $region84: #{skips_encoder_skipt_forward.1} parent=0 // pred_region
    _
  $region85: #{skips_encoder_skipt_forward.1} parent=0 // pred_fallthru
    _
  // Predicated region
  $region86: #{skips_encoder_skipt_forward.1} parent=0 // pred_check
    _
  $region87: #{skips_encoder_skipt_forward.1} parent=0 // pred_check_branch
    %8754 = sbr.rel (0) target = $region89
  $region88: #{skips_encoder_skipt_forward.1} parent=0 // pred_region
    _
  $region89: #{skips_encoder_skipt_forward.1} parent=0 // pred_fallthru
    _
  // Predicated region
  $region90: #{skips_encoder_skipt_forward.1} parent=0 // pred_check
    _
  $region91: #{skips_encoder_skipt_forward.1} parent=0 // pred_check_branch
    %8756 = sbr.rel (0) target = $region93
  $region92: #{skips_encoder_skipt_forward.1} parent=0 // pred_region
    _
  $region93: #{skips_encoder_skipt_forward.1} parent=0 // pred_fallthru
    _

</llo_original>
